<compile_context>
chip_gen: v7x
topology: tpu7x:2x2x1
jax: 0.10.0
libtpu: 0.0.40
codegen_flags: <defaults>
</compile_context>

<pallas_src>
import jax
import jax.numpy as jnp
from jax.experimental import pallas as pl
from jax.experimental.pallas import tpu as pltpu


# ----------------------------------------------------------------------------
# Model configuration (small shapes consistent with the PyTorch module)
# ----------------------------------------------------------------------------
INPUT_DIM = 32
LABEL_DIM = 8
NUM_FILTERS = [32, 16, 8]
OUTPUT_DIM = 3
K = 4                       # deconv kernel size
EPS = 1e-5                  # BatchNorm2d default eps

COMPUTE_DTYPE = jnp.bfloat16   # MXU operand dtype; epilogues stay float32.
OUT_CH_PAD = 4                 # pad output channels 3 -> 4 (lane-dense output)

# (oy, py, kh): output fine row 2*y + py of a k=4,s=2,p=1 ConvTranspose sums
# input row y + oy with kernel row kh.  Order = stacking order of the packed
# weight K-blocks.
_ROW_TAPS = ((-1, 0, 3), (0, 0, 1), (0, 1, 2), (1, 1, 0))


# ----------------------------------------------------------------------------
# One-time weight packing (prepare step)
# ----------------------------------------------------------------------------
def _pack_input_stage(w1, w2):
    """Block-diagonal weight for the fused [deconv(z) || deconv(c)] stage.

    w1: (Din_z, Ch, 4, 4), w2: (Din_c, Ch, 4, 4) in PyTorch ConvTranspose2d
    layout.  Columns are ordered (kh, kw, co) with co minor, so each 128-wide
    column block is one 4x4-image row in layout R (x, channel).
    """
    din1, ch1 = w1.shape[0], w1.shape[1]
    din2, ch2 = w2.shape[0], w2.shape[1]
    wt1 = jnp.transpose(w1, (2, 3, 0, 1))                       # (4,4,Din1,Ch1)
    wt2 = jnp.transpose(w2, (2, 3, 0, 1))                       # (4,4,Din2,Ch2)
    top = jnp.concatenate([wt1, jnp.zeros((K, K, din1, ch2), w1.dtype)], axis=-1)
    bot = jnp.concatenate([jnp.zeros((K, K, din2, ch1), w2.dtype), wt2], axis=-1)
    wfull = jnp.concatenate([top, bot], axis=2)                 # (4,4,Din,C)
    c_all = ch1 + ch2
    return jnp.transpose(wfull, (2, 0, 1, 3)).reshape(din1 + din2, K * K * c_all)


def _pack_deconv(w, w_in):
    """ConvTranspose2d(k=4, s=2, p=1) weight (Cin, Cout, 4, 4) -> (4*W*Cin, 2*W*Cout).

    Four stacked K-blocks, one per (oy, py) row-tap in _ROW_TAPS order.  Each
    block maps one layout-R input image row (columns (ix, ci)) to one fully
    x-interleaved output image row of phase py (columns (X, co)); the
    x-direction taps/phases of the deconv are folded into the block sparsity,
    so no im2col and no x phase-interleave of activations is ever required.
    """
    cin, cout = w.shape[0], w.shape[1]
    wimg = w_in
    x_out = jnp.arange(2 * wimg)
    xc = x_out // 2
    px = x_out % 2
    ix = jnp.arange(wimg)
    m1 = (ix[:, None] == xc[None, :]).astype(w.dtype)            # tap ix == x
    ix2 = jnp.where(px == 0, xc - 1, xc + 1)                     # neighbouring ix
    m2 = (ix[:, None] == ix2[None, :]).astype(w.dtype)           # (bounds auto-crop)
    kw_a = 1 + px                                                # kw for ix == x
    kw_b = 3 * (1 - px)                                          # kw for neighbour
    blocks = []
    for (_oy, _py, kh) in _ROW_TAPS:
        wa = w[:, :, kh, :][:, :, kw_a]                          # (Cin, Cout, 2W)
        wb = w[:, :, kh, :][:, :, kw_b]
        big = (jnp.einsum('iX,coX->icXo', m1, wa)
               + jnp.einsum('iX,coX->icXo', m2, wb))             # (W, Cin, 2W, Cout)
        blocks.append(big.reshape(wimg * cin, 2 * wimg * cout))
    return jnp.concatenate(blocks, axis=0)


def init_params(key):
    """PyTorch-layout parameters (ConvTranspose2d weights, BN gamma/beta)."""
    def normal(k, shape):
        return 0.02 * jax.random.normal(k, shape, dtype=jnp.float32)

    keys = jax.random.split(key, 8)
    half = NUM_FILTERS[0] // 2
    params = {
        "w1": normal(keys[0], (INPUT_DIM, half, K, K)),
        "g1": jnp.ones((half,), jnp.float32),
        "be1": jnp.zeros((half,), jnp.float32),
        "w2": normal(keys[1], (LABEL_DIM, half, K, K)),
        "g2": jnp.ones((half,), jnp.float32),
        "be2": jnp.zeros((half,), jnp.float32),
        "hidden": [],
        "wo": normal(keys[7], (NUM_FILTERS[-1], OUTPUT_DIM, K, K)),
        "bo": jnp.zeros((OUTPUT_DIM,), jnp.float32),
    }
    # ConvTranspose biases of BN layers are omitted: zero-init in the reference
    # module and exactly cancelled by training-mode batch normalization.
    for i in range(1, len(NUM_FILTERS)):
        w = normal(keys[1 + i], (NUM_FILTERS[i - 1], NUM_FILTERS[i], K, K))
        params["hidden"].append((
            w,
            jnp.ones((NUM_FILTERS[i],), jnp.float32),    # gamma
            jnp.zeros((NUM_FILTERS[i],), jnp.float32),   # beta
        ))
    return params


def pack_params(params):
    """One-time packing of PyTorch-layout weights into MXU-ready matrices."""
    packed = {
        "w0": _pack_input_stage(params["w1"], params["w2"]).astype(COMPUTE_DTYPE),
        "g0": jnp.concatenate([params["g1"], params["g2"]]).reshape(1, -1),
        "b0": jnp.concatenate([params["be1"], params["be2"]]).reshape(1, -1),
        "hidden": [],
    }
    w_img = K
    for (w, g, b) in params["hidden"]:
        packed["hidden"].append((
            _pack_deconv(w, w_img).astype(COMPUTE_DTYPE),
            g.reshape(1, -1),
            b.reshape(1, -1),
        ))
        w_img *= 2
    # Output layer: pad Cout 3 -> 4 so all matmuls/stores are 128 lanes wide.
    wo = jnp.pad(params["wo"], ((0, 0), (0, OUT_CH_PAD - OUTPUT_DIM), (0, 0), (0, 0)))
    packed["wo"] = _pack_deconv(wo, w_img).astype(COMPUTE_DTYPE)
    bo = jnp.pad(params["bo"], (0, OUT_CH_PAD - OUTPUT_DIM))
    packed["bo"] = jnp.tile(bo, 2 * w_img).reshape(1, -1)        # cols (X, co)
    return packed


# ----------------------------------------------------------------------------
# The fused Pallas kernel
# ----------------------------------------------------------------------------
def _make_generator_kernel(batch):
    c0, c1, c2 = NUM_FILTERS
    h0, h1, h2 = K, 2 * K, 4 * K
    f32 = jnp.float32

    def combine_mat(n, c):
        # (n, c) 0/1 matrix summing the n columns (x-position, channel) per channel.
        i = jax.lax.broadcasted_iota(jnp.int32, (n, c), 0)
        j = jax.lax.broadcasted_iota(jnp.int32, (n, c), 1)
        return (i % c == j).astype(f32)

    def bcast_mat(c, n):
        # (c, n) 0/1 matrix broadcasting a per-channel row back to (x, channel) columns.
        i = jax.lax.broadcasted_iota(jnp.int32, (c, n), 0)
        j = jax.lax.broadcasted_iota(jnp.int32, (c, n), 1)
        return (j % c == i).astype(f32)

    def kernel(zc_ref, w0_ref, g0_ref, b0_ref,
               wa_ref, ga_ref, ba_ref,
               wb_ref, gb_ref, bb_ref,
               wc_ref, bo_ref,
               out_ref, buf0, buf1, buf2):

        def bn_scale_shift(parts, g_ref, b_ref, c, n_valid):
            """Training-mode BN scale/shift for f32 parts sharing one BatchNorm."""
            n = parts[0].shape[1]
            s1 = parts[0].sum(axis=0, keepdims=True)
            s2 = (parts[0] * parts[0]).sum(axis=0, keepdims=True)
            for p in parts[1:]:
                s1 = s1 + p.sum(axis=0, keepdims=True)
                s2 = s2 + (p * p).sum(axis=0, keepdims=True)
            pc = combine_mat(n, c)
            s1c = jnp.dot(s1, pc, preferred_element_type=f32)     # (1, c)
            s2c = jnp.dot(s2, pc, preferred_element_type=f32)
            inv = 1.0 / float(n_valid)
            mean = s1c * inv
            var = jnp.maximum(s2c * inv - mean * mean, 0.0)       # biased, clamped
            scale_c = g_ref[...] * jax.lax.rsqrt(var + EPS)
            shift_c = b_ref[...] - mean * scale_c
            pct = bcast_mat(c, n)
            scale = jnp.dot(scale_c, pct, preferred_element_type=f32)  # (1, n)
            shift = jnp.dot(shift_c, pct, preferred_element_type=f32)
            return scale, shift

        def deconv_phases(src_ref, h_img, w_ref_l):
            """Phase-decomposed k=4,s=2,p=1 ConvTranspose of a layout-R image.

            Returns f32 (m, N) outputs for output-row phases 0/1; the x taps and
            x phases are already folded into the packed weight blocks.
            """
            m_rows = src_ref.shape[0] - 2
            lanes = src_ref.shape[1]
            h_idx = jax.lax.broadcasted_iota(jnp.int32, (m_rows, lanes), 0) % h_img
            zero = jnp.zeros((m_rows, lanes), f32)
            slab = {}
            for oy in (-1, 0, 1):
                s = src_ref[1 + oy:1 + oy + m_rows, :]
                if oy == -1:                     # top image row has no row above
                    s = jnp.where(h_idx >= 1, s, zero)
                elif oy == 1:                    # bottom image row has no row below
                    s = jnp.where(h_idx <= h_img - 2, s, zero)
                slab[oy] = s.astype(COMPUTE_DTYPE)
            kdim = w_ref_l.shape[0] // 4
            wblk = [w_ref_l[i * kdim:(i + 1) * kdim, :] for i in range(4)]
            y0 = (jnp.dot(slab[-1], wblk[0], preferred_element_type=f32)
                  + jnp.dot(slab[0], wblk[1], preferred_element_type=f32))
            y1 = (jnp.dot(slab[0], wblk[2], preferred_element_type=f32)
                  + jnp.dot(slab[1], wblk[3], preferred_element_type=f32))
            return y0, y1

        # Zero the activation buffers once (pad rows / unused rows read as 0 and
        # therefore contribute nothing to BN statistics or boundary taps).
        buf0[...] = jnp.zeros_like(buf0)
        buf1[...] = jnp.zeros_like(buf1)
        buf2[...] = jnp.zeros_like(buf2)

        # --- stage 0: fused [deconv(z) || deconv(c)] + BN + ReLU -------------
        y = jnp.dot(zc_ref[...], w0_ref[...], preferred_element_type=f32)  # (16, 512)
        scale, shift = bn_scale_shift([y], g0_ref, b0_ref, c0, batch * K * K)
        y = jnp.maximum(y * scale + shift, 0.0)
        row_w = K * c0                                    # 128 = one image row
        for bi in range(batch):
            for hh in range(K):
                buf0[1 + bi * K + hh:2 + bi * K + hh, :] = (
                    y[bi:bi + 1, hh * row_w:(hh + 1) * row_w])

        # --- hidden s2-deconv stages: BN + ReLU, row-interleaved store -------
        for (src, dst, h_img, w_r, g_r, b_r, cout) in (
                (buf0, buf1, h0, wa_ref, ga_ref, ba_ref, c1),
                (buf1, buf2, h1, wb_ref, gb_ref, bb_ref, c2)):
            y0, y1 = deconv_phases(src, h_img, w_r)
            scale, shift = bn_scale_shift([y0, y1], g_r, b_r, cout,
                                          batch * 4 * h_img * h_img)
            y0 = jnp.maximum(y0 * scale + shift, 0.0)
            y1 = jnp.maximum(y1 * scale + shift, 0.0)
            for r in range(batch * h_img):
                dst[1 + 2 * r:2 + 2 * r, :] = y0[r:r + 1, :]
                dst[2 + 2 * r:3 + 2 * r, :] = y1[r:r + 1, :]

        # --- output stage: bias + tanh (no BN), row-interleaved into out_ref -
        y0, y1 = deconv_phases(buf2, h2, wc_ref)
        bias = bo_ref[...]
        y0 = jnp.tanh(y0 + bias)
        y1 = jnp.tanh(y1 + bias)
        for r in range(batch * h2):
            out_ref[2 * r:2 * r + 1, :] = y0[r:r + 1, :]
            out_ref[2 * r + 1:2 * r + 2, :] = y1[r:r + 1, :]

    return kernel


def _generator_pallas(packed, zc_pad, batch):
    """Single fused pallas_call for the whole generator."""
    c0, c1, c2 = NUM_FILTERS
    h0, h1, h2 = K, 2 * K, 4 * K
    m1 = max(16, batch * h0)          # bf16-friendly matmul row counts
    m2 = max(16, batch * h1)
    m3 = max(16, batch * h2)
    out_rows = batch * 2 * h2
    n_out = 2 * h2 * OUT_CH_PAD       # 128 (lane-dense output)

    wa, ga, ba = packed["hidden"][0]
    wb, gb, bb = packed["hidden"][1]
    inputs = (zc_pad, packed["w0"], packed["g0"], packed["b0"],
              wa, ga, ba, wb, gb, bb, packed["wo"], packed["bo"])

    def fullspec(x):
        return pl.BlockSpec(x.shape, lambda i: (0, 0))

    return pl.pallas_call(
        _make_generator_kernel(batch),
        out_shape=jax.ShapeDtypeStruct((out_rows, n_out), jnp.float32),
        grid=(1,),
        in_specs=[fullspec(x) for x in inputs],
        out_specs=pl.BlockSpec((out_rows, n_out), lambda i: (0, 0)),
        scratch_shapes=[
            pltpu.VMEM((m1 + 2, h0 * c0), jnp.float32),   # 4x4x32  image (+pad rows)
            pltpu.VMEM((m2 + 2, h1 * c1), jnp.float32),   # 8x8x16  image (+pad rows)
            pltpu.VMEM((m3 + 2, h2 * c2), jnp.float32),   # 16x16x8 image (+pad rows)
        ],
        compiler_params=pltpu.CompilerParams(
            dimension_semantics=("arbitrary",)),
    )(*inputs)


# ----------------------------------------------------------------------------
# Forward pass (same structure as the PyTorch module)
# ----------------------------------------------------------------------------
def generator_forward(packed, z_nchw, c_nchw):
    b = z_nchw.shape[0]
    zc = jnp.concatenate(
        [z_nchw.reshape(b, INPUT_DIM), c_nchw.reshape(b, LABEL_DIM)],
        axis=1).astype(jnp.float32)
    m0 = max(16, ((b + 15) // 16) * 16)          # bf16 sublane packing
    zc = jnp.pad(zc, ((0, m0 - b), (0, 0))).astype(COMPUTE_DTYPE)
    out2d = _generator_pallas(packed, zc, b)     # (b*32, 128) f32
    side = 8 * K                                 # 1x1 -> 4 -> 8 -> 16 -> 32
    img = out2d.reshape(b, side, side, OUT_CH_PAD)[..., :OUTPUT_DIM]
    return jnp.transpose(img, (0, 3, 1, 2))      # NHWC -> NCHW


if __name__ == "__main__":
    batch = 2
    key = jax.random.PRNGKey(0)
    kz, kc = jax.random.split(key)
    z = jax.random.normal(kz, (batch, INPUT_DIM, 1, 1), dtype=jnp.float32)
    c = jax.random.normal(kc, (batch, LABEL_DIM, 1, 1), dtype=jnp.float32)

    params = init_params(jax.random.PRNGKey(42))
    packed = pack_params(params)                 # one-time prepare step

    fwd = jax.jit(generator_forward)
    out = jax.block_until_ready(fwd(packed, z, c))

    assert out.shape == (batch, OUTPUT_DIM, 8 * K, 8 * K), out.shape
    assert bool(jnp.all(jnp.isfinite(out)))
    assert bool(jnp.all(jnp.abs(out) <= 1.0 + 1e-6))     # tanh range
    print("KERNEL_OK")
</pallas_src>

<mosaic_0001>
module attributes {stable_mosaic.version = 11 : i64} {
  func.func @kernel(%arg0: i32, %arg1: memref<16x40xbf16, #tpu.memory_space<vmem>>, %arg2: memref<40x512xbf16, #tpu.memory_space<vmem>>, %arg3: memref<1x32xf32, #tpu.memory_space<vmem>>, %arg4: memref<1x32xf32, #tpu.memory_space<vmem>>, %arg5: memref<512x128xbf16, #tpu.memory_space<vmem>>, %arg6: memref<1x16xf32, #tpu.memory_space<vmem>>, %arg7: memref<1x16xf32, #tpu.memory_space<vmem>>, %arg8: memref<512x128xbf16, #tpu.memory_space<vmem>>, %arg9: memref<1x8xf32, #tpu.memory_space<vmem>>, %arg10: memref<1x8xf32, #tpu.memory_space<vmem>>, %arg11: memref<512x128xbf16, #tpu.memory_space<vmem>>, %arg12: memref<1x128xf32, #tpu.memory_space<vmem>>, %arg13: memref<64x128xf32, #tpu.memory_space<vmem>>, %arg14: memref<18x128xf32, #tpu.memory_space<vmem>>, %arg15: memref<18x128xf32, #tpu.memory_space<vmem>>, %arg16: memref<34x128xf32, #tpu.memory_space<vmem>>) attributes {dimension_semantics = [#tpu.dimension_semantics<arbitrary>], iteration_bounds = array<i64: 1>, scalar_prefetch = 0 : i64, scratch_operands = 3 : i64, tpu.core_type = #tpu.core_type<tc>, window_params = [{pipeline_mode = #tpu.pipeline_mode<synchronous>, transform_indices = @transform_0, window_bounds = array<i64: 16, 40>}, {pipeline_mode = #tpu.pipeline_mode<synchronous>, transform_indices = @transform_1, window_bounds = array<i64: 40, 512>}, {pipeline_mode = #tpu.pipeline_mode<synchronous>, transform_indices = @transform_2, window_bounds = array<i64: 1, 32>}, {pipeline_mode = #tpu.pipeline_mode<synchronous>, transform_indices = @transform_3, window_bounds = array<i64: 1, 32>}, {pipeline_mode = #tpu.pipeline_mode<synchronous>, transform_indices = @transform_4, window_bounds = array<i64: 512, 128>}, {pipeline_mode = #tpu.pipeline_mode<synchronous>, transform_indices = @transform_5, window_bounds = array<i64: 1, 16>}, {pipeline_mode = #tpu.pipeline_mode<synchronous>, transform_indices = @transform_6, window_bounds = array<i64: 1, 16>}, {pipeline_mode = #tpu.pipeline_mode<synchronous>, transform_indices = @transform_7, window_bounds = array<i64: 512, 128>}, {pipeline_mode = #tpu.pipeline_mode<synchronous>, transform_indices = @transform_8, window_bounds = array<i64: 1, 8>}, {pipeline_mode = #tpu.pipeline_mode<synchronous>, transform_indices = @transform_9, window_bounds = array<i64: 1, 8>}, {pipeline_mode = #tpu.pipeline_mode<synchronous>, transform_indices = @transform_10, window_bounds = array<i64: 512, 128>}, {pipeline_mode = #tpu.pipeline_mode<synchronous>, transform_indices = @transform_11, window_bounds = array<i64: 1, 128>}, {pipeline_mode = #tpu.pipeline_mode<synchronous>, transform_indices = @transform_12, window_bounds = array<i64: 64, 128>}]} {
    %cst = arith.constant 0.000000e+00 : f32
    %0 = vector.broadcast %cst : f32 to vector<18x128xf32>
    %c0 = arith.constant 0 : index
    %c0_0 = arith.constant 0 : index
    %1 = vector.load %arg14[%c0, %c0_0] : memref<18x128xf32, #tpu.memory_space<vmem>>, vector<18x128xf32>
    tpu.vector_store %arg14[%c0, %c0_0], %0 {strides = array<i32>} : memref<18x128xf32, #tpu.memory_space<vmem>>, vector<18x128xf32>,
    %cst_1 = arith.constant 0.000000e+00 : f32
    %2 = vector.broadcast %cst_1 : f32 to vector<18x128xf32>
    %c0_2 = arith.constant 0 : index
    %c0_3 = arith.constant 0 : index
    %3 = vector.load %arg15[%c0_2, %c0_3] : memref<18x128xf32, #tpu.memory_space<vmem>>, vector<18x128xf32>
    tpu.vector_store %arg15[%c0_2, %c0_3], %2 {strides = array<i32>} : memref<18x128xf32, #tpu.memory_space<vmem>>, vector<18x128xf32>,
    %cst_4 = arith.constant 0.000000e+00 : f32
    %4 = vector.broadcast %cst_4 : f32 to vector<34x128xf32>
    %c0_5 = arith.constant 0 : index
    %c0_6 = arith.constant 0 : index
    %5 = vector.load %arg16[%c0_5, %c0_6] : memref<34x128xf32, #tpu.memory_space<vmem>>, vector<34x128xf32>
    tpu.vector_store %arg16[%c0_5, %c0_6], %4 {strides = array<i32>} : memref<34x128xf32, #tpu.memory_space<vmem>>, vector<34x128xf32>,
    %c0_7 = arith.constant 0 : index
    %c0_8 = arith.constant 0 : index
    %6 = vector.load %arg1[%c0_7, %c0_8] : memref<16x40xbf16, #tpu.memory_space<vmem>>, vector<16x40xbf16>
    %c0_9 = arith.constant 0 : index
    %c0_10 = arith.constant 0 : index
    %7 = vector.load %arg2[%c0_9, %c0_10] : memref<40x512xbf16, #tpu.memory_space<vmem>>, vector<40x512xbf16>
    %cst_11 = arith.constant dense<0.000000e+00> : vector<16x512xf32>
    %8 = tpu.matmul %6, %7, %cst_11 {dimension_numbers = #tpu.dot_dimension_numbers<[1], [0], [0], [1], [0, 0, 1, 1], [], []>} : vector<16x40xbf16>, vector<40x512xbf16>, vector<16x512xf32> -> vector<16x512xf32>
    %cst_12 = arith.constant dense<0.000000e+00> : vector<512xf32>
    %9 = vector.multi_reduction <add>, %8, %cst_12 [0] : vector<16x512xf32> to vector<512xf32>
    %10 = vector.shape_cast %9 : vector<512xf32> to vector<1x512xf32>
    %11 = arith.mulf %8, %8 : vector<16x512xf32>
    %cst_13 = arith.constant dense<0.000000e+00> : vector<512xf32>
    %12 = vector.multi_reduction <add>, %11, %cst_13 [0] : vector<16x512xf32> to vector<512xf32>
    %13 = vector.shape_cast %12 : vector<512xf32> to vector<1x512xf32>
    %14 = tpu.iota {dimensions = array<i32: 0>} : vector<512x32xi32>
    %15 = tpu.iota {dimensions = array<i32: 1>} : vector<512x32xi32>
    %c32_i32 = arith.constant 32 : i32
    %c0_i32 = arith.constant 0 : i32
    %16 = arith.cmpi eq, %c32_i32, %c0_i32 : i32
    %c1_i32 = arith.constant 1 : i32
    %17 = arith.select %16, %c1_i32, %c32_i32 : i32
    %18 = vector.broadcast %17 : i32 to vector<512x32xi32>
    %19 = arith.remsi %14, %18 : vector<512x32xi32>
    %c0_i32_14 = arith.constant 0 : i32
    %20 = vector.broadcast %c0_i32_14 : i32 to vector<512x32xi32>
    %21 = arith.cmpi ne, %19, %20 : vector<512x32xi32>
    %c0_i32_15 = arith.constant 0 : i32
    %22 = vector.broadcast %c0_i32_15 : i32 to vector<512x32xi32>
    %23 = arith.cmpi slt, %19, %22 : vector<512x32xi32>
    %c0_i32_16 = arith.constant 0 : i32
    %24 = arith.cmpi slt, %17, %c0_i32_16 : i32
    %25 = vector.broadcast %24 : i1 to vector<512x32xi1>
    %26 = vector.broadcast %25 : vector<512x32xi1> to vector<512x32xi1>
    %27 = arith.xori %23, %26 : vector<512x32xi1>
    %28 = arith.andi %27, %21 : vector<512x32xi1>
    %29 = vector.broadcast %17 : i32 to vector<512x32xi32>
    %30 = arith.addi %19, %29 : vector<512x32xi32>
    %31 = arith.select %28, %30, %19 : vector<512x32xi1>, vector<512x32xi32>
    %32 = arith.cmpi eq, %31, %15 : vector<512x32xi32>
    %33 = arith.extui %32 : vector<512x32xi1> to vector<512x32xi32>
    %34 = arith.sitofp %33 : vector<512x32xi32> to vector<512x32xf32>
    %cst_17 = arith.constant dense<0.000000e+00> : vector<1x32xf32>
    %35 = tpu.matmul %10, %34, %cst_17 {dimension_numbers = #tpu.dot_dimension_numbers<[1], [0], [0], [1], [0, 0, 1, 1], [], []>} : vector<1x512xf32>, vector<512x32xf32>, vector<1x32xf32> -> vector<1x32xf32>
    %cst_18 = arith.constant dense<0.000000e+00> : vector<1x32xf32>
    %36 = tpu.matmul %13, %34, %cst_18 {dimension_numbers = #tpu.dot_dimension_numbers<[1], [0], [0], [1], [0, 0, 1, 1], [], []>} : vector<1x512xf32>, vector<512x32xf32>, vector<1x32xf32> -> vector<1x32xf32>
    %cst_19 = arith.constant 3.125000e-02 : f32
    %37 = vector.broadcast %cst_19 : f32 to vector<1x32xf32>
    %38 = arith.mulf %35, %37 : vector<1x32xf32>
    %cst_20 = arith.constant 3.125000e-02 : f32
    %39 = vector.broadcast %cst_20 : f32 to vector<1x32xf32>
    %40 = arith.mulf %36, %39 : vector<1x32xf32>
    %41 = arith.mulf %38, %38 : vector<1x32xf32>
    %42 = arith.subf %40, %41 : vector<1x32xf32>
    %cst_21 = arith.constant 0.000000e+00 : f32
    %43 = vector.broadcast %cst_21 : f32 to vector<1x32xf32>
    %44 = arith.maximumf %42, %43 : vector<1x32xf32>
    %c0_22 = arith.constant 0 : index
    %c0_23 = arith.constant 0 : index
    %45 = vector.load %arg3[%c0_22, %c0_23] : memref<1x32xf32, #tpu.memory_space<vmem>>, vector<1x32xf32>
    %cst_24 = arith.constant 9.99999974E-6 : f32
    %46 = vector.broadcast %cst_24 : f32 to vector<1x32xf32>
    %47 = arith.addf %44, %46 : vector<1x32xf32>
    %48 = math.rsqrt %47 : vector<1x32xf32>
    %49 = arith.mulf %45, %48 : vector<1x32xf32>
    %c0_25 = arith.constant 0 : index
    %c0_26 = arith.constant 0 : index
    %50 = vector.load %arg4[%c0_25, %c0_26] : memref<1x32xf32, #tpu.memory_space<vmem>>, vector<1x32xf32>
    %51 = arith.mulf %38, %49 : vector<1x32xf32>
    %52 = arith.subf %50, %51 : vector<1x32xf32>
    %53 = tpu.iota {dimensions = array<i32: 0>} : vector<32x512xi32>
    %54 = tpu.iota {dimensions = array<i32: 1>} : vector<32x512xi32>
    %c32_i32_27 = arith.constant 32 : i32
    %c0_i32_28 = arith.constant 0 : i32
    %55 = arith.cmpi eq, %c32_i32_27, %c0_i32_28 : i32
    %c1_i32_29 = arith.constant 1 : i32
    %56 = arith.select %55, %c1_i32_29, %c32_i32_27 : i32
    %57 = vector.broadcast %56 : i32 to vector<32x512xi32>
    %58 = arith.remsi %54, %57 : vector<32x512xi32>
    %c0_i32_30 = arith.constant 0 : i32
    %59 = vector.broadcast %c0_i32_30 : i32 to vector<32x512xi32>
    %60 = arith.cmpi ne, %58, %59 : vector<32x512xi32>
    %c0_i32_31 = arith.constant 0 : i32
    %61 = vector.broadcast %c0_i32_31 : i32 to vector<32x512xi32>
    %62 = arith.cmpi slt, %58, %61 : vector<32x512xi32>
    %c0_i32_32 = arith.constant 0 : i32
    %63 = arith.cmpi slt, %56, %c0_i32_32 : i32
    %64 = vector.broadcast %63 : i1 to vector<32x512xi1>
    %65 = vector.broadcast %64 : vector<32x512xi1> to vector<32x512xi1>
    %66 = arith.xori %62, %65 : vector<32x512xi1>
    %67 = arith.andi %66, %60 : vector<32x512xi1>
    %68 = vector.broadcast %56 : i32 to vector<32x512xi32>
    %69 = arith.addi %58, %68 : vector<32x512xi32>
    %70 = arith.select %67, %69, %58 : vector<32x512xi1>, vector<32x512xi32>
    %71 = arith.cmpi eq, %70, %53 : vector<32x512xi32>
    %72 = arith.extui %71 : vector<32x512xi1> to vector<32x512xi32>
    %73 = arith.sitofp %72 : vector<32x512xi32> to vector<32x512xf32>
    %cst_33 = arith.constant dense<0.000000e+00> : vector<1x512xf32>
    %74 = tpu.matmul %49, %73, %cst_33 {dimension_numbers = #tpu.dot_dimension_numbers<[1], [0], [0], [1], [0, 0, 1, 1], [], []>} : vector<1x32xf32>, vector<32x512xf32>, vector<1x512xf32> -> vector<1x512xf32>
    %cst_34 = arith.constant dense<0.000000e+00> : vector<1x512xf32>
    %75 = tpu.matmul %52, %73, %cst_34 {dimension_numbers = #tpu.dot_dimension_numbers<[1], [0], [0], [1], [0, 0, 1, 1], [], []>} : vector<1x32xf32>, vector<32x512xf32>, vector<1x512xf32> -> vector<1x512xf32>
    %76 = vector.broadcast %74 : vector<1x512xf32> to vector<16x512xf32>
    %77 = arith.mulf %8, %76 : vector<16x512xf32>
    %78 = vector.broadcast %75 : vector<1x512xf32> to vector<16x512xf32>
    %79 = arith.addf %77, %78 : vector<16x512xf32>
    %cst_35 = arith.constant 0.000000e+00 : f32
    %80 = vector.broadcast %cst_35 : f32 to vector<16x512xf32>
    %81 = arith.maximumf %79, %80 : vector<16x512xf32>
    %82 = vector.extract_strided_slice %81 {offsets = [0, 0], sizes = [1, 128], strides = [1, 1]} : vector<16x512xf32> to vector<1x128xf32>
    %c1 = arith.constant 1 : index
    %c0_36 = arith.constant 0 : index
    %83 = vector.load %arg14[%c1, %c0_36] : memref<18x128xf32, #tpu.memory_space<vmem>>, vector<1x128xf32>
    tpu.vector_store %arg14[%c1, %c0_36], %82 {strides = array<i32>} : memref<18x128xf32, #tpu.memory_space<vmem>>, vector<1x128xf32>,
    %84 = vector.extract_strided_slice %81 {offsets = [0, 128], sizes = [1, 128], strides = [1, 1]} : vector<16x512xf32> to vector<1x128xf32>
    %c2 = arith.constant 2 : index
    %c0_37 = arith.constant 0 : index
    %85 = vector.load %arg14[%c2, %c0_37] : memref<18x128xf32, #tpu.memory_space<vmem>>, vector<1x128xf32>
    tpu.vector_store %arg14[%c2, %c0_37], %84 {strides = array<i32>} : memref<18x128xf32, #tpu.memory_space<vmem>>, vector<1x128xf32>,
    %86 = vector.extract_strided_slice %81 {offsets = [0, 256], sizes = [1, 128], strides = [1, 1]} : vector<16x512xf32> to vector<1x128xf32>
    %c3 = arith.constant 3 : index
    %c0_38 = arith.constant 0 : index
    %87 = vector.load %arg14[%c3, %c0_38] : memref<18x128xf32, #tpu.memory_space<vmem>>, vector<1x128xf32>
    tpu.vector_store %arg14[%c3, %c0_38], %86 {strides = array<i32>} : memref<18x128xf32, #tpu.memory_space<vmem>>, vector<1x128xf32>,
    %88 = vector.extract_strided_slice %81 {offsets = [0, 384], sizes = [1, 128], strides = [1, 1]} : vector<16x512xf32> to vector<1x128xf32>
    %c4 = arith.constant 4 : index
    %c0_39 = arith.constant 0 : index
    %89 = vector.load %arg14[%c4, %c0_39] : memref<18x128xf32, #tpu.memory_space<vmem>>, vector<1x128xf32>
    tpu.vector_store %arg14[%c4, %c0_39], %88 {strides = array<i32>} : memref<18x128xf32, #tpu.memory_space<vmem>>, vector<1x128xf32>,
    %90 = vector.extract_strided_slice %81 {offsets = [1, 0], sizes = [1, 128], strides = [1, 1]} : vector<16x512xf32> to vector<1x128xf32>
    %c5 = arith.constant 5 : index
    %c0_40 = arith.constant 0 : index
    %91 = vector.load %arg14[%c5, %c0_40] : memref<18x128xf32, #tpu.memory_space<vmem>>, vector<1x128xf32>
    tpu.vector_store %arg14[%c5, %c0_40], %90 {strides = array<i32>} : memref<18x128xf32, #tpu.memory_space<vmem>>, vector<1x128xf32>,
    %92 = vector.extract_strided_slice %81 {offsets = [1, 128], sizes = [1, 128], strides = [1, 1]} : vector<16x512xf32> to vector<1x128xf32>
    %c6 = arith.constant 6 : index
    %c0_41 = arith.constant 0 : index
    %93 = vector.load %arg14[%c6, %c0_41] : memref<18x128xf32, #tpu.memory_space<vmem>>, vector<1x128xf32>
    tpu.vector_store %arg14[%c6, %c0_41], %92 {strides = array<i32>} : memref<18x128xf32, #tpu.memory_space<vmem>>, vector<1x128xf32>,
    %94 = vector.extract_strided_slice %81 {offsets = [1, 256], sizes = [1, 128], strides = [1, 1]} : vector<16x512xf32> to vector<1x128xf32>
    %c7 = arith.constant 7 : index
    %c0_42 = arith.constant 0 : index
    %95 = vector.load %arg14[%c7, %c0_42] : memref<18x128xf32, #tpu.memory_space<vmem>>, vector<1x128xf32>
    tpu.vector_store %arg14[%c7, %c0_42], %94 {strides = array<i32>} : memref<18x128xf32, #tpu.memory_space<vmem>>, vector<1x128xf32>,
    %96 = vector.extract_strided_slice %81 {offsets = [1, 384], sizes = [1, 128], strides = [1, 1]} : vector<16x512xf32> to vector<1x128xf32>
    %c8 = arith.constant 8 : index
    %c0_43 = arith.constant 0 : index
    %97 = vector.load %arg14[%c8, %c0_43] : memref<18x128xf32, #tpu.memory_space<vmem>>, vector<1x128xf32>
    tpu.vector_store %arg14[%c8, %c0_43], %96 {strides = array<i32>} : memref<18x128xf32, #tpu.memory_space<vmem>>, vector<1x128xf32>,
    %98 = tpu.iota {dimensions = array<i32: 0>} : vector<16x128xi32>
    %c4_i32 = arith.constant 4 : i32
    %c0_i32_44 = arith.constant 0 : i32
    %99 = arith.cmpi eq, %c4_i32, %c0_i32_44 : i32
    %c1_i32_45 = arith.constant 1 : i32
    %100 = arith.select %99, %c1_i32_45, %c4_i32 : i32
    %101 = vector.broadcast %100 : i32 to vector<16x128xi32>
    %102 = arith.remsi %98, %101 : vector<16x128xi32>
    %c0_i32_46 = arith.constant 0 : i32
    %103 = vector.broadcast %c0_i32_46 : i32 to vector<16x128xi32>
    %104 = arith.cmpi ne, %102, %103 : vector<16x128xi32>
    %c0_i32_47 = arith.constant 0 : i32
    %105 = vector.broadcast %c0_i32_47 : i32 to vector<16x128xi32>
    %106 = arith.cmpi slt, %102, %105 : vector<16x128xi32>
    %c0_i32_48 = arith.constant 0 : i32
    %107 = arith.cmpi slt, %100, %c0_i32_48 : i32
    %108 = vector.broadcast %107 : i1 to vector<16x128xi1>
    %109 = vector.broadcast %108 : vector<16x128xi1> to vector<16x128xi1>
    %110 = arith.xori %106, %109 : vector<16x128xi1>
    %111 = arith.andi %110, %104 : vector<16x128xi1>
    %112 = vector.broadcast %100 : i32 to vector<16x128xi32>
    %113 = arith.addi %102, %112 : vector<16x128xi32>
    %114 = arith.select %111, %113, %102 : vector<16x128xi1>, vector<16x128xi32>
    %cst_49 = arith.constant 0.000000e+00 : f32
    %115 = vector.broadcast %cst_49 : f32 to vector<16x128xf32>
    %c0_50 = arith.constant 0 : index
    %c0_51 = arith.constant 0 : index
    %116 = vector.load %arg14[%c0_50, %c0_51] : memref<18x128xf32, #tpu.memory_space<vmem>>, vector<16x128xf32>
    %c1_i32_52 = arith.constant 1 : i32
    %117 = vector.broadcast %c1_i32_52 : i32 to vector<16x128xi32>
    %118 = arith.cmpi sge, %114, %117 : vector<16x128xi32>
    %119 = arith.select %118, %116, %115 : vector<16x128xi1>, vector<16x128xf32>
    %120 = arith.truncf %119 : vector<16x128xf32> to vector<16x128xbf16>
    %c1_53 = arith.constant 1 : index
    %c0_54 = arith.constant 0 : index
    %121 = vector.load %arg14[%c1_53, %c0_54] : memref<18x128xf32, #tpu.memory_space<vmem>>, vector<16x128xf32>
    %122 = arith.truncf %121 : vector<16x128xf32> to vector<16x128xbf16>
    %c2_55 = arith.constant 2 : index
    %c0_56 = arith.constant 0 : index
    %123 = vector.load %arg14[%c2_55, %c0_56] : memref<18x128xf32, #tpu.memory_space<vmem>>, vector<16x128xf32>
    %c2_i32 = arith.constant 2 : i32
    %124 = vector.broadcast %c2_i32 : i32 to vector<16x128xi32>
    %125 = arith.cmpi sle, %114, %124 : vector<16x128xi32>
    %126 = arith.select %125, %123, %115 : vector<16x128xi1>, vector<16x128xf32>
    %127 = arith.truncf %126 : vector<16x128xf32> to vector<16x128xbf16>
    %c0_57 = arith.constant 0 : index
    %c0_58 = arith.constant 0 : index
    %128 = vector.load %arg5[%c0_57, %c0_58] : memref<512x128xbf16, #tpu.memory_space<vmem>>, vector<128x128xbf16>
    %c128 = arith.constant 128 : index
    %c0_59 = arith.constant 0 : index
    %129 = vector.load %arg5[%c128, %c0_59] : memref<512x128xbf16, #tpu.memory_space<vmem>>, vector<128x128xbf16>
    %c256 = arith.constant 256 : index
    %c0_60 = arith.constant 0 : index
    %130 = vector.load %arg5[%c256, %c0_60] : memref<512x128xbf16, #tpu.memory_space<vmem>>, vector<128x128xbf16>
    %c384 = arith.constant 384 : index
    %c0_61 = arith.constant 0 : index
    %131 = vector.load %arg5[%c384, %c0_61] : memref<512x128xbf16, #tpu.memory_space<vmem>>, vector<128x128xbf16>
    %cst_62 = arith.constant dense<0.000000e+00> : vector<16x128xf32>
    %132 = tpu.matmul %120, %128, %cst_62 {dimension_numbers = #tpu.dot_dimension_numbers<[1], [0], [0], [1], [0, 0, 1, 1], [], []>} : vector<16x128xbf16>, vector<128x128xbf16>, vector<16x128xf32> -> vector<16x128xf32>
    %cst_63 = arith.constant dense<0.000000e+00> : vector<16x128xf32>
    %133 = tpu.matmul %122, %129, %cst_63 {dimension_numbers = #tpu.dot_dimension_numbers<[1], [0], [0], [1], [0, 0, 1, 1], [], []>} : vector<16x128xbf16>, vector<128x128xbf16>, vector<16x128xf32> -> vector<16x128xf32>
    %134 = arith.addf %132, %133 : vector<16x128xf32>
    %cst_64 = arith.constant dense<0.000000e+00> : vector<16x128xf32>
    %135 = tpu.matmul %122, %130, %cst_64 {dimension_numbers = #tpu.dot_dimension_numbers<[1], [0], [0], [1], [0, 0, 1, 1], [], []>} : vector<16x128xbf16>, vector<128x128xbf16>, vector<16x128xf32> -> vector<16x128xf32>
    %cst_65 = arith.constant dense<0.000000e+00> : vector<16x128xf32>
    %136 = tpu.matmul %127, %131, %cst_65 {dimension_numbers = #tpu.dot_dimension_numbers<[1], [0], [0], [1], [0, 0, 1, 1], [], []>} : vector<16x128xbf16>, vector<128x128xbf16>, vector<16x128xf32> -> vector<16x128xf32>
    %137 = arith.addf %135, %136 : vector<16x128xf32>
    %cst_66 = arith.constant dense<0.000000e+00> : vector<128xf32>
    %138 = vector.multi_reduction <add>, %134, %cst_66 [0] : vector<16x128xf32> to vector<128xf32>
    %139 = vector.shape_cast %138 : vector<128xf32> to vector<1x128xf32>
    %140 = arith.mulf %134, %134 : vector<16x128xf32>
    %cst_67 = arith.constant dense<0.000000e+00> : vector<128xf32>
    %141 = vector.multi_reduction <add>, %140, %cst_67 [0] : vector<16x128xf32> to vector<128xf32>
    %142 = vector.shape_cast %141 : vector<128xf32> to vector<1x128xf32>
    %cst_68 = arith.constant dense<0.000000e+00> : vector<128xf32>
    %143 = vector.multi_reduction <add>, %137, %cst_68 [0] : vector<16x128xf32> to vector<128xf32>
    %144 = vector.shape_cast %143 : vector<128xf32> to vector<1x128xf32>
    %145 = arith.addf %139, %144 : vector<1x128xf32>
    %146 = arith.mulf %137, %137 : vector<16x128xf32>
    %cst_69 = arith.constant dense<0.000000e+00> : vector<128xf32>
    %147 = vector.multi_reduction <add>, %146, %cst_69 [0] : vector<16x128xf32> to vector<128xf32>
    %148 = vector.shape_cast %147 : vector<128xf32> to vector<1x128xf32>
    %149 = arith.addf %142, %148 : vector<1x128xf32>
    %150 = tpu.iota {dimensions = array<i32: 0>} : vector<128x16xi32>
    %151 = tpu.iota {dimensions = array<i32: 1>} : vector<128x16xi32>
    %c16_i32 = arith.constant 16 : i32
    %c0_i32_70 = arith.constant 0 : i32
    %152 = arith.cmpi eq, %c16_i32, %c0_i32_70 : i32
    %c1_i32_71 = arith.constant 1 : i32
    %153 = arith.select %152, %c1_i32_71, %c16_i32 : i32
    %154 = vector.broadcast %153 : i32 to vector<128x16xi32>
    %155 = arith.remsi %150, %154 : vector<128x16xi32>
    %c0_i32_72 = arith.constant 0 : i32
    %156 = vector.broadcast %c0_i32_72 : i32 to vector<128x16xi32>
    %157 = arith.cmpi ne, %155, %156 : vector<128x16xi32>
    %c0_i32_73 = arith.constant 0 : i32
    %158 = vector.broadcast %c0_i32_73 : i32 to vector<128x16xi32>
    %159 = arith.cmpi slt, %155, %158 : vector<128x16xi32>
    %c0_i32_74 = arith.constant 0 : i32
    %160 = arith.cmpi slt, %153, %c0_i32_74 : i32
    %161 = vector.broadcast %160 : i1 to vector<128x16xi1>
    %162 = vector.broadcast %161 : vector<128x16xi1> to vector<128x16xi1>
    %163 = arith.xori %159, %162 : vector<128x16xi1>
    %164 = arith.andi %163, %157 : vector<128x16xi1>
    %165 = vector.broadcast %153 : i32 to vector<128x16xi32>
    %166 = arith.addi %155, %165 : vector<128x16xi32>
    %167 = arith.select %164, %166, %155 : vector<128x16xi1>, vector<128x16xi32>
    %168 = arith.cmpi eq, %167, %151 : vector<128x16xi32>
    %169 = arith.extui %168 : vector<128x16xi1> to vector<128x16xi32>
    %170 = arith.sitofp %169 : vector<128x16xi32> to vector<128x16xf32>
    %cst_75 = arith.constant dense<0.000000e+00> : vector<1x16xf32>
    %171 = tpu.matmul %145, %170, %cst_75 {dimension_numbers = #tpu.dot_dimension_numbers<[1], [0], [0], [1], [0, 0, 1, 1], [], []>} : vector<1x128xf32>, vector<128x16xf32>, vector<1x16xf32> -> vector<1x16xf32>
    %cst_76 = arith.constant dense<0.000000e+00> : vector<1x16xf32>
    %172 = tpu.matmul %149, %170, %cst_76 {dimension_numbers = #tpu.dot_dimension_numbers<[1], [0], [0], [1], [0, 0, 1, 1], [], []>} : vector<1x128xf32>, vector<128x16xf32>, vector<1x16xf32> -> vector<1x16xf32>
    %cst_77 = arith.constant 7.812500e-03 : f32
    %173 = vector.broadcast %cst_77 : f32 to vector<1x16xf32>
    %174 = arith.mulf %171, %173 : vector<1x16xf32>
    %cst_78 = arith.constant 7.812500e-03 : f32
    %175 = vector.broadcast %cst_78 : f32 to vector<1x16xf32>
    %176 = arith.mulf %172, %175 : vector<1x16xf32>
    %177 = arith.mulf %174, %174 : vector<1x16xf32>
    %178 = arith.subf %176, %177 : vector<1x16xf32>
    %cst_79 = arith.constant 0.000000e+00 : f32
    %179 = vector.broadcast %cst_79 : f32 to vector<1x16xf32>
    %180 = arith.maximumf %178, %179 : vector<1x16xf32>
    %c0_80 = arith.constant 0 : index
    %c0_81 = arith.constant 0 : index
    %181 = vector.load %arg6[%c0_80, %c0_81] : memref<1x16xf32, #tpu.memory_space<vmem>>, vector<1x16xf32>
    %cst_82 = arith.constant 9.99999974E-6 : f32
    %182 = vector.broadcast %cst_82 : f32 to vector<1x16xf32>
    %183 = arith.addf %180, %182 : vector<1x16xf32>
    %184 = math.rsqrt %183 : vector<1x16xf32>
    %185 = arith.mulf %181, %184 : vector<1x16xf32>
    %c0_83 = arith.constant 0 : index
    %c0_84 = arith.constant 0 : index
    %186 = vector.load %arg7[%c0_83, %c0_84] : memref<1x16xf32, #tpu.memory_space<vmem>>, vector<1x16xf32>
    %187 = arith.mulf %174, %185 : vector<1x16xf32>
    %188 = arith.subf %186, %187 : vector<1x16xf32>
    %189 = tpu.iota {dimensions = array<i32: 0>} : vector<16x128xi32>
    %190 = tpu.iota {dimensions = array<i32: 1>} : vector<16x128xi32>
    %c16_i32_85 = arith.constant 16 : i32
    %c0_i32_86 = arith.constant 0 : i32
    %191 = arith.cmpi eq, %c16_i32_85, %c0_i32_86 : i32
    %c1_i32_87 = arith.constant 1 : i32
    %192 = arith.select %191, %c1_i32_87, %c16_i32_85 : i32
    %193 = vector.broadcast %192 : i32 to vector<16x128xi32>
    %194 = arith.remsi %190, %193 : vector<16x128xi32>
    %c0_i32_88 = arith.constant 0 : i32
    %195 = vector.broadcast %c0_i32_88 : i32 to vector<16x128xi32>
    %196 = arith.cmpi ne, %194, %195 : vector<16x128xi32>
    %c0_i32_89 = arith.constant 0 : i32
    %197 = vector.broadcast %c0_i32_89 : i32 to vector<16x128xi32>
    %198 = arith.cmpi slt, %194, %197 : vector<16x128xi32>
    %c0_i32_90 = arith.constant 0 : i32
    %199 = arith.cmpi slt, %192, %c0_i32_90 : i32
    %200 = vector.broadcast %199 : i1 to vector<16x128xi1>
    %201 = vector.broadcast %200 : vector<16x128xi1> to vector<16x128xi1>
    %202 = arith.xori %198, %201 : vector<16x128xi1>
    %203 = arith.andi %202, %196 : vector<16x128xi1>
    %204 = vector.broadcast %192 : i32 to vector<16x128xi32>
    %205 = arith.addi %194, %204 : vector<16x128xi32>
    %206 = arith.select %203, %205, %194 : vector<16x128xi1>, vector<16x128xi32>
    %207 = arith.cmpi eq, %206, %189 : vector<16x128xi32>
    %208 = arith.extui %207 : vector<16x128xi1> to vector<16x128xi32>
    %209 = arith.sitofp %208 : vector<16x128xi32> to vector<16x128xf32>
    %cst_91 = arith.constant dense<0.000000e+00> : vector<1x128xf32>
    %210 = tpu.matmul %185, %209, %cst_91 {dimension_numbers = #tpu.dot_dimension_numbers<[1], [0], [0], [1], [0, 0, 1, 1], [], []>} : vector<1x16xf32>, vector<16x128xf32>, vector<1x128xf32> -> vector<1x128xf32>
    %cst_92 = arith.constant dense<0.000000e+00> : vector<1x128xf32>
    %211 = tpu.matmul %188, %209, %cst_92 {dimension_numbers = #tpu.dot_dimension_numbers<[1], [0], [0], [1], [0, 0, 1, 1], [], []>} : vector<1x16xf32>, vector<16x128xf32>, vector<1x128xf32> -> vector<1x128xf32>
    %212 = vector.broadcast %210 : vector<1x128xf32> to vector<16x128xf32>
    %213 = arith.mulf %134, %212 : vector<16x128xf32>
    %214 = vector.broadcast %211 : vector<1x128xf32> to vector<16x128xf32>
    %215 = arith.addf %213, %214 : vector<16x128xf32>
    %cst_93 = arith.constant 0.000000e+00 : f32
    %216 = vector.broadcast %cst_93 : f32 to vector<16x128xf32>
    %217 = arith.maximumf %215, %216 : vector<16x128xf32>
    %218 = vector.broadcast %210 : vector<1x128xf32> to vector<16x128xf32>
    %219 = arith.mulf %137, %218 : vector<16x128xf32>
    %220 = vector.broadcast %211 : vector<1x128xf32> to vector<16x128xf32>
    %221 = arith.addf %219, %220 : vector<16x128xf32>
    %cst_94 = arith.constant 0.000000e+00 : f32
    %222 = vector.broadcast %cst_94 : f32 to vector<16x128xf32>
    %223 = arith.maximumf %221, %222 : vector<16x128xf32>
    %224 = vector.extract_strided_slice %217 {offsets = [0, 0], sizes = [1, 128], strides = [1, 1]} : vector<16x128xf32> to vector<1x128xf32>
    %c1_95 = arith.constant 1 : index
    %c0_96 = arith.constant 0 : index
    %225 = vector.load %arg15[%c1_95, %c0_96] : memref<18x128xf32, #tpu.memory_space<vmem>>, vector<1x128xf32>
    tpu.vector_store %arg15[%c1_95, %c0_96], %224 {strides = array<i32>} : memref<18x128xf32, #tpu.memory_space<vmem>>, vector<1x128xf32>,
    %226 = vector.extract_strided_slice %223 {offsets = [0, 0], sizes = [1, 128], strides = [1, 1]} : vector<16x128xf32> to vector<1x128xf32>
    %c2_97 = arith.constant 2 : index
    %c0_98 = arith.constant 0 : index
    %227 = vector.load %arg15[%c2_97, %c0_98] : memref<18x128xf32, #tpu.memory_space<vmem>>, vector<1x128xf32>
    tpu.vector_store %arg15[%c2_97, %c0_98], %226 {strides = array<i32>} : memref<18x128xf32, #tpu.memory_space<vmem>>, vector<1x128xf32>,
    %228 = vector.extract_strided_slice %217 {offsets = [1, 0], sizes = [1, 128], strides = [1, 1]} : vector<16x128xf32> to vector<1x128xf32>
    %c3_99 = arith.constant 3 : index
    %c0_100 = arith.constant 0 : index
    %229 = vector.load %arg15[%c3_99, %c0_100] : memref<18x128xf32, #tpu.memory_space<vmem>>, vector<1x128xf32>
    tpu.vector_store %arg15[%c3_99, %c0_100], %228 {strides = array<i32>} : memref<18x128xf32, #tpu.memory_space<vmem>>, vector<1x128xf32>,
    %230 = vector.extract_strided_slice %223 {offsets = [1, 0], sizes = [1, 128], strides = [1, 1]} : vector<16x128xf32> to vector<1x128xf32>
    %c4_101 = arith.constant 4 : index
    %c0_102 = arith.constant 0 : index
    %231 = vector.load %arg15[%c4_101, %c0_102] : memref<18x128xf32, #tpu.memory_space<vmem>>, vector<1x128xf32>
    tpu.vector_store %arg15[%c4_101, %c0_102], %230 {strides = array<i32>} : memref<18x128xf32, #tpu.memory_space<vmem>>, vector<1x128xf32>,
    %232 = vector.extract_strided_slice %217 {offsets = [2, 0], sizes = [1, 128], strides = [1, 1]} : vector<16x128xf32> to vector<1x128xf32>
    %c5_103 = arith.constant 5 : index
    %c0_104 = arith.constant 0 : index
    %233 = vector.load %arg15[%c5_103, %c0_104] : memref<18x128xf32, #tpu.memory_space<vmem>>, vector<1x128xf32>
    tpu.vector_store %arg15[%c5_103, %c0_104], %232 {strides = array<i32>} : memref<18x128xf32, #tpu.memory_space<vmem>>, vector<1x128xf32>,
    %234 = vector.extract_strided_slice %223 {offsets = [2, 0], sizes = [1, 128], strides = [1, 1]} : vector<16x128xf32> to vector<1x128xf32>
    %c6_105 = arith.constant 6 : index
    %c0_106 = arith.constant 0 : index
    %235 = vector.load %arg15[%c6_105, %c0_106] : memref<18x128xf32, #tpu.memory_space<vmem>>, vector<1x128xf32>
    tpu.vector_store %arg15[%c6_105, %c0_106], %234 {strides = array<i32>} : memref<18x128xf32, #tpu.memory_space<vmem>>, vector<1x128xf32>,
    %236 = vector.extract_strided_slice %217 {offsets = [3, 0], sizes = [1, 128], strides = [1, 1]} : vector<16x128xf32> to vector<1x128xf32>
    %c7_107 = arith.constant 7 : index
    %c0_108 = arith.constant 0 : index
    %237 = vector.load %arg15[%c7_107, %c0_108] : memref<18x128xf32, #tpu.memory_space<vmem>>, vector<1x128xf32>
    tpu.vector_store %arg15[%c7_107, %c0_108], %236 {strides = array<i32>} : memref<18x128xf32, #tpu.memory_space<vmem>>, vector<1x128xf32>,
    %238 = vector.extract_strided_slice %223 {offsets = [3, 0], sizes = [1, 128], strides = [1, 1]} : vector<16x128xf32> to vector<1x128xf32>
    %c8_109 = arith.constant 8 : index
    %c0_110 = arith.constant 0 : index
    %239 = vector.load %arg15[%c8_109, %c0_110] : memref<18x128xf32, #tpu.memory_space<vmem>>, vector<1x128xf32>
    tpu.vector_store %arg15[%c8_109, %c0_110], %238 {strides = array<i32>} : memref<18x128xf32, #tpu.memory_space<vmem>>, vector<1x128xf32>,
    %240 = vector.extract_strided_slice %217 {offsets = [4, 0], sizes = [1, 128], strides = [1, 1]} : vector<16x128xf32> to vector<1x128xf32>
    %c9 = arith.constant 9 : index
    %c0_111 = arith.constant 0 : index
    %241 = vector.load %arg15[%c9, %c0_111] : memref<18x128xf32, #tpu.memory_space<vmem>>, vector<1x128xf32>
    tpu.vector_store %arg15[%c9, %c0_111], %240 {strides = array<i32>} : memref<18x128xf32, #tpu.memory_space<vmem>>, vector<1x128xf32>,
    %242 = vector.extract_strided_slice %223 {offsets = [4, 0], sizes = [1, 128], strides = [1, 1]} : vector<16x128xf32> to vector<1x128xf32>
    %c10 = arith.constant 10 : index
    %c0_112 = arith.constant 0 : index
    %243 = vector.load %arg15[%c10, %c0_112] : memref<18x128xf32, #tpu.memory_space<vmem>>, vector<1x128xf32>
    tpu.vector_store %arg15[%c10, %c0_112], %242 {strides = array<i32>} : memref<18x128xf32, #tpu.memory_space<vmem>>, vector<1x128xf32>,
    %244 = vector.extract_strided_slice %217 {offsets = [5, 0], sizes = [1, 128], strides = [1, 1]} : vector<16x128xf32> to vector<1x128xf32>
    %c11 = arith.constant 11 : index
    %c0_113 = arith.constant 0 : index
    %245 = vector.load %arg15[%c11, %c0_113] : memref<18x128xf32, #tpu.memory_space<vmem>>, vector<1x128xf32>
    tpu.vector_store %arg15[%c11, %c0_113], %244 {strides = array<i32>} : memref<18x128xf32, #tpu.memory_space<vmem>>, vector<1x128xf32>,
    %246 = vector.extract_strided_slice %223 {offsets = [5, 0], sizes = [1, 128], strides = [1, 1]} : vector<16x128xf32> to vector<1x128xf32>
    %c12 = arith.constant 12 : index
    %c0_114 = arith.constant 0 : index
    %247 = vector.load %arg15[%c12, %c0_114] : memref<18x128xf32, #tpu.memory_space<vmem>>, vector<1x128xf32>
    tpu.vector_store %arg15[%c12, %c0_114], %246 {strides = array<i32>} : memref<18x128xf32, #tpu.memory_space<vmem>>, vector<1x128xf32>,
    %248 = vector.extract_strided_slice %217 {offsets = [6, 0], sizes = [1, 128], strides = [1, 1]} : vector<16x128xf32> to vector<1x128xf32>
    %c13 = arith.constant 13 : index
    %c0_115 = arith.constant 0 : index
    %249 = vector.load %arg15[%c13, %c0_115] : memref<18x128xf32, #tpu.memory_space<vmem>>, vector<1x128xf32>
    tpu.vector_store %arg15[%c13, %c0_115], %248 {strides = array<i32>} : memref<18x128xf32, #tpu.memory_space<vmem>>, vector<1x128xf32>,
    %250 = vector.extract_strided_slice %223 {offsets = [6, 0], sizes = [1, 128], strides = [1, 1]} : vector<16x128xf32> to vector<1x128xf32>
    %c14 = arith.constant 14 : index
    %c0_116 = arith.constant 0 : index
    %251 = vector.load %arg15[%c14, %c0_116] : memref<18x128xf32, #tpu.memory_space<vmem>>, vector<1x128xf32>
    tpu.vector_store %arg15[%c14, %c0_116], %250 {strides = array<i32>} : memref<18x128xf32, #tpu.memory_space<vmem>>, vector<1x128xf32>,
    %252 = vector.extract_strided_slice %217 {offsets = [7, 0], sizes = [1, 128], strides = [1, 1]} : vector<16x128xf32> to vector<1x128xf32>
    %c15 = arith.constant 15 : index
    %c0_117 = arith.constant 0 : index
    %253 = vector.load %arg15[%c15, %c0_117] : memref<18x128xf32, #tpu.memory_space<vmem>>, vector<1x128xf32>
    tpu.vector_store %arg15[%c15, %c0_117], %252 {strides = array<i32>} : memref<18x128xf32, #tpu.memory_space<vmem>>, vector<1x128xf32>,
    %254 = vector.extract_strided_slice %223 {offsets = [7, 0], sizes = [1, 128], strides = [1, 1]} : vector<16x128xf32> to vector<1x128xf32>
    %c16 = arith.constant 16 : index
    %c0_118 = arith.constant 0 : index
    %255 = vector.load %arg15[%c16, %c0_118] : memref<18x128xf32, #tpu.memory_space<vmem>>, vector<1x128xf32>
    tpu.vector_store %arg15[%c16, %c0_118], %254 {strides = array<i32>} : memref<18x128xf32, #tpu.memory_space<vmem>>, vector<1x128xf32>,
    %256 = tpu.iota {dimensions = array<i32: 0>} : vector<16x128xi32>
    %c8_i32 = arith.constant 8 : i32
    %c0_i32_119 = arith.constant 0 : i32
    %257 = arith.cmpi eq, %c8_i32, %c0_i32_119 : i32
    %c1_i32_120 = arith.constant 1 : i32
    %258 = arith.select %257, %c1_i32_120, %c8_i32 : i32
    %259 = vector.broadcast %258 : i32 to vector<16x128xi32>
    %260 = arith.remsi %256, %259 : vector<16x128xi32>
    %c0_i32_121 = arith.constant 0 : i32
    %261 = vector.broadcast %c0_i32_121 : i32 to vector<16x128xi32>
    %262 = arith.cmpi ne, %260, %261 : vector<16x128xi32>
    %c0_i32_122 = arith.constant 0 : i32
    %263 = vector.broadcast %c0_i32_122 : i32 to vector<16x128xi32>
    %264 = arith.cmpi slt, %260, %263 : vector<16x128xi32>
    %c0_i32_123 = arith.constant 0 : i32
    %265 = arith.cmpi slt, %258, %c0_i32_123 : i32
    %266 = vector.broadcast %265 : i1 to vector<16x128xi1>
    %267 = vector.broadcast %266 : vector<16x128xi1> to vector<16x128xi1>
    %268 = arith.xori %264, %267 : vector<16x128xi1>
    %269 = arith.andi %268, %262 : vector<16x128xi1>
    %270 = vector.broadcast %258 : i32 to vector<16x128xi32>
    %271 = arith.addi %260, %270 : vector<16x128xi32>
    %272 = arith.select %269, %271, %260 : vector<16x128xi1>, vector<16x128xi32>
    %cst_124 = arith.constant 0.000000e+00 : f32
    %273 = vector.broadcast %cst_124 : f32 to vector<16x128xf32>
    %c0_125 = arith.constant 0 : index
    %c0_126 = arith.constant 0 : index
    %274 = vector.load %arg15[%c0_125, %c0_126] : memref<18x128xf32, #tpu.memory_space<vmem>>, vector<16x128xf32>
    %c1_i32_127 = arith.constant 1 : i32
    %275 = vector.broadcast %c1_i32_127 : i32 to vector<16x128xi32>
    %276 = arith.cmpi sge, %272, %275 : vector<16x128xi32>
    %277 = arith.select %276, %274, %273 : vector<16x128xi1>, vector<16x128xf32>
    %278 = arith.truncf %277 : vector<16x128xf32> to vector<16x128xbf16>
    %c1_128 = arith.constant 1 : index
    %c0_129 = arith.constant 0 : index
    %279 = vector.load %arg15[%c1_128, %c0_129] : memref<18x128xf32, #tpu.memory_space<vmem>>, vector<16x128xf32>
    %280 = arith.truncf %279 : vector<16x128xf32> to vector<16x128xbf16>
    %c2_130 = arith.constant 2 : index
    %c0_131 = arith.constant 0 : index
    %281 = vector.load %arg15[%c2_130, %c0_131] : memref<18x128xf32, #tpu.memory_space<vmem>>, vector<16x128xf32>
    %c6_i32 = arith.constant 6 : i32
    %282 = vector.broadcast %c6_i32 : i32 to vector<16x128xi32>
    %283 = arith.cmpi sle, %272, %282 : vector<16x128xi32>
    %284 = arith.select %283, %281, %273 : vector<16x128xi1>, vector<16x128xf32>
    %285 = arith.truncf %284 : vector<16x128xf32> to vector<16x128xbf16>
    %c0_132 = arith.constant 0 : index
    %c0_133 = arith.constant 0 : index
    %286 = vector.load %arg8[%c0_132, %c0_133] : memref<512x128xbf16, #tpu.memory_space<vmem>>, vector<128x128xbf16>
    %c128_134 = arith.constant 128 : index
    %c0_135 = arith.constant 0 : index
    %287 = vector.load %arg8[%c128_134, %c0_135] : memref<512x128xbf16, #tpu.memory_space<vmem>>, vector<128x128xbf16>
    %c256_136 = arith.constant 256 : index
    %c0_137 = arith.constant 0 : index
    %288 = vector.load %arg8[%c256_136, %c0_137] : memref<512x128xbf16, #tpu.memory_space<vmem>>, vector<128x128xbf16>
    %c384_138 = arith.constant 384 : index
    %c0_139 = arith.constant 0 : index
    %289 = vector.load %arg8[%c384_138, %c0_139] : memref<512x128xbf16, #tpu.memory_space<vmem>>, vector<128x128xbf16>
    %cst_140 = arith.constant dense<0.000000e+00> : vector<16x128xf32>
    %290 = tpu.matmul %278, %286, %cst_140 {dimension_numbers = #tpu.dot_dimension_numbers<[1], [0], [0], [1], [0, 0, 1, 1], [], []>} : vector<16x128xbf16>, vector<128x128xbf16>, vector<16x128xf32> -> vector<16x128xf32>
    %cst_141 = arith.constant dense<0.000000e+00> : vector<16x128xf32>
    %291 = tpu.matmul %280, %287, %cst_141 {dimension_numbers = #tpu.dot_dimension_numbers<[1], [0], [0], [1], [0, 0, 1, 1], [], []>} : vector<16x128xbf16>, vector<128x128xbf16>, vector<16x128xf32> -> vector<16x128xf32>
    %292 = arith.addf %290, %291 : vector<16x128xf32>
    %cst_142 = arith.constant dense<0.000000e+00> : vector<16x128xf32>
    %293 = tpu.matmul %280, %288, %cst_142 {dimension_numbers = #tpu.dot_dimension_numbers<[1], [0], [0], [1], [0, 0, 1, 1], [], []>} : vector<16x128xbf16>, vector<128x128xbf16>, vector<16x128xf32> -> vector<16x128xf32>
    %cst_143 = arith.constant dense<0.000000e+00> : vector<16x128xf32>
    %294 = tpu.matmul %285, %289, %cst_143 {dimension_numbers = #tpu.dot_dimension_numbers<[1], [0], [0], [1], [0, 0, 1, 1], [], []>} : vector<16x128xbf16>, vector<128x128xbf16>, vector<16x128xf32> -> vector<16x128xf32>
    %295 = arith.addf %293, %294 : vector<16x128xf32>
    %cst_144 = arith.constant dense<0.000000e+00> : vector<128xf32>
    %296 = vector.multi_reduction <add>, %292, %cst_144 [0] : vector<16x128xf32> to vector<128xf32>
    %297 = vector.shape_cast %296 : vector<128xf32> to vector<1x128xf32>
    %298 = arith.mulf %292, %292 : vector<16x128xf32>
    %cst_145 = arith.constant dense<0.000000e+00> : vector<128xf32>
    %299 = vector.multi_reduction <add>, %298, %cst_145 [0] : vector<16x128xf32> to vector<128xf32>
    %300 = vector.shape_cast %299 : vector<128xf32> to vector<1x128xf32>
    %cst_146 = arith.constant dense<0.000000e+00> : vector<128xf32>
    %301 = vector.multi_reduction <add>, %295, %cst_146 [0] : vector<16x128xf32> to vector<128xf32>
    %302 = vector.shape_cast %301 : vector<128xf32> to vector<1x128xf32>
    %303 = arith.addf %297, %302 : vector<1x128xf32>
    %304 = arith.mulf %295, %295 : vector<16x128xf32>
    %cst_147 = arith.constant dense<0.000000e+00> : vector<128xf32>
    %305 = vector.multi_reduction <add>, %304, %cst_147 [0] : vector<16x128xf32> to vector<128xf32>
    %306 = vector.shape_cast %305 : vector<128xf32> to vector<1x128xf32>
    %307 = arith.addf %300, %306 : vector<1x128xf32>
    %308 = tpu.iota {dimensions = array<i32: 0>} : vector<128x8xi32>
    %309 = tpu.iota {dimensions = array<i32: 1>} : vector<128x8xi32>
    %c8_i32_148 = arith.constant 8 : i32
    %c0_i32_149 = arith.constant 0 : i32
    %310 = arith.cmpi eq, %c8_i32_148, %c0_i32_149 : i32
    %c1_i32_150 = arith.constant 1 : i32
    %311 = arith.select %310, %c1_i32_150, %c8_i32_148 : i32
    %312 = vector.broadcast %311 : i32 to vector<128x8xi32>
    %313 = arith.remsi %308, %312 : vector<128x8xi32>
    %c0_i32_151 = arith.constant 0 : i32
    %314 = vector.broadcast %c0_i32_151 : i32 to vector<128x8xi32>
    %315 = arith.cmpi ne, %313, %314 : vector<128x8xi32>
    %c0_i32_152 = arith.constant 0 : i32
    %316 = vector.broadcast %c0_i32_152 : i32 to vector<128x8xi32>
    %317 = arith.cmpi slt, %313, %316 : vector<128x8xi32>
    %c0_i32_153 = arith.constant 0 : i32
    %318 = arith.cmpi slt, %311, %c0_i32_153 : i32
    %319 = vector.broadcast %318 : i1 to vector<128x8xi1>
    %320 = vector.broadcast %319 : vector<128x8xi1> to vector<128x8xi1>
    %321 = arith.xori %317, %320 : vector<128x8xi1>
    %322 = arith.andi %321, %315 : vector<128x8xi1>
    %323 = vector.broadcast %311 : i32 to vector<128x8xi32>
    %324 = arith.addi %313, %323 : vector<128x8xi32>
    %325 = arith.select %322, %324, %313 : vector<128x8xi1>, vector<128x8xi32>
    %326 = arith.cmpi eq, %325, %309 : vector<128x8xi32>
    %327 = arith.extui %326 : vector<128x8xi1> to vector<128x8xi32>
    %328 = arith.sitofp %327 : vector<128x8xi32> to vector<128x8xf32>
    %cst_154 = arith.constant dense<0.000000e+00> : vector<1x8xf32>
    %329 = tpu.matmul %303, %328, %cst_154 {dimension_numbers = #tpu.dot_dimension_numbers<[1], [0], [0], [1], [0, 0, 1, 1], [], []>} : vector<1x128xf32>, vector<128x8xf32>, vector<1x8xf32> -> vector<1x8xf32>
    %cst_155 = arith.constant dense<0.000000e+00> : vector<1x8xf32>
    %330 = tpu.matmul %307, %328, %cst_155 {dimension_numbers = #tpu.dot_dimension_numbers<[1], [0], [0], [1], [0, 0, 1, 1], [], []>} : vector<1x128xf32>, vector<128x8xf32>, vector<1x8xf32> -> vector<1x8xf32>
    %cst_156 = arith.constant 0.001953125 : f32
    %331 = vector.broadcast %cst_156 : f32 to vector<1x8xf32>
    %332 = arith.mulf %329, %331 : vector<1x8xf32>
    %cst_157 = arith.constant 0.001953125 : f32
    %333 = vector.broadcast %cst_157 : f32 to vector<1x8xf32>
    %334 = arith.mulf %330, %333 : vector<1x8xf32>
    %335 = arith.mulf %332, %332 : vector<1x8xf32>
    %336 = arith.subf %334, %335 : vector<1x8xf32>
    %cst_158 = arith.constant 0.000000e+00 : f32
    %337 = vector.broadcast %cst_158 : f32 to vector<1x8xf32>
    %338 = arith.maximumf %336, %337 : vector<1x8xf32>
    %c0_159 = arith.constant 0 : index
    %c0_160 = arith.constant 0 : index
    %339 = vector.load %arg9[%c0_159, %c0_160] : memref<1x8xf32, #tpu.memory_space<vmem>>, vector<1x8xf32>
    %cst_161 = arith.constant 9.99999974E-6 : f32
    %340 = vector.broadcast %cst_161 : f32 to vector<1x8xf32>
    %341 = arith.addf %338, %340 : vector<1x8xf32>
    %342 = math.rsqrt %341 : vector<1x8xf32>
    %343 = arith.mulf %339, %342 : vector<1x8xf32>
    %c0_162 = arith.constant 0 : index
    %c0_163 = arith.constant 0 : index
    %344 = vector.load %arg10[%c0_162, %c0_163] : memref<1x8xf32, #tpu.memory_space<vmem>>, vector<1x8xf32>
    %345 = arith.mulf %332, %343 : vector<1x8xf32>
    %346 = arith.subf %344, %345 : vector<1x8xf32>
    %347 = tpu.iota {dimensions = array<i32: 0>} : vector<8x128xi32>
    %348 = tpu.iota {dimensions = array<i32: 1>} : vector<8x128xi32>
    %c8_i32_164 = arith.constant 8 : i32
    %c0_i32_165 = arith.constant 0 : i32
    %349 = arith.cmpi eq, %c8_i32_164, %c0_i32_165 : i32
    %c1_i32_166 = arith.constant 1 : i32
    %350 = arith.select %349, %c1_i32_166, %c8_i32_164 : i32
    %351 = vector.broadcast %350 : i32 to vector<8x128xi32>
    %352 = arith.remsi %348, %351 : vector<8x128xi32>
    %c0_i32_167 = arith.constant 0 : i32
    %353 = vector.broadcast %c0_i32_167 : i32 to vector<8x128xi32>
    %354 = arith.cmpi ne, %352, %353 : vector<8x128xi32>
    %c0_i32_168 = arith.constant 0 : i32
    %355 = vector.broadcast %c0_i32_168 : i32 to vector<8x128xi32>
    %356 = arith.cmpi slt, %352, %355 : vector<8x128xi32>
    %c0_i32_169 = arith.constant 0 : i32
    %357 = arith.cmpi slt, %350, %c0_i32_169 : i32
    %358 = vector.broadcast %357 : i1 to vector<8x128xi1>
    %359 = vector.broadcast %358 : vector<8x128xi1> to vector<8x128xi1>
    %360 = arith.xori %356, %359 : vector<8x128xi1>
    %361 = arith.andi %360, %354 : vector<8x128xi1>
    %362 = vector.broadcast %350 : i32 to vector<8x128xi32>
    %363 = arith.addi %352, %362 : vector<8x128xi32>
    %364 = arith.select %361, %363, %352 : vector<8x128xi1>, vector<8x128xi32>
    %365 = arith.cmpi eq, %364, %347 : vector<8x128xi32>
    %366 = arith.extui %365 : vector<8x128xi1> to vector<8x128xi32>
    %367 = arith.sitofp %366 : vector<8x128xi32> to vector<8x128xf32>
    %cst_170 = arith.constant dense<0.000000e+00> : vector<1x128xf32>
    %368 = tpu.matmul %343, %367, %cst_170 {dimension_numbers = #tpu.dot_dimension_numbers<[1], [0], [0], [1], [0, 0, 1, 1], [], []>} : vector<1x8xf32>, vector<8x128xf32>, vector<1x128xf32> -> vector<1x128xf32>
    %cst_171 = arith.constant dense<0.000000e+00> : vector<1x128xf32>
    %369 = tpu.matmul %346, %367, %cst_171 {dimension_numbers = #tpu.dot_dimension_numbers<[1], [0], [0], [1], [0, 0, 1, 1], [], []>} : vector<1x8xf32>, vector<8x128xf32>, vector<1x128xf32> -> vector<1x128xf32>
    %370 = vector.broadcast %368 : vector<1x128xf32> to vector<16x128xf32>
    %371 = arith.mulf %292, %370 : vector<16x128xf32>
    %372 = vector.broadcast %369 : vector<1x128xf32> to vector<16x128xf32>
    %373 = arith.addf %371, %372 : vector<16x128xf32>
    %cst_172 = arith.constant 0.000000e+00 : f32
    %374 = vector.broadcast %cst_172 : f32 to vector<16x128xf32>
    %375 = arith.maximumf %373, %374 : vector<16x128xf32>
    %376 = vector.broadcast %368 : vector<1x128xf32> to vector<16x128xf32>
    %377 = arith.mulf %295, %376 : vector<16x128xf32>
    %378 = vector.broadcast %369 : vector<1x128xf32> to vector<16x128xf32>
    %379 = arith.addf %377, %378 : vector<16x128xf32>
    %cst_173 = arith.constant 0.000000e+00 : f32
    %380 = vector.broadcast %cst_173 : f32 to vector<16x128xf32>
    %381 = arith.maximumf %379, %380 : vector<16x128xf32>
    %382 = vector.extract_strided_slice %375 {offsets = [0, 0], sizes = [1, 128], strides = [1, 1]} : vector<16x128xf32> to vector<1x128xf32>
    %c1_174 = arith.constant 1 : index
    %c0_175 = arith.constant 0 : index
    %383 = vector.load %arg16[%c1_174, %c0_175] : memref<34x128xf32, #tpu.memory_space<vmem>>, vector<1x128xf32>
    tpu.vector_store %arg16[%c1_174, %c0_175], %382 {strides = array<i32>} : memref<34x128xf32, #tpu.memory_space<vmem>>, vector<1x128xf32>,
    %384 = vector.extract_strided_slice %381 {offsets = [0, 0], sizes = [1, 128], strides = [1, 1]} : vector<16x128xf32> to vector<1x128xf32>
    %c2_176 = arith.constant 2 : index
    %c0_177 = arith.constant 0 : index
    %385 = vector.load %arg16[%c2_176, %c0_177] : memref<34x128xf32, #tpu.memory_space<vmem>>, vector<1x128xf32>
    tpu.vector_store %arg16[%c2_176, %c0_177], %384 {strides = array<i32>} : memref<34x128xf32, #tpu.memory_space<vmem>>, vector<1x128xf32>,
    %386 = vector.extract_strided_slice %375 {offsets = [1, 0], sizes = [1, 128], strides = [1, 1]} : vector<16x128xf32> to vector<1x128xf32>
    %c3_178 = arith.constant 3 : index
    %c0_179 = arith.constant 0 : index
    %387 = vector.load %arg16[%c3_178, %c0_179] : memref<34x128xf32, #tpu.memory_space<vmem>>, vector<1x128xf32>
    tpu.vector_store %arg16[%c3_178, %c0_179], %386 {strides = array<i32>} : memref<34x128xf32, #tpu.memory_space<vmem>>, vector<1x128xf32>,
    %388 = vector.extract_strided_slice %381 {offsets = [1, 0], sizes = [1, 128], strides = [1, 1]} : vector<16x128xf32> to vector<1x128xf32>
    %c4_180 = arith.constant 4 : index
    %c0_181 = arith.constant 0 : index
    %389 = vector.load %arg16[%c4_180, %c0_181] : memref<34x128xf32, #tpu.memory_space<vmem>>, vector<1x128xf32>
    tpu.vector_store %arg16[%c4_180, %c0_181], %388 {strides = array<i32>} : memref<34x128xf32, #tpu.memory_space<vmem>>, vector<1x128xf32>,
    %390 = vector.extract_strided_slice %375 {offsets = [2, 0], sizes = [1, 128], strides = [1, 1]} : vector<16x128xf32> to vector<1x128xf32>
    %c5_182 = arith.constant 5 : index
    %c0_183 = arith.constant 0 : index
    %391 = vector.load %arg16[%c5_182, %c0_183] : memref<34x128xf32, #tpu.memory_space<vmem>>, vector<1x128xf32>
    tpu.vector_store %arg16[%c5_182, %c0_183], %390 {strides = array<i32>} : memref<34x128xf32, #tpu.memory_space<vmem>>, vector<1x128xf32>,
    %392 = vector.extract_strided_slice %381 {offsets = [2, 0], sizes = [1, 128], strides = [1, 1]} : vector<16x128xf32> to vector<1x128xf32>
    %c6_184 = arith.constant 6 : index
    %c0_185 = arith.constant 0 : index
    %393 = vector.load %arg16[%c6_184, %c0_185] : memref<34x128xf32, #tpu.memory_space<vmem>>, vector<1x128xf32>
    tpu.vector_store %arg16[%c6_184, %c0_185], %392 {strides = array<i32>} : memref<34x128xf32, #tpu.memory_space<vmem>>, vector<1x128xf32>,
    %394 = vector.extract_strided_slice %375 {offsets = [3, 0], sizes = [1, 128], strides = [1, 1]} : vector<16x128xf32> to vector<1x128xf32>
    %c7_186 = arith.constant 7 : index
    %c0_187 = arith.constant 0 : index
    %395 = vector.load %arg16[%c7_186, %c0_187] : memref<34x128xf32, #tpu.memory_space<vmem>>, vector<1x128xf32>
    tpu.vector_store %arg16[%c7_186, %c0_187], %394 {strides = array<i32>} : memref<34x128xf32, #tpu.memory_space<vmem>>, vector<1x128xf32>,
    %396 = vector.extract_strided_slice %381 {offsets = [3, 0], sizes = [1, 128], strides = [1, 1]} : vector<16x128xf32> to vector<1x128xf32>
    %c8_188 = arith.constant 8 : index
    %c0_189 = arith.constant 0 : index
    %397 = vector.load %arg16[%c8_188, %c0_189] : memref<34x128xf32, #tpu.memory_space<vmem>>, vector<1x128xf32>
    tpu.vector_store %arg16[%c8_188, %c0_189], %396 {strides = array<i32>} : memref<34x128xf32, #tpu.memory_space<vmem>>, vector<1x128xf32>,
    %398 = vector.extract_strided_slice %375 {offsets = [4, 0], sizes = [1, 128], strides = [1, 1]} : vector<16x128xf32> to vector<1x128xf32>
    %c9_190 = arith.constant 9 : index
    %c0_191 = arith.constant 0 : index
    %399 = vector.load %arg16[%c9_190, %c0_191] : memref<34x128xf32, #tpu.memory_space<vmem>>, vector<1x128xf32>
    tpu.vector_store %arg16[%c9_190, %c0_191], %398 {strides = array<i32>} : memref<34x128xf32, #tpu.memory_space<vmem>>, vector<1x128xf32>,
    %400 = vector.extract_strided_slice %381 {offsets = [4, 0], sizes = [1, 128], strides = [1, 1]} : vector<16x128xf32> to vector<1x128xf32>
    %c10_192 = arith.constant 10 : index
    %c0_193 = arith.constant 0 : index
    %401 = vector.load %arg16[%c10_192, %c0_193] : memref<34x128xf32, #tpu.memory_space<vmem>>, vector<1x128xf32>
    tpu.vector_store %arg16[%c10_192, %c0_193], %400 {strides = array<i32>} : memref<34x128xf32, #tpu.memory_space<vmem>>, vector<1x128xf32>,
    %402 = vector.extract_strided_slice %375 {offsets = [5, 0], sizes = [1, 128], strides = [1, 1]} : vector<16x128xf32> to vector<1x128xf32>
    %c11_194 = arith.constant 11 : index
    %c0_195 = arith.constant 0 : index
    %403 = vector.load %arg16[%c11_194, %c0_195] : memref<34x128xf32, #tpu.memory_space<vmem>>, vector<1x128xf32>
    tpu.vector_store %arg16[%c11_194, %c0_195], %402 {strides = array<i32>} : memref<34x128xf32, #tpu.memory_space<vmem>>, vector<1x128xf32>,
    %404 = vector.extract_strided_slice %381 {offsets = [5, 0], sizes = [1, 128], strides = [1, 1]} : vector<16x128xf32> to vector<1x128xf32>
    %c12_196 = arith.constant 12 : index
    %c0_197 = arith.constant 0 : index
    %405 = vector.load %arg16[%c12_196, %c0_197] : memref<34x128xf32, #tpu.memory_space<vmem>>, vector<1x128xf32>
    tpu.vector_store %arg16[%c12_196, %c0_197], %404 {strides = array<i32>} : memref<34x128xf32, #tpu.memory_space<vmem>>, vector<1x128xf32>,
    %406 = vector.extract_strided_slice %375 {offsets = [6, 0], sizes = [1, 128], strides = [1, 1]} : vector<16x128xf32> to vector<1x128xf32>
    %c13_198 = arith.constant 13 : index
    %c0_199 = arith.constant 0 : index
    %407 = vector.load %arg16[%c13_198, %c0_199] : memref<34x128xf32, #tpu.memory_space<vmem>>, vector<1x128xf32>
    tpu.vector_store %arg16[%c13_198, %c0_199], %406 {strides = array<i32>} : memref<34x128xf32, #tpu.memory_space<vmem>>, vector<1x128xf32>,
    %408 = vector.extract_strided_slice %381 {offsets = [6, 0], sizes = [1, 128], strides = [1, 1]} : vector<16x128xf32> to vector<1x128xf32>
    %c14_200 = arith.constant 14 : index
    %c0_201 = arith.constant 0 : index
    %409 = vector.load %arg16[%c14_200, %c0_201] : memref<34x128xf32, #tpu.memory_space<vmem>>, vector<1x128xf32>
    tpu.vector_store %arg16[%c14_200, %c0_201], %408 {strides = array<i32>} : memref<34x128xf32, #tpu.memory_space<vmem>>, vector<1x128xf32>,
    %410 = vector.extract_strided_slice %375 {offsets = [7, 0], sizes = [1, 128], strides = [1, 1]} : vector<16x128xf32> to vector<1x128xf32>
    %c15_202 = arith.constant 15 : index
    %c0_203 = arith.constant 0 : index
    %411 = vector.load %arg16[%c15_202, %c0_203] : memref<34x128xf32, #tpu.memory_space<vmem>>, vector<1x128xf32>
    tpu.vector_store %arg16[%c15_202, %c0_203], %410 {strides = array<i32>} : memref<34x128xf32, #tpu.memory_space<vmem>>, vector<1x128xf32>,
    %412 = vector.extract_strided_slice %381 {offsets = [7, 0], sizes = [1, 128], strides = [1, 1]} : vector<16x128xf32> to vector<1x128xf32>
    %c16_204 = arith.constant 16 : index
    %c0_205 = arith.constant 0 : index
    %413 = vector.load %arg16[%c16_204, %c0_205] : memref<34x128xf32, #tpu.memory_space<vmem>>, vector<1x128xf32>
    tpu.vector_store %arg16[%c16_204, %c0_205], %412 {strides = array<i32>} : memref<34x128xf32, #tpu.memory_space<vmem>>, vector<1x128xf32>,
    %414 = vector.extract_strided_slice %375 {offsets = [8, 0], sizes = [1, 128], strides = [1, 1]} : vector<16x128xf32> to vector<1x128xf32>
    %c17 = arith.constant 17 : index
    %c0_206 = arith.constant 0 : index
    %415 = vector.load %arg16[%c17, %c0_206] : memref<34x128xf32, #tpu.memory_space<vmem>>, vector<1x128xf32>
    tpu.vector_store %arg16[%c17, %c0_206], %414 {strides = array<i32>} : memref<34x128xf32, #tpu.memory_space<vmem>>, vector<1x128xf32>,
    %416 = vector.extract_strided_slice %381 {offsets = [8, 0], sizes = [1, 128], strides = [1, 1]} : vector<16x128xf32> to vector<1x128xf32>
    %c18 = arith.constant 18 : index
    %c0_207 = arith.constant 0 : index
    %417 = vector.load %arg16[%c18, %c0_207] : memref<34x128xf32, #tpu.memory_space<vmem>>, vector<1x128xf32>
    tpu.vector_store %arg16[%c18, %c0_207], %416 {strides = array<i32>} : memref<34x128xf32, #tpu.memory_space<vmem>>, vector<1x128xf32>,
    %418 = vector.extract_strided_slice %375 {offsets = [9, 0], sizes = [1, 128], strides = [1, 1]} : vector<16x128xf32> to vector<1x128xf32>
    %c19 = arith.constant 19 : index
    %c0_208 = arith.constant 0 : index
    %419 = vector.load %arg16[%c19, %c0_208] : memref<34x128xf32, #tpu.memory_space<vmem>>, vector<1x128xf32>
    tpu.vector_store %arg16[%c19, %c0_208], %418 {strides = array<i32>} : memref<34x128xf32, #tpu.memory_space<vmem>>, vector<1x128xf32>,
    %420 = vector.extract_strided_slice %381 {offsets = [9, 0], sizes = [1, 128], strides = [1, 1]} : vector<16x128xf32> to vector<1x128xf32>
    %c20 = arith.constant 20 : index
    %c0_209 = arith.constant 0 : index
    %421 = vector.load %arg16[%c20, %c0_209] : memref<34x128xf32, #tpu.memory_space<vmem>>, vector<1x128xf32>
    tpu.vector_store %arg16[%c20, %c0_209], %420 {strides = array<i32>} : memref<34x128xf32, #tpu.memory_space<vmem>>, vector<1x128xf32>,
    %422 = vector.extract_strided_slice %375 {offsets = [10, 0], sizes = [1, 128], strides = [1, 1]} : vector<16x128xf32> to vector<1x128xf32>
    %c21 = arith.constant 21 : index
    %c0_210 = arith.constant 0 : index
    %423 = vector.load %arg16[%c21, %c0_210] : memref<34x128xf32, #tpu.memory_space<vmem>>, vector<1x128xf32>
    tpu.vector_store %arg16[%c21, %c0_210], %422 {strides = array<i32>} : memref<34x128xf32, #tpu.memory_space<vmem>>, vector<1x128xf32>,
    %424 = vector.extract_strided_slice %381 {offsets = [10, 0], sizes = [1, 128], strides = [1, 1]} : vector<16x128xf32> to vector<1x128xf32>
    %c22 = arith.constant 22 : index
    %c0_211 = arith.constant 0 : index
    %425 = vector.load %arg16[%c22, %c0_211] : memref<34x128xf32, #tpu.memory_space<vmem>>, vector<1x128xf32>
    tpu.vector_store %arg16[%c22, %c0_211], %424 {strides = array<i32>} : memref<34x128xf32, #tpu.memory_space<vmem>>, vector<1x128xf32>,
    %426 = vector.extract_strided_slice %375 {offsets = [11, 0], sizes = [1, 128], strides = [1, 1]} : vector<16x128xf32> to vector<1x128xf32>
    %c23 = arith.constant 23 : index
    %c0_212 = arith.constant 0 : index
    %427 = vector.load %arg16[%c23, %c0_212] : memref<34x128xf32, #tpu.memory_space<vmem>>, vector<1x128xf32>
    tpu.vector_store %arg16[%c23, %c0_212], %426 {strides = array<i32>} : memref<34x128xf32, #tpu.memory_space<vmem>>, vector<1x128xf32>,
    %428 = vector.extract_strided_slice %381 {offsets = [11, 0], sizes = [1, 128], strides = [1, 1]} : vector<16x128xf32> to vector<1x128xf32>
    %c24 = arith.constant 24 : index
    %c0_213 = arith.constant 0 : index
    %429 = vector.load %arg16[%c24, %c0_213] : memref<34x128xf32, #tpu.memory_space<vmem>>, vector<1x128xf32>
    tpu.vector_store %arg16[%c24, %c0_213], %428 {strides = array<i32>} : memref<34x128xf32, #tpu.memory_space<vmem>>, vector<1x128xf32>,
    %430 = vector.extract_strided_slice %375 {offsets = [12, 0], sizes = [1, 128], strides = [1, 1]} : vector<16x128xf32> to vector<1x128xf32>
    %c25 = arith.constant 25 : index
    %c0_214 = arith.constant 0 : index
    %431 = vector.load %arg16[%c25, %c0_214] : memref<34x128xf32, #tpu.memory_space<vmem>>, vector<1x128xf32>
    tpu.vector_store %arg16[%c25, %c0_214], %430 {strides = array<i32>} : memref<34x128xf32, #tpu.memory_space<vmem>>, vector<1x128xf32>,
    %432 = vector.extract_strided_slice %381 {offsets = [12, 0], sizes = [1, 128], strides = [1, 1]} : vector<16x128xf32> to vector<1x128xf32>
    %c26 = arith.constant 26 : index
    %c0_215 = arith.constant 0 : index
    %433 = vector.load %arg16[%c26, %c0_215] : memref<34x128xf32, #tpu.memory_space<vmem>>, vector<1x128xf32>
    tpu.vector_store %arg16[%c26, %c0_215], %432 {strides = array<i32>} : memref<34x128xf32, #tpu.memory_space<vmem>>, vector<1x128xf32>,
    %434 = vector.extract_strided_slice %375 {offsets = [13, 0], sizes = [1, 128], strides = [1, 1]} : vector<16x128xf32> to vector<1x128xf32>
    %c27 = arith.constant 27 : index
    %c0_216 = arith.constant 0 : index
    %435 = vector.load %arg16[%c27, %c0_216] : memref<34x128xf32, #tpu.memory_space<vmem>>, vector<1x128xf32>
    tpu.vector_store %arg16[%c27, %c0_216], %434 {strides = array<i32>} : memref<34x128xf32, #tpu.memory_space<vmem>>, vector<1x128xf32>,
    %436 = vector.extract_strided_slice %381 {offsets = [13, 0], sizes = [1, 128], strides = [1, 1]} : vector<16x128xf32> to vector<1x128xf32>
    %c28 = arith.constant 28 : index
    %c0_217 = arith.constant 0 : index
    %437 = vector.load %arg16[%c28, %c0_217] : memref<34x128xf32, #tpu.memory_space<vmem>>, vector<1x128xf32>
    tpu.vector_store %arg16[%c28, %c0_217], %436 {strides = array<i32>} : memref<34x128xf32, #tpu.memory_space<vmem>>, vector<1x128xf32>,
    %438 = vector.extract_strided_slice %375 {offsets = [14, 0], sizes = [1, 128], strides = [1, 1]} : vector<16x128xf32> to vector<1x128xf32>
    %c29 = arith.constant 29 : index
    %c0_218 = arith.constant 0 : index
    %439 = vector.load %arg16[%c29, %c0_218] : memref<34x128xf32, #tpu.memory_space<vmem>>, vector<1x128xf32>
    tpu.vector_store %arg16[%c29, %c0_218], %438 {strides = array<i32>} : memref<34x128xf32, #tpu.memory_space<vmem>>, vector<1x128xf32>,
    %440 = vector.extract_strided_slice %381 {offsets = [14, 0], sizes = [1, 128], strides = [1, 1]} : vector<16x128xf32> to vector<1x128xf32>
    %c30 = arith.constant 30 : index
    %c0_219 = arith.constant 0 : index
    %441 = vector.load %arg16[%c30, %c0_219] : memref<34x128xf32, #tpu.memory_space<vmem>>, vector<1x128xf32>
    tpu.vector_store %arg16[%c30, %c0_219], %440 {strides = array<i32>} : memref<34x128xf32, #tpu.memory_space<vmem>>, vector<1x128xf32>,
    %442 = vector.extract_strided_slice %375 {offsets = [15, 0], sizes = [1, 128], strides = [1, 1]} : vector<16x128xf32> to vector<1x128xf32>
    %c31 = arith.constant 31 : index
    %c0_220 = arith.constant 0 : index
    %443 = vector.load %arg16[%c31, %c0_220] : memref<34x128xf32, #tpu.memory_space<vmem>>, vector<1x128xf32>
    tpu.vector_store %arg16[%c31, %c0_220], %442 {strides = array<i32>} : memref<34x128xf32, #tpu.memory_space<vmem>>, vector<1x128xf32>,
    %444 = vector.extract_strided_slice %381 {offsets = [15, 0], sizes = [1, 128], strides = [1, 1]} : vector<16x128xf32> to vector<1x128xf32>
    %c32 = arith.constant 32 : index
    %c0_221 = arith.constant 0 : index
    %445 = vector.load %arg16[%c32, %c0_221] : memref<34x128xf32, #tpu.memory_space<vmem>>, vector<1x128xf32>
    tpu.vector_store %arg16[%c32, %c0_221], %444 {strides = array<i32>} : memref<34x128xf32, #tpu.memory_space<vmem>>, vector<1x128xf32>,
    %446 = tpu.iota {dimensions = array<i32: 0>} : vector<32x128xi32>
    %c16_i32_222 = arith.constant 16 : i32
    %c0_i32_223 = arith.constant 0 : i32
    %447 = arith.cmpi eq, %c16_i32_222, %c0_i32_223 : i32
    %c1_i32_224 = arith.constant 1 : i32
    %448 = arith.select %447, %c1_i32_224, %c16_i32_222 : i32
    %449 = vector.broadcast %448 : i32 to vector<32x128xi32>
    %450 = arith.remsi %446, %449 : vector<32x128xi32>
    %c0_i32_225 = arith.constant 0 : i32
    %451 = vector.broadcast %c0_i32_225 : i32 to vector<32x128xi32>
    %452 = arith.cmpi ne, %450, %451 : vector<32x128xi32>
    %c0_i32_226 = arith.constant 0 : i32
    %453 = vector.broadcast %c0_i32_226 : i32 to vector<32x128xi32>
    %454 = arith.cmpi slt, %450, %453 : vector<32x128xi32>
    %c0_i32_227 = arith.constant 0 : i32
    %455 = arith.cmpi slt, %448, %c0_i32_227 : i32
    %456 = vector.broadcast %455 : i1 to vector<32x128xi1>
    %457 = vector.broadcast %456 : vector<32x128xi1> to vector<32x128xi1>
    %458 = arith.xori %454, %457 : vector<32x128xi1>
    %459 = arith.andi %458, %452 : vector<32x128xi1>
    %460 = vector.broadcast %448 : i32 to vector<32x128xi32>
    %461 = arith.addi %450, %460 : vector<32x128xi32>
    %462 = arith.select %459, %461, %450 : vector<32x128xi1>, vector<32x128xi32>
    %cst_228 = arith.constant 0.000000e+00 : f32
    %463 = vector.broadcast %cst_228 : f32 to vector<32x128xf32>
    %c0_229 = arith.constant 0 : index
    %c0_230 = arith.constant 0 : index
    %464 = vector.load %arg16[%c0_229, %c0_230] : memref<34x128xf32, #tpu.memory_space<vmem>>, vector<32x128xf32>
    %c1_i32_231 = arith.constant 1 : i32
    %465 = vector.broadcast %c1_i32_231 : i32 to vector<32x128xi32>
    %466 = arith.cmpi sge, %462, %465 : vector<32x128xi32>
    %467 = arith.select %466, %464, %463 : vector<32x128xi1>, vector<32x128xf32>
    %468 = arith.truncf %467 : vector<32x128xf32> to vector<32x128xbf16>
    %c1_232 = arith.constant 1 : index
    %c0_233 = arith.constant 0 : index
    %469 = vector.load %arg16[%c1_232, %c0_233] : memref<34x128xf32, #tpu.memory_space<vmem>>, vector<32x128xf32>
    %470 = arith.truncf %469 : vector<32x128xf32> to vector<32x128xbf16>
    %c2_234 = arith.constant 2 : index
    %c0_235 = arith.constant 0 : index
    %471 = vector.load %arg16[%c2_234, %c0_235] : memref<34x128xf32, #tpu.memory_space<vmem>>, vector<32x128xf32>
    %c14_i32 = arith.constant 14 : i32
    %472 = vector.broadcast %c14_i32 : i32 to vector<32x128xi32>
    %473 = arith.cmpi sle, %462, %472 : vector<32x128xi32>
    %474 = arith.select %473, %471, %463 : vector<32x128xi1>, vector<32x128xf32>
    %475 = arith.truncf %474 : vector<32x128xf32> to vector<32x128xbf16>
    %c0_236 = arith.constant 0 : index
    %c0_237 = arith.constant 0 : index
    %476 = vector.load %arg11[%c0_236, %c0_237] : memref<512x128xbf16, #tpu.memory_space<vmem>>, vector<128x128xbf16>
    %c128_238 = arith.constant 128 : index
    %c0_239 = arith.constant 0 : index
    %477 = vector.load %arg11[%c128_238, %c0_239] : memref<512x128xbf16, #tpu.memory_space<vmem>>, vector<128x128xbf16>
    %c256_240 = arith.constant 256 : index
    %c0_241 = arith.constant 0 : index
    %478 = vector.load %arg11[%c256_240, %c0_241] : memref<512x128xbf16, #tpu.memory_space<vmem>>, vector<128x128xbf16>
    %c384_242 = arith.constant 384 : index
    %c0_243 = arith.constant 0 : index
    %479 = vector.load %arg11[%c384_242, %c0_243] : memref<512x128xbf16, #tpu.memory_space<vmem>>, vector<128x128xbf16>
    %cst_244 = arith.constant dense<0.000000e+00> : vector<32x128xf32>
    %480 = tpu.matmul %468, %476, %cst_244 {dimension_numbers = #tpu.dot_dimension_numbers<[1], [0], [0], [1], [0, 0, 1, 1], [], []>} : vector<32x128xbf16>, vector<128x128xbf16>, vector<32x128xf32> -> vector<32x128xf32>
    %cst_245 = arith.constant dense<0.000000e+00> : vector<32x128xf32>
    %481 = tpu.matmul %470, %477, %cst_245 {dimension_numbers = #tpu.dot_dimension_numbers<[1], [0], [0], [1], [0, 0, 1, 1], [], []>} : vector<32x128xbf16>, vector<128x128xbf16>, vector<32x128xf32> -> vector<32x128xf32>
    %482 = arith.addf %480, %481 : vector<32x128xf32>
    %cst_246 = arith.constant dense<0.000000e+00> : vector<32x128xf32>
    %483 = tpu.matmul %470, %478, %cst_246 {dimension_numbers = #tpu.dot_dimension_numbers<[1], [0], [0], [1], [0, 0, 1, 1], [], []>} : vector<32x128xbf16>, vector<128x128xbf16>, vector<32x128xf32> -> vector<32x128xf32>
    %cst_247 = arith.constant dense<0.000000e+00> : vector<32x128xf32>
    %484 = tpu.matmul %475, %479, %cst_247 {dimension_numbers = #tpu.dot_dimension_numbers<[1], [0], [0], [1], [0, 0, 1, 1], [], []>} : vector<32x128xbf16>, vector<128x128xbf16>, vector<32x128xf32> -> vector<32x128xf32>
    %485 = arith.addf %483, %484 : vector<32x128xf32>
    %c0_248 = arith.constant 0 : index
    %c0_249 = arith.constant 0 : index
    %486 = vector.load %arg12[%c0_248, %c0_249] : memref<1x128xf32, #tpu.memory_space<vmem>>, vector<1x128xf32>
    %487 = vector.broadcast %486 : vector<1x128xf32> to vector<32x128xf32>
    %488 = arith.addf %482, %487 : vector<32x128xf32>
    %489 = math.tanh %488 : vector<32x128xf32>
    %490 = vector.broadcast %486 : vector<1x128xf32> to vector<32x128xf32>
    %491 = arith.addf %485, %490 : vector<32x128xf32>
    %492 = math.tanh %491 : vector<32x128xf32>
    %493 = vector.extract_strided_slice %489 {offsets = [0, 0], sizes = [1, 128], strides = [1, 1]} : vector<32x128xf32> to vector<1x128xf32>
    %c0_250 = arith.constant 0 : index
    %c0_251 = arith.constant 0 : index
    %494 = vector.load %arg13[%c0_250, %c0_251] : memref<64x128xf32, #tpu.memory_space<vmem>>, vector<1x128xf32>
    tpu.vector_store %arg13[%c0_250, %c0_251], %493 {strides = array<i32>} : memref<64x128xf32, #tpu.memory_space<vmem>>, vector<1x128xf32>,
    %495 = vector.extract_strided_slice %492 {offsets = [0, 0], sizes = [1, 128], strides = [1, 1]} : vector<32x128xf32> to vector<1x128xf32>
    %c1_252 = arith.constant 1 : index
    %c0_253 = arith.constant 0 : index
    %496 = vector.load %arg13[%c1_252, %c0_253] : memref<64x128xf32, #tpu.memory_space<vmem>>, vector<1x128xf32>
    tpu.vector_store %arg13[%c1_252, %c0_253], %495 {strides = array<i32>} : memref<64x128xf32, #tpu.memory_space<vmem>>, vector<1x128xf32>,
    %497 = vector.extract_strided_slice %489 {offsets = [1, 0], sizes = [1, 128], strides = [1, 1]} : vector<32x128xf32> to vector<1x128xf32>
    %c2_254 = arith.constant 2 : index
    %c0_255 = arith.constant 0 : index
    %498 = vector.load %arg13[%c2_254, %c0_255] : memref<64x128xf32, #tpu.memory_space<vmem>>, vector<1x128xf32>
    tpu.vector_store %arg13[%c2_254, %c0_255], %497 {strides = array<i32>} : memref<64x128xf32, #tpu.memory_space<vmem>>, vector<1x128xf32>,
    %499 = vector.extract_strided_slice %492 {offsets = [1, 0], sizes = [1, 128], strides = [1, 1]} : vector<32x128xf32> to vector<1x128xf32>
    %c3_256 = arith.constant 3 : index
    %c0_257 = arith.constant 0 : index
    %500 = vector.load %arg13[%c3_256, %c0_257] : memref<64x128xf32, #tpu.memory_space<vmem>>, vector<1x128xf32>
    tpu.vector_store %arg13[%c3_256, %c0_257], %499 {strides = array<i32>} : memref<64x128xf32, #tpu.memory_space<vmem>>, vector<1x128xf32>,
    %501 = vector.extract_strided_slice %489 {offsets = [2, 0], sizes = [1, 128], strides = [1, 1]} : vector<32x128xf32> to vector<1x128xf32>
    %c4_258 = arith.constant 4 : index
    %c0_259 = arith.constant 0 : index
    %502 = vector.load %arg13[%c4_258, %c0_259] : memref<64x128xf32, #tpu.memory_space<vmem>>, vector<1x128xf32>
    tpu.vector_store %arg13[%c4_258, %c0_259], %501 {strides = array<i32>} : memref<64x128xf32, #tpu.memory_space<vmem>>, vector<1x128xf32>,
    %503 = vector.extract_strided_slice %492 {offsets = [2, 0], sizes = [1, 128], strides = [1, 1]} : vector<32x128xf32> to vector<1x128xf32>
    %c5_260 = arith.constant 5 : index
    %c0_261 = arith.constant 0 : index
    %504 = vector.load %arg13[%c5_260, %c0_261] : memref<64x128xf32, #tpu.memory_space<vmem>>, vector<1x128xf32>
    tpu.vector_store %arg13[%c5_260, %c0_261], %503 {strides = array<i32>} : memref<64x128xf32, #tpu.memory_space<vmem>>, vector<1x128xf32>,
    %505 = vector.extract_strided_slice %489 {offsets = [3, 0], sizes = [1, 128], strides = [1, 1]} : vector<32x128xf32> to vector<1x128xf32>
    %c6_262 = arith.constant 6 : index
    %c0_263 = arith.constant 0 : index
    %506 = vector.load %arg13[%c6_262, %c0_263] : memref<64x128xf32, #tpu.memory_space<vmem>>, vector<1x128xf32>
    tpu.vector_store %arg13[%c6_262, %c0_263], %505 {strides = array<i32>} : memref<64x128xf32, #tpu.memory_space<vmem>>, vector<1x128xf32>,
    %507 = vector.extract_strided_slice %492 {offsets = [3, 0], sizes = [1, 128], strides = [1, 1]} : vector<32x128xf32> to vector<1x128xf32>
    %c7_264 = arith.constant 7 : index
    %c0_265 = arith.constant 0 : index
    %508 = vector.load %arg13[%c7_264, %c0_265] : memref<64x128xf32, #tpu.memory_space<vmem>>, vector<1x128xf32>
    tpu.vector_store %arg13[%c7_264, %c0_265], %507 {strides = array<i32>} : memref<64x128xf32, #tpu.memory_space<vmem>>, vector<1x128xf32>,
    %509 = vector.extract_strided_slice %489 {offsets = [4, 0], sizes = [1, 128], strides = [1, 1]} : vector<32x128xf32> to vector<1x128xf32>
    %c8_266 = arith.constant 8 : index
    %c0_267 = arith.constant 0 : index
    %510 = vector.load %arg13[%c8_266, %c0_267] : memref<64x128xf32, #tpu.memory_space<vmem>>, vector<1x128xf32>
    tpu.vector_store %arg13[%c8_266, %c0_267], %509 {strides = array<i32>} : memref<64x128xf32, #tpu.memory_space<vmem>>, vector<1x128xf32>,
    %511 = vector.extract_strided_slice %492 {offsets = [4, 0], sizes = [1, 128], strides = [1, 1]} : vector<32x128xf32> to vector<1x128xf32>
    %c9_268 = arith.constant 9 : index
    %c0_269 = arith.constant 0 : index
    %512 = vector.load %arg13[%c9_268, %c0_269] : memref<64x128xf32, #tpu.memory_space<vmem>>, vector<1x128xf32>
    tpu.vector_store %arg13[%c9_268, %c0_269], %511 {strides = array<i32>} : memref<64x128xf32, #tpu.memory_space<vmem>>, vector<1x128xf32>,
    %513 = vector.extract_strided_slice %489 {offsets = [5, 0], sizes = [1, 128], strides = [1, 1]} : vector<32x128xf32> to vector<1x128xf32>
    %c10_270 = arith.constant 10 : index
    %c0_271 = arith.constant 0 : index
    %514 = vector.load %arg13[%c10_270, %c0_271] : memref<64x128xf32, #tpu.memory_space<vmem>>, vector<1x128xf32>
    tpu.vector_store %arg13[%c10_270, %c0_271], %513 {strides = array<i32>} : memref<64x128xf32, #tpu.memory_space<vmem>>, vector<1x128xf32>,
    %515 = vector.extract_strided_slice %492 {offsets = [5, 0], sizes = [1, 128], strides = [1, 1]} : vector<32x128xf32> to vector<1x128xf32>
    %c11_272 = arith.constant 11 : index
    %c0_273 = arith.constant 0 : index
    %516 = vector.load %arg13[%c11_272, %c0_273] : memref<64x128xf32, #tpu.memory_space<vmem>>, vector<1x128xf32>
    tpu.vector_store %arg13[%c11_272, %c0_273], %515 {strides = array<i32>} : memref<64x128xf32, #tpu.memory_space<vmem>>, vector<1x128xf32>,
    %517 = vector.extract_strided_slice %489 {offsets = [6, 0], sizes = [1, 128], strides = [1, 1]} : vector<32x128xf32> to vector<1x128xf32>
    %c12_274 = arith.constant 12 : index
    %c0_275 = arith.constant 0 : index
    %518 = vector.load %arg13[%c12_274, %c0_275] : memref<64x128xf32, #tpu.memory_space<vmem>>, vector<1x128xf32>
    tpu.vector_store %arg13[%c12_274, %c0_275], %517 {strides = array<i32>} : memref<64x128xf32, #tpu.memory_space<vmem>>, vector<1x128xf32>,
    %519 = vector.extract_strided_slice %492 {offsets = [6, 0], sizes = [1, 128], strides = [1, 1]} : vector<32x128xf32> to vector<1x128xf32>
    %c13_276 = arith.constant 13 : index
    %c0_277 = arith.constant 0 : index
    %520 = vector.load %arg13[%c13_276, %c0_277] : memref<64x128xf32, #tpu.memory_space<vmem>>, vector<1x128xf32>
    tpu.vector_store %arg13[%c13_276, %c0_277], %519 {strides = array<i32>} : memref<64x128xf32, #tpu.memory_space<vmem>>, vector<1x128xf32>,
    %521 = vector.extract_strided_slice %489 {offsets = [7, 0], sizes = [1, 128], strides = [1, 1]} : vector<32x128xf32> to vector<1x128xf32>
    %c14_278 = arith.constant 14 : index
    %c0_279 = arith.constant 0 : index
    %522 = vector.load %arg13[%c14_278, %c0_279] : memref<64x128xf32, #tpu.memory_space<vmem>>, vector<1x128xf32>
    tpu.vector_store %arg13[%c14_278, %c0_279], %521 {strides = array<i32>} : memref<64x128xf32, #tpu.memory_space<vmem>>, vector<1x128xf32>,
    %523 = vector.extract_strided_slice %492 {offsets = [7, 0], sizes = [1, 128], strides = [1, 1]} : vector<32x128xf32> to vector<1x128xf32>
    %c15_280 = arith.constant 15 : index
    %c0_281 = arith.constant 0 : index
    %524 = vector.load %arg13[%c15_280, %c0_281] : memref<64x128xf32, #tpu.memory_space<vmem>>, vector<1x128xf32>
    tpu.vector_store %arg13[%c15_280, %c0_281], %523 {strides = array<i32>} : memref<64x128xf32, #tpu.memory_space<vmem>>, vector<1x128xf32>,
    %525 = vector.extract_strided_slice %489 {offsets = [8, 0], sizes = [1, 128], strides = [1, 1]} : vector<32x128xf32> to vector<1x128xf32>
    %c16_282 = arith.constant 16 : index
    %c0_283 = arith.constant 0 : index
    %526 = vector.load %arg13[%c16_282, %c0_283] : memref<64x128xf32, #tpu.memory_space<vmem>>, vector<1x128xf32>
    tpu.vector_store %arg13[%c16_282, %c0_283], %525 {strides = array<i32>} : memref<64x128xf32, #tpu.memory_space<vmem>>, vector<1x128xf32>,
    %527 = vector.extract_strided_slice %492 {offsets = [8, 0], sizes = [1, 128], strides = [1, 1]} : vector<32x128xf32> to vector<1x128xf32>
    %c17_284 = arith.constant 17 : index
    %c0_285 = arith.constant 0 : index
    %528 = vector.load %arg13[%c17_284, %c0_285] : memref<64x128xf32, #tpu.memory_space<vmem>>, vector<1x128xf32>
    tpu.vector_store %arg13[%c17_284, %c0_285], %527 {strides = array<i32>} : memref<64x128xf32, #tpu.memory_space<vmem>>, vector<1x128xf32>,
    %529 = vector.extract_strided_slice %489 {offsets = [9, 0], sizes = [1, 128], strides = [1, 1]} : vector<32x128xf32> to vector<1x128xf32>
    %c18_286 = arith.constant 18 : index
    %c0_287 = arith.constant 0 : index
    %530 = vector.load %arg13[%c18_286, %c0_287] : memref<64x128xf32, #tpu.memory_space<vmem>>, vector<1x128xf32>
    tpu.vector_store %arg13[%c18_286, %c0_287], %529 {strides = array<i32>} : memref<64x128xf32, #tpu.memory_space<vmem>>, vector<1x128xf32>,
    %531 = vector.extract_strided_slice %492 {offsets = [9, 0], sizes = [1, 128], strides = [1, 1]} : vector<32x128xf32> to vector<1x128xf32>
    %c19_288 = arith.constant 19 : index
    %c0_289 = arith.constant 0 : index
    %532 = vector.load %arg13[%c19_288, %c0_289] : memref<64x128xf32, #tpu.memory_space<vmem>>, vector<1x128xf32>
    tpu.vector_store %arg13[%c19_288, %c0_289], %531 {strides = array<i32>} : memref<64x128xf32, #tpu.memory_space<vmem>>, vector<1x128xf32>,
    %533 = vector.extract_strided_slice %489 {offsets = [10, 0], sizes = [1, 128], strides = [1, 1]} : vector<32x128xf32> to vector<1x128xf32>
    %c20_290 = arith.constant 20 : index
    %c0_291 = arith.constant 0 : index
    %534 = vector.load %arg13[%c20_290, %c0_291] : memref<64x128xf32, #tpu.memory_space<vmem>>, vector<1x128xf32>
    tpu.vector_store %arg13[%c20_290, %c0_291], %533 {strides = array<i32>} : memref<64x128xf32, #tpu.memory_space<vmem>>, vector<1x128xf32>,
    %535 = vector.extract_strided_slice %492 {offsets = [10, 0], sizes = [1, 128], strides = [1, 1]} : vector<32x128xf32> to vector<1x128xf32>
    %c21_292 = arith.constant 21 : index
    %c0_293 = arith.constant 0 : index
    %536 = vector.load %arg13[%c21_292, %c0_293] : memref<64x128xf32, #tpu.memory_space<vmem>>, vector<1x128xf32>
    tpu.vector_store %arg13[%c21_292, %c0_293], %535 {strides = array<i32>} : memref<64x128xf32, #tpu.memory_space<vmem>>, vector<1x128xf32>,
    %537 = vector.extract_strided_slice %489 {offsets = [11, 0], sizes = [1, 128], strides = [1, 1]} : vector<32x128xf32> to vector<1x128xf32>
    %c22_294 = arith.constant 22 : index
    %c0_295 = arith.constant 0 : index
    %538 = vector.load %arg13[%c22_294, %c0_295] : memref<64x128xf32, #tpu.memory_space<vmem>>, vector<1x128xf32>
    tpu.vector_store %arg13[%c22_294, %c0_295], %537 {strides = array<i32>} : memref<64x128xf32, #tpu.memory_space<vmem>>, vector<1x128xf32>,
    %539 = vector.extract_strided_slice %492 {offsets = [11, 0], sizes = [1, 128], strides = [1, 1]} : vector<32x128xf32> to vector<1x128xf32>
    %c23_296 = arith.constant 23 : index
    %c0_297 = arith.constant 0 : index
    %540 = vector.load %arg13[%c23_296, %c0_297] : memref<64x128xf32, #tpu.memory_space<vmem>>, vector<1x128xf32>
    tpu.vector_store %arg13[%c23_296, %c0_297], %539 {strides = array<i32>} : memref<64x128xf32, #tpu.memory_space<vmem>>, vector<1x128xf32>,
    %541 = vector.extract_strided_slice %489 {offsets = [12, 0], sizes = [1, 128], strides = [1, 1]} : vector<32x128xf32> to vector<1x128xf32>
    %c24_298 = arith.constant 24 : index
    %c0_299 = arith.constant 0 : index
    %542 = vector.load %arg13[%c24_298, %c0_299] : memref<64x128xf32, #tpu.memory_space<vmem>>, vector<1x128xf32>
    tpu.vector_store %arg13[%c24_298, %c0_299], %541 {strides = array<i32>} : memref<64x128xf32, #tpu.memory_space<vmem>>, vector<1x128xf32>,
    %543 = vector.extract_strided_slice %492 {offsets = [12, 0], sizes = [1, 128], strides = [1, 1]} : vector<32x128xf32> to vector<1x128xf32>
    %c25_300 = arith.constant 25 : index
    %c0_301 = arith.constant 0 : index
    %544 = vector.load %arg13[%c25_300, %c0_301] : memref<64x128xf32, #tpu.memory_space<vmem>>, vector<1x128xf32>
    tpu.vector_store %arg13[%c25_300, %c0_301], %543 {strides = array<i32>} : memref<64x128xf32, #tpu.memory_space<vmem>>, vector<1x128xf32>,
    %545 = vector.extract_strided_slice %489 {offsets = [13, 0], sizes = [1, 128], strides = [1, 1]} : vector<32x128xf32> to vector<1x128xf32>
    %c26_302 = arith.constant 26 : index
    %c0_303 = arith.constant 0 : index
    %546 = vector.load %arg13[%c26_302, %c0_303] : memref<64x128xf32, #tpu.memory_space<vmem>>, vector<1x128xf32>
    tpu.vector_store %arg13[%c26_302, %c0_303], %545 {strides = array<i32>} : memref<64x128xf32, #tpu.memory_space<vmem>>, vector<1x128xf32>,
    %547 = vector.extract_strided_slice %492 {offsets = [13, 0], sizes = [1, 128], strides = [1, 1]} : vector<32x128xf32> to vector<1x128xf32>
    %c27_304 = arith.constant 27 : index
    %c0_305 = arith.constant 0 : index
    %548 = vector.load %arg13[%c27_304, %c0_305] : memref<64x128xf32, #tpu.memory_space<vmem>>, vector<1x128xf32>
    tpu.vector_store %arg13[%c27_304, %c0_305], %547 {strides = array<i32>} : memref<64x128xf32, #tpu.memory_space<vmem>>, vector<1x128xf32>,
    %549 = vector.extract_strided_slice %489 {offsets = [14, 0], sizes = [1, 128], strides = [1, 1]} : vector<32x128xf32> to vector<1x128xf32>
    %c28_306 = arith.constant 28 : index
    %c0_307 = arith.constant 0 : index
    %550 = vector.load %arg13[%c28_306, %c0_307] : memref<64x128xf32, #tpu.memory_space<vmem>>, vector<1x128xf32>
    tpu.vector_store %arg13[%c28_306, %c0_307], %549 {strides = array<i32>} : memref<64x128xf32, #tpu.memory_space<vmem>>, vector<1x128xf32>,
    %551 = vector.extract_strided_slice %492 {offsets = [14, 0], sizes = [1, 128], strides = [1, 1]} : vector<32x128xf32> to vector<1x128xf32>
    %c29_308 = arith.constant 29 : index
    %c0_309 = arith.constant 0 : index
    %552 = vector.load %arg13[%c29_308, %c0_309] : memref<64x128xf32, #tpu.memory_space<vmem>>, vector<1x128xf32>
    tpu.vector_store %arg13[%c29_308, %c0_309], %551 {strides = array<i32>} : memref<64x128xf32, #tpu.memory_space<vmem>>, vector<1x128xf32>,
    %553 = vector.extract_strided_slice %489 {offsets = [15, 0], sizes = [1, 128], strides = [1, 1]} : vector<32x128xf32> to vector<1x128xf32>
    %c30_310 = arith.constant 30 : index
    %c0_311 = arith.constant 0 : index
    %554 = vector.load %arg13[%c30_310, %c0_311] : memref<64x128xf32, #tpu.memory_space<vmem>>, vector<1x128xf32>
    tpu.vector_store %arg13[%c30_310, %c0_311], %553 {strides = array<i32>} : memref<64x128xf32, #tpu.memory_space<vmem>>, vector<1x128xf32>,
    %555 = vector.extract_strided_slice %492 {offsets = [15, 0], sizes = [1, 128], strides = [1, 1]} : vector<32x128xf32> to vector<1x128xf32>
    %c31_312 = arith.constant 31 : index
    %c0_313 = arith.constant 0 : index
    %556 = vector.load %arg13[%c31_312, %c0_313] : memref<64x128xf32, #tpu.memory_space<vmem>>, vector<1x128xf32>
    tpu.vector_store %arg13[%c31_312, %c0_313], %555 {strides = array<i32>} : memref<64x128xf32, #tpu.memory_space<vmem>>, vector<1x128xf32>,
    %557 = vector.extract_strided_slice %489 {offsets = [16, 0], sizes = [1, 128], strides = [1, 1]} : vector<32x128xf32> to vector<1x128xf32>
    %c32_314 = arith.constant 32 : index
    %c0_315 = arith.constant 0 : index
    %558 = vector.load %arg13[%c32_314, %c0_315] : memref<64x128xf32, #tpu.memory_space<vmem>>, vector<1x128xf32>
    tpu.vector_store %arg13[%c32_314, %c0_315], %557 {strides = array<i32>} : memref<64x128xf32, #tpu.memory_space<vmem>>, vector<1x128xf32>,
    %559 = vector.extract_strided_slice %492 {offsets = [16, 0], sizes = [1, 128], strides = [1, 1]} : vector<32x128xf32> to vector<1x128xf32>
    %c33 = arith.constant 33 : index
    %c0_316 = arith.constant 0 : index
    %560 = vector.load %arg13[%c33, %c0_316] : memref<64x128xf32, #tpu.memory_space<vmem>>, vector<1x128xf32>
    tpu.vector_store %arg13[%c33, %c0_316], %559 {strides = array<i32>} : memref<64x128xf32, #tpu.memory_space<vmem>>, vector<1x128xf32>,
    %561 = vector.extract_strided_slice %489 {offsets = [17, 0], sizes = [1, 128], strides = [1, 1]} : vector<32x128xf32> to vector<1x128xf32>
    %c34 = arith.constant 34 : index
    %c0_317 = arith.constant 0 : index
    %562 = vector.load %arg13[%c34, %c0_317] : memref<64x128xf32, #tpu.memory_space<vmem>>, vector<1x128xf32>
    tpu.vector_store %arg13[%c34, %c0_317], %561 {strides = array<i32>} : memref<64x128xf32, #tpu.memory_space<vmem>>, vector<1x128xf32>,
    %563 = vector.extract_strided_slice %492 {offsets = [17, 0], sizes = [1, 128], strides = [1, 1]} : vector<32x128xf32> to vector<1x128xf32>
    %c35 = arith.constant 35 : index
    %c0_318 = arith.constant 0 : index
    %564 = vector.load %arg13[%c35, %c0_318] : memref<64x128xf32, #tpu.memory_space<vmem>>, vector<1x128xf32>
    tpu.vector_store %arg13[%c35, %c0_318], %563 {strides = array<i32>} : memref<64x128xf32, #tpu.memory_space<vmem>>, vector<1x128xf32>,
    %565 = vector.extract_strided_slice %489 {offsets = [18, 0], sizes = [1, 128], strides = [1, 1]} : vector<32x128xf32> to vector<1x128xf32>
    %c36 = arith.constant 36 : index
    %c0_319 = arith.constant 0 : index
    %566 = vector.load %arg13[%c36, %c0_319] : memref<64x128xf32, #tpu.memory_space<vmem>>, vector<1x128xf32>
    tpu.vector_store %arg13[%c36, %c0_319], %565 {strides = array<i32>} : memref<64x128xf32, #tpu.memory_space<vmem>>, vector<1x128xf32>,
    %567 = vector.extract_strided_slice %492 {offsets = [18, 0], sizes = [1, 128], strides = [1, 1]} : vector<32x128xf32> to vector<1x128xf32>
    %c37 = arith.constant 37 : index
    %c0_320 = arith.constant 0 : index
    %568 = vector.load %arg13[%c37, %c0_320] : memref<64x128xf32, #tpu.memory_space<vmem>>, vector<1x128xf32>
    tpu.vector_store %arg13[%c37, %c0_320], %567 {strides = array<i32>} : memref<64x128xf32, #tpu.memory_space<vmem>>, vector<1x128xf32>,
    %569 = vector.extract_strided_slice %489 {offsets = [19, 0], sizes = [1, 128], strides = [1, 1]} : vector<32x128xf32> to vector<1x128xf32>
    %c38 = arith.constant 38 : index
    %c0_321 = arith.constant 0 : index
    %570 = vector.load %arg13[%c38, %c0_321] : memref<64x128xf32, #tpu.memory_space<vmem>>, vector<1x128xf32>
    tpu.vector_store %arg13[%c38, %c0_321], %569 {strides = array<i32>} : memref<64x128xf32, #tpu.memory_space<vmem>>, vector<1x128xf32>,
    %571 = vector.extract_strided_slice %492 {offsets = [19, 0], sizes = [1, 128], strides = [1, 1]} : vector<32x128xf32> to vector<1x128xf32>
    %c39 = arith.constant 39 : index
    %c0_322 = arith.constant 0 : index
    %572 = vector.load %arg13[%c39, %c0_322] : memref<64x128xf32, #tpu.memory_space<vmem>>, vector<1x128xf32>
    tpu.vector_store %arg13[%c39, %c0_322], %571 {strides = array<i32>} : memref<64x128xf32, #tpu.memory_space<vmem>>, vector<1x128xf32>,
    %573 = vector.extract_strided_slice %489 {offsets = [20, 0], sizes = [1, 128], strides = [1, 1]} : vector<32x128xf32> to vector<1x128xf32>
    %c40 = arith.constant 40 : index
    %c0_323 = arith.constant 0 : index
    %574 = vector.load %arg13[%c40, %c0_323] : memref<64x128xf32, #tpu.memory_space<vmem>>, vector<1x128xf32>
    tpu.vector_store %arg13[%c40, %c0_323], %573 {strides = array<i32>} : memref<64x128xf32, #tpu.memory_space<vmem>>, vector<1x128xf32>,
    %575 = vector.extract_strided_slice %492 {offsets = [20, 0], sizes = [1, 128], strides = [1, 1]} : vector<32x128xf32> to vector<1x128xf32>
    %c41 = arith.constant 41 : index
    %c0_324 = arith.constant 0 : index
    %576 = vector.load %arg13[%c41, %c0_324] : memref<64x128xf32, #tpu.memory_space<vmem>>, vector<1x128xf32>
    tpu.vector_store %arg13[%c41, %c0_324], %575 {strides = array<i32>} : memref<64x128xf32, #tpu.memory_space<vmem>>, vector<1x128xf32>,
    %577 = vector.extract_strided_slice %489 {offsets = [21, 0], sizes = [1, 128], strides = [1, 1]} : vector<32x128xf32> to vector<1x128xf32>
    %c42 = arith.constant 42 : index
    %c0_325 = arith.constant 0 : index
    %578 = vector.load %arg13[%c42, %c0_325] : memref<64x128xf32, #tpu.memory_space<vmem>>, vector<1x128xf32>
    tpu.vector_store %arg13[%c42, %c0_325], %577 {strides = array<i32>} : memref<64x128xf32, #tpu.memory_space<vmem>>, vector<1x128xf32>,
    %579 = vector.extract_strided_slice %492 {offsets = [21, 0], sizes = [1, 128], strides = [1, 1]} : vector<32x128xf32> to vector<1x128xf32>
    %c43 = arith.constant 43 : index
    %c0_326 = arith.constant 0 : index
    %580 = vector.load %arg13[%c43, %c0_326] : memref<64x128xf32, #tpu.memory_space<vmem>>, vector<1x128xf32>
    tpu.vector_store %arg13[%c43, %c0_326], %579 {strides = array<i32>} : memref<64x128xf32, #tpu.memory_space<vmem>>, vector<1x128xf32>,
    %581 = vector.extract_strided_slice %489 {offsets = [22, 0], sizes = [1, 128], strides = [1, 1]} : vector<32x128xf32> to vector<1x128xf32>
    %c44 = arith.constant 44 : index
    %c0_327 = arith.constant 0 : index
    %582 = vector.load %arg13[%c44, %c0_327] : memref<64x128xf32, #tpu.memory_space<vmem>>, vector<1x128xf32>
    tpu.vector_store %arg13[%c44, %c0_327], %581 {strides = array<i32>} : memref<64x128xf32, #tpu.memory_space<vmem>>, vector<1x128xf32>,
    %583 = vector.extract_strided_slice %492 {offsets = [22, 0], sizes = [1, 128], strides = [1, 1]} : vector<32x128xf32> to vector<1x128xf32>
    %c45 = arith.constant 45 : index
    %c0_328 = arith.constant 0 : index
    %584 = vector.load %arg13[%c45, %c0_328] : memref<64x128xf32, #tpu.memory_space<vmem>>, vector<1x128xf32>
    tpu.vector_store %arg13[%c45, %c0_328], %583 {strides = array<i32>} : memref<64x128xf32, #tpu.memory_space<vmem>>, vector<1x128xf32>,
    %585 = vector.extract_strided_slice %489 {offsets = [23, 0], sizes = [1, 128], strides = [1, 1]} : vector<32x128xf32> to vector<1x128xf32>
    %c46 = arith.constant 46 : index
    %c0_329 = arith.constant 0 : index
    %586 = vector.load %arg13[%c46, %c0_329] : memref<64x128xf32, #tpu.memory_space<vmem>>, vector<1x128xf32>
    tpu.vector_store %arg13[%c46, %c0_329], %585 {strides = array<i32>} : memref<64x128xf32, #tpu.memory_space<vmem>>, vector<1x128xf32>,
    %587 = vector.extract_strided_slice %492 {offsets = [23, 0], sizes = [1, 128], strides = [1, 1]} : vector<32x128xf32> to vector<1x128xf32>
    %c47 = arith.constant 47 : index
    %c0_330 = arith.constant 0 : index
    %588 = vector.load %arg13[%c47, %c0_330] : memref<64x128xf32, #tpu.memory_space<vmem>>, vector<1x128xf32>
    tpu.vector_store %arg13[%c47, %c0_330], %587 {strides = array<i32>} : memref<64x128xf32, #tpu.memory_space<vmem>>, vector<1x128xf32>,
    %589 = vector.extract_strided_slice %489 {offsets = [24, 0], sizes = [1, 128], strides = [1, 1]} : vector<32x128xf32> to vector<1x128xf32>
    %c48 = arith.constant 48 : index
    %c0_331 = arith.constant 0 : index
    %590 = vector.load %arg13[%c48, %c0_331] : memref<64x128xf32, #tpu.memory_space<vmem>>, vector<1x128xf32>
    tpu.vector_store %arg13[%c48, %c0_331], %589 {strides = array<i32>} : memref<64x128xf32, #tpu.memory_space<vmem>>, vector<1x128xf32>,
    %591 = vector.extract_strided_slice %492 {offsets = [24, 0], sizes = [1, 128], strides = [1, 1]} : vector<32x128xf32> to vector<1x128xf32>
    %c49 = arith.constant 49 : index
    %c0_332 = arith.constant 0 : index
    %592 = vector.load %arg13[%c49, %c0_332] : memref<64x128xf32, #tpu.memory_space<vmem>>, vector<1x128xf32>
    tpu.vector_store %arg13[%c49, %c0_332], %591 {strides = array<i32>} : memref<64x128xf32, #tpu.memory_space<vmem>>, vector<1x128xf32>,
    %593 = vector.extract_strided_slice %489 {offsets = [25, 0], sizes = [1, 128], strides = [1, 1]} : vector<32x128xf32> to vector<1x128xf32>
    %c50 = arith.constant 50 : index
    %c0_333 = arith.constant 0 : index
    %594 = vector.load %arg13[%c50, %c0_333] : memref<64x128xf32, #tpu.memory_space<vmem>>, vector<1x128xf32>
    tpu.vector_store %arg13[%c50, %c0_333], %593 {strides = array<i32>} : memref<64x128xf32, #tpu.memory_space<vmem>>, vector<1x128xf32>,
    %595 = vector.extract_strided_slice %492 {offsets = [25, 0], sizes = [1, 128], strides = [1, 1]} : vector<32x128xf32> to vector<1x128xf32>
    %c51 = arith.constant 51 : index
    %c0_334 = arith.constant 0 : index
    %596 = vector.load %arg13[%c51, %c0_334] : memref<64x128xf32, #tpu.memory_space<vmem>>, vector<1x128xf32>
    tpu.vector_store %arg13[%c51, %c0_334], %595 {strides = array<i32>} : memref<64x128xf32, #tpu.memory_space<vmem>>, vector<1x128xf32>,
    %597 = vector.extract_strided_slice %489 {offsets = [26, 0], sizes = [1, 128], strides = [1, 1]} : vector<32x128xf32> to vector<1x128xf32>
    %c52 = arith.constant 52 : index
    %c0_335 = arith.constant 0 : index
    %598 = vector.load %arg13[%c52, %c0_335] : memref<64x128xf32, #tpu.memory_space<vmem>>, vector<1x128xf32>
    tpu.vector_store %arg13[%c52, %c0_335], %597 {strides = array<i32>} : memref<64x128xf32, #tpu.memory_space<vmem>>, vector<1x128xf32>,
    %599 = vector.extract_strided_slice %492 {offsets = [26, 0], sizes = [1, 128], strides = [1, 1]} : vector<32x128xf32> to vector<1x128xf32>
    %c53 = arith.constant 53 : index
    %c0_336 = arith.constant 0 : index
    %600 = vector.load %arg13[%c53, %c0_336] : memref<64x128xf32, #tpu.memory_space<vmem>>, vector<1x128xf32>
    tpu.vector_store %arg13[%c53, %c0_336], %599 {strides = array<i32>} : memref<64x128xf32, #tpu.memory_space<vmem>>, vector<1x128xf32>,
    %601 = vector.extract_strided_slice %489 {offsets = [27, 0], sizes = [1, 128], strides = [1, 1]} : vector<32x128xf32> to vector<1x128xf32>
    %c54 = arith.constant 54 : index
    %c0_337 = arith.constant 0 : index
    %602 = vector.load %arg13[%c54, %c0_337] : memref<64x128xf32, #tpu.memory_space<vmem>>, vector<1x128xf32>
    tpu.vector_store %arg13[%c54, %c0_337], %601 {strides = array<i32>} : memref<64x128xf32, #tpu.memory_space<vmem>>, vector<1x128xf32>,
    %603 = vector.extract_strided_slice %492 {offsets = [27, 0], sizes = [1, 128], strides = [1, 1]} : vector<32x128xf32> to vector<1x128xf32>
    %c55 = arith.constant 55 : index
    %c0_338 = arith.constant 0 : index
    %604 = vector.load %arg13[%c55, %c0_338] : memref<64x128xf32, #tpu.memory_space<vmem>>, vector<1x128xf32>
    tpu.vector_store %arg13[%c55, %c0_338], %603 {strides = array<i32>} : memref<64x128xf32, #tpu.memory_space<vmem>>, vector<1x128xf32>,
    %605 = vector.extract_strided_slice %489 {offsets = [28, 0], sizes = [1, 128], strides = [1, 1]} : vector<32x128xf32> to vector<1x128xf32>
    %c56 = arith.constant 56 : index
    %c0_339 = arith.constant 0 : index
    %606 = vector.load %arg13[%c56, %c0_339] : memref<64x128xf32, #tpu.memory_space<vmem>>, vector<1x128xf32>
    tpu.vector_store %arg13[%c56, %c0_339], %605 {strides = array<i32>} : memref<64x128xf32, #tpu.memory_space<vmem>>, vector<1x128xf32>,
    %607 = vector.extract_strided_slice %492 {offsets = [28, 0], sizes = [1, 128], strides = [1, 1]} : vector<32x128xf32> to vector<1x128xf32>
    %c57 = arith.constant 57 : index
    %c0_340 = arith.constant 0 : index
    %608 = vector.load %arg13[%c57, %c0_340] : memref<64x128xf32, #tpu.memory_space<vmem>>, vector<1x128xf32>
    tpu.vector_store %arg13[%c57, %c0_340], %607 {strides = array<i32>} : memref<64x128xf32, #tpu.memory_space<vmem>>, vector<1x128xf32>,
    %609 = vector.extract_strided_slice %489 {offsets = [29, 0], sizes = [1, 128], strides = [1, 1]} : vector<32x128xf32> to vector<1x128xf32>
    %c58 = arith.constant 58 : index
    %c0_341 = arith.constant 0 : index
    %610 = vector.load %arg13[%c58, %c0_341] : memref<64x128xf32, #tpu.memory_space<vmem>>, vector<1x128xf32>
    tpu.vector_store %arg13[%c58, %c0_341], %609 {strides = array<i32>} : memref<64x128xf32, #tpu.memory_space<vmem>>, vector<1x128xf32>,
    %611 = vector.extract_strided_slice %492 {offsets = [29, 0], sizes = [1, 128], strides = [1, 1]} : vector<32x128xf32> to vector<1x128xf32>
    %c59 = arith.constant 59 : index
    %c0_342 = arith.constant 0 : index
    %612 = vector.load %arg13[%c59, %c0_342] : memref<64x128xf32, #tpu.memory_space<vmem>>, vector<1x128xf32>
    tpu.vector_store %arg13[%c59, %c0_342], %611 {strides = array<i32>} : memref<64x128xf32, #tpu.memory_space<vmem>>, vector<1x128xf32>,
    %613 = vector.extract_strided_slice %489 {offsets = [30, 0], sizes = [1, 128], strides = [1, 1]} : vector<32x128xf32> to vector<1x128xf32>
    %c60 = arith.constant 60 : index
    %c0_343 = arith.constant 0 : index
    %614 = vector.load %arg13[%c60, %c0_343] : memref<64x128xf32, #tpu.memory_space<vmem>>, vector<1x128xf32>
    tpu.vector_store %arg13[%c60, %c0_343], %613 {strides = array<i32>} : memref<64x128xf32, #tpu.memory_space<vmem>>, vector<1x128xf32>,
    %615 = vector.extract_strided_slice %492 {offsets = [30, 0], sizes = [1, 128], strides = [1, 1]} : vector<32x128xf32> to vector<1x128xf32>
    %c61 = arith.constant 61 : index
    %c0_344 = arith.constant 0 : index
    %616 = vector.load %arg13[%c61, %c0_344] : memref<64x128xf32, #tpu.memory_space<vmem>>, vector<1x128xf32>
    tpu.vector_store %arg13[%c61, %c0_344], %615 {strides = array<i32>} : memref<64x128xf32, #tpu.memory_space<vmem>>, vector<1x128xf32>,
    %617 = vector.extract_strided_slice %489 {offsets = [31, 0], sizes = [1, 128], strides = [1, 1]} : vector<32x128xf32> to vector<1x128xf32>
    %c62 = arith.constant 62 : index
    %c0_345 = arith.constant 0 : index
    %618 = vector.load %arg13[%c62, %c0_345] : memref<64x128xf32, #tpu.memory_space<vmem>>, vector<1x128xf32>
    tpu.vector_store %arg13[%c62, %c0_345], %617 {strides = array<i32>} : memref<64x128xf32, #tpu.memory_space<vmem>>, vector<1x128xf32>,
    %619 = vector.extract_strided_slice %492 {offsets = [31, 0], sizes = [1, 128], strides = [1, 1]} : vector<32x128xf32> to vector<1x128xf32>
    %c63 = arith.constant 63 : index
    %c0_346 = arith.constant 0 : index
    %620 = vector.load %arg13[%c63, %c0_346] : memref<64x128xf32, #tpu.memory_space<vmem>>, vector<1x128xf32>
    tpu.vector_store %arg13[%c63, %c0_346], %619 {strides = array<i32>} : memref<64x128xf32, #tpu.memory_space<vmem>>, vector<1x128xf32>,
    return
  }
  func.func @transform_0(%arg0: i32) -> (i32, i32) {
    %c0_i32 = arith.constant 0 : i32
    %c0_i32_0 = arith.constant 0 : i32
    %c0_i32_1 = arith.constant 0 : i32
    return %c0_i32, %c0_i32_0 : i32, i32
  }
  func.func @transform_1(%arg0: i32) -> (i32, i32) {
    %c0_i32 = arith.constant 0 : i32
    %c0_i32_0 = arith.constant 0 : i32
    %c0_i32_1 = arith.constant 0 : i32
    return %c0_i32, %c0_i32_0 : i32, i32
  }
  func.func @transform_2(%arg0: i32) -> (i32, i32) {
    %c0_i32 = arith.constant 0 : i32
    %c0_i32_0 = arith.constant 0 : i32
    %c0_i32_1 = arith.constant 0 : i32
    return %c0_i32, %c0_i32_0 : i32, i32
  }
  func.func @transform_3(%arg0: i32) -> (i32, i32) {
    %c0_i32 = arith.constant 0 : i32
    %c0_i32_0 = arith.constant 0 : i32
    %c0_i32_1 = arith.constant 0 : i32
    return %c0_i32, %c0_i32_0 : i32, i32
  }
  func.func @transform_4(%arg0: i32) -> (i32, i32) {
    %c0_i32 = arith.constant 0 : i32
    %c0_i32_0 = arith.constant 0 : i32
    %c0_i32_1 = arith.constant 0 : i32
    return %c0_i32, %c0_i32_0 : i32, i32
  }
  func.func @transform_5(%arg0: i32) -> (i32, i32) {
    %c0_i32 = arith.constant 0 : i32
    %c0_i32_0 = arith.constant 0 : i32
    %c0_i32_1 = arith.constant 0 : i32
    return %c0_i32, %c0_i32_0 : i32, i32
  }
  func.func @transform_6(%arg0: i32) -> (i32, i32) {
    %c0_i32 = arith.constant 0 : i32
    %c0_i32_0 = arith.constant 0 : i32
    %c0_i32_1 = arith.constant 0 : i32
    return %c0_i32, %c0_i32_0 : i32, i32
  }
  func.func @transform_7(%arg0: i32) -> (i32, i32) {
    %c0_i32 = arith.constant 0 : i32
    %c0_i32_0 = arith.constant 0 : i32
    %c0_i32_1 = arith.constant 0 : i32
    return %c0_i32, %c0_i32_0 : i32, i32
  }
  func.func @transform_8(%arg0: i32) -> (i32, i32) {
    %c0_i32 = arith.constant 0 : i32
    %c0_i32_0 = arith.constant 0 : i32
    %c0_i32_1 = arith.constant 0 : i32
    return %c0_i32, %c0_i32_0 : i32, i32
  }
  func.func @transform_9(%arg0: i32) -> (i32, i32) {
    %c0_i32 = arith.constant 0 : i32
    %c0_i32_0 = arith.constant 0 : i32
    %c0_i32_1 = arith.constant 0 : i32
    return %c0_i32, %c0_i32_0 : i32, i32
  }
  func.func @transform_10(%arg0: i32) -> (i32, i32) {
    %c0_i32 = arith.constant 0 : i32
    %c0_i32_0 = arith.constant 0 : i32
    %c0_i32_1 = arith.constant 0 : i32
    return %c0_i32, %c0_i32_0 : i32, i32
  }
  func.func @transform_11(%arg0: i32) -> (i32, i32) {
    %c0_i32 = arith.constant 0 : i32
    %c0_i32_0 = arith.constant 0 : i32
    %c0_i32_1 = arith.constant 0 : i32
    return %c0_i32, %c0_i32_0 : i32, i32
  }
  func.func @transform_12(%arg0: i32) -> (i32, i32) {
    %c0_i32 = arith.constant 0 : i32
    %c0_i32_0 = arith.constant 0 : i32
    %c0_i32_1 = arith.constant 0 : i32
    return %c0_i32, %c0_i32_0 : i32, i32
  }
}

</mosaic_0001>

<llo_original>
// kernel: generator_forward.1
$region0: #{generator_forward.1}
  #allocation0 [shape = 'u32[]', space=smem, size = 0x4, offset = 0x4, fixed_abs, tag = 'smem constant byte address 0x4 - core index']
  #allocation1 [shape = 'u32[144,128]{1,0:T(1,128)}', space=vmem, size = 0x12000, scoped, tag = 'internal scratch']
  #allocation2 [shape = 'f32[18,128]{1,0:T(8,128)}', space=vmem, size = 0x3000, scoped, tag = 'scratch operand']
  #allocation3 [shape = 'f32[18,128]{1,0:T(8,128)}', space=vmem, size = 0x3000, scoped, tag = 'scratch operand']
  #allocation4 [shape = 'f32[34,128]{1,0:T(8,128)}', space=vmem, size = 0x5000, scoped, tag = 'scratch operand']
  %s0 = inlined_call_operand.vmem [shape: bf16[16,40], index: 0, kind: input, shape index: {}]
  %s1 = inlined_call_operand.hbm [shape: bf16[40,512], index: 1, kind: input, shape index: {}]
  %s2 = inlined_call_operand.vmem [shape: f32[1,32], index: 2, kind: input, shape index: {}]
  %s3 = inlined_call_operand.vmem [shape: f32[1,32], index: 3, kind: input, shape index: {}]
  %s4 = inlined_call_operand.hbm [shape: bf16[512,128], index: 4, kind: input, shape index: {}]
  %s5 = inlined_call_operand.vmem [shape: f32[1,16], index: 5, kind: input, shape index: {}]
  %s6 = inlined_call_operand.vmem [shape: f32[1,16], index: 6, kind: input, shape index: {}]
  %s7 = inlined_call_operand.hbm [shape: bf16[512,128], index: 7, kind: input, shape index: {}]
  %s8 = inlined_call_operand.vmem [shape: f32[1,8], index: 8, kind: input, shape index: {}]
  %s9 = inlined_call_operand.vmem [shape: f32[1,8], index: 9, kind: input, shape index: {}]
  %s10 = inlined_call_operand.hbm [shape: bf16[512,128], index: 10, kind: input, shape index: {}]
  %s11 = inlined_call_operand.vmem [shape: f32[1,128], index: 11, kind: input, shape index: {}]
  %s12 = inlined_call_operand.vmem [shape: f32[64,128], index: 12, kind: output, shape index: {}]
  %s13 = sld [smem:[#allocation0]]
  $region74: #{generator_forward.1} parent=0
    _
  %s15 = ssub.s32 1, %s13
  %s16 = scalar_select 0, %s15, %s13
  $region1: #{generator_forward.1} parent=0
    #allocation5 [shape = 'u8[40960]{0}', space=vmem, size = 0xa000, scoped, tag = 'input window, operand 1, single buffered']
    #allocation6 [shape = 's32[1]{0}', space=sflag, size = 0x4, scoped, tag = 'scoped memory for generator_forward.1']
    #allocation7 [shape = 'u8[131072]{0}', space=vmem, size = 0x20000, scoped, tag = 'input window, operand 4, single buffered']
    #allocation8 [shape = 's32[1]{0}', space=sflag, size = 0x4, scoped, tag = 'scoped memory for generator_forward.1']
    #allocation9 [shape = 'u8[131072]{0}', space=vmem, size = 0x20000, scoped, tag = 'input window, operand 7, single buffered']
    #allocation10 [shape = 'u8[131072]{0}', space=vmem, size = 0x20000, scoped, tag = 'input window, operand 10, single buffered']
    #allocation11 [shape = 's32[1]{0}', space=sflag, size = 0x4, scoped, tag = 'scoped memory for generator_forward.1']
    %17 = vsyncpa [#allocation6], 0
    %18 = vsyncpa [#allocation8], 0
    %19 = vsyncpa [#allocation11], 0
    // Predicated region
    $region2: #{generator_forward.1} parent=1 // pred_check
      _
    $region3: #{generator_forward.1} parent=1 // pred_check_branch
      %21 = sbr.rel (0) target = $region5
    $region4: #{generator_forward.1} parent=1 // pred_region
      _
    $region5: #{generator_forward.1} parent=1 // pred_fallthru
      _
    // Predicated region
    $region6: #{generator_forward.1} parent=1 // pred_check
      _
    $region7: #{generator_forward.1} parent=1 // pred_check_branch
      %23 = sbr.rel (0) target = $region9
    $region8: #{generator_forward.1} parent=1 // pred_region
      %s25 = ssub.s32 1280, 1280
      %26 = vsyncadd [#allocation6], %s25
      %s27 = sshll.u32 [#allocation5], 4
      %s28 = int_to_ptr.vmem [resolvable:$true] %s27
      %33 = dma.hbm_to_vmem [thread:$0]  %s1, 1280, %s28, [#allocation6], 256, 256, 16
    $region9: #{generator_forward.1} parent=1 // pred_fallthru
      _
    // Predicated region
    $region10: #{generator_forward.1} parent=1 // pred_check
      _
    $region11: #{generator_forward.1} parent=1 // pred_check_branch
      %35 = sbr.rel (0) target = $region13
    $region12: #{generator_forward.1} parent=1 // pred_region
      _
    $region13: #{generator_forward.1} parent=1 // pred_fallthru
      _
    // Predicated region
    $region14: #{generator_forward.1} parent=1 // pred_check
      _
    $region15: #{generator_forward.1} parent=1 // pred_check_branch
      %37 = sbr.rel (0) target = $region17
    $region16: #{generator_forward.1} parent=1 // pred_region
      _
    $region17: #{generator_forward.1} parent=1 // pred_fallthru
      _
    // Predicated region
    $region18: #{generator_forward.1} parent=1 // pred_check
      _
    $region19: #{generator_forward.1} parent=1 // pred_check_branch
      %39 = sbr.rel (0) target = $region21
    $region20: #{generator_forward.1} parent=1 // pred_region
      %s41 = ssub.s32 4096, 4096
      %42 = vsyncadd [#allocation8], %s41
      %s43 = sshll.u32 [#allocation7], 4
      %s44 = int_to_ptr.vmem [resolvable:$true] %s43
      %49 = dma.hbm_to_vmem [thread:$0]  %s4, 4096, %s44, [#allocation8], 64, 64, 4
    $region21: #{generator_forward.1} parent=1 // pred_fallthru
      _
    // Predicated region
    $region22: #{generator_forward.1} parent=1 // pred_check
      _
    $region23: #{generator_forward.1} parent=1 // pred_check_branch
      %51 = sbr.rel (0) target = $region25
    $region24: #{generator_forward.1} parent=1 // pred_region
      _
    $region25: #{generator_forward.1} parent=1 // pred_fallthru
      _
    // Predicated region
    $region26: #{generator_forward.1} parent=1 // pred_check
      _
    $region27: #{generator_forward.1} parent=1 // pred_check_branch
      %53 = sbr.rel (0) target = $region29
    $region28: #{generator_forward.1} parent=1 // pred_region
      _
    $region29: #{generator_forward.1} parent=1 // pred_fallthru
      _
    // Predicated region
    $region30: #{generator_forward.1} parent=1 // pred_check
      _
    $region31: #{generator_forward.1} parent=1 // pred_check_branch
      %55 = sbr.rel (0) target = $region33
    $region32: #{generator_forward.1} parent=1 // pred_region
      %s57 = ssub.s32 4096, 4096
      %58 = vsyncadd [#allocation8], %s57
      %s59 = sshll.u32 [#allocation9], 4
      %s60 = int_to_ptr.vmem [resolvable:$true] %s59
      %65 = dma.hbm_to_vmem [thread:$0]  %s7, 4096, %s60, [#allocation8], 64, 64, 4
    $region33: #{generator_forward.1} parent=1 // pred_fallthru
      _
    // Predicated region
    $region34: #{generator_forward.1} parent=1 // pred_check
      _
    $region35: #{generator_forward.1} parent=1 // pred_check_branch
      %67 = sbr.rel (0) target = $region37
    $region36: #{generator_forward.1} parent=1 // pred_region
      _
    $region37: #{generator_forward.1} parent=1 // pred_fallthru
      _
    // Predicated region
    $region38: #{generator_forward.1} parent=1 // pred_check
      _
    $region39: #{generator_forward.1} parent=1 // pred_check_branch
      %69 = sbr.rel (0) target = $region41
    $region40: #{generator_forward.1} parent=1 // pred_region
      _
    $region41: #{generator_forward.1} parent=1 // pred_fallthru
      _
    // Predicated region
    $region42: #{generator_forward.1} parent=1 // pred_check
      _
    $region43: #{generator_forward.1} parent=1 // pred_check_branch
      %71 = sbr.rel (0) target = $region45
    $region44: #{generator_forward.1} parent=1 // pred_region
      %s73 = ssub.s32 4096, 4096
      %74 = vsyncadd [#allocation11], %s73
      %s75 = sshll.u32 [#allocation10], 4
      %s76 = int_to_ptr.vmem [resolvable:$true] %s75
      %81 = dma.hbm_to_vmem [thread:$0]  %s10, 4096, %s76, [#allocation11], 64, 64, 4
    $region45: #{generator_forward.1} parent=1 // pred_fallthru
      _
    // Predicated region
    $region46: #{generator_forward.1} parent=1 // pred_check
      _
    $region47: #{generator_forward.1} parent=1 // pred_check_branch
      %83 = sbr.rel (0) target = $region49
    $region48: #{generator_forward.1} parent=1 // pred_region
      _
    $region49: #{generator_forward.1} parent=1 // pred_fallthru
      _
    // Predicated region
    $region50: #{generator_forward.1} parent=1 // pred_check
      _
    $region51: #{generator_forward.1} parent=1 // pred_check_branch
      %85 = sbr.rel (0) target = $region53
    $region52: #{generator_forward.1} parent=1 // pred_region
      %86 = dma.done [#allocation6], 1280
    $region53: #{generator_forward.1} parent=1 // pred_fallthru
      _
    // Predicated region
    $region54: #{generator_forward.1} parent=1 // pred_check
      _
    $region55: #{generator_forward.1} parent=1 // pred_check_branch
      %88 = sbr.rel (0) target = $region57
    $region56: #{generator_forward.1} parent=1 // pred_region
      %89 = dma.done [#allocation8], 4096
    $region57: #{generator_forward.1} parent=1 // pred_fallthru
      _
    // Predicated region
    $region58: #{generator_forward.1} parent=1 // pred_check
      _
    $region59: #{generator_forward.1} parent=1 // pred_check_branch
      %91 = sbr.rel (0) target = $region61
    $region60: #{generator_forward.1} parent=1 // pred_region
      %92 = dma.done [#allocation8], 4096
    $region61: #{generator_forward.1} parent=1 // pred_fallthru
      _
    // Predicated region
    $region62: #{generator_forward.1} parent=1 // pred_check
      _
    $region63: #{generator_forward.1} parent=1 // pred_check_branch
      %94 = sbr.rel (0) target = $region65
    $region64: #{generator_forward.1} parent=1 // pred_region
      %95 = dma.done [#allocation11], 4096
    $region65: #{generator_forward.1} parent=1 // pred_fallthru
      _
    %97 = vst [vmem:[#allocation2] sm:$0xff] 0.0
    %98 = vst [vmem:[#allocation2 + $0x8] sm:$0xff] 0.0
    %99 = vst [vmem:[#allocation2 + $0x10] sm:$0x3] 0.0
    %100 = vst [vmem:[#allocation3] sm:$0xff] 0.0
    %101 = vst [vmem:[#allocation3 + $0x8] sm:$0xff] 0.0
    %102 = vst [vmem:[#allocation3 + $0x10] sm:$0x3] 0.0
    %103 = vst [vmem:[#allocation4] sm:$0xff] 0.0
    %104 = vst [vmem:[#allocation4 + $0x8] sm:$0xff] 0.0
    %105 = vst [vmem:[#allocation4 + $0x10] sm:$0xff] 0.0
    %106 = vst [vmem:[#allocation4 + $0x18] sm:$0xff] 0.0
    %107 = vst [vmem:[#allocation4 + $0x20] sm:$0x3] 0.0
    %v108 = vld [vmem:[%s0] sm:$0xf]
    %v109 = vld [vmem:[%s0 + $0x4] sm:$0xf]
    %v110 = vld [vmem:[#allocation5] sm:$0xff]
    %v111 = vld [vmem:[#allocation5 + $0x8] sm:$0xff]
    %v112 = vld [vmem:[#allocation5 + $0x10] sm:$0xff]
    %v113 = vld [vmem:[#allocation5 + $0x18] sm:$0xff]
    %v114 = vld [vmem:[#allocation5 + $0x20] sm:$0xff]
    %v115 = vld [vmem:[#allocation5 + $0x28] sm:$0xff]
    %v116 = vld [vmem:[#allocation5 + $0x30] sm:$0xff]
    %v117 = vld [vmem:[#allocation5 + $0x38] sm:$0xff]
    %v118 = vld [vmem:[#allocation5 + $0x40] sm:$0xff]
    %v119 = vld [vmem:[#allocation5 + $0x48] sm:$0xff]
    %v122 = vunpack.c.l.b16 %v108
    %v123 = vunpack.c.l.b16 %v109
    %v124 = vpack.c.b16 %v123, %v122
    %v135 = vunpack.c.l.b16 %v110
    %v136 = vunpack.c.h.b16 %v110
    %v137 = vunpack.c.l.b16 %v111
    %v138 = vunpack.c.h.b16 %v111
    %v139 = vunpack.c.l.b16 %v112
    %v140 = vunpack.c.h.b16 %v112
    %v141 = vunpack.c.l.b16 %v113
    %v142 = vunpack.c.h.b16 %v113
    %v143 = vunpack.c.l.b16 %v114
    %v144 = vunpack.c.h.b16 %v114
    %v145 = vunpack.c.l.b16 %v115
    %v146 = vunpack.c.h.b16 %v115
    %v147 = vunpack.c.l.b16 %v116
    %v148 = vunpack.c.h.b16 %v116
    %v149 = vunpack.c.l.b16 %v117
    %v150 = vunpack.c.h.b16 %v117
    %v151 = vunpack.c.l.b16 %v118
    %v152 = vunpack.c.h.b16 %v118
    %v153 = vunpack.c.l.b16 %v119
    %v154 = vunpack.c.h.b16 %v119
    %v155 = vpack.c.b16 %v139, %v135
    %v156 = vpack.c.b16 %v140, %v136
    %v157 = vpack.c.b16 %v141, %v137
    %v158 = vpack.c.b16 %v142, %v138
    %v159 = vpack.c.b16 %v147, %v143
    %v160 = vpack.c.b16 %v148, %v144
    %v161 = vpack.c.b16 %v149, %v145
    %v162 = vpack.c.b16 %v150, %v146
    %v163 = vpack.c.b16 %v151, %v151
    %v164 = vpack.c.b16 %v152, %v152
    %v165 = vpack.c.b16 %v153, %v153
    %v166 = vpack.c.b16 %v154, %v154
    %vm175 = vcmask 326656
    %v177 = vsel %vm175, %v124, 0
    %vm179 = vcmask 1043456
    %v181 = vsel %vm179, %v163, 0
    %v184 = vsel %vm179, %v164, 0
    %v187 = vsel %vm179, %v165, 0
    %v190 = vsel %vm179, %v166, 0
    %192 = vmatprep.subr.bf16.mxu0 %v156
    %193 = vmatpush1.bf16.msra.mxu0 %v155
    %194 = vmatprep.subr.bf16.mxu0 %v160
    %195 = vmatpush1.bf16.msra.mxu0 %v159
    %196 = vmatprep.subr.bf16.mxu0 %v184
    %197 = vmatpush1.bf16.msra.mxu0 %v181
    %198 = vmatprep.subr.bf16.mxu0 0
    %199 = vmatpush1.bf16.msra.mxu0 0
    %200 = vmatprep.subr.bf16.mxu0 0
    %201 = vmatpush1.bf16.msra.mxu0 0
    %202 = vmatprep.subr.bf16.mxu0 0
    %203 = vmatpush1.bf16.msra.mxu0 0
    %204 = vmatprep.subr.bf16.mxu0 0
    %205 = vmatpush1.bf16.msra.mxu0 0
    %206 = vmatprep.subr.bf16.mxu0 0
    %207 = vmatpush1.bf16.msra.mxu0 0
    %208 = vmatprep.subr.bf16.mxu0 0
    %209 = vmatpush1.bf16.msra.mxu0 0
    %210 = vmatprep.subr.bf16.mxu0 0
    %211 = vmatpush1.bf16.msra.mxu0 0
    %212 = vmatprep.subr.bf16.mxu0 0
    %213 = vmatpush1.bf16.msra.mxu0 0
    %214 = vmatprep.subr.bf16.mxu0 0
    %215 = vmatpush1.bf16.msra.mxu0 0
    %216 = vmatprep.subr.bf16.mxu0 0
    %217 = vmatpush1.bf16.msra.mxu0 0
    %218 = vmatprep.subr.bf16.mxu0 0
    %219 = vmatpush1.bf16.msra.mxu0 0
    %220 = vmatprep.subr.bf16.mxu0 0
    %221 = vmatpush1.bf16.msra.mxu0 0
    %222 = vmatprep.subr.bf16.mxu0 0
    %223 = vmatpush1.bf16.msra.mxu0 0
    %224 = vmatprep.mubr.bf16.mxu0 0
    %225 = vmatmul.mubr.bf16.gmra.mrb[0].mxu0 %v177
    %v226 = vpop.f32.mrb[0].mxu0
    %v227 = vadd.f32 0.0, %v226
    %v228 = vpop.f32.mrb[0].mxu0
    %v229 = vadd.f32 0.0, %v228
    %v230 = vpop.f32.mrb[0].mxu0
    %v231 = vadd.f32 0.0, %v230
    %v232 = vpop.f32.mrb[0].mxu0
    %v233 = vadd.f32 0.0, %v232
    %234 = vdwg.mxu0
    %235 = vmatprep.subr.bf16.mxu0 %v158
    %236 = vmatpush1.bf16.msra.mxu0 %v157
    %237 = vmatprep.subr.bf16.mxu0 %v162
    %238 = vmatpush1.bf16.msra.mxu0 %v161
    %239 = vmatprep.subr.bf16.mxu0 %v190
    %240 = vmatpush1.bf16.msra.mxu0 %v187
    %241 = vmatprep.subr.bf16.mxu0 0
    %242 = vmatpush1.bf16.msra.mxu0 0
    %243 = vmatprep.subr.bf16.mxu0 0
    %244 = vmatpush1.bf16.msra.mxu0 0
    %245 = vmatprep.subr.bf16.mxu0 0
    %246 = vmatpush1.bf16.msra.mxu0 0
    %247 = vmatprep.subr.bf16.mxu0 0
    %248 = vmatpush1.bf16.msra.mxu0 0
    %249 = vmatprep.subr.bf16.mxu0 0
    %250 = vmatpush1.bf16.msra.mxu0 0
    %251 = vmatprep.subr.bf16.mxu0 0
    %252 = vmatpush1.bf16.msra.mxu0 0
    %253 = vmatprep.subr.bf16.mxu0 0
    %254 = vmatpush1.bf16.msra.mxu0 0
    %255 = vmatprep.subr.bf16.mxu0 0
    %256 = vmatpush1.bf16.msra.mxu0 0
    %257 = vmatprep.subr.bf16.mxu0 0
    %258 = vmatpush1.bf16.msra.mxu0 0
    %259 = vmatprep.subr.bf16.mxu0 0
    %260 = vmatpush1.bf16.msra.mxu0 0
    %261 = vmatprep.subr.bf16.mxu0 0
    %262 = vmatpush1.bf16.msra.mxu0 0
    %263 = vmatprep.subr.bf16.mxu0 0
    %264 = vmatpush1.bf16.msra.mxu0 0
    %265 = vmatprep.subr.bf16.mxu0 0
    %266 = vmatpush1.bf16.msra.mxu0 0
    %267 = vmatprep.mubr.bf16.mxu0 0
    %268 = vmatmul.mubr.bf16.gmra.mrb[0].mxu0 %v177
    %v269 = vpop.f32.mrb[0].mxu0
    %v270 = vadd.f32 0.0, %v269
    %v271 = vpop.f32.mrb[0].mxu0
    %v272 = vadd.f32 0.0, %v271
    %v273 = vpop.f32.mrb[0].mxu0
    %v274 = vadd.f32 0.0, %v273
    %v275 = vpop.f32.mrb[0].mxu0
    %v276 = vadd.f32 0.0, %v275
    %277 = vdwg.mxu0
    %v278 = vadd.f32 %v227, %v231
    %v279 = vrot.slane %v278, 4
    %v280 = vadd.f32 %v278, %v279
    %v281 = vrot.slane %v280, 2
    %v282 = vadd.f32 %v280, %v281
    %v283 = vrot.slane %v282, 1
    %v284 = vadd.f32 %v282, %v283
    %v285 = vadd.f32 %v229, %v233
    %v286 = vrot.slane %v285, 4
    %v287 = vadd.f32 %v285, %v286
    %v288 = vrot.slane %v287, 2
    %v289 = vadd.f32 %v287, %v288
    %v290 = vrot.slane %v289, 1
    %v291 = vadd.f32 %v289, %v290
    %v292 = vadd.f32 %v270, %v274
    %v293 = vrot.slane %v292, 4
    %v294 = vadd.f32 %v292, %v293
    %v295 = vrot.slane %v294, 2
    %v296 = vadd.f32 %v294, %v295
    %v297 = vrot.slane %v296, 1
    %v298 = vadd.f32 %v296, %v297
    %v299 = vadd.f32 %v272, %v276
    %v300 = vrot.slane %v299, 4
    %v301 = vadd.f32 %v299, %v300
    %v302 = vrot.slane %v301, 2
    %v303 = vadd.f32 %v301, %v302
    %v304 = vrot.slane %v303, 1
    %v305 = vadd.f32 %v303, %v304
    %v306 = vmul.f32 %v227, %v227
    %v307 = vmul.f32 %v229, %v229
    %v308 = vmul.f32 %v270, %v270
    %v309 = vmul.f32 %v272, %v272
    %v310 = vmul.f32 %v231, %v231
    %v311 = vmul.f32 %v233, %v233
    %v312 = vmul.f32 %v274, %v274
    %v313 = vmul.f32 %v276, %v276
    %v314 = vadd.f32 %v306, %v310
    %v315 = vrot.slane %v314, 4
    %v316 = vadd.f32 %v314, %v315
    %v317 = vrot.slane %v316, 2
    %v318 = vadd.f32 %v316, %v317
    %v319 = vrot.slane %v318, 1
    %v320 = vadd.f32 %v318, %v319
    %v321 = vadd.f32 %v307, %v311
    %v322 = vrot.slane %v321, 4
    %v323 = vadd.f32 %v321, %v322
    %v324 = vrot.slane %v323, 2
    %v325 = vadd.f32 %v323, %v324
    %v326 = vrot.slane %v325, 1
    %v327 = vadd.f32 %v325, %v326
    %v328 = vadd.f32 %v308, %v312
    %v329 = vrot.slane %v328, 4
    %v330 = vadd.f32 %v328, %v329
    %v331 = vrot.slane %v330, 2
    %v332 = vadd.f32 %v330, %v331
    %v333 = vrot.slane %v332, 1
    %v334 = vadd.f32 %v332, %v333
    %v335 = vadd.f32 %v309, %v313
    %v336 = vrot.slane %v335, 4
    %v337 = vadd.f32 %v335, %v336
    %v338 = vrot.slane %v337, 2
    %v339 = vadd.f32 %v337, %v338
    %v340 = vrot.slane %v339, 1
    %v341 = vadd.f32 %v339, %v340
    %v342 = vlaneseq
    %v343 = vshrl.u32 %v342, 7
    %v344 = vadd.s32 %v343, 8
    %v345 = vadd.s32 %v343, 16
    %v346 = vadd.s32 %v343, 24
    %v347 = vadd.s32 %v343, 32
    %v348 = vadd.s32 %v343, 40
    %v349 = vadd.s32 %v343, 48
    %v350 = vadd.s32 %v343, 56
    %v351 = vadd.s32 %v343, 64
    %v352 = vadd.s32 %v343, 72
    %v353 = vadd.s32 %v343, 80
    %v354 = vadd.s32 %v343, 88
    %v355 = vadd.s32 %v343, 96
    %v356 = vadd.s32 %v343, 104
    %v357 = vadd.s32 %v343, 112
    %v358 = vadd.s32 %v343, 120
    %v359 = vadd.s32 %v343, 128
    %v360 = vadd.s32 %v343, 136
    %v361 = vadd.s32 %v343, 144
    %v362 = vadd.s32 %v343, 152
    %v363 = vadd.s32 %v343, 160
    %v364 = vadd.s32 %v343, 168
    %v365 = vadd.s32 %v343, 176
    %v366 = vadd.s32 %v343, 184
    %v367 = vadd.s32 %v343, 192
    %v368 = vadd.s32 %v343, 200
    %v369 = vadd.s32 %v343, 208
    %v370 = vadd.s32 %v343, 216
    %v371 = vadd.s32 %v343, 224
    %v372 = vadd.s32 %v343, 232
    %v373 = vadd.s32 %v343, 240
    %v374 = vadd.s32 %v343, 248
    %v375 = vadd.s32 %v343, 256
    %v376 = vadd.s32 %v343, 264
    %v377 = vadd.s32 %v343, 272
    %v378 = vadd.s32 %v343, 280
    %v379 = vadd.s32 %v343, 288
    %v380 = vadd.s32 %v343, 296
    %v381 = vadd.s32 %v343, 304
    %v382 = vadd.s32 %v343, 312
    %v383 = vadd.s32 %v343, 320
    %v384 = vadd.s32 %v343, 328
    %v385 = vadd.s32 %v343, 336
    %v386 = vadd.s32 %v343, 344
    %v387 = vadd.s32 %v343, 352
    %v388 = vadd.s32 %v343, 360
    %v389 = vadd.s32 %v343, 368
    %v390 = vadd.s32 %v343, 376
    %v391 = vadd.s32 %v343, 384
    %v392 = vadd.s32 %v343, 392
    %v393 = vadd.s32 %v343, 400
    %v394 = vadd.s32 %v343, 408
    %v395 = vadd.s32 %v343, 416
    %v396 = vadd.s32 %v343, 424
    %v397 = vadd.s32 %v343, 432
    %v398 = vadd.s32 %v343, 440
    %v399 = vadd.s32 %v343, 448
    %v400 = vadd.s32 %v343, 456
    %v401 = vadd.s32 %v343, 464
    %v402 = vadd.s32 %v343, 472
    %v403 = vadd.s32 %v343, 480
    %v404 = vadd.s32 %v343, 488
    %v405 = vadd.s32 %v343, 496
    %v406 = vadd.s32 %v343, 504
    %v407 = vlaneseq
    %v408 = vand.u32 %v407, 127
    %vm409 = vcmp.lt.s32.totalorder %v343, 0
    %v410 = vsub.s32 0, %v343
    %v411 = vsel %vm409, %v410, %v343
    %v412 = vshrl.u32 %v411, 5
    %v413 = vand.u32 %v411, 31
    %v414 = vsub.s32 0, %v413
    %v415 = vsel %vm409, %v414, %v413
    %vm416 = vcmp.lt.s32.totalorder %v344, 0
    %v417 = vsub.s32 0, %v344
    %v418 = vsel %vm416, %v417, %v344
    %v419 = vshrl.u32 %v418, 5
    %v420 = vand.u32 %v418, 31
    %v421 = vsub.s32 0, %v420
    %v422 = vsel %vm416, %v421, %v420
    %vm423 = vcmp.lt.s32.totalorder %v345, 0
    %v424 = vsub.s32 0, %v345
    %v425 = vsel %vm423, %v424, %v345
    %v426 = vshrl.u32 %v425, 5
    %v427 = vand.u32 %v425, 31
    %v428 = vsub.s32 0, %v427
    %v429 = vsel %vm423, %v428, %v427
    %vm430 = vcmp.lt.s32.totalorder %v346, 0
    %v431 = vsub.s32 0, %v346
    %v432 = vsel %vm430, %v431, %v346
    %v433 = vshrl.u32 %v432, 5
    %v434 = vand.u32 %v432, 31
    %v435 = vsub.s32 0, %v434
    %v436 = vsel %vm430, %v435, %v434
    %vm437 = vcmp.lt.s32.totalorder %v347, 0
    %v438 = vsub.s32 0, %v347
    %v439 = vsel %vm437, %v438, %v347
    %v440 = vshrl.u32 %v439, 5
    %v441 = vand.u32 %v439, 31
    %v442 = vsub.s32 0, %v441
    %v443 = vsel %vm437, %v442, %v441
    %vm444 = vcmp.lt.s32.totalorder %v348, 0
    %v445 = vsub.s32 0, %v348
    %v446 = vsel %vm444, %v445, %v348
    %v447 = vshrl.u32 %v446, 5
    %v448 = vand.u32 %v446, 31
    %v449 = vsub.s32 0, %v448
    %v450 = vsel %vm444, %v449, %v448
    %vm451 = vcmp.lt.s32.totalorder %v349, 0
    %v452 = vsub.s32 0, %v349
    %v453 = vsel %vm451, %v452, %v349
    %v454 = vshrl.u32 %v453, 5
    %v455 = vand.u32 %v453, 31
    %v456 = vsub.s32 0, %v455
    %v457 = vsel %vm451, %v456, %v455
    %vm458 = vcmp.lt.s32.totalorder %v350, 0
    %v459 = vsub.s32 0, %v350
    %v460 = vsel %vm458, %v459, %v350
    %v461 = vshrl.u32 %v460, 5
    %v462 = vand.u32 %v460, 31
    %v463 = vsub.s32 0, %v462
    %v464 = vsel %vm458, %v463, %v462
    %vm465 = vcmp.lt.s32.totalorder %v351, 0
    %v466 = vsub.s32 0, %v351
    %v467 = vsel %vm465, %v466, %v351
    %v468 = vshrl.u32 %v467, 5
    %v469 = vand.u32 %v467, 31
    %v470 = vsub.s32 0, %v469
    %v471 = vsel %vm465, %v470, %v469
    %vm472 = vcmp.lt.s32.totalorder %v352, 0
    %v473 = vsub.s32 0, %v352
    %v474 = vsel %vm472, %v473, %v352
    %v475 = vshrl.u32 %v474, 5
    %v476 = vand.u32 %v474, 31
    %v477 = vsub.s32 0, %v476
    %v478 = vsel %vm472, %v477, %v476
    %vm479 = vcmp.lt.s32.totalorder %v353, 0
    %v480 = vsub.s32 0, %v353
    %v481 = vsel %vm479, %v480, %v353
    %v482 = vshrl.u32 %v481, 5
    %v483 = vand.u32 %v481, 31
    %v484 = vsub.s32 0, %v483
    %v485 = vsel %vm479, %v484, %v483
    %vm486 = vcmp.lt.s32.totalorder %v354, 0
    %v487 = vsub.s32 0, %v354
    %v488 = vsel %vm486, %v487, %v354
    %v489 = vshrl.u32 %v488, 5
    %v490 = vand.u32 %v488, 31
    %v491 = vsub.s32 0, %v490
    %v492 = vsel %vm486, %v491, %v490
    %vm493 = vcmp.lt.s32.totalorder %v355, 0
    %v494 = vsub.s32 0, %v355
    %v495 = vsel %vm493, %v494, %v355
    %v496 = vshrl.u32 %v495, 5
    %v497 = vand.u32 %v495, 31
    %v498 = vsub.s32 0, %v497
    %v499 = vsel %vm493, %v498, %v497
    %vm500 = vcmp.lt.s32.totalorder %v356, 0
    %v501 = vsub.s32 0, %v356
    %v502 = vsel %vm500, %v501, %v356
    %v503 = vshrl.u32 %v502, 5
    %v504 = vand.u32 %v502, 31
    %v505 = vsub.s32 0, %v504
    %v506 = vsel %vm500, %v505, %v504
    %vm507 = vcmp.lt.s32.totalorder %v357, 0
    %v508 = vsub.s32 0, %v357
    %v509 = vsel %vm507, %v508, %v357
    %v510 = vshrl.u32 %v509, 5
    %v511 = vand.u32 %v509, 31
    %v512 = vsub.s32 0, %v511
    %v513 = vsel %vm507, %v512, %v511
    %vm514 = vcmp.lt.s32.totalorder %v358, 0
    %v515 = vsub.s32 0, %v358
    %v516 = vsel %vm514, %v515, %v358
    %v517 = vshrl.u32 %v516, 5
    %v518 = vand.u32 %v516, 31
    %v519 = vsub.s32 0, %v518
    %v520 = vsel %vm514, %v519, %v518
    %vm521 = vcmp.lt.s32.totalorder %v359, 0
    %v522 = vsub.s32 0, %v359
    %v523 = vsel %vm521, %v522, %v359
    %v524 = vshrl.u32 %v523, 5
    %v525 = vand.u32 %v523, 31
    %v526 = vsub.s32 0, %v525
    %v527 = vsel %vm521, %v526, %v525
    %vm528 = vcmp.lt.s32.totalorder %v360, 0
    %v529 = vsub.s32 0, %v360
    %v530 = vsel %vm528, %v529, %v360
    %v531 = vshrl.u32 %v530, 5
    %v532 = vand.u32 %v530, 31
    %v533 = vsub.s32 0, %v532
    %v534 = vsel %vm528, %v533, %v532
    %vm535 = vcmp.lt.s32.totalorder %v361, 0
    %v536 = vsub.s32 0, %v361
    %v537 = vsel %vm535, %v536, %v361
    %v538 = vshrl.u32 %v537, 5
    %v539 = vand.u32 %v537, 31
    %v540 = vsub.s32 0, %v539
    %v541 = vsel %vm535, %v540, %v539
    %vm542 = vcmp.lt.s32.totalorder %v362, 0
    %v543 = vsub.s32 0, %v362
    %v544 = vsel %vm542, %v543, %v362
    %v545 = vshrl.u32 %v544, 5
    %v546 = vand.u32 %v544, 31
    %v547 = vsub.s32 0, %v546
    %v548 = vsel %vm542, %v547, %v546
    %vm549 = vcmp.lt.s32.totalorder %v363, 0
    %v550 = vsub.s32 0, %v363
    %v551 = vsel %vm549, %v550, %v363
    %v552 = vshrl.u32 %v551, 5
    %v553 = vand.u32 %v551, 31
    %v554 = vsub.s32 0, %v553
    %v555 = vsel %vm549, %v554, %v553
    %vm556 = vcmp.lt.s32.totalorder %v364, 0
    %v557 = vsub.s32 0, %v364
    %v558 = vsel %vm556, %v557, %v364
    %v559 = vshrl.u32 %v558, 5
    %v560 = vand.u32 %v558, 31
    %v561 = vsub.s32 0, %v560
    %v562 = vsel %vm556, %v561, %v560
    %vm563 = vcmp.lt.s32.totalorder %v365, 0
    %v564 = vsub.s32 0, %v365
    %v565 = vsel %vm563, %v564, %v365
    %v566 = vshrl.u32 %v565, 5
    %v567 = vand.u32 %v565, 31
    %v568 = vsub.s32 0, %v567
    %v569 = vsel %vm563, %v568, %v567
    %vm570 = vcmp.lt.s32.totalorder %v366, 0
    %v571 = vsub.s32 0, %v366
    %v572 = vsel %vm570, %v571, %v366
    %v573 = vshrl.u32 %v572, 5
    %v574 = vand.u32 %v572, 31
    %v575 = vsub.s32 0, %v574
    %v576 = vsel %vm570, %v575, %v574
    %vm577 = vcmp.lt.s32.totalorder %v367, 0
    %v578 = vsub.s32 0, %v367
    %v579 = vsel %vm577, %v578, %v367
    %v580 = vshrl.u32 %v579, 5
    %v581 = vand.u32 %v579, 31
    %v582 = vsub.s32 0, %v581
    %v583 = vsel %vm577, %v582, %v581
    %vm584 = vcmp.lt.s32.totalorder %v368, 0
    %v585 = vsub.s32 0, %v368
    %v586 = vsel %vm584, %v585, %v368
    %v587 = vshrl.u32 %v586, 5
    %v588 = vand.u32 %v586, 31
    %v589 = vsub.s32 0, %v588
    %v590 = vsel %vm584, %v589, %v588
    %vm591 = vcmp.lt.s32.totalorder %v369, 0
    %v592 = vsub.s32 0, %v369
    %v593 = vsel %vm591, %v592, %v369
    %v594 = vshrl.u32 %v593, 5
    %v595 = vand.u32 %v593, 31
    %v596 = vsub.s32 0, %v595
    %v597 = vsel %vm591, %v596, %v595
    %vm598 = vcmp.lt.s32.totalorder %v370, 0
    %v599 = vsub.s32 0, %v370
    %v600 = vsel %vm598, %v599, %v370
    %v601 = vshrl.u32 %v600, 5
    %v602 = vand.u32 %v600, 31
    %v603 = vsub.s32 0, %v602
    %v604 = vsel %vm598, %v603, %v602
    %vm605 = vcmp.lt.s32.totalorder %v371, 0
    %v606 = vsub.s32 0, %v371
    %v607 = vsel %vm605, %v606, %v371
    %v608 = vshrl.u32 %v607, 5
    %v609 = vand.u32 %v607, 31
    %v610 = vsub.s32 0, %v609
    %v611 = vsel %vm605, %v610, %v609
    %vm612 = vcmp.lt.s32.totalorder %v372, 0
    %v613 = vsub.s32 0, %v372
    %v614 = vsel %vm612, %v613, %v372
    %v615 = vshrl.u32 %v614, 5
    %v616 = vand.u32 %v614, 31
    %v617 = vsub.s32 0, %v616
    %v618 = vsel %vm612, %v617, %v616
    %vm619 = vcmp.lt.s32.totalorder %v373, 0
    %v620 = vsub.s32 0, %v373
    %v621 = vsel %vm619, %v620, %v373
    %v622 = vshrl.u32 %v621, 5
    %v623 = vand.u32 %v621, 31
    %v624 = vsub.s32 0, %v623
    %v625 = vsel %vm619, %v624, %v623
    %vm626 = vcmp.lt.s32.totalorder %v374, 0
    %v627 = vsub.s32 0, %v374
    %v628 = vsel %vm626, %v627, %v374
    %v629 = vshrl.u32 %v628, 5
    %v630 = vand.u32 %v628, 31
    %v631 = vsub.s32 0, %v630
    %v632 = vsel %vm626, %v631, %v630
    %vm633 = vcmp.lt.s32.totalorder %v375, 0
    %v634 = vsub.s32 0, %v375
    %v635 = vsel %vm633, %v634, %v375
    %v636 = vshrl.u32 %v635, 5
    %v637 = vand.u32 %v635, 31
    %v638 = vsub.s32 0, %v637
    %v639 = vsel %vm633, %v638, %v637
    %vm640 = vcmp.lt.s32.totalorder %v376, 0
    %v641 = vsub.s32 0, %v376
    %v642 = vsel %vm640, %v641, %v376
    %v643 = vshrl.u32 %v642, 5
    %v644 = vand.u32 %v642, 31
    %v645 = vsub.s32 0, %v644
    %v646 = vsel %vm640, %v645, %v644
    %vm647 = vcmp.lt.s32.totalorder %v377, 0
    %v648 = vsub.s32 0, %v377
    %v649 = vsel %vm647, %v648, %v377
    %v650 = vshrl.u32 %v649, 5
    %v651 = vand.u32 %v649, 31
    %v652 = vsub.s32 0, %v651
    %v653 = vsel %vm647, %v652, %v651
    %vm654 = vcmp.lt.s32.totalorder %v378, 0
    %v655 = vsub.s32 0, %v378
    %v656 = vsel %vm654, %v655, %v378
    %v657 = vshrl.u32 %v656, 5
    %v658 = vand.u32 %v656, 31
    %v659 = vsub.s32 0, %v658
    %v660 = vsel %vm654, %v659, %v658
    %vm661 = vcmp.lt.s32.totalorder %v379, 0
    %v662 = vsub.s32 0, %v379
    %v663 = vsel %vm661, %v662, %v379
    %v664 = vshrl.u32 %v663, 5
    %v665 = vand.u32 %v663, 31
    %v666 = vsub.s32 0, %v665
    %v667 = vsel %vm661, %v666, %v665
    %vm668 = vcmp.lt.s32.totalorder %v380, 0
    %v669 = vsub.s32 0, %v380
    %v670 = vsel %vm668, %v669, %v380
    %v671 = vshrl.u32 %v670, 5
    %v672 = vand.u32 %v670, 31
    %v673 = vsub.s32 0, %v672
    %v674 = vsel %vm668, %v673, %v672
    %vm675 = vcmp.lt.s32.totalorder %v381, 0
    %v676 = vsub.s32 0, %v381
    %v677 = vsel %vm675, %v676, %v381
    %v678 = vshrl.u32 %v677, 5
    %v679 = vand.u32 %v677, 31
    %v680 = vsub.s32 0, %v679
    %v681 = vsel %vm675, %v680, %v679
    %vm682 = vcmp.lt.s32.totalorder %v382, 0
    %v683 = vsub.s32 0, %v382
    %v684 = vsel %vm682, %v683, %v382
    %v685 = vshrl.u32 %v684, 5
    %v686 = vand.u32 %v684, 31
    %v687 = vsub.s32 0, %v686
    %v688 = vsel %vm682, %v687, %v686
    %vm689 = vcmp.lt.s32.totalorder %v383, 0
    %v690 = vsub.s32 0, %v383
    %v691 = vsel %vm689, %v690, %v383
    %v692 = vshrl.u32 %v691, 5
    %v693 = vand.u32 %v691, 31
    %v694 = vsub.s32 0, %v693
    %v695 = vsel %vm689, %v694, %v693
    %vm696 = vcmp.lt.s32.totalorder %v384, 0
    %v697 = vsub.s32 0, %v384
    %v698 = vsel %vm696, %v697, %v384
    %v699 = vshrl.u32 %v698, 5
    %v700 = vand.u32 %v698, 31
    %v701 = vsub.s32 0, %v700
    %v702 = vsel %vm696, %v701, %v700
    %vm703 = vcmp.lt.s32.totalorder %v385, 0
    %v704 = vsub.s32 0, %v385
    %v705 = vsel %vm703, %v704, %v385
    %v706 = vshrl.u32 %v705, 5
    %v707 = vand.u32 %v705, 31
    %v708 = vsub.s32 0, %v707
    %v709 = vsel %vm703, %v708, %v707
    %vm710 = vcmp.lt.s32.totalorder %v386, 0
    %v711 = vsub.s32 0, %v386
    %v712 = vsel %vm710, %v711, %v386
    %v713 = vshrl.u32 %v712, 5
    %v714 = vand.u32 %v712, 31
    %v715 = vsub.s32 0, %v714
    %v716 = vsel %vm710, %v715, %v714
    %vm717 = vcmp.lt.s32.totalorder %v387, 0
    %v718 = vsub.s32 0, %v387
    %v719 = vsel %vm717, %v718, %v387
    %v720 = vshrl.u32 %v719, 5
    %v721 = vand.u32 %v719, 31
    %v722 = vsub.s32 0, %v721
    %v723 = vsel %vm717, %v722, %v721
    %vm724 = vcmp.lt.s32.totalorder %v388, 0
    %v725 = vsub.s32 0, %v388
    %v726 = vsel %vm724, %v725, %v388
    %v727 = vshrl.u32 %v726, 5
    %v728 = vand.u32 %v726, 31
    %v729 = vsub.s32 0, %v728
    %v730 = vsel %vm724, %v729, %v728
    %vm731 = vcmp.lt.s32.totalorder %v389, 0
    %v732 = vsub.s32 0, %v389
    %v733 = vsel %vm731, %v732, %v389
    %v734 = vshrl.u32 %v733, 5
    %v735 = vand.u32 %v733, 31
    %v736 = vsub.s32 0, %v735
    %v737 = vsel %vm731, %v736, %v735
    %vm738 = vcmp.lt.s32.totalorder %v390, 0
    %v739 = vsub.s32 0, %v390
    %v740 = vsel %vm738, %v739, %v390
    %v741 = vshrl.u32 %v740, 5
    %v742 = vand.u32 %v740, 31
    %v743 = vsub.s32 0, %v742
    %v744 = vsel %vm738, %v743, %v742
    %vm745 = vcmp.lt.s32.totalorder %v391, 0
    %v746 = vsub.s32 0, %v391
    %v747 = vsel %vm745, %v746, %v391
    %v748 = vshrl.u32 %v747, 5
    %v749 = vand.u32 %v747, 31
    %v750 = vsub.s32 0, %v749
    %v751 = vsel %vm745, %v750, %v749
    %vm752 = vcmp.lt.s32.totalorder %v392, 0
    %v753 = vsub.s32 0, %v392
    %v754 = vsel %vm752, %v753, %v392
    %v755 = vshrl.u32 %v754, 5
    %v756 = vand.u32 %v754, 31
    %v757 = vsub.s32 0, %v756
    %v758 = vsel %vm752, %v757, %v756
    %vm759 = vcmp.lt.s32.totalorder %v393, 0
    %v760 = vsub.s32 0, %v393
    %v761 = vsel %vm759, %v760, %v393
    %v762 = vshrl.u32 %v761, 5
    %v763 = vand.u32 %v761, 31
    %v764 = vsub.s32 0, %v763
    %v765 = vsel %vm759, %v764, %v763
    %vm766 = vcmp.lt.s32.totalorder %v394, 0
    %v767 = vsub.s32 0, %v394
    %v768 = vsel %vm766, %v767, %v394
    %v769 = vshrl.u32 %v768, 5
    %v770 = vand.u32 %v768, 31
    %v771 = vsub.s32 0, %v770
    %v772 = vsel %vm766, %v771, %v770
    %vm773 = vcmp.lt.s32.totalorder %v395, 0
    %v774 = vsub.s32 0, %v395
    %v775 = vsel %vm773, %v774, %v395
    %v776 = vshrl.u32 %v775, 5
    %v777 = vand.u32 %v775, 31
    %v778 = vsub.s32 0, %v777
    %v779 = vsel %vm773, %v778, %v777
    %vm780 = vcmp.lt.s32.totalorder %v396, 0
    %v781 = vsub.s32 0, %v396
    %v782 = vsel %vm780, %v781, %v396
    %v783 = vshrl.u32 %v782, 5
    %v784 = vand.u32 %v782, 31
    %v785 = vsub.s32 0, %v784
    %v786 = vsel %vm780, %v785, %v784
    %vm787 = vcmp.lt.s32.totalorder %v397, 0
    %v788 = vsub.s32 0, %v397
    %v789 = vsel %vm787, %v788, %v397
    %v790 = vshrl.u32 %v789, 5
    %v791 = vand.u32 %v789, 31
    %v792 = vsub.s32 0, %v791
    %v793 = vsel %vm787, %v792, %v791
    %vm794 = vcmp.lt.s32.totalorder %v398, 0
    %v795 = vsub.s32 0, %v398
    %v796 = vsel %vm794, %v795, %v398
    %v797 = vshrl.u32 %v796, 5
    %v798 = vand.u32 %v796, 31
    %v799 = vsub.s32 0, %v798
    %v800 = vsel %vm794, %v799, %v798
    %vm801 = vcmp.lt.s32.totalorder %v399, 0
    %v802 = vsub.s32 0, %v399
    %v803 = vsel %vm801, %v802, %v399
    %v804 = vshrl.u32 %v803, 5
    %v805 = vand.u32 %v803, 31
    %v806 = vsub.s32 0, %v805
    %v807 = vsel %vm801, %v806, %v805
    %vm808 = vcmp.lt.s32.totalorder %v400, 0
    %v809 = vsub.s32 0, %v400
    %v810 = vsel %vm808, %v809, %v400
    %v811 = vshrl.u32 %v810, 5
    %v812 = vand.u32 %v810, 31
    %v813 = vsub.s32 0, %v812
    %v814 = vsel %vm808, %v813, %v812
    %vm815 = vcmp.lt.s32.totalorder %v401, 0
    %v816 = vsub.s32 0, %v401
    %v817 = vsel %vm815, %v816, %v401
    %v818 = vshrl.u32 %v817, 5
    %v819 = vand.u32 %v817, 31
    %v820 = vsub.s32 0, %v819
    %v821 = vsel %vm815, %v820, %v819
    %vm822 = vcmp.lt.s32.totalorder %v402, 0
    %v823 = vsub.s32 0, %v402
    %v824 = vsel %vm822, %v823, %v402
    %v825 = vshrl.u32 %v824, 5
    %v826 = vand.u32 %v824, 31
    %v827 = vsub.s32 0, %v826
    %v828 = vsel %vm822, %v827, %v826
    %vm829 = vcmp.lt.s32.totalorder %v403, 0
    %v830 = vsub.s32 0, %v403
    %v831 = vsel %vm829, %v830, %v403
    %v832 = vshrl.u32 %v831, 5
    %v833 = vand.u32 %v831, 31
    %v834 = vsub.s32 0, %v833
    %v835 = vsel %vm829, %v834, %v833
    %vm836 = vcmp.lt.s32.totalorder %v404, 0
    %v837 = vsub.s32 0, %v404
    %v838 = vsel %vm836, %v837, %v404
    %v839 = vshrl.u32 %v838, 5
    %v840 = vand.u32 %v838, 31
    %v841 = vsub.s32 0, %v840
    %v842 = vsel %vm836, %v841, %v840
    %vm843 = vcmp.lt.s32.totalorder %v405, 0
    %v844 = vsub.s32 0, %v405
    %v845 = vsel %vm843, %v844, %v405
    %v846 = vshrl.u32 %v845, 5
    %v847 = vand.u32 %v845, 31
    %v848 = vsub.s32 0, %v847
    %v849 = vsel %vm843, %v848, %v847
    %vm850 = vcmp.lt.s32.totalorder %v406, 0
    %v851 = vsub.s32 0, %v406
    %v852 = vsel %vm850, %v851, %v406
    %v853 = vshrl.u32 %v852, 5
    %v854 = vand.u32 %v852, 31
    %v855 = vsub.s32 0, %v854
    %v856 = vsel %vm850, %v855, %v854
    %vm857 = vcmp.ne.s32.totalorder %v415, 0
    %vm858 = vcmp.ne.s32.totalorder %v422, 0
    %vm859 = vcmp.ne.s32.totalorder %v429, 0
    %vm860 = vcmp.ne.s32.totalorder %v436, 0
    %vm861 = vcmp.ne.s32.totalorder %v443, 0
    %vm862 = vcmp.ne.s32.totalorder %v450, 0
    %vm863 = vcmp.ne.s32.totalorder %v457, 0
    %vm864 = vcmp.ne.s32.totalorder %v464, 0
    %vm865 = vcmp.ne.s32.totalorder %v471, 0
    %vm866 = vcmp.ne.s32.totalorder %v478, 0
    %vm867 = vcmp.ne.s32.totalorder %v485, 0
    %vm868 = vcmp.ne.s32.totalorder %v492, 0
    %vm869 = vcmp.ne.s32.totalorder %v499, 0
    %vm870 = vcmp.ne.s32.totalorder %v506, 0
    %vm871 = vcmp.ne.s32.totalorder %v513, 0
    %vm872 = vcmp.ne.s32.totalorder %v520, 0
    %vm873 = vcmp.ne.s32.totalorder %v527, 0
    %vm874 = vcmp.ne.s32.totalorder %v534, 0
    %vm875 = vcmp.ne.s32.totalorder %v541, 0
    %vm876 = vcmp.ne.s32.totalorder %v548, 0
    %vm877 = vcmp.ne.s32.totalorder %v555, 0
    %vm878 = vcmp.ne.s32.totalorder %v562, 0
    %vm879 = vcmp.ne.s32.totalorder %v569, 0
    %vm880 = vcmp.ne.s32.totalorder %v576, 0
    %vm881 = vcmp.ne.s32.totalorder %v583, 0
    %vm882 = vcmp.ne.s32.totalorder %v590, 0
    %vm883 = vcmp.ne.s32.totalorder %v597, 0
    %vm884 = vcmp.ne.s32.totalorder %v604, 0
    %vm885 = vcmp.ne.s32.totalorder %v611, 0
    %vm886 = vcmp.ne.s32.totalorder %v618, 0
    %vm887 = vcmp.ne.s32.totalorder %v625, 0
    %vm888 = vcmp.ne.s32.totalorder %v632, 0
    %vm889 = vcmp.ne.s32.totalorder %v639, 0
    %vm890 = vcmp.ne.s32.totalorder %v646, 0
    %vm891 = vcmp.ne.s32.totalorder %v653, 0
    %vm892 = vcmp.ne.s32.totalorder %v660, 0
    %vm893 = vcmp.ne.s32.totalorder %v667, 0
    %vm894 = vcmp.ne.s32.totalorder %v674, 0
    %vm895 = vcmp.ne.s32.totalorder %v681, 0
    %vm896 = vcmp.ne.s32.totalorder %v688, 0
    %vm897 = vcmp.ne.s32.totalorder %v695, 0
    %vm898 = vcmp.ne.s32.totalorder %v702, 0
    %vm899 = vcmp.ne.s32.totalorder %v709, 0
    %vm900 = vcmp.ne.s32.totalorder %v716, 0
    %vm901 = vcmp.ne.s32.totalorder %v723, 0
    %vm902 = vcmp.ne.s32.totalorder %v730, 0
    %vm903 = vcmp.ne.s32.totalorder %v737, 0
    %vm904 = vcmp.ne.s32.totalorder %v744, 0
    %vm905 = vcmp.ne.s32.totalorder %v751, 0
    %vm906 = vcmp.ne.s32.totalorder %v758, 0
    %vm907 = vcmp.ne.s32.totalorder %v765, 0
    %vm908 = vcmp.ne.s32.totalorder %v772, 0
    %vm909 = vcmp.ne.s32.totalorder %v779, 0
    %vm910 = vcmp.ne.s32.totalorder %v786, 0
    %vm911 = vcmp.ne.s32.totalorder %v793, 0
    %vm912 = vcmp.ne.s32.totalorder %v800, 0
    %vm913 = vcmp.ne.s32.totalorder %v807, 0
    %vm914 = vcmp.ne.s32.totalorder %v814, 0
    %vm915 = vcmp.ne.s32.totalorder %v821, 0
    %vm916 = vcmp.ne.s32.totalorder %v828, 0
    %vm917 = vcmp.ne.s32.totalorder %v835, 0
    %vm918 = vcmp.ne.s32.totalorder %v842, 0
    %vm919 = vcmp.ne.s32.totalorder %v849, 0
    %vm920 = vcmp.ne.s32.totalorder %v856, 0
    %vm921 = vcmp.lt.s32.totalorder %v415, 0
    %vm922 = vcmp.lt.s32.totalorder %v422, 0
    %vm923 = vcmp.lt.s32.totalorder %v429, 0
    %vm924 = vcmp.lt.s32.totalorder %v436, 0
    %vm925 = vcmp.lt.s32.totalorder %v443, 0
    %vm926 = vcmp.lt.s32.totalorder %v450, 0
    %vm927 = vcmp.lt.s32.totalorder %v457, 0
    %vm928 = vcmp.lt.s32.totalorder %v464, 0
    %vm929 = vcmp.lt.s32.totalorder %v471, 0
    %vm930 = vcmp.lt.s32.totalorder %v478, 0
    %vm931 = vcmp.lt.s32.totalorder %v485, 0
    %vm932 = vcmp.lt.s32.totalorder %v492, 0
    %vm933 = vcmp.lt.s32.totalorder %v499, 0
    %vm934 = vcmp.lt.s32.totalorder %v506, 0
    %vm935 = vcmp.lt.s32.totalorder %v513, 0
    %vm936 = vcmp.lt.s32.totalorder %v520, 0
    %vm937 = vcmp.lt.s32.totalorder %v527, 0
    %vm938 = vcmp.lt.s32.totalorder %v534, 0
    %vm939 = vcmp.lt.s32.totalorder %v541, 0
    %vm940 = vcmp.lt.s32.totalorder %v548, 0
    %vm941 = vcmp.lt.s32.totalorder %v555, 0
    %vm942 = vcmp.lt.s32.totalorder %v562, 0
    %vm943 = vcmp.lt.s32.totalorder %v569, 0
    %vm944 = vcmp.lt.s32.totalorder %v576, 0
    %vm945 = vcmp.lt.s32.totalorder %v583, 0
    %vm946 = vcmp.lt.s32.totalorder %v590, 0
    %vm947 = vcmp.lt.s32.totalorder %v597, 0
    %vm948 = vcmp.lt.s32.totalorder %v604, 0
    %vm949 = vcmp.lt.s32.totalorder %v611, 0
    %vm950 = vcmp.lt.s32.totalorder %v618, 0
    %vm951 = vcmp.lt.s32.totalorder %v625, 0
    %vm952 = vcmp.lt.s32.totalorder %v632, 0
    %vm953 = vcmp.lt.s32.totalorder %v639, 0
    %vm954 = vcmp.lt.s32.totalorder %v646, 0
    %vm955 = vcmp.lt.s32.totalorder %v653, 0
    %vm956 = vcmp.lt.s32.totalorder %v660, 0
    %vm957 = vcmp.lt.s32.totalorder %v667, 0
    %vm958 = vcmp.lt.s32.totalorder %v674, 0
    %vm959 = vcmp.lt.s32.totalorder %v681, 0
    %vm960 = vcmp.lt.s32.totalorder %v688, 0
    %vm961 = vcmp.lt.s32.totalorder %v695, 0
    %vm962 = vcmp.lt.s32.totalorder %v702, 0
    %vm963 = vcmp.lt.s32.totalorder %v709, 0
    %vm964 = vcmp.lt.s32.totalorder %v716, 0
    %vm965 = vcmp.lt.s32.totalorder %v723, 0
    %vm966 = vcmp.lt.s32.totalorder %v730, 0
    %vm967 = vcmp.lt.s32.totalorder %v737, 0
    %vm968 = vcmp.lt.s32.totalorder %v744, 0
    %vm969 = vcmp.lt.s32.totalorder %v751, 0
    %vm970 = vcmp.lt.s32.totalorder %v758, 0
    %vm971 = vcmp.lt.s32.totalorder %v765, 0
    %vm972 = vcmp.lt.s32.totalorder %v772, 0
    %vm973 = vcmp.lt.s32.totalorder %v779, 0
    %vm974 = vcmp.lt.s32.totalorder %v786, 0
    %vm975 = vcmp.lt.s32.totalorder %v793, 0
    %vm976 = vcmp.lt.s32.totalorder %v800, 0
    %vm977 = vcmp.lt.s32.totalorder %v807, 0
    %vm978 = vcmp.lt.s32.totalorder %v814, 0
    %vm979 = vcmp.lt.s32.totalorder %v821, 0
    %vm980 = vcmp.lt.s32.totalorder %v828, 0
    %vm981 = vcmp.lt.s32.totalorder %v835, 0
    %vm982 = vcmp.lt.s32.totalorder %v842, 0
    %vm983 = vcmp.lt.s32.totalorder %v849, 0
    %vm984 = vcmp.lt.s32.totalorder %v856, 0
    %vm985 = vmand %vm921, %vm857
    %vm986 = vmand %vm922, %vm858
    %vm987 = vmand %vm923, %vm859
    %vm988 = vmand %vm924, %vm860
    %vm989 = vmand %vm925, %vm861
    %vm990 = vmand %vm926, %vm862
    %vm991 = vmand %vm927, %vm863
    %vm992 = vmand %vm928, %vm864
    %vm993 = vmand %vm929, %vm865
    %vm994 = vmand %vm930, %vm866
    %vm995 = vmand %vm931, %vm867
    %vm996 = vmand %vm932, %vm868
    %vm997 = vmand %vm933, %vm869
    %vm998 = vmand %vm934, %vm870
    %vm999 = vmand %vm935, %vm871
    %vm1000 = vmand %vm936, %vm872
    %vm1001 = vmand %vm937, %vm873
    %vm1002 = vmand %vm938, %vm874
    %vm1003 = vmand %vm939, %vm875
    %vm1004 = vmand %vm940, %vm876
    %vm1005 = vmand %vm941, %vm877
    %vm1006 = vmand %vm942, %vm878
    %vm1007 = vmand %vm943, %vm879
    %vm1008 = vmand %vm944, %vm880
    %vm1009 = vmand %vm945, %vm881
    %vm1010 = vmand %vm946, %vm882
    %vm1011 = vmand %vm947, %vm883
    %vm1012 = vmand %vm948, %vm884
    %vm1013 = vmand %vm949, %vm885
    %vm1014 = vmand %vm950, %vm886
    %vm1015 = vmand %vm951, %vm887
    %vm1016 = vmand %vm952, %vm888
    %vm1017 = vmand %vm953, %vm889
    %vm1018 = vmand %vm954, %vm890
    %vm1019 = vmand %vm955, %vm891
    %vm1020 = vmand %vm956, %vm892
    %vm1021 = vmand %vm957, %vm893
    %vm1022 = vmand %vm958, %vm894
    %vm1023 = vmand %vm959, %vm895
    %vm1024 = vmand %vm960, %vm896
    %vm1025 = vmand %vm961, %vm897
    %vm1026 = vmand %vm962, %vm898
    %vm1027 = vmand %vm963, %vm899
    %vm1028 = vmand %vm964, %vm900
    %vm1029 = vmand %vm965, %vm901
    %vm1030 = vmand %vm966, %vm902
    %vm1031 = vmand %vm967, %vm903
    %vm1032 = vmand %vm968, %vm904
    %vm1033 = vmand %vm969, %vm905
    %vm1034 = vmand %vm970, %vm906
    %vm1035 = vmand %vm971, %vm907
    %vm1036 = vmand %vm972, %vm908
    %vm1037 = vmand %vm973, %vm909
    %vm1038 = vmand %vm974, %vm910
    %vm1039 = vmand %vm975, %vm911
    %vm1040 = vmand %vm976, %vm912
    %vm1041 = vmand %vm977, %vm913
    %vm1042 = vmand %vm978, %vm914
    %vm1043 = vmand %vm979, %vm915
    %vm1044 = vmand %vm980, %vm916
    %vm1045 = vmand %vm981, %vm917
    %vm1046 = vmand %vm982, %vm918
    %vm1047 = vmand %vm983, %vm919
    %vm1048 = vmand %vm984, %vm920
    %v1049 = vadd.s32 %v415, 32
    %v1050 = vadd.s32 %v422, 32
    %v1051 = vadd.s32 %v429, 32
    %v1052 = vadd.s32 %v436, 32
    %v1053 = vadd.s32 %v443, 32
    %v1054 = vadd.s32 %v450, 32
    %v1055 = vadd.s32 %v457, 32
    %v1056 = vadd.s32 %v464, 32
    %v1057 = vadd.s32 %v471, 32
    %v1058 = vadd.s32 %v478, 32
    %v1059 = vadd.s32 %v485, 32
    %v1060 = vadd.s32 %v492, 32
    %v1061 = vadd.s32 %v499, 32
    %v1062 = vadd.s32 %v506, 32
    %v1063 = vadd.s32 %v513, 32
    %v1064 = vadd.s32 %v520, 32
    %v1065 = vadd.s32 %v527, 32
    %v1066 = vadd.s32 %v534, 32
    %v1067 = vadd.s32 %v541, 32
    %v1068 = vadd.s32 %v548, 32
    %v1069 = vadd.s32 %v555, 32
    %v1070 = vadd.s32 %v562, 32
    %v1071 = vadd.s32 %v569, 32
    %v1072 = vadd.s32 %v576, 32
    %v1073 = vadd.s32 %v583, 32
    %v1074 = vadd.s32 %v590, 32
    %v1075 = vadd.s32 %v597, 32
    %v1076 = vadd.s32 %v604, 32
    %v1077 = vadd.s32 %v611, 32
    %v1078 = vadd.s32 %v618, 32
    %v1079 = vadd.s32 %v625, 32
    %v1080 = vadd.s32 %v632, 32
    %v1081 = vadd.s32 %v639, 32
    %v1082 = vadd.s32 %v646, 32
    %v1083 = vadd.s32 %v653, 32
    %v1084 = vadd.s32 %v660, 32
    %v1085 = vadd.s32 %v667, 32
    %v1086 = vadd.s32 %v674, 32
    %v1087 = vadd.s32 %v681, 32
    %v1088 = vadd.s32 %v688, 32
    %v1089 = vadd.s32 %v695, 32
    %v1090 = vadd.s32 %v702, 32
    %v1091 = vadd.s32 %v709, 32
    %v1092 = vadd.s32 %v716, 32
    %v1093 = vadd.s32 %v723, 32
    %v1094 = vadd.s32 %v730, 32
    %v1095 = vadd.s32 %v737, 32
    %v1096 = vadd.s32 %v744, 32
    %v1097 = vadd.s32 %v751, 32
    %v1098 = vadd.s32 %v758, 32
    %v1099 = vadd.s32 %v765, 32
    %v1100 = vadd.s32 %v772, 32
    %v1101 = vadd.s32 %v779, 32
    %v1102 = vadd.s32 %v786, 32
    %v1103 = vadd.s32 %v793, 32
    %v1104 = vadd.s32 %v800, 32
    %v1105 = vadd.s32 %v807, 32
    %v1106 = vadd.s32 %v814, 32
    %v1107 = vadd.s32 %v821, 32
    %v1108 = vadd.s32 %v828, 32
    %v1109 = vadd.s32 %v835, 32
    %v1110 = vadd.s32 %v842, 32
    %v1111 = vadd.s32 %v849, 32
    %v1112 = vadd.s32 %v856, 32
    %v1113 = vsel %vm985, %v1049, %v415
    %v1114 = vsel %vm986, %v1050, %v422
    %v1115 = vsel %vm987, %v1051, %v429
    %v1116 = vsel %vm988, %v1052, %v436
    %v1117 = vsel %vm989, %v1053, %v443
    %v1118 = vsel %vm990, %v1054, %v450
    %v1119 = vsel %vm991, %v1055, %v457
    %v1120 = vsel %vm992, %v1056, %v464
    %v1121 = vsel %vm993, %v1057, %v471
    %v1122 = vsel %vm994, %v1058, %v478
    %v1123 = vsel %vm995, %v1059, %v485
    %v1124 = vsel %vm996, %v1060, %v492
    %v1125 = vsel %vm997, %v1061, %v499
    %v1126 = vsel %vm998, %v1062, %v506
    %v1127 = vsel %vm999, %v1063, %v513
    %v1128 = vsel %vm1000, %v1064, %v520
    %v1129 = vsel %vm1001, %v1065, %v527
    %v1130 = vsel %vm1002, %v1066, %v534
    %v1131 = vsel %vm1003, %v1067, %v541
    %v1132 = vsel %vm1004, %v1068, %v548
    %v1133 = vsel %vm1005, %v1069, %v555
    %v1134 = vsel %vm1006, %v1070, %v562
    %v1135 = vsel %vm1007, %v1071, %v569
    %v1136 = vsel %vm1008, %v1072, %v576
    %v1137 = vsel %vm1009, %v1073, %v583
    %v1138 = vsel %vm1010, %v1074, %v590
    %v1139 = vsel %vm1011, %v1075, %v597
    %v1140 = vsel %vm1012, %v1076, %v604
    %v1141 = vsel %vm1013, %v1077, %v611
    %v1142 = vsel %vm1014, %v1078, %v618
    %v1143 = vsel %vm1015, %v1079, %v625
    %v1144 = vsel %vm1016, %v1080, %v632
    %v1145 = vsel %vm1017, %v1081, %v639
    %v1146 = vsel %vm1018, %v1082, %v646
    %v1147 = vsel %vm1019, %v1083, %v653
    %v1148 = vsel %vm1020, %v1084, %v660
    %v1149 = vsel %vm1021, %v1085, %v667
    %v1150 = vsel %vm1022, %v1086, %v674
    %v1151 = vsel %vm1023, %v1087, %v681
    %v1152 = vsel %vm1024, %v1088, %v688
    %v1153 = vsel %vm1025, %v1089, %v695
    %v1154 = vsel %vm1026, %v1090, %v702
    %v1155 = vsel %vm1027, %v1091, %v709
    %v1156 = vsel %vm1028, %v1092, %v716
    %v1157 = vsel %vm1029, %v1093, %v723
    %v1158 = vsel %vm1030, %v1094, %v730
    %v1159 = vsel %vm1031, %v1095, %v737
    %v1160 = vsel %vm1032, %v1096, %v744
    %v1161 = vsel %vm1033, %v1097, %v751
    %v1162 = vsel %vm1034, %v1098, %v758
    %v1163 = vsel %vm1035, %v1099, %v765
    %v1164 = vsel %vm1036, %v1100, %v772
    %v1165 = vsel %vm1037, %v1101, %v779
    %v1166 = vsel %vm1038, %v1102, %v786
    %v1167 = vsel %vm1039, %v1103, %v793
    %v1168 = vsel %vm1040, %v1104, %v800
    %v1169 = vsel %vm1041, %v1105, %v807
    %v1170 = vsel %vm1042, %v1106, %v814
    %v1171 = vsel %vm1043, %v1107, %v821
    %v1172 = vsel %vm1044, %v1108, %v828
    %v1173 = vsel %vm1045, %v1109, %v835
    %v1174 = vsel %vm1046, %v1110, %v842
    %v1175 = vsel %vm1047, %v1111, %v849
    %v1176 = vsel %vm1048, %v1112, %v856
    %vm1177 = vcmp.eq.s32.totalorder %v1113, %v408
    %vm1178 = vcmp.eq.s32.totalorder %v1114, %v408
    %vm1179 = vcmp.eq.s32.totalorder %v1115, %v408
    %vm1180 = vcmp.eq.s32.totalorder %v1116, %v408
    %vm1181 = vcmp.eq.s32.totalorder %v1117, %v408
    %vm1182 = vcmp.eq.s32.totalorder %v1118, %v408
    %vm1183 = vcmp.eq.s32.totalorder %v1119, %v408
    %vm1184 = vcmp.eq.s32.totalorder %v1120, %v408
    %vm1185 = vcmp.eq.s32.totalorder %v1121, %v408
    %vm1186 = vcmp.eq.s32.totalorder %v1122, %v408
    %vm1187 = vcmp.eq.s32.totalorder %v1123, %v408
    %vm1188 = vcmp.eq.s32.totalorder %v1124, %v408
    %vm1189 = vcmp.eq.s32.totalorder %v1125, %v408
    %vm1190 = vcmp.eq.s32.totalorder %v1126, %v408
    %vm1191 = vcmp.eq.s32.totalorder %v1127, %v408
    %vm1192 = vcmp.eq.s32.totalorder %v1128, %v408
    %vm1193 = vcmp.eq.s32.totalorder %v1129, %v408
    %vm1194 = vcmp.eq.s32.totalorder %v1130, %v408
    %vm1195 = vcmp.eq.s32.totalorder %v1131, %v408
    %vm1196 = vcmp.eq.s32.totalorder %v1132, %v408
    %vm1197 = vcmp.eq.s32.totalorder %v1133, %v408
    %vm1198 = vcmp.eq.s32.totalorder %v1134, %v408
    %vm1199 = vcmp.eq.s32.totalorder %v1135, %v408
    %vm1200 = vcmp.eq.s32.totalorder %v1136, %v408
    %vm1201 = vcmp.eq.s32.totalorder %v1137, %v408
    %vm1202 = vcmp.eq.s32.totalorder %v1138, %v408
    %vm1203 = vcmp.eq.s32.totalorder %v1139, %v408
    %vm1204 = vcmp.eq.s32.totalorder %v1140, %v408
    %vm1205 = vcmp.eq.s32.totalorder %v1141, %v408
    %vm1206 = vcmp.eq.s32.totalorder %v1142, %v408
    %vm1207 = vcmp.eq.s32.totalorder %v1143, %v408
    %vm1208 = vcmp.eq.s32.totalorder %v1144, %v408
    %vm1209 = vcmp.eq.s32.totalorder %v1145, %v408
    %vm1210 = vcmp.eq.s32.totalorder %v1146, %v408
    %vm1211 = vcmp.eq.s32.totalorder %v1147, %v408
    %vm1212 = vcmp.eq.s32.totalorder %v1148, %v408
    %vm1213 = vcmp.eq.s32.totalorder %v1149, %v408
    %vm1214 = vcmp.eq.s32.totalorder %v1150, %v408
    %vm1215 = vcmp.eq.s32.totalorder %v1151, %v408
    %vm1216 = vcmp.eq.s32.totalorder %v1152, %v408
    %vm1217 = vcmp.eq.s32.totalorder %v1153, %v408
    %vm1218 = vcmp.eq.s32.totalorder %v1154, %v408
    %vm1219 = vcmp.eq.s32.totalorder %v1155, %v408
    %vm1220 = vcmp.eq.s32.totalorder %v1156, %v408
    %vm1221 = vcmp.eq.s32.totalorder %v1157, %v408
    %vm1222 = vcmp.eq.s32.totalorder %v1158, %v408
    %vm1223 = vcmp.eq.s32.totalorder %v1159, %v408
    %vm1224 = vcmp.eq.s32.totalorder %v1160, %v408
    %vm1225 = vcmp.eq.s32.totalorder %v1161, %v408
    %vm1226 = vcmp.eq.s32.totalorder %v1162, %v408
    %vm1227 = vcmp.eq.s32.totalorder %v1163, %v408
    %vm1228 = vcmp.eq.s32.totalorder %v1164, %v408
    %vm1229 = vcmp.eq.s32.totalorder %v1165, %v408
    %vm1230 = vcmp.eq.s32.totalorder %v1166, %v408
    %vm1231 = vcmp.eq.s32.totalorder %v1167, %v408
    %vm1232 = vcmp.eq.s32.totalorder %v1168, %v408
    %vm1233 = vcmp.eq.s32.totalorder %v1169, %v408
    %vm1234 = vcmp.eq.s32.totalorder %v1170, %v408
    %vm1235 = vcmp.eq.s32.totalorder %v1171, %v408
    %vm1236 = vcmp.eq.s32.totalorder %v1172, %v408
    %vm1237 = vcmp.eq.s32.totalorder %v1173, %v408
    %vm1238 = vcmp.eq.s32.totalorder %v1174, %v408
    %vm1239 = vcmp.eq.s32.totalorder %v1175, %v408
    %vm1240 = vcmp.eq.s32.totalorder %v1176, %v408
    %v1241 = vsel %vm1177, 1, 0
    %v1242 = vsel %vm1178, 1, 0
    %v1243 = vsel %vm1179, 1, 0
    %v1244 = vsel %vm1180, 1, 0
    %v1245 = vsel %vm1181, 1, 0
    %v1246 = vsel %vm1182, 1, 0
    %v1247 = vsel %vm1183, 1, 0
    %v1248 = vsel %vm1184, 1, 0
    %v1249 = vsel %vm1185, 1, 0
    %v1250 = vsel %vm1186, 1, 0
    %v1251 = vsel %vm1187, 1, 0
    %v1252 = vsel %vm1188, 1, 0
    %v1253 = vsel %vm1189, 1, 0
    %v1254 = vsel %vm1190, 1, 0
    %v1255 = vsel %vm1191, 1, 0
    %v1256 = vsel %vm1192, 1, 0
    %v1257 = vsel %vm1193, 1, 0
    %v1258 = vsel %vm1194, 1, 0
    %v1259 = vsel %vm1195, 1, 0
    %v1260 = vsel %vm1196, 1, 0
    %v1261 = vsel %vm1197, 1, 0
    %v1262 = vsel %vm1198, 1, 0
    %v1263 = vsel %vm1199, 1, 0
    %v1264 = vsel %vm1200, 1, 0
    %v1265 = vsel %vm1201, 1, 0
    %v1266 = vsel %vm1202, 1, 0
    %v1267 = vsel %vm1203, 1, 0
    %v1268 = vsel %vm1204, 1, 0
    %v1269 = vsel %vm1205, 1, 0
    %v1270 = vsel %vm1206, 1, 0
    %v1271 = vsel %vm1207, 1, 0
    %v1272 = vsel %vm1208, 1, 0
    %v1273 = vsel %vm1209, 1, 0
    %v1274 = vsel %vm1210, 1, 0
    %v1275 = vsel %vm1211, 1, 0
    %v1276 = vsel %vm1212, 1, 0
    %v1277 = vsel %vm1213, 1, 0
    %v1278 = vsel %vm1214, 1, 0
    %v1279 = vsel %vm1215, 1, 0
    %v1280 = vsel %vm1216, 1, 0
    %v1281 = vsel %vm1217, 1, 0
    %v1282 = vsel %vm1218, 1, 0
    %v1283 = vsel %vm1219, 1, 0
    %v1284 = vsel %vm1220, 1, 0
    %v1285 = vsel %vm1221, 1, 0
    %v1286 = vsel %vm1222, 1, 0
    %v1287 = vsel %vm1223, 1, 0
    %v1288 = vsel %vm1224, 1, 0
    %v1289 = vsel %vm1225, 1, 0
    %v1290 = vsel %vm1226, 1, 0
    %v1291 = vsel %vm1227, 1, 0
    %v1292 = vsel %vm1228, 1, 0
    %v1293 = vsel %vm1229, 1, 0
    %v1294 = vsel %vm1230, 1, 0
    %v1295 = vsel %vm1231, 1, 0
    %v1296 = vsel %vm1232, 1, 0
    %v1297 = vsel %vm1233, 1, 0
    %v1298 = vsel %vm1234, 1, 0
    %v1299 = vsel %vm1235, 1, 0
    %v1300 = vsel %vm1236, 1, 0
    %v1301 = vsel %vm1237, 1, 0
    %v1302 = vsel %vm1238, 1, 0
    %v1303 = vsel %vm1239, 1, 0
    %v1304 = vsel %vm1240, 1, 0
    %v1305 = vcvt.s32.f32 %v1241
    %v1306 = vcvt.s32.f32 %v1242
    %v1307 = vcvt.s32.f32 %v1243
    %v1308 = vcvt.s32.f32 %v1244
    %v1309 = vcvt.s32.f32 %v1245
    %v1310 = vcvt.s32.f32 %v1246
    %v1311 = vcvt.s32.f32 %v1247
    %v1312 = vcvt.s32.f32 %v1248
    %v1313 = vcvt.s32.f32 %v1249
    %v1314 = vcvt.s32.f32 %v1250
    %v1315 = vcvt.s32.f32 %v1251
    %v1316 = vcvt.s32.f32 %v1252
    %v1317 = vcvt.s32.f32 %v1253
    %v1318 = vcvt.s32.f32 %v1254
    %v1319 = vcvt.s32.f32 %v1255
    %v1320 = vcvt.s32.f32 %v1256
    %v1321 = vcvt.s32.f32 %v1257
    %v1322 = vcvt.s32.f32 %v1258
    %v1323 = vcvt.s32.f32 %v1259
    %v1324 = vcvt.s32.f32 %v1260
    %v1325 = vcvt.s32.f32 %v1261
    %v1326 = vcvt.s32.f32 %v1262
    %v1327 = vcvt.s32.f32 %v1263
    %v1328 = vcvt.s32.f32 %v1264
    %v1329 = vcvt.s32.f32 %v1265
    %v1330 = vcvt.s32.f32 %v1266
    %v1331 = vcvt.s32.f32 %v1267
    %v1332 = vcvt.s32.f32 %v1268
    %v1333 = vcvt.s32.f32 %v1269
    %v1334 = vcvt.s32.f32 %v1270
    %v1335 = vcvt.s32.f32 %v1271
    %v1336 = vcvt.s32.f32 %v1272
    %v1337 = vcvt.s32.f32 %v1273
    %v1338 = vcvt.s32.f32 %v1274
    %v1339 = vcvt.s32.f32 %v1275
    %v1340 = vcvt.s32.f32 %v1276
    %v1341 = vcvt.s32.f32 %v1277
    %v1342 = vcvt.s32.f32 %v1278
    %v1343 = vcvt.s32.f32 %v1279
    %v1344 = vcvt.s32.f32 %v1280
    %v1345 = vcvt.s32.f32 %v1281
    %v1346 = vcvt.s32.f32 %v1282
    %v1347 = vcvt.s32.f32 %v1283
    %v1348 = vcvt.s32.f32 %v1284
    %v1349 = vcvt.s32.f32 %v1285
    %v1350 = vcvt.s32.f32 %v1286
    %v1351 = vcvt.s32.f32 %v1287
    %v1352 = vcvt.s32.f32 %v1288
    %v1353 = vcvt.s32.f32 %v1289
    %v1354 = vcvt.s32.f32 %v1290
    %v1355 = vcvt.s32.f32 %v1291
    %v1356 = vcvt.s32.f32 %v1292
    %v1357 = vcvt.s32.f32 %v1293
    %v1358 = vcvt.s32.f32 %v1294
    %v1359 = vcvt.s32.f32 %v1295
    %v1360 = vcvt.s32.f32 %v1296
    %v1361 = vcvt.s32.f32 %v1297
    %v1362 = vcvt.s32.f32 %v1298
    %v1363 = vcvt.s32.f32 %v1299
    %v1364 = vcvt.s32.f32 %v1300
    %v1365 = vcvt.s32.f32 %v1301
    %v1366 = vcvt.s32.f32 %v1302
    %v1367 = vcvt.s32.f32 %v1303
    %v1368 = vcvt.s32.f32 %v1304
    %1369 = vmatprep.subr.mxu0 0.0
    %1370 = vmatpush1.msra.mxu0 %v1305
    %1371 = vmatprep.subr.mxu0 0.0
    %1372 = vmatpush1.msra.mxu0 %v1306
    %1373 = vmatprep.subr.mxu0 0.0
    %1374 = vmatpush1.msra.mxu0 %v1307
    %1375 = vmatprep.subr.mxu0 0.0
    %1376 = vmatpush1.msra.mxu0 %v1308
    %1377 = vmatprep.subr.mxu0 0.0
    %1378 = vmatpush1.msra.mxu0 %v1309
    %1379 = vmatprep.subr.mxu0 0.0
    %1380 = vmatpush1.msra.mxu0 %v1310
    %1381 = vmatprep.subr.mxu0 0.0
    %1382 = vmatpush1.msra.mxu0 %v1311
    %1383 = vmatprep.subr.mxu0 0.0
    %1384 = vmatpush1.msra.mxu0 %v1312
    %1385 = vmatprep.subr.mxu0 0.0
    %1386 = vmatpush1.msra.mxu0 %v1313
    %1387 = vmatprep.subr.mxu0 0.0
    %1388 = vmatpush1.msra.mxu0 %v1314
    %1389 = vmatprep.subr.mxu0 0.0
    %1390 = vmatpush1.msra.mxu0 %v1315
    %1391 = vmatprep.subr.mxu0 0.0
    %1392 = vmatpush1.msra.mxu0 %v1316
    %1393 = vmatprep.subr.mxu0 0.0
    %1394 = vmatpush1.msra.mxu0 %v1317
    %1395 = vmatprep.subr.mxu0 0.0
    %1396 = vmatpush1.msra.mxu0 %v1318
    %1397 = vmatprep.subr.mxu0 0.0
    %1398 = vmatpush1.msra.mxu0 %v1319
    %1399 = vmatprep.subr.mxu0 0.0
    %1400 = vmatpush1.msra.mxu0 %v1320
    %1401 = vmatprep.subr.mxu0 0.0
    %1402 = vmatpush1.msra.mxu0 %v1321
    %1403 = vmatprep.subr.mxu0 0.0
    %1404 = vmatpush1.msra.mxu0 %v1322
    %1405 = vmatprep.subr.mxu0 0.0
    %1406 = vmatpush1.msra.mxu0 %v1323
    %1407 = vmatprep.subr.mxu0 0.0
    %1408 = vmatpush1.msra.mxu0 %v1324
    %1409 = vmatprep.subr.mxu0 0.0
    %1410 = vmatpush1.msra.mxu0 %v1325
    %1411 = vmatprep.subr.mxu0 0.0
    %1412 = vmatpush1.msra.mxu0 %v1326
    %1413 = vmatprep.subr.mxu0 0.0
    %1414 = vmatpush1.msra.mxu0 %v1327
    %1415 = vmatprep.subr.mxu0 0.0
    %1416 = vmatpush1.msra.mxu0 %v1328
    %1417 = vmatprep.subr.mxu0 0.0
    %1418 = vmatpush1.msra.mxu0 %v1329
    %1419 = vmatprep.subr.mxu0 0.0
    %1420 = vmatpush1.msra.mxu0 %v1330
    %1421 = vmatprep.subr.mxu0 0.0
    %1422 = vmatpush1.msra.mxu0 %v1331
    %1423 = vmatprep.subr.mxu0 0.0
    %1424 = vmatpush1.msra.mxu0 %v1332
    %1425 = vmatprep.subr.mxu0 0.0
    %1426 = vmatpush1.msra.mxu0 %v1333
    %1427 = vmatprep.subr.mxu0 0.0
    %1428 = vmatpush1.msra.mxu0 %v1334
    %1429 = vmatprep.subr.mxu0 0.0
    %1430 = vmatpush1.msra.mxu0 %v1335
    %1431 = vmatprep.subr.mxu0 0.0
    %1432 = vmatpush1.msra.mxu0 %v1336
    %1433 = vmatprep.mubr.f32.mxu0 %v291
    %1434 = vmatmul.mubr.f32.gmra.mrb[0].mxu0 %v284
    %v1435 = vpop.f32.mrb[0].mxu0
    %v1436 = vadd.f32 0.0, %v1435
    %v1437 = vpop.f32.mrb[0].mxu0
    %1438 = vdwg.mxu0
    %1439 = vmatprep.subr.mxu0 0.0
    %1440 = vmatpush1.msra.mxu0 %v1337
    %1441 = vmatprep.subr.mxu0 0.0
    %1442 = vmatpush1.msra.mxu0 %v1338
    %1443 = vmatprep.subr.mxu0 0.0
    %1444 = vmatpush1.msra.mxu0 %v1339
    %1445 = vmatprep.subr.mxu0 0.0
    %1446 = vmatpush1.msra.mxu0 %v1340
    %1447 = vmatprep.subr.mxu0 0.0
    %1448 = vmatpush1.msra.mxu0 %v1341
    %1449 = vmatprep.subr.mxu0 0.0
    %1450 = vmatpush1.msra.mxu0 %v1342
    %1451 = vmatprep.subr.mxu0 0.0
    %1452 = vmatpush1.msra.mxu0 %v1343
    %1453 = vmatprep.subr.mxu0 0.0
    %1454 = vmatpush1.msra.mxu0 %v1344
    %1455 = vmatprep.subr.mxu0 0.0
    %1456 = vmatpush1.msra.mxu0 %v1345
    %1457 = vmatprep.subr.mxu0 0.0
    %1458 = vmatpush1.msra.mxu0 %v1346
    %1459 = vmatprep.subr.mxu0 0.0
    %1460 = vmatpush1.msra.mxu0 %v1347
    %1461 = vmatprep.subr.mxu0 0.0
    %1462 = vmatpush1.msra.mxu0 %v1348
    %1463 = vmatprep.subr.mxu0 0.0
    %1464 = vmatpush1.msra.mxu0 %v1349
    %1465 = vmatprep.subr.mxu0 0.0
    %1466 = vmatpush1.msra.mxu0 %v1350
    %1467 = vmatprep.subr.mxu0 0.0
    %1468 = vmatpush1.msra.mxu0 %v1351
    %1469 = vmatprep.subr.mxu0 0.0
    %1470 = vmatpush1.msra.mxu0 %v1352
    %1471 = vmatprep.subr.mxu0 0.0
    %1472 = vmatpush1.msra.mxu0 %v1353
    %1473 = vmatprep.subr.mxu0 0.0
    %1474 = vmatpush1.msra.mxu0 %v1354
    %1475 = vmatprep.subr.mxu0 0.0
    %1476 = vmatpush1.msra.mxu0 %v1355
    %1477 = vmatprep.subr.mxu0 0.0
    %1478 = vmatpush1.msra.mxu0 %v1356
    %1479 = vmatprep.subr.mxu0 0.0
    %1480 = vmatpush1.msra.mxu0 %v1357
    %1481 = vmatprep.subr.mxu0 0.0
    %1482 = vmatpush1.msra.mxu0 %v1358
    %1483 = vmatprep.subr.mxu0 0.0
    %1484 = vmatpush1.msra.mxu0 %v1359
    %1485 = vmatprep.subr.mxu0 0.0
    %1486 = vmatpush1.msra.mxu0 %v1360
    %1487 = vmatprep.subr.mxu0 0.0
    %1488 = vmatpush1.msra.mxu0 %v1361
    %1489 = vmatprep.subr.mxu0 0.0
    %1490 = vmatpush1.msra.mxu0 %v1362
    %1491 = vmatprep.subr.mxu0 0.0
    %1492 = vmatpush1.msra.mxu0 %v1363
    %1493 = vmatprep.subr.mxu0 0.0
    %1494 = vmatpush1.msra.mxu0 %v1364
    %1495 = vmatprep.subr.mxu0 0.0
    %1496 = vmatpush1.msra.mxu0 %v1365
    %1497 = vmatprep.subr.mxu0 0.0
    %1498 = vmatpush1.msra.mxu0 %v1366
    %1499 = vmatprep.subr.mxu0 0.0
    %1500 = vmatpush1.msra.mxu0 %v1367
    %1501 = vmatprep.subr.mxu0 0.0
    %1502 = vmatpush1.msra.mxu0 %v1368
    %1503 = vmatprep.mubr.f32.mxu0 %v305
    %1504 = vmatmul.mubr.f32.gmra.mrb[0].mxu0 %v298
    %v1505 = vpop.f32.mrb[0].mxu0
    %v1506 = vadd.f32 %v1436, %v1505
    %v1507 = vpop.f32.mrb[0].mxu0
    %1508 = vdwg.mxu0
    %1509 = vmatprep.subr.mxu0 0.0
    %1510 = vmatpush1.msra.mxu0 %v1305
    %1511 = vmatprep.subr.mxu0 0.0
    %1512 = vmatpush1.msra.mxu0 %v1306
    %1513 = vmatprep.subr.mxu0 0.0
    %1514 = vmatpush1.msra.mxu0 %v1307
    %1515 = vmatprep.subr.mxu0 0.0
    %1516 = vmatpush1.msra.mxu0 %v1308
    %1517 = vmatprep.subr.mxu0 0.0
    %1518 = vmatpush1.msra.mxu0 %v1309
    %1519 = vmatprep.subr.mxu0 0.0
    %1520 = vmatpush1.msra.mxu0 %v1310
    %1521 = vmatprep.subr.mxu0 0.0
    %1522 = vmatpush1.msra.mxu0 %v1311
    %1523 = vmatprep.subr.mxu0 0.0
    %1524 = vmatpush1.msra.mxu0 %v1312
    %1525 = vmatprep.subr.mxu0 0.0
    %1526 = vmatpush1.msra.mxu0 %v1313
    %1527 = vmatprep.subr.mxu0 0.0
    %1528 = vmatpush1.msra.mxu0 %v1314
    %1529 = vmatprep.subr.mxu0 0.0
    %1530 = vmatpush1.msra.mxu0 %v1315
    %1531 = vmatprep.subr.mxu0 0.0
    %1532 = vmatpush1.msra.mxu0 %v1316
    %1533 = vmatprep.subr.mxu0 0.0
    %1534 = vmatpush1.msra.mxu0 %v1317
    %1535 = vmatprep.subr.mxu0 0.0
    %1536 = vmatpush1.msra.mxu0 %v1318
    %1537 = vmatprep.subr.mxu0 0.0
    %1538 = vmatpush1.msra.mxu0 %v1319
    %1539 = vmatprep.subr.mxu0 0.0
    %1540 = vmatpush1.msra.mxu0 %v1320
    %1541 = vmatprep.subr.mxu0 0.0
    %1542 = vmatpush1.msra.mxu0 %v1321
    %1543 = vmatprep.subr.mxu0 0.0
    %1544 = vmatpush1.msra.mxu0 %v1322
    %1545 = vmatprep.subr.mxu0 0.0
    %1546 = vmatpush1.msra.mxu0 %v1323
    %1547 = vmatprep.subr.mxu0 0.0
    %1548 = vmatpush1.msra.mxu0 %v1324
    %1549 = vmatprep.subr.mxu0 0.0
    %1550 = vmatpush1.msra.mxu0 %v1325
    %1551 = vmatprep.subr.mxu0 0.0
    %1552 = vmatpush1.msra.mxu0 %v1326
    %1553 = vmatprep.subr.mxu0 0.0
    %1554 = vmatpush1.msra.mxu0 %v1327
    %1555 = vmatprep.subr.mxu0 0.0
    %1556 = vmatpush1.msra.mxu0 %v1328
    %1557 = vmatprep.subr.mxu0 0.0
    %1558 = vmatpush1.msra.mxu0 %v1329
    %1559 = vmatprep.subr.mxu0 0.0
    %1560 = vmatpush1.msra.mxu0 %v1330
    %1561 = vmatprep.subr.mxu0 0.0
    %1562 = vmatpush1.msra.mxu0 %v1331
    %1563 = vmatprep.subr.mxu0 0.0
    %1564 = vmatpush1.msra.mxu0 %v1332
    %1565 = vmatprep.subr.mxu0 0.0
    %1566 = vmatpush1.msra.mxu0 %v1333
    %1567 = vmatprep.subr.mxu0 0.0
    %1568 = vmatpush1.msra.mxu0 %v1334
    %1569 = vmatprep.subr.mxu0 0.0
    %1570 = vmatpush1.msra.mxu0 %v1335
    %1571 = vmatprep.subr.mxu0 0.0
    %1572 = vmatpush1.msra.mxu0 %v1336
    %1573 = vmatprep.mubr.f32.mxu0 %v327
    %1574 = vmatmul.mubr.f32.gmra.mrb[0].mxu0 %v320
    %v1575 = vpop.f32.mrb[0].mxu0
    %v1576 = vadd.f32 0.0, %v1575
    %v1577 = vpop.f32.mrb[0].mxu0
    %1578 = vdwg.mxu0
    %1579 = vmatprep.subr.mxu0 0.0
    %1580 = vmatpush1.msra.mxu0 %v1337
    %1581 = vmatprep.subr.mxu0 0.0
    %1582 = vmatpush1.msra.mxu0 %v1338
    %1583 = vmatprep.subr.mxu0 0.0
    %1584 = vmatpush1.msra.mxu0 %v1339
    %1585 = vmatprep.subr.mxu0 0.0
    %1586 = vmatpush1.msra.mxu0 %v1340
    %1587 = vmatprep.subr.mxu0 0.0
    %1588 = vmatpush1.msra.mxu0 %v1341
    %1589 = vmatprep.subr.mxu0 0.0
    %1590 = vmatpush1.msra.mxu0 %v1342
    %1591 = vmatprep.subr.mxu0 0.0
    %1592 = vmatpush1.msra.mxu0 %v1343
    %1593 = vmatprep.subr.mxu0 0.0
    %1594 = vmatpush1.msra.mxu0 %v1344
    %1595 = vmatprep.subr.mxu0 0.0
    %1596 = vmatpush1.msra.mxu0 %v1345
    %1597 = vmatprep.subr.mxu0 0.0
    %1598 = vmatpush1.msra.mxu0 %v1346
    %1599 = vmatprep.subr.mxu0 0.0
    %1600 = vmatpush1.msra.mxu0 %v1347
    %1601 = vmatprep.subr.mxu0 0.0
    %1602 = vmatpush1.msra.mxu0 %v1348
    %1603 = vmatprep.subr.mxu0 0.0
    %1604 = vmatpush1.msra.mxu0 %v1349
    %1605 = vmatprep.subr.mxu0 0.0
    %1606 = vmatpush1.msra.mxu0 %v1350
    %1607 = vmatprep.subr.mxu0 0.0
    %1608 = vmatpush1.msra.mxu0 %v1351
    %1609 = vmatprep.subr.mxu0 0.0
    %1610 = vmatpush1.msra.mxu0 %v1352
    %1611 = vmatprep.subr.mxu0 0.0
    %1612 = vmatpush1.msra.mxu0 %v1353
    %1613 = vmatprep.subr.mxu0 0.0
    %1614 = vmatpush1.msra.mxu0 %v1354
    %1615 = vmatprep.subr.mxu0 0.0
    %1616 = vmatpush1.msra.mxu0 %v1355
    %1617 = vmatprep.subr.mxu0 0.0
    %1618 = vmatpush1.msra.mxu0 %v1356
    %1619 = vmatprep.subr.mxu0 0.0
    %1620 = vmatpush1.msra.mxu0 %v1357
    %1621 = vmatprep.subr.mxu0 0.0
    %1622 = vmatpush1.msra.mxu0 %v1358
    %1623 = vmatprep.subr.mxu0 0.0
    %1624 = vmatpush1.msra.mxu0 %v1359
    %1625 = vmatprep.subr.mxu0 0.0
    %1626 = vmatpush1.msra.mxu0 %v1360
    %1627 = vmatprep.subr.mxu0 0.0
    %1628 = vmatpush1.msra.mxu0 %v1361
    %1629 = vmatprep.subr.mxu0 0.0
    %1630 = vmatpush1.msra.mxu0 %v1362
    %1631 = vmatprep.subr.mxu0 0.0
    %1632 = vmatpush1.msra.mxu0 %v1363
    %1633 = vmatprep.subr.mxu0 0.0
    %1634 = vmatpush1.msra.mxu0 %v1364
    %1635 = vmatprep.subr.mxu0 0.0
    %1636 = vmatpush1.msra.mxu0 %v1365
    %1637 = vmatprep.subr.mxu0 0.0
    %1638 = vmatpush1.msra.mxu0 %v1366
    %1639 = vmatprep.subr.mxu0 0.0
    %1640 = vmatpush1.msra.mxu0 %v1367
    %1641 = vmatprep.subr.mxu0 0.0
    %1642 = vmatpush1.msra.mxu0 %v1368
    %1643 = vmatprep.mubr.f32.mxu0 %v341
    %1644 = vmatmul.mubr.f32.gmra.mrb[0].mxu0 %v334
    %v1645 = vpop.f32.mrb[0].mxu0
    %v1646 = vadd.f32 %v1576, %v1645
    %v1647 = vpop.f32.mrb[0].mxu0
    %1648 = vdwg.mxu0
    %v1649 = vmul.f32 %v1506, 0.03125
    %v1650 = vmul.f32 %v1646, 0.03125
    %v1651 = vmul.f32 %v1649, %v1649
    %v1652 = vsub.f32 %v1650, %v1651
    %v1653 = vmax.f32 %v1652, 0.0
    %v1654 = vld [vmem:[%s2] sm:$0x1]
    %v1655 = vadd.f32 %v1653, 1e-05
    %v1656 = vrsqrt.pop %v1655
    %v1657 = vmul.f32 %v1654, %v1656
    %v1658 = vld [vmem:[%s3] sm:$0x1]
    %v1659 = vmul.f32 %v1649, %v1657
    %v1660 = vsub.f32 %v1658, %v1659
    %v1661 = vadd.s32 %v408, 128
    %v1662 = vadd.s32 %v408, 256
    %v1663 = vadd.s32 %v408, 384
    %vm1664 = vcmp.lt.s32.totalorder %v408, 0
    %v1665 = vsub.s32 0, %v408
    %v1666 = vsel %vm1664, %v1665, %v408
    %v1667 = vshrl.u32 %v1666, 5
    %v1668 = vand.u32 %v1666, 31
    %v1669 = vsub.s32 0, %v1668
    %v1670 = vsel %vm1664, %v1669, %v1668
    %vm1671 = vcmp.lt.s32.totalorder %v1661, 0
    %v1672 = vsub.s32 0, %v1661
    %v1673 = vsel %vm1671, %v1672, %v1661
    %v1674 = vshrl.u32 %v1673, 5
    %v1675 = vand.u32 %v1673, 31
    %v1676 = vsub.s32 0, %v1675
    %v1677 = vsel %vm1671, %v1676, %v1675
    %vm1678 = vcmp.lt.s32.totalorder %v1662, 0
    %v1679 = vsub.s32 0, %v1662
    %v1680 = vsel %vm1678, %v1679, %v1662
    %v1681 = vshrl.u32 %v1680, 5
    %v1682 = vand.u32 %v1680, 31
    %v1683 = vsub.s32 0, %v1682
    %v1684 = vsel %vm1678, %v1683, %v1682
    %vm1685 = vcmp.lt.s32.totalorder %v1663, 0
    %v1686 = vsub.s32 0, %v1663
    %v1687 = vsel %vm1685, %v1686, %v1663
    %v1688 = vshrl.u32 %v1687, 5
    %v1689 = vand.u32 %v1687, 31
    %v1690 = vsub.s32 0, %v1689
    %v1691 = vsel %vm1685, %v1690, %v1689
    %vm1692 = vcmp.ne.s32.totalorder %v1670, 0
    %vm1693 = vcmp.ne.s32.totalorder %v1677, 0
    %vm1694 = vcmp.ne.s32.totalorder %v1684, 0
    %vm1695 = vcmp.ne.s32.totalorder %v1691, 0
    %vm1696 = vcmp.lt.s32.totalorder %v1670, 0
    %vm1697 = vcmp.lt.s32.totalorder %v1677, 0
    %vm1698 = vcmp.lt.s32.totalorder %v1684, 0
    %vm1699 = vcmp.lt.s32.totalorder %v1691, 0
    %vm1700 = vmand %vm1696, %vm1692
    %vm1701 = vmand %vm1697, %vm1693
    %vm1702 = vmand %vm1698, %vm1694
    %vm1703 = vmand %vm1699, %vm1695
    %v1704 = vadd.s32 %v1670, 32
    %v1705 = vadd.s32 %v1677, 32
    %v1706 = vadd.s32 %v1684, 32
    %v1707 = vadd.s32 %v1691, 32
    %v1708 = vsel %vm1700, %v1704, %v1670
    %v1709 = vsel %vm1701, %v1705, %v1677
    %v1710 = vsel %vm1702, %v1706, %v1684
    %v1711 = vsel %vm1703, %v1707, %v1691
    %vm1712 = vcmp.eq.s32.totalorder %v1708, %v343
    %vm1713 = vcmp.eq.s32.totalorder %v1709, %v343
    %vm1714 = vcmp.eq.s32.totalorder %v1710, %v343
    %vm1715 = vcmp.eq.s32.totalorder %v1711, %v343
    %vm1716 = vcmp.eq.s32.totalorder %v1708, %v344
    %vm1717 = vcmp.eq.s32.totalorder %v1709, %v344
    %vm1718 = vcmp.eq.s32.totalorder %v1710, %v344
    %vm1719 = vcmp.eq.s32.totalorder %v1711, %v344
    %vm1720 = vcmp.eq.s32.totalorder %v1708, %v345
    %vm1721 = vcmp.eq.s32.totalorder %v1709, %v345
    %vm1722 = vcmp.eq.s32.totalorder %v1710, %v345
    %vm1723 = vcmp.eq.s32.totalorder %v1711, %v345
    %vm1724 = vcmp.eq.s32.totalorder %v1708, %v346
    %vm1725 = vcmp.eq.s32.totalorder %v1709, %v346
    %vm1726 = vcmp.eq.s32.totalorder %v1710, %v346
    %vm1727 = vcmp.eq.s32.totalorder %v1711, %v346
    %v1728 = vsel %vm1712, 1, 0
    %v1729 = vsel %vm1713, 1, 0
    %v1730 = vsel %vm1714, 1, 0
    %v1731 = vsel %vm1715, 1, 0
    %v1732 = vsel %vm1716, 1, 0
    %v1733 = vsel %vm1717, 1, 0
    %v1734 = vsel %vm1718, 1, 0
    %v1735 = vsel %vm1719, 1, 0
    %v1736 = vsel %vm1720, 1, 0
    %v1737 = vsel %vm1721, 1, 0
    %v1738 = vsel %vm1722, 1, 0
    %v1739 = vsel %vm1723, 1, 0
    %v1740 = vsel %vm1724, 1, 0
    %v1741 = vsel %vm1725, 1, 0
    %v1742 = vsel %vm1726, 1, 0
    %v1743 = vsel %vm1727, 1, 0
    %v1744 = vcvt.s32.f32 %v1728
    %v1745 = vcvt.s32.f32 %v1729
    %v1746 = vcvt.s32.f32 %v1730
    %v1747 = vcvt.s32.f32 %v1731
    %v1748 = vcvt.s32.f32 %v1732
    %v1749 = vcvt.s32.f32 %v1733
    %v1750 = vcvt.s32.f32 %v1734
    %v1751 = vcvt.s32.f32 %v1735
    %v1752 = vcvt.s32.f32 %v1736
    %v1753 = vcvt.s32.f32 %v1737
    %v1754 = vcvt.s32.f32 %v1738
    %v1755 = vcvt.s32.f32 %v1739
    %v1756 = vcvt.s32.f32 %v1740
    %v1757 = vcvt.s32.f32 %v1741
    %v1758 = vcvt.s32.f32 %v1742
    %v1759 = vcvt.s32.f32 %v1743
    %vm1760 = vcmask 261120
    %v1762 = vsel %vm1760, %v1657, 0
    %1764 = vmatprep.subr.mxu0 %v1745
    %1765 = vmatpush1.msra.mxu0 %v1744
    %1766 = vmatprep.subr.mxu0 %v1749
    %1767 = vmatpush1.msra.mxu0 %v1748
    %1768 = vmatprep.subr.mxu0 %v1753
    %1769 = vmatpush1.msra.mxu0 %v1752
    %1770 = vmatprep.subr.mxu0 %v1757
    %1771 = vmatpush1.msra.mxu0 %v1756
    %1772 = vmatprep.subr.mxu0 0.0
    %1773 = vmatpush1.msra.mxu0 0.0
    %1774 = vmatprep.subr.mxu0 0.0
    %1775 = vmatpush1.msra.mxu0 0.0
    %1776 = vmatprep.subr.mxu0 0.0
    %1777 = vmatpush1.msra.mxu0 0.0
    %1778 = vmatprep.subr.mxu0 0.0
    %1779 = vmatpush1.msra.mxu0 0.0
    %1780 = vmatprep.subr.mxu0 0.0
    %1781 = vmatpush1.msra.mxu0 0.0
    %1782 = vmatprep.subr.mxu0 0.0
    %1783 = vmatpush1.msra.mxu0 0.0
    %1784 = vmatprep.subr.mxu0 0.0
    %1785 = vmatpush1.msra.mxu0 0.0
    %1786 = vmatprep.subr.mxu0 0.0
    %1787 = vmatpush1.msra.mxu0 0.0
    %1788 = vmatprep.subr.mxu0 0.0
    %1789 = vmatpush1.msra.mxu0 0.0
    %1790 = vmatprep.subr.mxu0 0.0
    %1791 = vmatpush1.msra.mxu0 0.0
    %1792 = vmatprep.subr.mxu0 0.0
    %1793 = vmatpush1.msra.mxu0 0.0
    %1794 = vmatprep.subr.mxu0 0.0
    %1795 = vmatpush1.msra.mxu0 0.0
    %1796 = vmatprep.subr.mxu0 0.0
    %1797 = vmatpush1.msra.mxu0 0.0
    %1798 = vmatprep.subr.mxu0 0.0
    %1799 = vmatpush1.msra.mxu0 0.0
    %1800 = vmatprep.subr.mxu0 0.0
    %1801 = vmatpush1.msra.mxu0 0.0
    %1802 = vmatprep.subr.mxu0 0.0
    %1803 = vmatpush1.msra.mxu0 0.0
    %1804 = vmatprep.subr.mxu0 0.0
    %1805 = vmatpush1.msra.mxu0 0.0
    %1806 = vmatprep.subr.mxu0 0.0
    %1807 = vmatpush1.msra.mxu0 0.0
    %1808 = vmatprep.subr.mxu0 0.0
    %1809 = vmatpush1.msra.mxu0 0.0
    %1810 = vmatprep.subr.mxu0 0.0
    %1811 = vmatpush1.msra.mxu0 0.0
    %1812 = vmatprep.subr.mxu0 0.0
    %1813 = vmatpush1.msra.mxu0 0.0
    %1814 = vmatprep.subr.mxu0 0.0
    %1815 = vmatpush1.msra.mxu0 0.0
    %1816 = vmatprep.subr.mxu0 0.0
    %1817 = vmatpush1.msra.mxu0 0.0
    %1818 = vmatprep.subr.mxu0 0.0
    %1819 = vmatpush1.msra.mxu0 0.0
    %1820 = vmatprep.subr.mxu0 0.0
    %1821 = vmatpush1.msra.mxu0 0.0
    %1822 = vmatprep.subr.mxu0 0.0
    %1823 = vmatpush1.msra.mxu0 0.0
    %1824 = vmatprep.subr.mxu0 0.0
    %1825 = vmatpush1.msra.mxu0 0.0
    %1826 = vmatprep.subr.mxu0 0.0
    %1827 = vmatpush1.msra.mxu0 0.0
    %1828 = vmatprep.mubr.f32.mxu0 0.0
    %1829 = vmatmul.mubr.f32.gmra.mrb[0].mxu0 %v1762
    %v1830 = vpop.f32.mrb[0].mxu0
    %v1831 = vadd.f32 0.0, %v1830
    %v1832 = vpop.f32.mrb[0].mxu0
    %v1833 = vadd.f32 0.0, %v1832
    %1834 = vdwg.mxu0
    %1835 = vmatprep.subr.mxu0 %v1747
    %1836 = vmatpush1.msra.mxu0 %v1746
    %1837 = vmatprep.subr.mxu0 %v1751
    %1838 = vmatpush1.msra.mxu0 %v1750
    %1839 = vmatprep.subr.mxu0 %v1755
    %1840 = vmatpush1.msra.mxu0 %v1754
    %1841 = vmatprep.subr.mxu0 %v1759
    %1842 = vmatpush1.msra.mxu0 %v1758
    %1843 = vmatprep.subr.mxu0 0.0
    %1844 = vmatpush1.msra.mxu0 0.0
    %1845 = vmatprep.subr.mxu0 0.0
    %1846 = vmatpush1.msra.mxu0 0.0
    %1847 = vmatprep.subr.mxu0 0.0
    %1848 = vmatpush1.msra.mxu0 0.0
    %1849 = vmatprep.subr.mxu0 0.0
    %1850 = vmatpush1.msra.mxu0 0.0
    %1851 = vmatprep.subr.mxu0 0.0
    %1852 = vmatpush1.msra.mxu0 0.0
    %1853 = vmatprep.subr.mxu0 0.0
    %1854 = vmatpush1.msra.mxu0 0.0
    %1855 = vmatprep.subr.mxu0 0.0
    %1856 = vmatpush1.msra.mxu0 0.0
    %1857 = vmatprep.subr.mxu0 0.0
    %1858 = vmatpush1.msra.mxu0 0.0
    %1859 = vmatprep.subr.mxu0 0.0
    %1860 = vmatpush1.msra.mxu0 0.0
    %1861 = vmatprep.subr.mxu0 0.0
    %1862 = vmatpush1.msra.mxu0 0.0
    %1863 = vmatprep.subr.mxu0 0.0
    %1864 = vmatpush1.msra.mxu0 0.0
    %1865 = vmatprep.subr.mxu0 0.0
    %1866 = vmatpush1.msra.mxu0 0.0
    %1867 = vmatprep.subr.mxu0 0.0
    %1868 = vmatpush1.msra.mxu0 0.0
    %1869 = vmatprep.subr.mxu0 0.0
    %1870 = vmatpush1.msra.mxu0 0.0
    %1871 = vmatprep.subr.mxu0 0.0
    %1872 = vmatpush1.msra.mxu0 0.0
    %1873 = vmatprep.subr.mxu0 0.0
    %1874 = vmatpush1.msra.mxu0 0.0
    %1875 = vmatprep.subr.mxu0 0.0
    %1876 = vmatpush1.msra.mxu0 0.0
    %1877 = vmatprep.subr.mxu0 0.0
    %1878 = vmatpush1.msra.mxu0 0.0
    %1879 = vmatprep.subr.mxu0 0.0
    %1880 = vmatpush1.msra.mxu0 0.0
    %1881 = vmatprep.subr.mxu0 0.0
    %1882 = vmatpush1.msra.mxu0 0.0
    %1883 = vmatprep.subr.mxu0 0.0
    %1884 = vmatpush1.msra.mxu0 0.0
    %1885 = vmatprep.subr.mxu0 0.0
    %1886 = vmatpush1.msra.mxu0 0.0
    %1887 = vmatprep.subr.mxu0 0.0
    %1888 = vmatpush1.msra.mxu0 0.0
    %1889 = vmatprep.subr.mxu0 0.0
    %1890 = vmatpush1.msra.mxu0 0.0
    %1891 = vmatprep.subr.mxu0 0.0
    %1892 = vmatpush1.msra.mxu0 0.0
    %1893 = vmatprep.subr.mxu0 0.0
    %1894 = vmatpush1.msra.mxu0 0.0
    %1895 = vmatprep.subr.mxu0 0.0
    %1896 = vmatpush1.msra.mxu0 0.0
    %1897 = vmatprep.subr.mxu0 0.0
    %1898 = vmatpush1.msra.mxu0 0.0
    %1899 = vmatprep.mubr.f32.mxu0 0.0
    %1900 = vmatmul.mubr.f32.gmra.mrb[0].mxu0 %v1762
    %v1901 = vpop.f32.mrb[0].mxu0
    %v1902 = vadd.f32 0.0, %v1901
    %v1903 = vpop.f32.mrb[0].mxu0
    %v1904 = vadd.f32 0.0, %v1903
    %1905 = vdwg.mxu0
    %v1907 = vsel %vm1760, %v1660, 0
    %1909 = vmatprep.subr.mxu0 %v1745
    %1910 = vmatpush1.msra.mxu0 %v1744
    %1911 = vmatprep.subr.mxu0 %v1749
    %1912 = vmatpush1.msra.mxu0 %v1748
    %1913 = vmatprep.subr.mxu0 %v1753
    %1914 = vmatpush1.msra.mxu0 %v1752
    %1915 = vmatprep.subr.mxu0 %v1757
    %1916 = vmatpush1.msra.mxu0 %v1756
    %1917 = vmatprep.subr.mxu0 0.0
    %1918 = vmatpush1.msra.mxu0 0.0
    %1919 = vmatprep.subr.mxu0 0.0
    %1920 = vmatpush1.msra.mxu0 0.0
    %1921 = vmatprep.subr.mxu0 0.0
    %1922 = vmatpush1.msra.mxu0 0.0
    %1923 = vmatprep.subr.mxu0 0.0
    %1924 = vmatpush1.msra.mxu0 0.0
    %1925 = vmatprep.subr.mxu0 0.0
    %1926 = vmatpush1.msra.mxu0 0.0
    %1927 = vmatprep.subr.mxu0 0.0
    %1928 = vmatpush1.msra.mxu0 0.0
    %1929 = vmatprep.subr.mxu0 0.0
    %1930 = vmatpush1.msra.mxu0 0.0
    %1931 = vmatprep.subr.mxu0 0.0
    %1932 = vmatpush1.msra.mxu0 0.0
    %1933 = vmatprep.subr.mxu0 0.0
    %1934 = vmatpush1.msra.mxu0 0.0
    %1935 = vmatprep.subr.mxu0 0.0
    %1936 = vmatpush1.msra.mxu0 0.0
    %1937 = vmatprep.subr.mxu0 0.0
    %1938 = vmatpush1.msra.mxu0 0.0
    %1939 = vmatprep.subr.mxu0 0.0
    %1940 = vmatpush1.msra.mxu0 0.0
    %1941 = vmatprep.subr.mxu0 0.0
    %1942 = vmatpush1.msra.mxu0 0.0
    %1943 = vmatprep.subr.mxu0 0.0
    %1944 = vmatpush1.msra.mxu0 0.0
    %1945 = vmatprep.subr.mxu0 0.0
    %1946 = vmatpush1.msra.mxu0 0.0
    %1947 = vmatprep.subr.mxu0 0.0
    %1948 = vmatpush1.msra.mxu0 0.0
    %1949 = vmatprep.subr.mxu0 0.0
    %1950 = vmatpush1.msra.mxu0 0.0
    %1951 = vmatprep.subr.mxu0 0.0
    %1952 = vmatpush1.msra.mxu0 0.0
    %1953 = vmatprep.subr.mxu0 0.0
    %1954 = vmatpush1.msra.mxu0 0.0
    %1955 = vmatprep.subr.mxu0 0.0
    %1956 = vmatpush1.msra.mxu0 0.0
    %1957 = vmatprep.subr.mxu0 0.0
    %1958 = vmatpush1.msra.mxu0 0.0
    %1959 = vmatprep.subr.mxu0 0.0
    %1960 = vmatpush1.msra.mxu0 0.0
    %1961 = vmatprep.subr.mxu0 0.0
    %1962 = vmatpush1.msra.mxu0 0.0
    %1963 = vmatprep.subr.mxu0 0.0
    %1964 = vmatpush1.msra.mxu0 0.0
    %1965 = vmatprep.subr.mxu0 0.0
    %1966 = vmatpush1.msra.mxu0 0.0
    %1967 = vmatprep.subr.mxu0 0.0
    %1968 = vmatpush1.msra.mxu0 0.0
    %1969 = vmatprep.subr.mxu0 0.0
    %1970 = vmatpush1.msra.mxu0 0.0
    %1971 = vmatprep.subr.mxu0 0.0
    %1972 = vmatpush1.msra.mxu0 0.0
    %1973 = vmatprep.mubr.f32.mxu0 0.0
    %1974 = vmatmul.mubr.f32.gmra.mrb[0].mxu0 %v1907
    %v1975 = vpop.f32.mrb[0].mxu0
    %v1976 = vadd.f32 0.0, %v1975
    %v1977 = vpop.f32.mrb[0].mxu0
    %v1978 = vadd.f32 0.0, %v1977
    %1979 = vdwg.mxu0
    %1980 = vmatprep.subr.mxu0 %v1747
    %1981 = vmatpush1.msra.mxu0 %v1746
    %1982 = vmatprep.subr.mxu0 %v1751
    %1983 = vmatpush1.msra.mxu0 %v1750
    %1984 = vmatprep.subr.mxu0 %v1755
    %1985 = vmatpush1.msra.mxu0 %v1754
    %1986 = vmatprep.subr.mxu0 %v1759
    %1987 = vmatpush1.msra.mxu0 %v1758
    %1988 = vmatprep.subr.mxu0 0.0
    %1989 = vmatpush1.msra.mxu0 0.0
    %1990 = vmatprep.subr.mxu0 0.0
    %1991 = vmatpush1.msra.mxu0 0.0
    %1992 = vmatprep.subr.mxu0 0.0
    %1993 = vmatpush1.msra.mxu0 0.0
    %1994 = vmatprep.subr.mxu0 0.0
    %1995 = vmatpush1.msra.mxu0 0.0
    %1996 = vmatprep.subr.mxu0 0.0
    %1997 = vmatpush1.msra.mxu0 0.0
    %1998 = vmatprep.subr.mxu0 0.0
    %1999 = vmatpush1.msra.mxu0 0.0
    %2000 = vmatprep.subr.mxu0 0.0
    %2001 = vmatpush1.msra.mxu0 0.0
    %2002 = vmatprep.subr.mxu0 0.0
    %2003 = vmatpush1.msra.mxu0 0.0
    %2004 = vmatprep.subr.mxu0 0.0
    %2005 = vmatpush1.msra.mxu0 0.0
    %2006 = vmatprep.subr.mxu0 0.0
    %2007 = vmatpush1.msra.mxu0 0.0
    %2008 = vmatprep.subr.mxu0 0.0
    %2009 = vmatpush1.msra.mxu0 0.0
    %2010 = vmatprep.subr.mxu0 0.0
    %2011 = vmatpush1.msra.mxu0 0.0
    %2012 = vmatprep.subr.mxu0 0.0
    %2013 = vmatpush1.msra.mxu0 0.0
    %2014 = vmatprep.subr.mxu0 0.0
    %2015 = vmatpush1.msra.mxu0 0.0
    %2016 = vmatprep.subr.mxu0 0.0
    %2017 = vmatpush1.msra.mxu0 0.0
    %2018 = vmatprep.subr.mxu0 0.0
    %2019 = vmatpush1.msra.mxu0 0.0
    %2020 = vmatprep.subr.mxu0 0.0
    %2021 = vmatpush1.msra.mxu0 0.0
    %2022 = vmatprep.subr.mxu0 0.0
    %2023 = vmatpush1.msra.mxu0 0.0
    %2024 = vmatprep.subr.mxu0 0.0
    %2025 = vmatpush1.msra.mxu0 0.0
    %2026 = vmatprep.subr.mxu0 0.0
    %2027 = vmatpush1.msra.mxu0 0.0
    %2028 = vmatprep.subr.mxu0 0.0
    %2029 = vmatpush1.msra.mxu0 0.0
    %2030 = vmatprep.subr.mxu0 0.0
    %2031 = vmatpush1.msra.mxu0 0.0
    %2032 = vmatprep.subr.mxu0 0.0
    %2033 = vmatpush1.msra.mxu0 0.0
    %2034 = vmatprep.subr.mxu0 0.0
    %2035 = vmatpush1.msra.mxu0 0.0
    %2036 = vmatprep.subr.mxu0 0.0
    %2037 = vmatpush1.msra.mxu0 0.0
    %2038 = vmatprep.subr.mxu0 0.0
    %2039 = vmatpush1.msra.mxu0 0.0
    %2040 = vmatprep.subr.mxu0 0.0
    %2041 = vmatpush1.msra.mxu0 0.0
    %2042 = vmatprep.subr.mxu0 0.0
    %2043 = vmatpush1.msra.mxu0 0.0
    %2044 = vmatprep.mubr.f32.mxu0 0.0
    %2045 = vmatmul.mubr.f32.gmra.mrb[0].mxu0 %v1907
    %v2046 = vpop.f32.mrb[0].mxu0
    %v2047 = vadd.f32 0.0, %v2046
    %v2048 = vpop.f32.mrb[0].mxu0
    %v2049 = vadd.f32 0.0, %v2048
    %2050 = vdwg.mxu0
    %v2051 = vlaneseq
    %v2052 = vshrl.u32 %v2051, 7
    %v2053 = vsub.s32 0, %v2052
    %v2054 = vrot.slane %v1831, %v2053
    %v2055 = vlaneseq
    %v2056 = vshrl.u32 %v2055, 7
    %v2057 = vsub.s32 0, %v2056
    %v2058 = vrot.slane %v1833, %v2057
    %v2059 = vlaneseq
    %v2060 = vshrl.u32 %v2059, 7
    %v2061 = vsub.s32 0, %v2060
    %v2062 = vrot.slane %v1902, %v2061
    %v2063 = vlaneseq
    %v2064 = vshrl.u32 %v2063, 7
    %v2065 = vsub.s32 0, %v2064
    %v2066 = vrot.slane %v1904, %v2065
    %v2067 = vmul.f32 %v227, %v2054
    %v2068 = vmul.f32 %v229, %v2058
    %v2069 = vmul.f32 %v270, %v2062
    %v2070 = vmul.f32 %v272, %v2066
    %v2071 = vlaneseq
    %v2072 = vshrl.u32 %v2071, 7
    %v2073 = vsub.s32 0, %v2072
    %v2074 = vrot.slane %v1976, %v2073
    %v2075 = vlaneseq
    %v2076 = vshrl.u32 %v2075, 7
    %v2077 = vsub.s32 0, %v2076
    %v2078 = vrot.slane %v1978, %v2077
    %v2079 = vlaneseq
    %v2080 = vshrl.u32 %v2079, 7
    %v2081 = vsub.s32 0, %v2080
    %v2082 = vrot.slane %v2047, %v2081
    %v2083 = vlaneseq
    %v2084 = vshrl.u32 %v2083, 7
    %v2085 = vsub.s32 0, %v2084
    %v2086 = vrot.slane %v2049, %v2085
    %v2087 = vadd.f32 %v2067, %v2074
    %v2088 = vadd.f32 %v2068, %v2078
    %v2089 = vadd.f32 %v2069, %v2082
    %v2090 = vadd.f32 %v2070, %v2086
    %v2091 = vmax.f32 %v2087, 0.0
    %v2092 = vmax.f32 %v2088, 0.0
    %v2093 = vmax.f32 %v2089, 0.0
    %v2094 = vmax.f32 %v2090, 0.0
    %2095 = vst [vmem:[#allocation2 + $0x1] sm:$0x1] %v2091
    %2096 = vst [vmem:[#allocation2 + $0x2] sm:$0x1] %v2092
    %2097 = vst [vmem:[#allocation2 + $0x3] sm:$0x1] %v2093
    %2098 = vst [vmem:[#allocation2 + $0x4] sm:$0x1] %v2094
    %2099 = vst [vmem:[#allocation2 + $0x4] sm:$0x2] %v2091
    %2100 = vst [vmem:[#allocation2 + $0x5] sm:$0x2] %v2092
    %2101 = vst [vmem:[#allocation2 + $0x6] sm:$0x2] %v2093
    %2102 = vst [vmem:[#allocation2 + $0x7] sm:$0x2] %v2094
    %vm2103 = vcmp.lt.s32.totalorder %v343, 0
    %v2104 = vsub.s32 0, %v343
    %v2105 = vsel %vm2103, %v2104, %v343
    %v2106 = vshrl.u32 %v2105, 2
    %v2107 = vand.u32 %v2105, 3
    %v2108 = vsub.s32 0, %v2107
    %v2109 = vsel %vm2103, %v2108, %v2107
    %vm2110 = vcmp.lt.s32.totalorder %v344, 0
    %v2111 = vsub.s32 0, %v344
    %v2112 = vsel %vm2110, %v2111, %v344
    %v2113 = vshrl.u32 %v2112, 2
    %v2114 = vand.u32 %v2112, 3
    %v2115 = vsub.s32 0, %v2114
    %v2116 = vsel %vm2110, %v2115, %v2114
    %vm2117 = vcmp.ne.s32.totalorder %v2109, 0
    %vm2118 = vcmp.ne.s32.totalorder %v2116, 0
    %vm2119 = vcmp.lt.s32.totalorder %v2109, 0
    %vm2120 = vcmp.lt.s32.totalorder %v2116, 0
    %vm2121 = vmand %vm2119, %vm2117
    %vm2122 = vmand %vm2120, %vm2118
    %v2123 = vadd.s32 %v2109, 4
    %v2124 = vadd.s32 %v2116, 4
    %v2125 = vsel %vm2121, %v2123, %v2109
    %v2126 = vsel %vm2122, %v2124, %v2116
    %v2127 = vld [vmem:[#allocation2] sm:$0xff]
    %v2128 = vld [vmem:[#allocation2 + $0x8] sm:$0xff]
    %vm2129 = vcmp.ge.s32.totalorder %v2125, 1
    %vm2130 = vcmp.ge.s32.totalorder %v2126, 1
    %v2131 = vsel %vm2129, %v2127, 0.0
    %v2132 = vsel %vm2130, %v2128, 0.0
    %v2133 = vpack.c.bf16 %v2132, %v2131
    %v2134 = vld [vmem:[#allocation2 + $0x1] sm:$0xff]
    %v2135 = vld [vmem:[#allocation2 + $0x9] sm:$0xff]
    %v2136 = vpack.c.bf16 %v2135, %v2134
    %v2137 = vld [vmem:[#allocation2 + $0x2] sm:$0xff]
    %v2138 = vld [vmem:[#allocation2 + $0xa] sm:$0xff]
    %vm2139 = vcmp.le.s32.totalorder %v2125, 2
    %vm2140 = vcmp.le.s32.totalorder %v2126, 2
    %v2141 = vsel %vm2139, %v2137, 0.0
    %v2142 = vsel %vm2140, %v2138, 0.0
    %v2143 = vpack.c.bf16 %v2142, %v2141
    %v2144 = vld [vmem:[#allocation7] sm:$0xf]
    %v2145 = vld [vmem:[#allocation7 + $0x4] sm:$0xf]
    %v2146 = vld [vmem:[#allocation7 + $0x8] sm:$0xf]
    %v2147 = vld [vmem:[#allocation7 + $0xc] sm:$0xf]
    %v2148 = vld [vmem:[#allocation7 + $0x10] sm:$0xf]
    %v2149 = vld [vmem:[#allocation7 + $0x14] sm:$0xf]
    %v2150 = vld [vmem:[#allocation7 + $0x18] sm:$0xf]
    %v2151 = vld [vmem:[#allocation7 + $0x1c] sm:$0xf]
    %v2152 = vld [vmem:[#allocation7 + $0x20] sm:$0xf]
    %v2153 = vld [vmem:[#allocation7 + $0x24] sm:$0xf]
    %v2154 = vld [vmem:[#allocation7 + $0x28] sm:$0xf]
    %v2155 = vld [vmem:[#allocation7 + $0x2c] sm:$0xf]
    %v2156 = vld [vmem:[#allocation7 + $0x30] sm:$0xf]
    %v2157 = vld [vmem:[#allocation7 + $0x34] sm:$0xf]
    %v2158 = vld [vmem:[#allocation7 + $0x38] sm:$0xf]
    %v2159 = vld [vmem:[#allocation7 + $0x3c] sm:$0xf]
    %v2160 = vld [vmem:[#allocation7 + $0x40] sm:$0xf]
    %v2161 = vld [vmem:[#allocation7 + $0x44] sm:$0xf]
    %v2162 = vld [vmem:[#allocation7 + $0x48] sm:$0xf]
    %v2163 = vld [vmem:[#allocation7 + $0x4c] sm:$0xf]
    %v2164 = vld [vmem:[#allocation7 + $0x50] sm:$0xf]
    %v2165 = vld [vmem:[#allocation7 + $0x54] sm:$0xf]
    %v2166 = vld [vmem:[#allocation7 + $0x58] sm:$0xf]
    %v2167 = vld [vmem:[#allocation7 + $0x5c] sm:$0xf]
    %v2168 = vld [vmem:[#allocation7 + $0x60] sm:$0xf]
    %v2169 = vld [vmem:[#allocation7 + $0x64] sm:$0xf]
    %v2170 = vld [vmem:[#allocation7 + $0x68] sm:$0xf]
    %v2171 = vld [vmem:[#allocation7 + $0x6c] sm:$0xf]
    %v2172 = vld [vmem:[#allocation7 + $0x70] sm:$0xf]
    %v2173 = vld [vmem:[#allocation7 + $0x74] sm:$0xf]
    %v2174 = vld [vmem:[#allocation7 + $0x78] sm:$0xf]
    %v2175 = vld [vmem:[#allocation7 + $0x7c] sm:$0xf]
    %v2176 = vld [vmem:[#allocation7 + $0x80] sm:$0xf]
    %v2177 = vld [vmem:[#allocation7 + $0x84] sm:$0xf]
    %v2178 = vld [vmem:[#allocation7 + $0x88] sm:$0xf]
    %v2179 = vld [vmem:[#allocation7 + $0x8c] sm:$0xf]
    %v2180 = vld [vmem:[#allocation7 + $0x90] sm:$0xf]
    %v2181 = vld [vmem:[#allocation7 + $0x94] sm:$0xf]
    %v2182 = vld [vmem:[#allocation7 + $0x98] sm:$0xf]
    %v2183 = vld [vmem:[#allocation7 + $0x9c] sm:$0xf]
    %v2184 = vld [vmem:[#allocation7 + $0xa0] sm:$0xf]
    %v2185 = vld [vmem:[#allocation7 + $0xa4] sm:$0xf]
    %v2186 = vld [vmem:[#allocation7 + $0xa8] sm:$0xf]
    %v2187 = vld [vmem:[#allocation7 + $0xac] sm:$0xf]
    %v2188 = vld [vmem:[#allocation7 + $0xb0] sm:$0xf]
    %v2189 = vld [vmem:[#allocation7 + $0xb4] sm:$0xf]
    %v2190 = vld [vmem:[#allocation7 + $0xb8] sm:$0xf]
    %v2191 = vld [vmem:[#allocation7 + $0xbc] sm:$0xf]
    %v2192 = vld [vmem:[#allocation7 + $0xc0] sm:$0xf]
    %v2193 = vld [vmem:[#allocation7 + $0xc4] sm:$0xf]
    %v2194 = vld [vmem:[#allocation7 + $0xc8] sm:$0xf]
    %v2195 = vld [vmem:[#allocation7 + $0xcc] sm:$0xf]
    %v2196 = vld [vmem:[#allocation7 + $0xd0] sm:$0xf]
    %v2197 = vld [vmem:[#allocation7 + $0xd4] sm:$0xf]
    %v2198 = vld [vmem:[#allocation7 + $0xd8] sm:$0xf]
    %v2199 = vld [vmem:[#allocation7 + $0xdc] sm:$0xf]
    %v2200 = vld [vmem:[#allocation7 + $0xe0] sm:$0xf]
    %v2201 = vld [vmem:[#allocation7 + $0xe4] sm:$0xf]
    %v2202 = vld [vmem:[#allocation7 + $0xe8] sm:$0xf]
    %v2203 = vld [vmem:[#allocation7 + $0xec] sm:$0xf]
    %v2204 = vld [vmem:[#allocation7 + $0xf0] sm:$0xf]
    %v2205 = vld [vmem:[#allocation7 + $0xf4] sm:$0xf]
    %v2206 = vld [vmem:[#allocation7 + $0xf8] sm:$0xf]
    %v2207 = vld [vmem:[#allocation7 + $0xfc] sm:$0xf]
    %v2224 = vunpack.c.l.b16 %v2160
    %v2225 = vunpack.c.l.b16 %v2161
    %v2226 = vunpack.c.l.b16 %v2162
    %v2227 = vunpack.c.l.b16 %v2163
    %v2228 = vunpack.c.l.b16 %v2164
    %v2229 = vunpack.c.l.b16 %v2165
    %v2230 = vunpack.c.l.b16 %v2166
    %v2231 = vunpack.c.l.b16 %v2167
    %v2232 = vunpack.c.l.b16 %v2168
    %v2233 = vunpack.c.l.b16 %v2169
    %v2234 = vunpack.c.l.b16 %v2170
    %v2235 = vunpack.c.l.b16 %v2171
    %v2236 = vunpack.c.l.b16 %v2172
    %v2237 = vunpack.c.l.b16 %v2173
    %v2238 = vunpack.c.l.b16 %v2174
    %v2239 = vunpack.c.l.b16 %v2175
    %v2240 = vpack.c.b16 %v2225, %v2224
    %v2241 = vpack.c.b16 %v2227, %v2226
    %v2242 = vpack.c.b16 %v2229, %v2228
    %v2243 = vpack.c.b16 %v2231, %v2230
    %v2244 = vpack.c.b16 %v2233, %v2232
    %v2245 = vpack.c.b16 %v2235, %v2234
    %v2246 = vpack.c.b16 %v2237, %v2236
    %v2247 = vpack.c.b16 %v2239, %v2238
    %2256 = vmatprep.subr.bf16.mxu0 0
    %2257 = vmatpush1.bf16.msra.mxu0 %v2240
    %2258 = vmatprep.subr.bf16.mxu0 0
    %2259 = vmatpush1.bf16.msra.mxu0 %v2241
    %2260 = vmatprep.subr.bf16.mxu0 0
    %2261 = vmatpush1.bf16.msra.mxu0 %v2242
    %2262 = vmatprep.subr.bf16.mxu0 0
    %2263 = vmatpush1.bf16.msra.mxu0 %v2243
    %2264 = vmatprep.subr.bf16.mxu0 0
    %2265 = vmatpush1.bf16.msra.mxu0 %v2244
    %2266 = vmatprep.subr.bf16.mxu0 0
    %2267 = vmatpush1.bf16.msra.mxu0 %v2245
    %2268 = vmatprep.subr.bf16.mxu0 0
    %2269 = vmatpush1.bf16.msra.mxu0 %v2246
    %2270 = vmatprep.subr.bf16.mxu0 0
    %2271 = vmatpush1.bf16.msra.mxu0 %v2247
    %2272 = vmatprep.subr.bf16.mxu0 0
    %2273 = vmatpush1.bf16.msra.mxu0 0
    %2274 = vmatprep.subr.bf16.mxu0 0
    %2275 = vmatpush1.bf16.msra.mxu0 0
    %2276 = vmatprep.subr.bf16.mxu0 0
    %2277 = vmatpush1.bf16.msra.mxu0 0
    %2278 = vmatprep.subr.bf16.mxu0 0
    %2279 = vmatpush1.bf16.msra.mxu0 0
    %2280 = vmatprep.subr.bf16.mxu0 0
    %2281 = vmatpush1.bf16.msra.mxu0 0
    %2282 = vmatprep.subr.bf16.mxu0 0
    %2283 = vmatpush1.bf16.msra.mxu0 0
    %2284 = vmatprep.subr.bf16.mxu0 0
    %2285 = vmatpush1.bf16.msra.mxu0 0
    %2286 = vmatprep.subr.bf16.mxu0 0
    %2287 = vmatpush1.bf16.msra.mxu0 0
    %2288 = vmatprep.mubr.bf16.mxu0 0
    %2289 = vmatmul.mubr.bf16.gmra.mrb[0].mxu0 %v2136
    %v2290 = vpop.f32.mrb[0].mxu0
    %v2291 = vadd.f32 0.0, %v2290
    %v2292 = vpop.f32.mrb[0].mxu0
    %v2293 = vpop.f32.mrb[0].mxu0
    %v2294 = vadd.f32 0.0, %v2293
    %v2295 = vpop.f32.mrb[0].mxu0
    %2296 = vdwg.mxu0
    %v2313 = vunpack.c.l.b16 %v2144
    %v2314 = vunpack.c.l.b16 %v2145
    %v2315 = vunpack.c.l.b16 %v2146
    %v2316 = vunpack.c.l.b16 %v2147
    %v2317 = vunpack.c.l.b16 %v2148
    %v2318 = vunpack.c.l.b16 %v2149
    %v2319 = vunpack.c.l.b16 %v2150
    %v2320 = vunpack.c.l.b16 %v2151
    %v2321 = vunpack.c.l.b16 %v2152
    %v2322 = vunpack.c.l.b16 %v2153
    %v2323 = vunpack.c.l.b16 %v2154
    %v2324 = vunpack.c.l.b16 %v2155
    %v2325 = vunpack.c.l.b16 %v2156
    %v2326 = vunpack.c.l.b16 %v2157
    %v2327 = vunpack.c.l.b16 %v2158
    %v2328 = vunpack.c.l.b16 %v2159
    %v2329 = vpack.c.b16 %v2314, %v2313
    %v2330 = vpack.c.b16 %v2316, %v2315
    %v2331 = vpack.c.b16 %v2318, %v2317
    %v2332 = vpack.c.b16 %v2320, %v2319
    %v2333 = vpack.c.b16 %v2322, %v2321
    %v2334 = vpack.c.b16 %v2324, %v2323
    %v2335 = vpack.c.b16 %v2326, %v2325
    %v2336 = vpack.c.b16 %v2328, %v2327
    %2345 = vmatprep.subr.bf16.mxu0 0
    %2346 = vmatpush1.bf16.msra.mxu0 %v2329
    %2347 = vmatprep.subr.bf16.mxu0 0
    %2348 = vmatpush1.bf16.msra.mxu0 %v2330
    %2349 = vmatprep.subr.bf16.mxu0 0
    %2350 = vmatpush1.bf16.msra.mxu0 %v2331
    %2351 = vmatprep.subr.bf16.mxu0 0
    %2352 = vmatpush1.bf16.msra.mxu0 %v2332
    %2353 = vmatprep.subr.bf16.mxu0 0
    %2354 = vmatpush1.bf16.msra.mxu0 %v2333
    %2355 = vmatprep.subr.bf16.mxu0 0
    %2356 = vmatpush1.bf16.msra.mxu0 %v2334
    %2357 = vmatprep.subr.bf16.mxu0 0
    %2358 = vmatpush1.bf16.msra.mxu0 %v2335
    %2359 = vmatprep.subr.bf16.mxu0 0
    %2360 = vmatpush1.bf16.msra.mxu0 %v2336
    %2361 = vmatprep.subr.bf16.mxu0 0
    %2362 = vmatpush1.bf16.msra.mxu0 0
    %2363 = vmatprep.subr.bf16.mxu0 0
    %2364 = vmatpush1.bf16.msra.mxu0 0
    %2365 = vmatprep.subr.bf16.mxu0 0
    %2366 = vmatpush1.bf16.msra.mxu0 0
    %2367 = vmatprep.subr.bf16.mxu0 0
    %2368 = vmatpush1.bf16.msra.mxu0 0
    %2369 = vmatprep.subr.bf16.mxu0 0
    %2370 = vmatpush1.bf16.msra.mxu0 0
    %2371 = vmatprep.subr.bf16.mxu0 0
    %2372 = vmatpush1.bf16.msra.mxu0 0
    %2373 = vmatprep.subr.bf16.mxu0 0
    %2374 = vmatpush1.bf16.msra.mxu0 0
    %2375 = vmatprep.subr.bf16.mxu0 0
    %2376 = vmatpush1.bf16.msra.mxu0 0
    %2377 = vmatprep.mubr.bf16.mxu0 0
    %2378 = vmatmul.mubr.bf16.gmra.mrb[0].mxu0 %v2133
    %v2379 = vpop.f32.mrb[0].mxu0
    %v2380 = vadd.f32 %v2291, %v2379
    %v2381 = vpop.f32.mrb[0].mxu0
    %v2382 = vpop.f32.mrb[0].mxu0
    %v2383 = vadd.f32 %v2294, %v2382
    %v2384 = vpop.f32.mrb[0].mxu0
    %2385 = vdwg.mxu0
    %v2402 = vunpack.c.l.b16 %v2192
    %v2403 = vunpack.c.l.b16 %v2193
    %v2404 = vunpack.c.l.b16 %v2194
    %v2405 = vunpack.c.l.b16 %v2195
    %v2406 = vunpack.c.l.b16 %v2196
    %v2407 = vunpack.c.l.b16 %v2197
    %v2408 = vunpack.c.l.b16 %v2198
    %v2409 = vunpack.c.l.b16 %v2199
    %v2410 = vunpack.c.l.b16 %v2200
    %v2411 = vunpack.c.l.b16 %v2201
    %v2412 = vunpack.c.l.b16 %v2202
    %v2413 = vunpack.c.l.b16 %v2203
    %v2414 = vunpack.c.l.b16 %v2204
    %v2415 = vunpack.c.l.b16 %v2205
    %v2416 = vunpack.c.l.b16 %v2206
    %v2417 = vunpack.c.l.b16 %v2207
    %v2418 = vpack.c.b16 %v2403, %v2402
    %v2419 = vpack.c.b16 %v2405, %v2404
    %v2420 = vpack.c.b16 %v2407, %v2406
    %v2421 = vpack.c.b16 %v2409, %v2408
    %v2422 = vpack.c.b16 %v2411, %v2410
    %v2423 = vpack.c.b16 %v2413, %v2412
    %v2424 = vpack.c.b16 %v2415, %v2414
    %v2425 = vpack.c.b16 %v2417, %v2416
    %2434 = vmatprep.subr.bf16.mxu0 0
    %2435 = vmatpush1.bf16.msra.mxu0 %v2418
    %2436 = vmatprep.subr.bf16.mxu0 0
    %2437 = vmatpush1.bf16.msra.mxu0 %v2419
    %2438 = vmatprep.subr.bf16.mxu0 0
    %2439 = vmatpush1.bf16.msra.mxu0 %v2420
    %2440 = vmatprep.subr.bf16.mxu0 0
    %2441 = vmatpush1.bf16.msra.mxu0 %v2421
    %2442 = vmatprep.subr.bf16.mxu0 0
    %2443 = vmatpush1.bf16.msra.mxu0 %v2422
    %2444 = vmatprep.subr.bf16.mxu0 0
    %2445 = vmatpush1.bf16.msra.mxu0 %v2423
    %2446 = vmatprep.subr.bf16.mxu0 0
    %2447 = vmatpush1.bf16.msra.mxu0 %v2424
    %2448 = vmatprep.subr.bf16.mxu0 0
    %2449 = vmatpush1.bf16.msra.mxu0 %v2425
    %2450 = vmatprep.subr.bf16.mxu0 0
    %2451 = vmatpush1.bf16.msra.mxu0 0
    %2452 = vmatprep.subr.bf16.mxu0 0
    %2453 = vmatpush1.bf16.msra.mxu0 0
    %2454 = vmatprep.subr.bf16.mxu0 0
    %2455 = vmatpush1.bf16.msra.mxu0 0
    %2456 = vmatprep.subr.bf16.mxu0 0
    %2457 = vmatpush1.bf16.msra.mxu0 0
    %2458 = vmatprep.subr.bf16.mxu0 0
    %2459 = vmatpush1.bf16.msra.mxu0 0
    %2460 = vmatprep.subr.bf16.mxu0 0
    %2461 = vmatpush1.bf16.msra.mxu0 0
    %2462 = vmatprep.subr.bf16.mxu0 0
    %2463 = vmatpush1.bf16.msra.mxu0 0
    %2464 = vmatprep.subr.bf16.mxu0 0
    %2465 = vmatpush1.bf16.msra.mxu0 0
    %2466 = vmatprep.mubr.bf16.mxu0 0
    %2467 = vmatmul.mubr.bf16.gmra.mrb[0].mxu0 %v2143
    %v2468 = vpop.f32.mrb[0].mxu0
    %v2469 = vadd.f32 0.0, %v2468
    %v2470 = vpop.f32.mrb[0].mxu0
    %v2471 = vpop.f32.mrb[0].mxu0
    %v2472 = vadd.f32 0.0, %v2471
    %v2473 = vpop.f32.mrb[0].mxu0
    %2474 = vdwg.mxu0
    %v2491 = vunpack.c.l.b16 %v2176
    %v2492 = vunpack.c.l.b16 %v2177
    %v2493 = vunpack.c.l.b16 %v2178
    %v2494 = vunpack.c.l.b16 %v2179
    %v2495 = vunpack.c.l.b16 %v2180
    %v2496 = vunpack.c.l.b16 %v2181
    %v2497 = vunpack.c.l.b16 %v2182
    %v2498 = vunpack.c.l.b16 %v2183
    %v2499 = vunpack.c.l.b16 %v2184
    %v2500 = vunpack.c.l.b16 %v2185
    %v2501 = vunpack.c.l.b16 %v2186
    %v2502 = vunpack.c.l.b16 %v2187
    %v2503 = vunpack.c.l.b16 %v2188
    %v2504 = vunpack.c.l.b16 %v2189
    %v2505 = vunpack.c.l.b16 %v2190
    %v2506 = vunpack.c.l.b16 %v2191
    %v2507 = vpack.c.b16 %v2492, %v2491
    %v2508 = vpack.c.b16 %v2494, %v2493
    %v2509 = vpack.c.b16 %v2496, %v2495
    %v2510 = vpack.c.b16 %v2498, %v2497
    %v2511 = vpack.c.b16 %v2500, %v2499
    %v2512 = vpack.c.b16 %v2502, %v2501
    %v2513 = vpack.c.b16 %v2504, %v2503
    %v2514 = vpack.c.b16 %v2506, %v2505
    %2523 = vmatprep.subr.bf16.mxu0 0
    %2524 = vmatpush1.bf16.msra.mxu0 %v2507
    %2525 = vmatprep.subr.bf16.mxu0 0
    %2526 = vmatpush1.bf16.msra.mxu0 %v2508
    %2527 = vmatprep.subr.bf16.mxu0 0
    %2528 = vmatpush1.bf16.msra.mxu0 %v2509
    %2529 = vmatprep.subr.bf16.mxu0 0
    %2530 = vmatpush1.bf16.msra.mxu0 %v2510
    %2531 = vmatprep.subr.bf16.mxu0 0
    %2532 = vmatpush1.bf16.msra.mxu0 %v2511
    %2533 = vmatprep.subr.bf16.mxu0 0
    %2534 = vmatpush1.bf16.msra.mxu0 %v2512
    %2535 = vmatprep.subr.bf16.mxu0 0
    %2536 = vmatpush1.bf16.msra.mxu0 %v2513
    %2537 = vmatprep.subr.bf16.mxu0 0
    %2538 = vmatpush1.bf16.msra.mxu0 %v2514
    %2539 = vmatprep.subr.bf16.mxu0 0
    %2540 = vmatpush1.bf16.msra.mxu0 0
    %2541 = vmatprep.subr.bf16.mxu0 0
    %2542 = vmatpush1.bf16.msra.mxu0 0
    %2543 = vmatprep.subr.bf16.mxu0 0
    %2544 = vmatpush1.bf16.msra.mxu0 0
    %2545 = vmatprep.subr.bf16.mxu0 0
    %2546 = vmatpush1.bf16.msra.mxu0 0
    %2547 = vmatprep.subr.bf16.mxu0 0
    %2548 = vmatpush1.bf16.msra.mxu0 0
    %2549 = vmatprep.subr.bf16.mxu0 0
    %2550 = vmatpush1.bf16.msra.mxu0 0
    %2551 = vmatprep.subr.bf16.mxu0 0
    %2552 = vmatpush1.bf16.msra.mxu0 0
    %2553 = vmatprep.subr.bf16.mxu0 0
    %2554 = vmatpush1.bf16.msra.mxu0 0
    %2555 = vmatprep.mubr.bf16.mxu0 0
    %2556 = vmatmul.mubr.bf16.gmra.mrb[0].mxu0 %v2136
    %v2557 = vpop.f32.mrb[0].mxu0
    %v2558 = vadd.f32 %v2469, %v2557
    %v2559 = vpop.f32.mrb[0].mxu0
    %v2560 = vpop.f32.mrb[0].mxu0
    %v2561 = vadd.f32 %v2472, %v2560
    %v2562 = vpop.f32.mrb[0].mxu0
    %2563 = vdwg.mxu0
    %v2564 = vadd.f32 %v2380, %v2383
    %v2565 = vrot.slane %v2564, 4
    %v2566 = vadd.f32 %v2564, %v2565
    %v2567 = vrot.slane %v2566, 2
    %v2568 = vadd.f32 %v2566, %v2567
    %v2569 = vrot.slane %v2568, 1
    %v2570 = vadd.f32 %v2568, %v2569
    %v2571 = vmul.f32 %v2380, %v2380
    %v2572 = vmul.f32 %v2383, %v2383
    %v2573 = vadd.f32 %v2571, %v2572
    %v2574 = vrot.slane %v2573, 4
    %v2575 = vadd.f32 %v2573, %v2574
    %v2576 = vrot.slane %v2575, 2
    %v2577 = vadd.f32 %v2575, %v2576
    %v2578 = vrot.slane %v2577, 1
    %v2579 = vadd.f32 %v2577, %v2578
    %v2580 = vadd.f32 %v2558, %v2561
    %v2581 = vrot.slane %v2580, 4
    %v2582 = vadd.f32 %v2580, %v2581
    %v2583 = vrot.slane %v2582, 2
    %v2584 = vadd.f32 %v2582, %v2583
    %v2585 = vrot.slane %v2584, 1
    %v2586 = vadd.f32 %v2584, %v2585
    %v2587 = vadd.f32 %v2570, %v2586
    %v2588 = vmul.f32 %v2558, %v2558
    %v2589 = vmul.f32 %v2561, %v2561
    %v2590 = vadd.f32 %v2588, %v2589
    %v2591 = vrot.slane %v2590, 4
    %v2592 = vadd.f32 %v2590, %v2591
    %v2593 = vrot.slane %v2592, 2
    %v2594 = vadd.f32 %v2592, %v2593
    %v2595 = vrot.slane %v2594, 1
    %v2596 = vadd.f32 %v2594, %v2595
    %v2597 = vadd.f32 %v2579, %v2596
    %vm2598 = vcmp.lt.s32.totalorder %v343, 0
    %v2599 = vsub.s32 0, %v343
    %v2600 = vsel %vm2598, %v2599, %v343
    %v2601 = vshrl.u32 %v2600, 4
    %v2602 = vand.u32 %v2600, 15
    %v2603 = vsub.s32 0, %v2602
    %v2604 = vsel %vm2598, %v2603, %v2602
    %vm2605 = vcmp.lt.s32.totalorder %v344, 0
    %v2606 = vsub.s32 0, %v344
    %v2607 = vsel %vm2605, %v2606, %v344
    %v2608 = vshrl.u32 %v2607, 4
    %v2609 = vand.u32 %v2607, 15
    %v2610 = vsub.s32 0, %v2609
    %v2611 = vsel %vm2605, %v2610, %v2609
    %vm2612 = vcmp.lt.s32.totalorder %v345, 0
    %v2613 = vsub.s32 0, %v345
    %v2614 = vsel %vm2612, %v2613, %v345
    %v2615 = vshrl.u32 %v2614, 4
    %v2616 = vand.u32 %v2614, 15
    %v2617 = vsub.s32 0, %v2616
    %v2618 = vsel %vm2612, %v2617, %v2616
    %vm2619 = vcmp.lt.s32.totalorder %v346, 0
    %v2620 = vsub.s32 0, %v346
    %v2621 = vsel %vm2619, %v2620, %v346
    %v2622 = vshrl.u32 %v2621, 4
    %v2623 = vand.u32 %v2621, 15
    %v2624 = vsub.s32 0, %v2623
    %v2625 = vsel %vm2619, %v2624, %v2623
    %vm2626 = vcmp.lt.s32.totalorder %v347, 0
    %v2627 = vsub.s32 0, %v347
    %v2628 = vsel %vm2626, %v2627, %v347
    %v2629 = vshrl.u32 %v2628, 4
    %v2630 = vand.u32 %v2628, 15
    %v2631 = vsub.s32 0, %v2630
    %v2632 = vsel %vm2626, %v2631, %v2630
    %vm2633 = vcmp.lt.s32.totalorder %v348, 0
    %v2634 = vsub.s32 0, %v348
    %v2635 = vsel %vm2633, %v2634, %v348
    %v2636 = vshrl.u32 %v2635, 4
    %v2637 = vand.u32 %v2635, 15
    %v2638 = vsub.s32 0, %v2637
    %v2639 = vsel %vm2633, %v2638, %v2637
    %vm2640 = vcmp.lt.s32.totalorder %v349, 0
    %v2641 = vsub.s32 0, %v349
    %v2642 = vsel %vm2640, %v2641, %v349
    %v2643 = vshrl.u32 %v2642, 4
    %v2644 = vand.u32 %v2642, 15
    %v2645 = vsub.s32 0, %v2644
    %v2646 = vsel %vm2640, %v2645, %v2644
    %vm2647 = vcmp.lt.s32.totalorder %v350, 0
    %v2648 = vsub.s32 0, %v350
    %v2649 = vsel %vm2647, %v2648, %v350
    %v2650 = vshrl.u32 %v2649, 4
    %v2651 = vand.u32 %v2649, 15
    %v2652 = vsub.s32 0, %v2651
    %v2653 = vsel %vm2647, %v2652, %v2651
    %vm2654 = vcmp.lt.s32.totalorder %v351, 0
    %v2655 = vsub.s32 0, %v351
    %v2656 = vsel %vm2654, %v2655, %v351
    %v2657 = vshrl.u32 %v2656, 4
    %v2658 = vand.u32 %v2656, 15
    %v2659 = vsub.s32 0, %v2658
    %v2660 = vsel %vm2654, %v2659, %v2658
    %vm2661 = vcmp.lt.s32.totalorder %v352, 0
    %v2662 = vsub.s32 0, %v352
    %v2663 = vsel %vm2661, %v2662, %v352
    %v2664 = vshrl.u32 %v2663, 4
    %v2665 = vand.u32 %v2663, 15
    %v2666 = vsub.s32 0, %v2665
    %v2667 = vsel %vm2661, %v2666, %v2665
    %vm2668 = vcmp.lt.s32.totalorder %v353, 0
    %v2669 = vsub.s32 0, %v353
    %v2670 = vsel %vm2668, %v2669, %v353
    %v2671 = vshrl.u32 %v2670, 4
    %v2672 = vand.u32 %v2670, 15
    %v2673 = vsub.s32 0, %v2672
    %v2674 = vsel %vm2668, %v2673, %v2672
    %vm2675 = vcmp.lt.s32.totalorder %v354, 0
    %v2676 = vsub.s32 0, %v354
    %v2677 = vsel %vm2675, %v2676, %v354
    %v2678 = vshrl.u32 %v2677, 4
    %v2679 = vand.u32 %v2677, 15
    %v2680 = vsub.s32 0, %v2679
    %v2681 = vsel %vm2675, %v2680, %v2679
    %vm2682 = vcmp.lt.s32.totalorder %v355, 0
    %v2683 = vsub.s32 0, %v355
    %v2684 = vsel %vm2682, %v2683, %v355
    %v2685 = vshrl.u32 %v2684, 4
    %v2686 = vand.u32 %v2684, 15
    %v2687 = vsub.s32 0, %v2686
    %v2688 = vsel %vm2682, %v2687, %v2686
    %vm2689 = vcmp.lt.s32.totalorder %v356, 0
    %v2690 = vsub.s32 0, %v356
    %v2691 = vsel %vm2689, %v2690, %v356
    %v2692 = vshrl.u32 %v2691, 4
    %v2693 = vand.u32 %v2691, 15
    %v2694 = vsub.s32 0, %v2693
    %v2695 = vsel %vm2689, %v2694, %v2693
    %vm2696 = vcmp.lt.s32.totalorder %v357, 0
    %v2697 = vsub.s32 0, %v357
    %v2698 = vsel %vm2696, %v2697, %v357
    %v2699 = vshrl.u32 %v2698, 4
    %v2700 = vand.u32 %v2698, 15
    %v2701 = vsub.s32 0, %v2700
    %v2702 = vsel %vm2696, %v2701, %v2700
    %vm2703 = vcmp.lt.s32.totalorder %v358, 0
    %v2704 = vsub.s32 0, %v358
    %v2705 = vsel %vm2703, %v2704, %v358
    %v2706 = vshrl.u32 %v2705, 4
    %v2707 = vand.u32 %v2705, 15
    %v2708 = vsub.s32 0, %v2707
    %v2709 = vsel %vm2703, %v2708, %v2707
    %vm2710 = vcmp.ne.s32.totalorder %v2604, 0
    %vm2711 = vcmp.ne.s32.totalorder %v2611, 0
    %vm2712 = vcmp.ne.s32.totalorder %v2618, 0
    %vm2713 = vcmp.ne.s32.totalorder %v2625, 0
    %vm2714 = vcmp.ne.s32.totalorder %v2632, 0
    %vm2715 = vcmp.ne.s32.totalorder %v2639, 0
    %vm2716 = vcmp.ne.s32.totalorder %v2646, 0
    %vm2717 = vcmp.ne.s32.totalorder %v2653, 0
    %vm2718 = vcmp.ne.s32.totalorder %v2660, 0
    %vm2719 = vcmp.ne.s32.totalorder %v2667, 0
    %vm2720 = vcmp.ne.s32.totalorder %v2674, 0
    %vm2721 = vcmp.ne.s32.totalorder %v2681, 0
    %vm2722 = vcmp.ne.s32.totalorder %v2688, 0
    %vm2723 = vcmp.ne.s32.totalorder %v2695, 0
    %vm2724 = vcmp.ne.s32.totalorder %v2702, 0
    %vm2725 = vcmp.ne.s32.totalorder %v2709, 0
    %vm2726 = vcmp.lt.s32.totalorder %v2604, 0
    %vm2727 = vcmp.lt.s32.totalorder %v2611, 0
    %vm2728 = vcmp.lt.s32.totalorder %v2618, 0
    %vm2729 = vcmp.lt.s32.totalorder %v2625, 0
    %vm2730 = vcmp.lt.s32.totalorder %v2632, 0
    %vm2731 = vcmp.lt.s32.totalorder %v2639, 0
    %vm2732 = vcmp.lt.s32.totalorder %v2646, 0
    %vm2733 = vcmp.lt.s32.totalorder %v2653, 0
    %vm2734 = vcmp.lt.s32.totalorder %v2660, 0
    %vm2735 = vcmp.lt.s32.totalorder %v2667, 0
    %vm2736 = vcmp.lt.s32.totalorder %v2674, 0
    %vm2737 = vcmp.lt.s32.totalorder %v2681, 0
    %vm2738 = vcmp.lt.s32.totalorder %v2688, 0
    %vm2739 = vcmp.lt.s32.totalorder %v2695, 0
    %vm2740 = vcmp.lt.s32.totalorder %v2702, 0
    %vm2741 = vcmp.lt.s32.totalorder %v2709, 0
    %vm2742 = vmand %vm2726, %vm2710
    %vm2743 = vmand %vm2727, %vm2711
    %vm2744 = vmand %vm2728, %vm2712
    %vm2745 = vmand %vm2729, %vm2713
    %vm2746 = vmand %vm2730, %vm2714
    %vm2747 = vmand %vm2731, %vm2715
    %vm2748 = vmand %vm2732, %vm2716
    %vm2749 = vmand %vm2733, %vm2717
    %vm2750 = vmand %vm2734, %vm2718
    %vm2751 = vmand %vm2735, %vm2719
    %vm2752 = vmand %vm2736, %vm2720
    %vm2753 = vmand %vm2737, %vm2721
    %vm2754 = vmand %vm2738, %vm2722
    %vm2755 = vmand %vm2739, %vm2723
    %vm2756 = vmand %vm2740, %vm2724
    %vm2757 = vmand %vm2741, %vm2725
    %v2758 = vadd.s32 %v2604, 16
    %v2759 = vadd.s32 %v2611, 16
    %v2760 = vadd.s32 %v2618, 16
    %v2761 = vadd.s32 %v2625, 16
    %v2762 = vadd.s32 %v2632, 16
    %v2763 = vadd.s32 %v2639, 16
    %v2764 = vadd.s32 %v2646, 16
    %v2765 = vadd.s32 %v2653, 16
    %v2766 = vadd.s32 %v2660, 16
    %v2767 = vadd.s32 %v2667, 16
    %v2768 = vadd.s32 %v2674, 16
    %v2769 = vadd.s32 %v2681, 16
    %v2770 = vadd.s32 %v2688, 16
    %v2771 = vadd.s32 %v2695, 16
    %v2772 = vadd.s32 %v2702, 16
    %v2773 = vadd.s32 %v2709, 16
    %v2774 = vsel %vm2742, %v2758, %v2604
    %v2775 = vsel %vm2743, %v2759, %v2611
    %v2776 = vsel %vm2744, %v2760, %v2618
    %v2777 = vsel %vm2745, %v2761, %v2625
    %v2778 = vsel %vm2746, %v2762, %v2632
    %v2779 = vsel %vm2747, %v2763, %v2639
    %v2780 = vsel %vm2748, %v2764, %v2646
    %v2781 = vsel %vm2749, %v2765, %v2653
    %v2782 = vsel %vm2750, %v2766, %v2660
    %v2783 = vsel %vm2751, %v2767, %v2667
    %v2784 = vsel %vm2752, %v2768, %v2674
    %v2785 = vsel %vm2753, %v2769, %v2681
    %v2786 = vsel %vm2754, %v2770, %v2688
    %v2787 = vsel %vm2755, %v2771, %v2695
    %v2788 = vsel %vm2756, %v2772, %v2702
    %v2789 = vsel %vm2757, %v2773, %v2709
    %vm2790 = vcmp.eq.s32.totalorder %v2774, %v408
    %vm2791 = vcmp.eq.s32.totalorder %v2775, %v408
    %vm2792 = vcmp.eq.s32.totalorder %v2776, %v408
    %vm2793 = vcmp.eq.s32.totalorder %v2777, %v408
    %vm2794 = vcmp.eq.s32.totalorder %v2778, %v408
    %vm2795 = vcmp.eq.s32.totalorder %v2779, %v408
    %vm2796 = vcmp.eq.s32.totalorder %v2780, %v408
    %vm2797 = vcmp.eq.s32.totalorder %v2781, %v408
    %vm2798 = vcmp.eq.s32.totalorder %v2782, %v408
    %vm2799 = vcmp.eq.s32.totalorder %v2783, %v408
    %vm2800 = vcmp.eq.s32.totalorder %v2784, %v408
    %vm2801 = vcmp.eq.s32.totalorder %v2785, %v408
    %vm2802 = vcmp.eq.s32.totalorder %v2786, %v408
    %vm2803 = vcmp.eq.s32.totalorder %v2787, %v408
    %vm2804 = vcmp.eq.s32.totalorder %v2788, %v408
    %vm2805 = vcmp.eq.s32.totalorder %v2789, %v408
    %v2806 = vsel %vm2790, 1, 0
    %v2807 = vsel %vm2791, 1, 0
    %v2808 = vsel %vm2792, 1, 0
    %v2809 = vsel %vm2793, 1, 0
    %v2810 = vsel %vm2794, 1, 0
    %v2811 = vsel %vm2795, 1, 0
    %v2812 = vsel %vm2796, 1, 0
    %v2813 = vsel %vm2797, 1, 0
    %v2814 = vsel %vm2798, 1, 0
    %v2815 = vsel %vm2799, 1, 0
    %v2816 = vsel %vm2800, 1, 0
    %v2817 = vsel %vm2801, 1, 0
    %v2818 = vsel %vm2802, 1, 0
    %v2819 = vsel %vm2803, 1, 0
    %v2820 = vsel %vm2804, 1, 0
    %v2821 = vsel %vm2805, 1, 0
    %v2822 = vcvt.s32.f32 %v2806
    %v2823 = vcvt.s32.f32 %v2807
    %v2824 = vcvt.s32.f32 %v2808
    %v2825 = vcvt.s32.f32 %v2809
    %v2826 = vcvt.s32.f32 %v2810
    %v2827 = vcvt.s32.f32 %v2811
    %v2828 = vcvt.s32.f32 %v2812
    %v2829 = vcvt.s32.f32 %v2813
    %v2830 = vcvt.s32.f32 %v2814
    %v2831 = vcvt.s32.f32 %v2815
    %v2832 = vcvt.s32.f32 %v2816
    %v2833 = vcvt.s32.f32 %v2817
    %v2834 = vcvt.s32.f32 %v2818
    %v2835 = vcvt.s32.f32 %v2819
    %v2836 = vcvt.s32.f32 %v2820
    %v2837 = vcvt.s32.f32 %v2821
    %2838 = vmatprep.subr.mxu0 0.0
    %2839 = vmatpush1.msra.mxu0 %v2822
    %2840 = vmatprep.subr.mxu0 0.0
    %2841 = vmatpush1.msra.mxu0 %v2823
    %2842 = vmatprep.subr.mxu0 0.0
    %2843 = vmatpush1.msra.mxu0 %v2824
    %2844 = vmatprep.subr.mxu0 0.0
    %2845 = vmatpush1.msra.mxu0 %v2825
    %2846 = vmatprep.subr.mxu0 0.0
    %2847 = vmatpush1.msra.mxu0 %v2826
    %2848 = vmatprep.subr.mxu0 0.0
    %2849 = vmatpush1.msra.mxu0 %v2827
    %2850 = vmatprep.subr.mxu0 0.0
    %2851 = vmatpush1.msra.mxu0 %v2828
    %2852 = vmatprep.subr.mxu0 0.0
    %2853 = vmatpush1.msra.mxu0 %v2829
    %2854 = vmatprep.subr.mxu0 0.0
    %2855 = vmatpush1.msra.mxu0 %v2830
    %2856 = vmatprep.subr.mxu0 0.0
    %2857 = vmatpush1.msra.mxu0 %v2831
    %2858 = vmatprep.subr.mxu0 0.0
    %2859 = vmatpush1.msra.mxu0 %v2832
    %2860 = vmatprep.subr.mxu0 0.0
    %2861 = vmatpush1.msra.mxu0 %v2833
    %2862 = vmatprep.subr.mxu0 0.0
    %2863 = vmatpush1.msra.mxu0 %v2834
    %2864 = vmatprep.subr.mxu0 0.0
    %2865 = vmatpush1.msra.mxu0 %v2835
    %2866 = vmatprep.subr.mxu0 0.0
    %2867 = vmatpush1.msra.mxu0 %v2836
    %2868 = vmatprep.subr.mxu0 0.0
    %2869 = vmatpush1.msra.mxu0 %v2837
    %2870 = vmatprep.subr.mxu0 0.0
    %2871 = vmatpush1.msra.mxu0 0.0
    %2872 = vmatprep.subr.mxu0 0.0
    %2873 = vmatpush1.msra.mxu0 0.0
    %2874 = vmatprep.subr.mxu0 0.0
    %2875 = vmatpush1.msra.mxu0 0.0
    %2876 = vmatprep.subr.mxu0 0.0
    %2877 = vmatpush1.msra.mxu0 0.0
    %2878 = vmatprep.subr.mxu0 0.0
    %2879 = vmatpush1.msra.mxu0 0.0
    %2880 = vmatprep.subr.mxu0 0.0
    %2881 = vmatpush1.msra.mxu0 0.0
    %2882 = vmatprep.subr.mxu0 0.0
    %2883 = vmatpush1.msra.mxu0 0.0
    %2884 = vmatprep.subr.mxu0 0.0
    %2885 = vmatpush1.msra.mxu0 0.0
    %2886 = vmatprep.subr.mxu0 0.0
    %2887 = vmatpush1.msra.mxu0 0.0
    %2888 = vmatprep.subr.mxu0 0.0
    %2889 = vmatpush1.msra.mxu0 0.0
    %2890 = vmatprep.subr.mxu0 0.0
    %2891 = vmatpush1.msra.mxu0 0.0
    %2892 = vmatprep.subr.mxu0 0.0
    %2893 = vmatpush1.msra.mxu0 0.0
    %2894 = vmatprep.subr.mxu0 0.0
    %2895 = vmatpush1.msra.mxu0 0.0
    %2896 = vmatprep.subr.mxu0 0.0
    %2897 = vmatpush1.msra.mxu0 0.0
    %2898 = vmatprep.subr.mxu0 0.0
    %2899 = vmatpush1.msra.mxu0 0.0
    %2900 = vmatprep.subr.mxu0 0.0
    %2901 = vmatpush1.msra.mxu0 0.0
    %2902 = vmatprep.mubr.f32.mxu0 0.0
    %2903 = vmatmul.mubr.f32.gmra.mrb[0].mxu0 %v2587
    %v2904 = vpop.f32.mrb[0].mxu0
    %v2905 = vadd.f32 0.0, %v2904
    %v2906 = vpop.f32.mrb[0].mxu0
    %2907 = vdwg.mxu0
    %2908 = vmatprep.subr.mxu0 0.0
    %2909 = vmatpush1.msra.mxu0 %v2822
    %2910 = vmatprep.subr.mxu0 0.0
    %2911 = vmatpush1.msra.mxu0 %v2823
    %2912 = vmatprep.subr.mxu0 0.0
    %2913 = vmatpush1.msra.mxu0 %v2824
    %2914 = vmatprep.subr.mxu0 0.0
    %2915 = vmatpush1.msra.mxu0 %v2825
    %2916 = vmatprep.subr.mxu0 0.0
    %2917 = vmatpush1.msra.mxu0 %v2826
    %2918 = vmatprep.subr.mxu0 0.0
    %2919 = vmatpush1.msra.mxu0 %v2827
    %2920 = vmatprep.subr.mxu0 0.0
    %2921 = vmatpush1.msra.mxu0 %v2828
    %2922 = vmatprep.subr.mxu0 0.0
    %2923 = vmatpush1.msra.mxu0 %v2829
    %2924 = vmatprep.subr.mxu0 0.0
    %2925 = vmatpush1.msra.mxu0 %v2830
    %2926 = vmatprep.subr.mxu0 0.0
    %2927 = vmatpush1.msra.mxu0 %v2831
    %2928 = vmatprep.subr.mxu0 0.0
    %2929 = vmatpush1.msra.mxu0 %v2832
    %2930 = vmatprep.subr.mxu0 0.0
    %2931 = vmatpush1.msra.mxu0 %v2833
    %2932 = vmatprep.subr.mxu0 0.0
    %2933 = vmatpush1.msra.mxu0 %v2834
    %2934 = vmatprep.subr.mxu0 0.0
    %2935 = vmatpush1.msra.mxu0 %v2835
    %2936 = vmatprep.subr.mxu0 0.0
    %2937 = vmatpush1.msra.mxu0 %v2836
    %2938 = vmatprep.subr.mxu0 0.0
    %2939 = vmatpush1.msra.mxu0 %v2837
    %2940 = vmatprep.subr.mxu0 0.0
    %2941 = vmatpush1.msra.mxu0 0.0
    %2942 = vmatprep.subr.mxu0 0.0
    %2943 = vmatpush1.msra.mxu0 0.0
    %2944 = vmatprep.subr.mxu0 0.0
    %2945 = vmatpush1.msra.mxu0 0.0
    %2946 = vmatprep.subr.mxu0 0.0
    %2947 = vmatpush1.msra.mxu0 0.0
    %2948 = vmatprep.subr.mxu0 0.0
    %2949 = vmatpush1.msra.mxu0 0.0
    %2950 = vmatprep.subr.mxu0 0.0
    %2951 = vmatpush1.msra.mxu0 0.0
    %2952 = vmatprep.subr.mxu0 0.0
    %2953 = vmatpush1.msra.mxu0 0.0
    %2954 = vmatprep.subr.mxu0 0.0
    %2955 = vmatpush1.msra.mxu0 0.0
    %2956 = vmatprep.subr.mxu0 0.0
    %2957 = vmatpush1.msra.mxu0 0.0
    %2958 = vmatprep.subr.mxu0 0.0
    %2959 = vmatpush1.msra.mxu0 0.0
    %2960 = vmatprep.subr.mxu0 0.0
    %2961 = vmatpush1.msra.mxu0 0.0
    %2962 = vmatprep.subr.mxu0 0.0
    %2963 = vmatpush1.msra.mxu0 0.0
    %2964 = vmatprep.subr.mxu0 0.0
    %2965 = vmatpush1.msra.mxu0 0.0
    %2966 = vmatprep.subr.mxu0 0.0
    %2967 = vmatpush1.msra.mxu0 0.0
    %2968 = vmatprep.subr.mxu0 0.0
    %2969 = vmatpush1.msra.mxu0 0.0
    %2970 = vmatprep.subr.mxu0 0.0
    %2971 = vmatpush1.msra.mxu0 0.0
    %2972 = vmatprep.mubr.f32.mxu0 0.0
    %2973 = vmatmul.mubr.f32.gmra.mrb[0].mxu0 %v2597
    %v2974 = vpop.f32.mrb[0].mxu0
    %v2975 = vadd.f32 0.0, %v2974
    %v2976 = vpop.f32.mrb[0].mxu0
    %2977 = vdwg.mxu0
    %v2978 = vmul.f32 %v2905, 0.0078125
    %v2979 = vmul.f32 %v2975, 0.0078125
    %v2980 = vmul.f32 %v2978, %v2978
    %v2981 = vsub.f32 %v2979, %v2980
    %v2982 = vmax.f32 %v2981, 0.0
    %v2983 = vld [vmem:[%s5] sm:$0x1]
    %v2984 = vadd.f32 %v2982, 1e-05
    %v2985 = vrsqrt.pop %v2984
    %v2986 = vmul.f32 %v2983, %v2985
    %v2987 = vld [vmem:[%s6] sm:$0x1]
    %v2988 = vmul.f32 %v2978, %v2986
    %v2989 = vsub.f32 %v2987, %v2988
    %vm2990 = vcmp.lt.s32.totalorder %v408, 0
    %v2991 = vsub.s32 0, %v408
    %v2992 = vsel %vm2990, %v2991, %v408
    %v2993 = vshrl.u32 %v2992, 4
    %v2994 = vand.u32 %v2992, 15
    %v2995 = vsub.s32 0, %v2994
    %v2996 = vsel %vm2990, %v2995, %v2994
    %vm2997 = vcmp.ne.s32.totalorder %v2996, 0
    %vm2998 = vcmp.lt.s32.totalorder %v2996, 0
    %vm2999 = vmand %vm2998, %vm2997
    %v3000 = vadd.s32 %v2996, 16
    %v3001 = vsel %vm2999, %v3000, %v2996
    %vm3002 = vcmp.eq.s32.totalorder %v3001, %v343
    %vm3003 = vcmp.eq.s32.totalorder %v3001, %v344
    %v3004 = vsel %vm3002, 1, 0
    %v3005 = vsel %vm3003, 1, 0
    %v3006 = vcvt.s32.f32 %v3004
    %v3007 = vcvt.s32.f32 %v3005
    %vm3008 = vcmask 130048
    %v3010 = vsel %vm3008, %v2986, 0
    %3012 = vmatprep.subr.mxu0 0.0
    %3013 = vmatpush1.msra.mxu0 %v3006
    %3014 = vmatprep.subr.mxu0 0.0
    %3015 = vmatpush1.msra.mxu0 %v3007
    %3016 = vmatprep.subr.mxu0 0.0
    %3017 = vmatpush1.msra.mxu0 0.0
    %3018 = vmatprep.subr.mxu0 0.0
    %3019 = vmatpush1.msra.mxu0 0.0
    %3020 = vmatprep.subr.mxu0 0.0
    %3021 = vmatpush1.msra.mxu0 0.0
    %3022 = vmatprep.subr.mxu0 0.0
    %3023 = vmatpush1.msra.mxu0 0.0
    %3024 = vmatprep.subr.mxu0 0.0
    %3025 = vmatpush1.msra.mxu0 0.0
    %3026 = vmatprep.subr.mxu0 0.0
    %3027 = vmatpush1.msra.mxu0 0.0
    %3028 = vmatprep.subr.mxu0 0.0
    %3029 = vmatpush1.msra.mxu0 0.0
    %3030 = vmatprep.subr.mxu0 0.0
    %3031 = vmatpush1.msra.mxu0 0.0
    %3032 = vmatprep.subr.mxu0 0.0
    %3033 = vmatpush1.msra.mxu0 0.0
    %3034 = vmatprep.subr.mxu0 0.0
    %3035 = vmatpush1.msra.mxu0 0.0
    %3036 = vmatprep.subr.mxu0 0.0
    %3037 = vmatpush1.msra.mxu0 0.0
    %3038 = vmatprep.subr.mxu0 0.0
    %3039 = vmatpush1.msra.mxu0 0.0
    %3040 = vmatprep.subr.mxu0 0.0
    %3041 = vmatpush1.msra.mxu0 0.0
    %3042 = vmatprep.subr.mxu0 0.0
    %3043 = vmatpush1.msra.mxu0 0.0
    %3044 = vmatprep.subr.mxu0 0.0
    %3045 = vmatpush1.msra.mxu0 0.0
    %3046 = vmatprep.subr.mxu0 0.0
    %3047 = vmatpush1.msra.mxu0 0.0
    %3048 = vmatprep.subr.mxu0 0.0
    %3049 = vmatpush1.msra.mxu0 0.0
    %3050 = vmatprep.subr.mxu0 0.0
    %3051 = vmatpush1.msra.mxu0 0.0
    %3052 = vmatprep.subr.mxu0 0.0
    %3053 = vmatpush1.msra.mxu0 0.0
    %3054 = vmatprep.subr.mxu0 0.0
    %3055 = vmatpush1.msra.mxu0 0.0
    %3056 = vmatprep.subr.mxu0 0.0
    %3057 = vmatpush1.msra.mxu0 0.0
    %3058 = vmatprep.subr.mxu0 0.0
    %3059 = vmatpush1.msra.mxu0 0.0
    %3060 = vmatprep.subr.mxu0 0.0
    %3061 = vmatpush1.msra.mxu0 0.0
    %3062 = vmatprep.subr.mxu0 0.0
    %3063 = vmatpush1.msra.mxu0 0.0
    %3064 = vmatprep.subr.mxu0 0.0
    %3065 = vmatpush1.msra.mxu0 0.0
    %3066 = vmatprep.subr.mxu0 0.0
    %3067 = vmatpush1.msra.mxu0 0.0
    %3068 = vmatprep.subr.mxu0 0.0
    %3069 = vmatpush1.msra.mxu0 0.0
    %3070 = vmatprep.subr.mxu0 0.0
    %3071 = vmatpush1.msra.mxu0 0.0
    %3072 = vmatprep.subr.mxu0 0.0
    %3073 = vmatpush1.msra.mxu0 0.0
    %3074 = vmatprep.subr.mxu0 0.0
    %3075 = vmatpush1.msra.mxu0 0.0
    %3076 = vmatprep.mubr.f32.mxu0 0.0
    %3077 = vmatmul.mubr.f32.gmra.mrb[0].mxu0 %v3010
    %v3078 = vpop.f32.mrb[0].mxu0
    %v3079 = vadd.f32 0.0, %v3078
    %v3080 = vpop.f32.mrb[0].mxu0
    %3081 = vdwg.mxu0
    %v3083 = vsel %vm3008, %v2989, 0
    %3085 = vmatprep.subr.mxu0 0.0
    %3086 = vmatpush1.msra.mxu0 %v3006
    %3087 = vmatprep.subr.mxu0 0.0
    %3088 = vmatpush1.msra.mxu0 %v3007
    %3089 = vmatprep.subr.mxu0 0.0
    %3090 = vmatpush1.msra.mxu0 0.0
    %3091 = vmatprep.subr.mxu0 0.0
    %3092 = vmatpush1.msra.mxu0 0.0
    %3093 = vmatprep.subr.mxu0 0.0
    %3094 = vmatpush1.msra.mxu0 0.0
    %3095 = vmatprep.subr.mxu0 0.0
    %3096 = vmatpush1.msra.mxu0 0.0
    %3097 = vmatprep.subr.mxu0 0.0
    %3098 = vmatpush1.msra.mxu0 0.0
    %3099 = vmatprep.subr.mxu0 0.0
    %3100 = vmatpush1.msra.mxu0 0.0
    %3101 = vmatprep.subr.mxu0 0.0
    %3102 = vmatpush1.msra.mxu0 0.0
    %3103 = vmatprep.subr.mxu0 0.0
    %3104 = vmatpush1.msra.mxu0 0.0
    %3105 = vmatprep.subr.mxu0 0.0
    %3106 = vmatpush1.msra.mxu0 0.0
    %3107 = vmatprep.subr.mxu0 0.0
    %3108 = vmatpush1.msra.mxu0 0.0
    %3109 = vmatprep.subr.mxu0 0.0
    %3110 = vmatpush1.msra.mxu0 0.0
    %3111 = vmatprep.subr.mxu0 0.0
    %3112 = vmatpush1.msra.mxu0 0.0
    %3113 = vmatprep.subr.mxu0 0.0
    %3114 = vmatpush1.msra.mxu0 0.0
    %3115 = vmatprep.subr.mxu0 0.0
    %3116 = vmatpush1.msra.mxu0 0.0
    %3117 = vmatprep.subr.mxu0 0.0
    %3118 = vmatpush1.msra.mxu0 0.0
    %3119 = vmatprep.subr.mxu0 0.0
    %3120 = vmatpush1.msra.mxu0 0.0
    %3121 = vmatprep.subr.mxu0 0.0
    %3122 = vmatpush1.msra.mxu0 0.0
    %3123 = vmatprep.subr.mxu0 0.0
    %3124 = vmatpush1.msra.mxu0 0.0
    %3125 = vmatprep.subr.mxu0 0.0
    %3126 = vmatpush1.msra.mxu0 0.0
    %3127 = vmatprep.subr.mxu0 0.0
    %3128 = vmatpush1.msra.mxu0 0.0
    %3129 = vmatprep.subr.mxu0 0.0
    %3130 = vmatpush1.msra.mxu0 0.0
    %3131 = vmatprep.subr.mxu0 0.0
    %3132 = vmatpush1.msra.mxu0 0.0
    %3133 = vmatprep.subr.mxu0 0.0
    %3134 = vmatpush1.msra.mxu0 0.0
    %3135 = vmatprep.subr.mxu0 0.0
    %3136 = vmatpush1.msra.mxu0 0.0
    %3137 = vmatprep.subr.mxu0 0.0
    %3138 = vmatpush1.msra.mxu0 0.0
    %3139 = vmatprep.subr.mxu0 0.0
    %3140 = vmatpush1.msra.mxu0 0.0
    %3141 = vmatprep.subr.mxu0 0.0
    %3142 = vmatpush1.msra.mxu0 0.0
    %3143 = vmatprep.subr.mxu0 0.0
    %3144 = vmatpush1.msra.mxu0 0.0
    %3145 = vmatprep.subr.mxu0 0.0
    %3146 = vmatpush1.msra.mxu0 0.0
    %3147 = vmatprep.subr.mxu0 0.0
    %3148 = vmatpush1.msra.mxu0 0.0
    %3149 = vmatprep.mubr.f32.mxu0 0.0
    %3150 = vmatmul.mubr.f32.gmra.mrb[0].mxu0 %v3083
    %v3151 = vpop.f32.mrb[0].mxu0
    %v3152 = vadd.f32 0.0, %v3151
    %v3153 = vpop.f32.mrb[0].mxu0
    %3154 = vdwg.mxu0
    %v3155 = vlaneseq
    %v3156 = vshrl.u32 %v3155, 7
    %v3157 = vsub.s32 0, %v3156
    %v3158 = vrot.slane %v3079, %v3157
    %v3159 = vmul.f32 %v2380, %v3158
    %v3160 = vlaneseq
    %v3161 = vshrl.u32 %v3160, 7
    %v3162 = vsub.s32 0, %v3161
    %v3163 = vrot.slane %v3152, %v3162
    %v3164 = vadd.f32 %v3159, %v3163
    %v3165 = vmax.f32 %v3164, 0.0
    %v3166 = vmul.f32 %v2558, %v3158
    %v3167 = vadd.f32 %v3166, %v3163
    %v3168 = vmax.f32 %v3167, 0.0
    %3169 = vst [vmem:[#allocation3 + $0x1] sm:$0x1] %v3165
    %3170 = vst [vmem:[#allocation3 + $0x2] sm:$0x1] %v3168
    %3171 = vst [vmem:[#allocation3 + $0x2] sm:$0x2] %v3165
    %3172 = vst [vmem:[#allocation3 + $0x3] sm:$0x2] %v3168
    %3173 = vst [vmem:[#allocation3 + $0x3] sm:$0x4] %v3165
    %3174 = vst [vmem:[#allocation3 + $0x4] sm:$0x4] %v3168
    %3175 = vst [vmem:[#allocation3 + $0x4] sm:$0x8] %v3165
    %3176 = vst [vmem:[#allocation3 + $0x5] sm:$0x8] %v3168
    %3177 = vst [vmem:[#allocation3 + $0x5] sm:$0x10] %v3165
    %3178 = vst [vmem:[#allocation3 + $0x6] sm:$0x10] %v3168
    %3179 = vst [vmem:[#allocation3 + $0x6] sm:$0x20] %v3165
    %3180 = vst [vmem:[#allocation3 + $0x7] sm:$0x20] %v3168
    %3181 = vst [vmem:[#allocation3 + $0x7] sm:$0x40] %v3165
    %3182 = vst [vmem:[#allocation3 + $0x8] sm:$0x40] %v3168
    %3183 = vst [vmem:[#allocation3 + $0x8] sm:$0x80] %v3165
    %3184 = vst [vmem:[#allocation3 + $0x9] sm:$0x80] %v3168
    %vm3185 = vcmp.lt.s32.totalorder %v343, 0
    %v3186 = vsub.s32 0, %v343
    %v3187 = vsel %vm3185, %v3186, %v343
    %v3188 = vshrl.u32 %v3187, 3
    %v3189 = vand.u32 %v3187, 7
    %v3190 = vsub.s32 0, %v3189
    %v3191 = vsel %vm3185, %v3190, %v3189
    %vm3192 = vcmp.lt.s32.totalorder %v344, 0
    %v3193 = vsub.s32 0, %v344
    %v3194 = vsel %vm3192, %v3193, %v344
    %v3195 = vshrl.u32 %v3194, 3
    %v3196 = vand.u32 %v3194, 7
    %v3197 = vsub.s32 0, %v3196
    %v3198 = vsel %vm3192, %v3197, %v3196
    %vm3199 = vcmp.ne.s32.totalorder %v3191, 0
    %vm3200 = vcmp.ne.s32.totalorder %v3198, 0
    %vm3201 = vcmp.lt.s32.totalorder %v3191, 0
    %vm3202 = vcmp.lt.s32.totalorder %v3198, 0
    %vm3203 = vmand %vm3201, %vm3199
    %vm3204 = vmand %vm3202, %vm3200
    %v3205 = vadd.s32 %v3191, 8
    %v3206 = vadd.s32 %v3198, 8
    %v3207 = vsel %vm3203, %v3205, %v3191
    %v3208 = vsel %vm3204, %v3206, %v3198
    %v3209 = vld [vmem:[#allocation3] sm:$0xff]
    %v3210 = vld [vmem:[#allocation3 + $0x8] sm:$0xff]
    %vm3211 = vcmp.ge.s32.totalorder %v3207, 1
    %vm3212 = vcmp.ge.s32.totalorder %v3208, 1
    %v3213 = vsel %vm3211, %v3209, 0.0
    %v3214 = vsel %vm3212, %v3210, 0.0
    %v3215 = vpack.c.bf16 %v3214, %v3213
    %v3216 = vld [vmem:[#allocation3 + $0x1] sm:$0xff]
    %v3217 = vld [vmem:[#allocation3 + $0x9] sm:$0xff]
    %v3218 = vpack.c.bf16 %v3217, %v3216
    %v3219 = vld [vmem:[#allocation3 + $0x2] sm:$0xff]
    %v3220 = vld [vmem:[#allocation3 + $0xa] sm:$0xff]
    %vm3221 = vcmp.le.s32.totalorder %v3207, 6
    %vm3222 = vcmp.le.s32.totalorder %v3208, 6
    %v3223 = vsel %vm3221, %v3219, 0.0
    %v3224 = vsel %vm3222, %v3220, 0.0
    %v3225 = vpack.c.bf16 %v3224, %v3223
    %v3226 = vld [vmem:[#allocation9] sm:$0xf]
    %v3227 = vld [vmem:[#allocation9 + $0x4] sm:$0xf]
    %v3228 = vld [vmem:[#allocation9 + $0x8] sm:$0xf]
    %v3229 = vld [vmem:[#allocation9 + $0xc] sm:$0xf]
    %v3230 = vld [vmem:[#allocation9 + $0x10] sm:$0xf]
    %v3231 = vld [vmem:[#allocation9 + $0x14] sm:$0xf]
    %v3232 = vld [vmem:[#allocation9 + $0x18] sm:$0xf]
    %v3233 = vld [vmem:[#allocation9 + $0x1c] sm:$0xf]
    %v3234 = vld [vmem:[#allocation9 + $0x20] sm:$0xf]
    %v3235 = vld [vmem:[#allocation9 + $0x24] sm:$0xf]
    %v3236 = vld [vmem:[#allocation9 + $0x28] sm:$0xf]
    %v3237 = vld [vmem:[#allocation9 + $0x2c] sm:$0xf]
    %v3238 = vld [vmem:[#allocation9 + $0x30] sm:$0xf]
    %v3239 = vld [vmem:[#allocation9 + $0x34] sm:$0xf]
    %v3240 = vld [vmem:[#allocation9 + $0x38] sm:$0xf]
    %v3241 = vld [vmem:[#allocation9 + $0x3c] sm:$0xf]
    %v3242 = vld [vmem:[#allocation9 + $0x40] sm:$0xf]
    %v3243 = vld [vmem:[#allocation9 + $0x44] sm:$0xf]
    %v3244 = vld [vmem:[#allocation9 + $0x48] sm:$0xf]
    %v3245 = vld [vmem:[#allocation9 + $0x4c] sm:$0xf]
    %v3246 = vld [vmem:[#allocation9 + $0x50] sm:$0xf]
    %v3247 = vld [vmem:[#allocation9 + $0x54] sm:$0xf]
    %v3248 = vld [vmem:[#allocation9 + $0x58] sm:$0xf]
    %v3249 = vld [vmem:[#allocation9 + $0x5c] sm:$0xf]
    %v3250 = vld [vmem:[#allocation9 + $0x60] sm:$0xf]
    %v3251 = vld [vmem:[#allocation9 + $0x64] sm:$0xf]
    %v3252 = vld [vmem:[#allocation9 + $0x68] sm:$0xf]
    %v3253 = vld [vmem:[#allocation9 + $0x6c] sm:$0xf]
    %v3254 = vld [vmem:[#allocation9 + $0x70] sm:$0xf]
    %v3255 = vld [vmem:[#allocation9 + $0x74] sm:$0xf]
    %v3256 = vld [vmem:[#allocation9 + $0x78] sm:$0xf]
    %v3257 = vld [vmem:[#allocation9 + $0x7c] sm:$0xf]
    %v3258 = vld [vmem:[#allocation9 + $0x80] sm:$0xf]
    %v3259 = vld [vmem:[#allocation9 + $0x84] sm:$0xf]
    %v3260 = vld [vmem:[#allocation9 + $0x88] sm:$0xf]
    %v3261 = vld [vmem:[#allocation9 + $0x8c] sm:$0xf]
    %v3262 = vld [vmem:[#allocation9 + $0x90] sm:$0xf]
    %v3263 = vld [vmem:[#allocation9 + $0x94] sm:$0xf]
    %v3264 = vld [vmem:[#allocation9 + $0x98] sm:$0xf]
    %v3265 = vld [vmem:[#allocation9 + $0x9c] sm:$0xf]
    %v3266 = vld [vmem:[#allocation9 + $0xa0] sm:$0xf]
    %v3267 = vld [vmem:[#allocation9 + $0xa4] sm:$0xf]
    %v3268 = vld [vmem:[#allocation9 + $0xa8] sm:$0xf]
    %v3269 = vld [vmem:[#allocation9 + $0xac] sm:$0xf]
    %v3270 = vld [vmem:[#allocation9 + $0xb0] sm:$0xf]
    %v3271 = vld [vmem:[#allocation9 + $0xb4] sm:$0xf]
    %v3272 = vld [vmem:[#allocation9 + $0xb8] sm:$0xf]
    %v3273 = vld [vmem:[#allocation9 + $0xbc] sm:$0xf]
    %v3274 = vld [vmem:[#allocation9 + $0xc0] sm:$0xf]
    %v3275 = vld [vmem:[#allocation9 + $0xc4] sm:$0xf]
    %v3276 = vld [vmem:[#allocation9 + $0xc8] sm:$0xf]
    %v3277 = vld [vmem:[#allocation9 + $0xcc] sm:$0xf]
    %v3278 = vld [vmem:[#allocation9 + $0xd0] sm:$0xf]
    %v3279 = vld [vmem:[#allocation9 + $0xd4] sm:$0xf]
    %v3280 = vld [vmem:[#allocation9 + $0xd8] sm:$0xf]
    %v3281 = vld [vmem:[#allocation9 + $0xdc] sm:$0xf]
    %v3282 = vld [vmem:[#allocation9 + $0xe0] sm:$0xf]
    %v3283 = vld [vmem:[#allocation9 + $0xe4] sm:$0xf]
    %v3284 = vld [vmem:[#allocation9 + $0xe8] sm:$0xf]
    %v3285 = vld [vmem:[#allocation9 + $0xec] sm:$0xf]
    %v3286 = vld [vmem:[#allocation9 + $0xf0] sm:$0xf]
    %v3287 = vld [vmem:[#allocation9 + $0xf4] sm:$0xf]
    %v3288 = vld [vmem:[#allocation9 + $0xf8] sm:$0xf]
    %v3289 = vld [vmem:[#allocation9 + $0xfc] sm:$0xf]
    %v3306 = vunpack.c.l.b16 %v3242
    %v3307 = vunpack.c.l.b16 %v3243
    %v3308 = vunpack.c.l.b16 %v3244
    %v3309 = vunpack.c.l.b16 %v3245
    %v3310 = vunpack.c.l.b16 %v3246
    %v3311 = vunpack.c.l.b16 %v3247
    %v3312 = vunpack.c.l.b16 %v3248
    %v3313 = vunpack.c.l.b16 %v3249
    %v3314 = vunpack.c.l.b16 %v3250
    %v3315 = vunpack.c.l.b16 %v3251
    %v3316 = vunpack.c.l.b16 %v3252
    %v3317 = vunpack.c.l.b16 %v3253
    %v3318 = vunpack.c.l.b16 %v3254
    %v3319 = vunpack.c.l.b16 %v3255
    %v3320 = vunpack.c.l.b16 %v3256
    %v3321 = vunpack.c.l.b16 %v3257
    %v3322 = vpack.c.b16 %v3307, %v3306
    %v3323 = vpack.c.b16 %v3309, %v3308
    %v3324 = vpack.c.b16 %v3311, %v3310
    %v3325 = vpack.c.b16 %v3313, %v3312
    %v3326 = vpack.c.b16 %v3315, %v3314
    %v3327 = vpack.c.b16 %v3317, %v3316
    %v3328 = vpack.c.b16 %v3319, %v3318
    %v3329 = vpack.c.b16 %v3321, %v3320
    %3338 = vmatprep.subr.bf16.mxu0 0
    %3339 = vmatpush1.bf16.msra.mxu0 %v3322
    %3340 = vmatprep.subr.bf16.mxu0 0
    %3341 = vmatpush1.bf16.msra.mxu0 %v3323
    %3342 = vmatprep.subr.bf16.mxu0 0
    %3343 = vmatpush1.bf16.msra.mxu0 %v3324
    %3344 = vmatprep.subr.bf16.mxu0 0
    %3345 = vmatpush1.bf16.msra.mxu0 %v3325
    %3346 = vmatprep.subr.bf16.mxu0 0
    %3347 = vmatpush1.bf16.msra.mxu0 %v3326
    %3348 = vmatprep.subr.bf16.mxu0 0
    %3349 = vmatpush1.bf16.msra.mxu0 %v3327
    %3350 = vmatprep.subr.bf16.mxu0 0
    %3351 = vmatpush1.bf16.msra.mxu0 %v3328
    %3352 = vmatprep.subr.bf16.mxu0 0
    %3353 = vmatpush1.bf16.msra.mxu0 %v3329
    %3354 = vmatprep.subr.bf16.mxu0 0
    %3355 = vmatpush1.bf16.msra.mxu0 0
    %3356 = vmatprep.subr.bf16.mxu0 0
    %3357 = vmatpush1.bf16.msra.mxu0 0
    %3358 = vmatprep.subr.bf16.mxu0 0
    %3359 = vmatpush1.bf16.msra.mxu0 0
    %3360 = vmatprep.subr.bf16.mxu0 0
    %3361 = vmatpush1.bf16.msra.mxu0 0
    %3362 = vmatprep.subr.bf16.mxu0 0
    %3363 = vmatpush1.bf16.msra.mxu0 0
    %3364 = vmatprep.subr.bf16.mxu0 0
    %3365 = vmatpush1.bf16.msra.mxu0 0
    %3366 = vmatprep.subr.bf16.mxu0 0
    %3367 = vmatpush1.bf16.msra.mxu0 0
    %3368 = vmatprep.subr.bf16.mxu0 0
    %3369 = vmatpush1.bf16.msra.mxu0 0
    %3370 = vmatprep.mubr.bf16.mxu0 0
    %3371 = vmatmul.mubr.bf16.gmra.mrb[0].mxu0 %v3218
    %v3372 = vpop.f32.mrb[0].mxu0
    %v3373 = vadd.f32 0.0, %v3372
    %v3374 = vpop.f32.mrb[0].mxu0
    %v3375 = vpop.f32.mrb[0].mxu0
    %v3376 = vadd.f32 0.0, %v3375
    %v3377 = vpop.f32.mrb[0].mxu0
    %3378 = vdwg.mxu0
    %v3395 = vunpack.c.l.b16 %v3226
    %v3396 = vunpack.c.l.b16 %v3227
    %v3397 = vunpack.c.l.b16 %v3228
    %v3398 = vunpack.c.l.b16 %v3229
    %v3399 = vunpack.c.l.b16 %v3230
    %v3400 = vunpack.c.l.b16 %v3231
    %v3401 = vunpack.c.l.b16 %v3232
    %v3402 = vunpack.c.l.b16 %v3233
    %v3403 = vunpack.c.l.b16 %v3234
    %v3404 = vunpack.c.l.b16 %v3235
    %v3405 = vunpack.c.l.b16 %v3236
    %v3406 = vunpack.c.l.b16 %v3237
    %v3407 = vunpack.c.l.b16 %v3238
    %v3408 = vunpack.c.l.b16 %v3239
    %v3409 = vunpack.c.l.b16 %v3240
    %v3410 = vunpack.c.l.b16 %v3241
    %v3411 = vpack.c.b16 %v3396, %v3395
    %v3412 = vpack.c.b16 %v3398, %v3397
    %v3413 = vpack.c.b16 %v3400, %v3399
    %v3414 = vpack.c.b16 %v3402, %v3401
    %v3415 = vpack.c.b16 %v3404, %v3403
    %v3416 = vpack.c.b16 %v3406, %v3405
    %v3417 = vpack.c.b16 %v3408, %v3407
    %v3418 = vpack.c.b16 %v3410, %v3409
    %3427 = vmatprep.subr.bf16.mxu0 0
    %3428 = vmatpush1.bf16.msra.mxu0 %v3411
    %3429 = vmatprep.subr.bf16.mxu0 0
    %3430 = vmatpush1.bf16.msra.mxu0 %v3412
    %3431 = vmatprep.subr.bf16.mxu0 0
    %3432 = vmatpush1.bf16.msra.mxu0 %v3413
    %3433 = vmatprep.subr.bf16.mxu0 0
    %3434 = vmatpush1.bf16.msra.mxu0 %v3414
    %3435 = vmatprep.subr.bf16.mxu0 0
    %3436 = vmatpush1.bf16.msra.mxu0 %v3415
    %3437 = vmatprep.subr.bf16.mxu0 0
    %3438 = vmatpush1.bf16.msra.mxu0 %v3416
    %3439 = vmatprep.subr.bf16.mxu0 0
    %3440 = vmatpush1.bf16.msra.mxu0 %v3417
    %3441 = vmatprep.subr.bf16.mxu0 0
    %3442 = vmatpush1.bf16.msra.mxu0 %v3418
    %3443 = vmatprep.subr.bf16.mxu0 0
    %3444 = vmatpush1.bf16.msra.mxu0 0
    %3445 = vmatprep.subr.bf16.mxu0 0
    %3446 = vmatpush1.bf16.msra.mxu0 0
    %3447 = vmatprep.subr.bf16.mxu0 0
    %3448 = vmatpush1.bf16.msra.mxu0 0
    %3449 = vmatprep.subr.bf16.mxu0 0
    %3450 = vmatpush1.bf16.msra.mxu0 0
    %3451 = vmatprep.subr.bf16.mxu0 0
    %3452 = vmatpush1.bf16.msra.mxu0 0
    %3453 = vmatprep.subr.bf16.mxu0 0
    %3454 = vmatpush1.bf16.msra.mxu0 0
    %3455 = vmatprep.subr.bf16.mxu0 0
    %3456 = vmatpush1.bf16.msra.mxu0 0
    %3457 = vmatprep.subr.bf16.mxu0 0
    %3458 = vmatpush1.bf16.msra.mxu0 0
    %3459 = vmatprep.mubr.bf16.mxu0 0
    %3460 = vmatmul.mubr.bf16.gmra.mrb[0].mxu0 %v3215
    %v3461 = vpop.f32.mrb[0].mxu0
    %v3462 = vadd.f32 %v3373, %v3461
    %v3463 = vpop.f32.mrb[0].mxu0
    %v3464 = vpop.f32.mrb[0].mxu0
    %v3465 = vadd.f32 %v3376, %v3464
    %v3466 = vpop.f32.mrb[0].mxu0
    %3467 = vdwg.mxu0
    %v3484 = vunpack.c.l.b16 %v3274
    %v3485 = vunpack.c.l.b16 %v3275
    %v3486 = vunpack.c.l.b16 %v3276
    %v3487 = vunpack.c.l.b16 %v3277
    %v3488 = vunpack.c.l.b16 %v3278
    %v3489 = vunpack.c.l.b16 %v3279
    %v3490 = vunpack.c.l.b16 %v3280
    %v3491 = vunpack.c.l.b16 %v3281
    %v3492 = vunpack.c.l.b16 %v3282
    %v3493 = vunpack.c.l.b16 %v3283
    %v3494 = vunpack.c.l.b16 %v3284
    %v3495 = vunpack.c.l.b16 %v3285
    %v3496 = vunpack.c.l.b16 %v3286
    %v3497 = vunpack.c.l.b16 %v3287
    %v3498 = vunpack.c.l.b16 %v3288
    %v3499 = vunpack.c.l.b16 %v3289
    %v3500 = vpack.c.b16 %v3485, %v3484
    %v3501 = vpack.c.b16 %v3487, %v3486
    %v3502 = vpack.c.b16 %v3489, %v3488
    %v3503 = vpack.c.b16 %v3491, %v3490
    %v3504 = vpack.c.b16 %v3493, %v3492
    %v3505 = vpack.c.b16 %v3495, %v3494
    %v3506 = vpack.c.b16 %v3497, %v3496
    %v3507 = vpack.c.b16 %v3499, %v3498
    %3516 = vmatprep.subr.bf16.mxu0 0
    %3517 = vmatpush1.bf16.msra.mxu0 %v3500
    %3518 = vmatprep.subr.bf16.mxu0 0
    %3519 = vmatpush1.bf16.msra.mxu0 %v3501
    %3520 = vmatprep.subr.bf16.mxu0 0
    %3521 = vmatpush1.bf16.msra.mxu0 %v3502
    %3522 = vmatprep.subr.bf16.mxu0 0
    %3523 = vmatpush1.bf16.msra.mxu0 %v3503
    %3524 = vmatprep.subr.bf16.mxu0 0
    %3525 = vmatpush1.bf16.msra.mxu0 %v3504
    %3526 = vmatprep.subr.bf16.mxu0 0
    %3527 = vmatpush1.bf16.msra.mxu0 %v3505
    %3528 = vmatprep.subr.bf16.mxu0 0
    %3529 = vmatpush1.bf16.msra.mxu0 %v3506
    %3530 = vmatprep.subr.bf16.mxu0 0
    %3531 = vmatpush1.bf16.msra.mxu0 %v3507
    %3532 = vmatprep.subr.bf16.mxu0 0
    %3533 = vmatpush1.bf16.msra.mxu0 0
    %3534 = vmatprep.subr.bf16.mxu0 0
    %3535 = vmatpush1.bf16.msra.mxu0 0
    %3536 = vmatprep.subr.bf16.mxu0 0
    %3537 = vmatpush1.bf16.msra.mxu0 0
    %3538 = vmatprep.subr.bf16.mxu0 0
    %3539 = vmatpush1.bf16.msra.mxu0 0
    %3540 = vmatprep.subr.bf16.mxu0 0
    %3541 = vmatpush1.bf16.msra.mxu0 0
    %3542 = vmatprep.subr.bf16.mxu0 0
    %3543 = vmatpush1.bf16.msra.mxu0 0
    %3544 = vmatprep.subr.bf16.mxu0 0
    %3545 = vmatpush1.bf16.msra.mxu0 0
    %3546 = vmatprep.subr.bf16.mxu0 0
    %3547 = vmatpush1.bf16.msra.mxu0 0
    %3548 = vmatprep.mubr.bf16.mxu0 0
    %3549 = vmatmul.mubr.bf16.gmra.mrb[0].mxu0 %v3225
    %v3550 = vpop.f32.mrb[0].mxu0
    %v3551 = vadd.f32 0.0, %v3550
    %v3552 = vpop.f32.mrb[0].mxu0
    %v3553 = vpop.f32.mrb[0].mxu0
    %v3554 = vadd.f32 0.0, %v3553
    %v3555 = vpop.f32.mrb[0].mxu0
    %3556 = vdwg.mxu0
    %v3573 = vunpack.c.l.b16 %v3258
    %v3574 = vunpack.c.l.b16 %v3259
    %v3575 = vunpack.c.l.b16 %v3260
    %v3576 = vunpack.c.l.b16 %v3261
    %v3577 = vunpack.c.l.b16 %v3262
    %v3578 = vunpack.c.l.b16 %v3263
    %v3579 = vunpack.c.l.b16 %v3264
    %v3580 = vunpack.c.l.b16 %v3265
    %v3581 = vunpack.c.l.b16 %v3266
    %v3582 = vunpack.c.l.b16 %v3267
    %v3583 = vunpack.c.l.b16 %v3268
    %v3584 = vunpack.c.l.b16 %v3269
    %v3585 = vunpack.c.l.b16 %v3270
    %v3586 = vunpack.c.l.b16 %v3271
    %v3587 = vunpack.c.l.b16 %v3272
    %v3588 = vunpack.c.l.b16 %v3273
    %v3589 = vpack.c.b16 %v3574, %v3573
    %v3590 = vpack.c.b16 %v3576, %v3575
    %v3591 = vpack.c.b16 %v3578, %v3577
    %v3592 = vpack.c.b16 %v3580, %v3579
    %v3593 = vpack.c.b16 %v3582, %v3581
    %v3594 = vpack.c.b16 %v3584, %v3583
    %v3595 = vpack.c.b16 %v3586, %v3585
    %v3596 = vpack.c.b16 %v3588, %v3587
    %3605 = vmatprep.subr.bf16.mxu0 0
    %3606 = vmatpush1.bf16.msra.mxu0 %v3589
    %3607 = vmatprep.subr.bf16.mxu0 0
    %3608 = vmatpush1.bf16.msra.mxu0 %v3590
    %3609 = vmatprep.subr.bf16.mxu0 0
    %3610 = vmatpush1.bf16.msra.mxu0 %v3591
    %3611 = vmatprep.subr.bf16.mxu0 0
    %3612 = vmatpush1.bf16.msra.mxu0 %v3592
    %3613 = vmatprep.subr.bf16.mxu0 0
    %3614 = vmatpush1.bf16.msra.mxu0 %v3593
    %3615 = vmatprep.subr.bf16.mxu0 0
    %3616 = vmatpush1.bf16.msra.mxu0 %v3594
    %3617 = vmatprep.subr.bf16.mxu0 0
    %3618 = vmatpush1.bf16.msra.mxu0 %v3595
    %3619 = vmatprep.subr.bf16.mxu0 0
    %3620 = vmatpush1.bf16.msra.mxu0 %v3596
    %3621 = vmatprep.subr.bf16.mxu0 0
    %3622 = vmatpush1.bf16.msra.mxu0 0
    %3623 = vmatprep.subr.bf16.mxu0 0
    %3624 = vmatpush1.bf16.msra.mxu0 0
    %3625 = vmatprep.subr.bf16.mxu0 0
    %3626 = vmatpush1.bf16.msra.mxu0 0
    %3627 = vmatprep.subr.bf16.mxu0 0
    %3628 = vmatpush1.bf16.msra.mxu0 0
    %3629 = vmatprep.subr.bf16.mxu0 0
    %3630 = vmatpush1.bf16.msra.mxu0 0
    %3631 = vmatprep.subr.bf16.mxu0 0
    %3632 = vmatpush1.bf16.msra.mxu0 0
    %3633 = vmatprep.subr.bf16.mxu0 0
    %3634 = vmatpush1.bf16.msra.mxu0 0
    %3635 = vmatprep.subr.bf16.mxu0 0
    %3636 = vmatpush1.bf16.msra.mxu0 0
    %3637 = vmatprep.mubr.bf16.mxu0 0
    %3638 = vmatmul.mubr.bf16.gmra.mrb[0].mxu0 %v3218
    %v3639 = vpop.f32.mrb[0].mxu0
    %v3640 = vadd.f32 %v3551, %v3639
    %v3641 = vpop.f32.mrb[0].mxu0
    %v3642 = vpop.f32.mrb[0].mxu0
    %v3643 = vadd.f32 %v3554, %v3642
    %v3644 = vpop.f32.mrb[0].mxu0
    %3645 = vdwg.mxu0
    %v3646 = vadd.f32 %v3462, %v3465
    %v3647 = vrot.slane %v3646, 4
    %v3648 = vadd.f32 %v3646, %v3647
    %v3649 = vrot.slane %v3648, 2
    %v3650 = vadd.f32 %v3648, %v3649
    %v3651 = vrot.slane %v3650, 1
    %v3652 = vadd.f32 %v3650, %v3651
    %v3653 = vmul.f32 %v3462, %v3462
    %v3654 = vmul.f32 %v3465, %v3465
    %v3655 = vadd.f32 %v3653, %v3654
    %v3656 = vrot.slane %v3655, 4
    %v3657 = vadd.f32 %v3655, %v3656
    %v3658 = vrot.slane %v3657, 2
    %v3659 = vadd.f32 %v3657, %v3658
    %v3660 = vrot.slane %v3659, 1
    %v3661 = vadd.f32 %v3659, %v3660
    %v3662 = vadd.f32 %v3640, %v3643
    %v3663 = vrot.slane %v3662, 4
    %v3664 = vadd.f32 %v3662, %v3663
    %v3665 = vrot.slane %v3664, 2
    %v3666 = vadd.f32 %v3664, %v3665
    %v3667 = vrot.slane %v3666, 1
    %v3668 = vadd.f32 %v3666, %v3667
    %v3669 = vadd.f32 %v3652, %v3668
    %v3670 = vmul.f32 %v3640, %v3640
    %v3671 = vmul.f32 %v3643, %v3643
    %v3672 = vadd.f32 %v3670, %v3671
    %v3673 = vrot.slane %v3672, 4
    %v3674 = vadd.f32 %v3672, %v3673
    %v3675 = vrot.slane %v3674, 2
    %v3676 = vadd.f32 %v3674, %v3675
    %v3677 = vrot.slane %v3676, 1
    %v3678 = vadd.f32 %v3676, %v3677
    %v3679 = vadd.f32 %v3661, %v3678
    %vm3680 = vcmp.lt.s32.totalorder %v345, 0
    %v3681 = vsub.s32 0, %v345
    %v3682 = vsel %vm3680, %v3681, %v345
    %v3683 = vshrl.u32 %v3682, 3
    %v3684 = vand.u32 %v3682, 7
    %v3685 = vsub.s32 0, %v3684
    %v3686 = vsel %vm3680, %v3685, %v3684
    %vm3687 = vcmp.lt.s32.totalorder %v346, 0
    %v3688 = vsub.s32 0, %v346
    %v3689 = vsel %vm3687, %v3688, %v346
    %v3690 = vshrl.u32 %v3689, 3
    %v3691 = vand.u32 %v3689, 7
    %v3692 = vsub.s32 0, %v3691
    %v3693 = vsel %vm3687, %v3692, %v3691
    %vm3694 = vcmp.lt.s32.totalorder %v347, 0
    %v3695 = vsub.s32 0, %v347
    %v3696 = vsel %vm3694, %v3695, %v347
    %v3697 = vshrl.u32 %v3696, 3
    %v3698 = vand.u32 %v3696, 7
    %v3699 = vsub.s32 0, %v3698
    %v3700 = vsel %vm3694, %v3699, %v3698
    %vm3701 = vcmp.lt.s32.totalorder %v348, 0
    %v3702 = vsub.s32 0, %v348
    %v3703 = vsel %vm3701, %v3702, %v348
    %v3704 = vshrl.u32 %v3703, 3
    %v3705 = vand.u32 %v3703, 7
    %v3706 = vsub.s32 0, %v3705
    %v3707 = vsel %vm3701, %v3706, %v3705
    %vm3708 = vcmp.lt.s32.totalorder %v349, 0
    %v3709 = vsub.s32 0, %v349
    %v3710 = vsel %vm3708, %v3709, %v349
    %v3711 = vshrl.u32 %v3710, 3
    %v3712 = vand.u32 %v3710, 7
    %v3713 = vsub.s32 0, %v3712
    %v3714 = vsel %vm3708, %v3713, %v3712
    %vm3715 = vcmp.lt.s32.totalorder %v350, 0
    %v3716 = vsub.s32 0, %v350
    %v3717 = vsel %vm3715, %v3716, %v350
    %v3718 = vshrl.u32 %v3717, 3
    %v3719 = vand.u32 %v3717, 7
    %v3720 = vsub.s32 0, %v3719
    %v3721 = vsel %vm3715, %v3720, %v3719
    %vm3722 = vcmp.lt.s32.totalorder %v351, 0
    %v3723 = vsub.s32 0, %v351
    %v3724 = vsel %vm3722, %v3723, %v351
    %v3725 = vshrl.u32 %v3724, 3
    %v3726 = vand.u32 %v3724, 7
    %v3727 = vsub.s32 0, %v3726
    %v3728 = vsel %vm3722, %v3727, %v3726
    %vm3729 = vcmp.lt.s32.totalorder %v352, 0
    %v3730 = vsub.s32 0, %v352
    %v3731 = vsel %vm3729, %v3730, %v352
    %v3732 = vshrl.u32 %v3731, 3
    %v3733 = vand.u32 %v3731, 7
    %v3734 = vsub.s32 0, %v3733
    %v3735 = vsel %vm3729, %v3734, %v3733
    %vm3736 = vcmp.lt.s32.totalorder %v353, 0
    %v3737 = vsub.s32 0, %v353
    %v3738 = vsel %vm3736, %v3737, %v353
    %v3739 = vshrl.u32 %v3738, 3
    %v3740 = vand.u32 %v3738, 7
    %v3741 = vsub.s32 0, %v3740
    %v3742 = vsel %vm3736, %v3741, %v3740
    %vm3743 = vcmp.lt.s32.totalorder %v354, 0
    %v3744 = vsub.s32 0, %v354
    %v3745 = vsel %vm3743, %v3744, %v354
    %v3746 = vshrl.u32 %v3745, 3
    %v3747 = vand.u32 %v3745, 7
    %v3748 = vsub.s32 0, %v3747
    %v3749 = vsel %vm3743, %v3748, %v3747
    %vm3750 = vcmp.lt.s32.totalorder %v355, 0
    %v3751 = vsub.s32 0, %v355
    %v3752 = vsel %vm3750, %v3751, %v355
    %v3753 = vshrl.u32 %v3752, 3
    %v3754 = vand.u32 %v3752, 7
    %v3755 = vsub.s32 0, %v3754
    %v3756 = vsel %vm3750, %v3755, %v3754
    %vm3757 = vcmp.lt.s32.totalorder %v356, 0
    %v3758 = vsub.s32 0, %v356
    %v3759 = vsel %vm3757, %v3758, %v356
    %v3760 = vshrl.u32 %v3759, 3
    %v3761 = vand.u32 %v3759, 7
    %v3762 = vsub.s32 0, %v3761
    %v3763 = vsel %vm3757, %v3762, %v3761
    %vm3764 = vcmp.lt.s32.totalorder %v357, 0
    %v3765 = vsub.s32 0, %v357
    %v3766 = vsel %vm3764, %v3765, %v357
    %v3767 = vshrl.u32 %v3766, 3
    %v3768 = vand.u32 %v3766, 7
    %v3769 = vsub.s32 0, %v3768
    %v3770 = vsel %vm3764, %v3769, %v3768
    %vm3771 = vcmp.lt.s32.totalorder %v358, 0
    %v3772 = vsub.s32 0, %v358
    %v3773 = vsel %vm3771, %v3772, %v358
    %v3774 = vshrl.u32 %v3773, 3
    %v3775 = vand.u32 %v3773, 7
    %v3776 = vsub.s32 0, %v3775
    %v3777 = vsel %vm3771, %v3776, %v3775
    %vm3778 = vcmp.ne.s32.totalorder %v3686, 0
    %vm3779 = vcmp.ne.s32.totalorder %v3693, 0
    %vm3780 = vcmp.ne.s32.totalorder %v3700, 0
    %vm3781 = vcmp.ne.s32.totalorder %v3707, 0
    %vm3782 = vcmp.ne.s32.totalorder %v3714, 0
    %vm3783 = vcmp.ne.s32.totalorder %v3721, 0
    %vm3784 = vcmp.ne.s32.totalorder %v3728, 0
    %vm3785 = vcmp.ne.s32.totalorder %v3735, 0
    %vm3786 = vcmp.ne.s32.totalorder %v3742, 0
    %vm3787 = vcmp.ne.s32.totalorder %v3749, 0
    %vm3788 = vcmp.ne.s32.totalorder %v3756, 0
    %vm3789 = vcmp.ne.s32.totalorder %v3763, 0
    %vm3790 = vcmp.ne.s32.totalorder %v3770, 0
    %vm3791 = vcmp.ne.s32.totalorder %v3777, 0
    %vm3792 = vcmp.lt.s32.totalorder %v3686, 0
    %vm3793 = vcmp.lt.s32.totalorder %v3693, 0
    %vm3794 = vcmp.lt.s32.totalorder %v3700, 0
    %vm3795 = vcmp.lt.s32.totalorder %v3707, 0
    %vm3796 = vcmp.lt.s32.totalorder %v3714, 0
    %vm3797 = vcmp.lt.s32.totalorder %v3721, 0
    %vm3798 = vcmp.lt.s32.totalorder %v3728, 0
    %vm3799 = vcmp.lt.s32.totalorder %v3735, 0
    %vm3800 = vcmp.lt.s32.totalorder %v3742, 0
    %vm3801 = vcmp.lt.s32.totalorder %v3749, 0
    %vm3802 = vcmp.lt.s32.totalorder %v3756, 0
    %vm3803 = vcmp.lt.s32.totalorder %v3763, 0
    %vm3804 = vcmp.lt.s32.totalorder %v3770, 0
    %vm3805 = vcmp.lt.s32.totalorder %v3777, 0
    %vm3806 = vmand %vm3792, %vm3778
    %vm3807 = vmand %vm3793, %vm3779
    %vm3808 = vmand %vm3794, %vm3780
    %vm3809 = vmand %vm3795, %vm3781
    %vm3810 = vmand %vm3796, %vm3782
    %vm3811 = vmand %vm3797, %vm3783
    %vm3812 = vmand %vm3798, %vm3784
    %vm3813 = vmand %vm3799, %vm3785
    %vm3814 = vmand %vm3800, %vm3786
    %vm3815 = vmand %vm3801, %vm3787
    %vm3816 = vmand %vm3802, %vm3788
    %vm3817 = vmand %vm3803, %vm3789
    %vm3818 = vmand %vm3804, %vm3790
    %vm3819 = vmand %vm3805, %vm3791
    %v3820 = vadd.s32 %v3686, 8
    %v3821 = vadd.s32 %v3693, 8
    %v3822 = vadd.s32 %v3700, 8
    %v3823 = vadd.s32 %v3707, 8
    %v3824 = vadd.s32 %v3714, 8
    %v3825 = vadd.s32 %v3721, 8
    %v3826 = vadd.s32 %v3728, 8
    %v3827 = vadd.s32 %v3735, 8
    %v3828 = vadd.s32 %v3742, 8
    %v3829 = vadd.s32 %v3749, 8
    %v3830 = vadd.s32 %v3756, 8
    %v3831 = vadd.s32 %v3763, 8
    %v3832 = vadd.s32 %v3770, 8
    %v3833 = vadd.s32 %v3777, 8
    %v3834 = vsel %vm3806, %v3820, %v3686
    %v3835 = vsel %vm3807, %v3821, %v3693
    %v3836 = vsel %vm3808, %v3822, %v3700
    %v3837 = vsel %vm3809, %v3823, %v3707
    %v3838 = vsel %vm3810, %v3824, %v3714
    %v3839 = vsel %vm3811, %v3825, %v3721
    %v3840 = vsel %vm3812, %v3826, %v3728
    %v3841 = vsel %vm3813, %v3827, %v3735
    %v3842 = vsel %vm3814, %v3828, %v3742
    %v3843 = vsel %vm3815, %v3829, %v3749
    %v3844 = vsel %vm3816, %v3830, %v3756
    %v3845 = vsel %vm3817, %v3831, %v3763
    %v3846 = vsel %vm3818, %v3832, %v3770
    %v3847 = vsel %vm3819, %v3833, %v3777
    %vm3848 = vcmp.eq.s32.totalorder %v3207, %v408
    %vm3849 = vcmp.eq.s32.totalorder %v3208, %v408
    %vm3850 = vcmp.eq.s32.totalorder %v3834, %v408
    %vm3851 = vcmp.eq.s32.totalorder %v3835, %v408
    %vm3852 = vcmp.eq.s32.totalorder %v3836, %v408
    %vm3853 = vcmp.eq.s32.totalorder %v3837, %v408
    %vm3854 = vcmp.eq.s32.totalorder %v3838, %v408
    %vm3855 = vcmp.eq.s32.totalorder %v3839, %v408
    %vm3856 = vcmp.eq.s32.totalorder %v3840, %v408
    %vm3857 = vcmp.eq.s32.totalorder %v3841, %v408
    %vm3858 = vcmp.eq.s32.totalorder %v3842, %v408
    %vm3859 = vcmp.eq.s32.totalorder %v3843, %v408
    %vm3860 = vcmp.eq.s32.totalorder %v3844, %v408
    %vm3861 = vcmp.eq.s32.totalorder %v3845, %v408
    %vm3862 = vcmp.eq.s32.totalorder %v3846, %v408
    %vm3863 = vcmp.eq.s32.totalorder %v3847, %v408
    %v3864 = vsel %vm3848, 1, 0
    %v3865 = vsel %vm3849, 1, 0
    %v3866 = vsel %vm3850, 1, 0
    %v3867 = vsel %vm3851, 1, 0
    %v3868 = vsel %vm3852, 1, 0
    %v3869 = vsel %vm3853, 1, 0
    %v3870 = vsel %vm3854, 1, 0
    %v3871 = vsel %vm3855, 1, 0
    %v3872 = vsel %vm3856, 1, 0
    %v3873 = vsel %vm3857, 1, 0
    %v3874 = vsel %vm3858, 1, 0
    %v3875 = vsel %vm3859, 1, 0
    %v3876 = vsel %vm3860, 1, 0
    %v3877 = vsel %vm3861, 1, 0
    %v3878 = vsel %vm3862, 1, 0
    %v3879 = vsel %vm3863, 1, 0
    %v3880 = vcvt.s32.f32 %v3864
    %v3881 = vcvt.s32.f32 %v3865
    %v3882 = vcvt.s32.f32 %v3866
    %v3883 = vcvt.s32.f32 %v3867
    %v3884 = vcvt.s32.f32 %v3868
    %v3885 = vcvt.s32.f32 %v3869
    %v3886 = vcvt.s32.f32 %v3870
    %v3887 = vcvt.s32.f32 %v3871
    %v3888 = vcvt.s32.f32 %v3872
    %v3889 = vcvt.s32.f32 %v3873
    %v3890 = vcvt.s32.f32 %v3874
    %v3891 = vcvt.s32.f32 %v3875
    %v3892 = vcvt.s32.f32 %v3876
    %v3893 = vcvt.s32.f32 %v3877
    %v3894 = vcvt.s32.f32 %v3878
    %v3895 = vcvt.s32.f32 %v3879
    %3896 = vmatprep.subr.mxu0 0.0
    %3897 = vmatpush1.msra.mxu0 %v3880
    %3898 = vmatprep.subr.mxu0 0.0
    %3899 = vmatpush1.msra.mxu0 %v3881
    %3900 = vmatprep.subr.mxu0 0.0
    %3901 = vmatpush1.msra.mxu0 %v3882
    %3902 = vmatprep.subr.mxu0 0.0
    %3903 = vmatpush1.msra.mxu0 %v3883
    %3904 = vmatprep.subr.mxu0 0.0
    %3905 = vmatpush1.msra.mxu0 %v3884
    %3906 = vmatprep.subr.mxu0 0.0
    %3907 = vmatpush1.msra.mxu0 %v3885
    %3908 = vmatprep.subr.mxu0 0.0
    %3909 = vmatpush1.msra.mxu0 %v3886
    %3910 = vmatprep.subr.mxu0 0.0
    %3911 = vmatpush1.msra.mxu0 %v3887
    %3912 = vmatprep.subr.mxu0 0.0
    %3913 = vmatpush1.msra.mxu0 %v3888
    %3914 = vmatprep.subr.mxu0 0.0
    %3915 = vmatpush1.msra.mxu0 %v3889
    %3916 = vmatprep.subr.mxu0 0.0
    %3917 = vmatpush1.msra.mxu0 %v3890
    %3918 = vmatprep.subr.mxu0 0.0
    %3919 = vmatpush1.msra.mxu0 %v3891
    %3920 = vmatprep.subr.mxu0 0.0
    %3921 = vmatpush1.msra.mxu0 %v3892
    %3922 = vmatprep.subr.mxu0 0.0
    %3923 = vmatpush1.msra.mxu0 %v3893
    %3924 = vmatprep.subr.mxu0 0.0
    %3925 = vmatpush1.msra.mxu0 %v3894
    %3926 = vmatprep.subr.mxu0 0.0
    %3927 = vmatpush1.msra.mxu0 %v3895
    %3928 = vmatprep.subr.mxu0 0.0
    %3929 = vmatpush1.msra.mxu0 0.0
    %3930 = vmatprep.subr.mxu0 0.0
    %3931 = vmatpush1.msra.mxu0 0.0
    %3932 = vmatprep.subr.mxu0 0.0
    %3933 = vmatpush1.msra.mxu0 0.0
    %3934 = vmatprep.subr.mxu0 0.0
    %3935 = vmatpush1.msra.mxu0 0.0
    %3936 = vmatprep.subr.mxu0 0.0
    %3937 = vmatpush1.msra.mxu0 0.0
    %3938 = vmatprep.subr.mxu0 0.0
    %3939 = vmatpush1.msra.mxu0 0.0
    %3940 = vmatprep.subr.mxu0 0.0
    %3941 = vmatpush1.msra.mxu0 0.0
    %3942 = vmatprep.subr.mxu0 0.0
    %3943 = vmatpush1.msra.mxu0 0.0
    %3944 = vmatprep.subr.mxu0 0.0
    %3945 = vmatpush1.msra.mxu0 0.0
    %3946 = vmatprep.subr.mxu0 0.0
    %3947 = vmatpush1.msra.mxu0 0.0
    %3948 = vmatprep.subr.mxu0 0.0
    %3949 = vmatpush1.msra.mxu0 0.0
    %3950 = vmatprep.subr.mxu0 0.0
    %3951 = vmatpush1.msra.mxu0 0.0
    %3952 = vmatprep.subr.mxu0 0.0
    %3953 = vmatpush1.msra.mxu0 0.0
    %3954 = vmatprep.subr.mxu0 0.0
    %3955 = vmatpush1.msra.mxu0 0.0
    %3956 = vmatprep.subr.mxu0 0.0
    %3957 = vmatpush1.msra.mxu0 0.0
    %3958 = vmatprep.subr.mxu0 0.0
    %3959 = vmatpush1.msra.mxu0 0.0
    %3960 = vmatprep.mubr.f32.mxu0 0.0
    %3961 = vmatmul.mubr.f32.gmra.mrb[0].mxu0 %v3669
    %v3962 = vpop.f32.mrb[0].mxu0
    %v3963 = vadd.f32 0.0, %v3962
    %v3964 = vpop.f32.mrb[0].mxu0
    %3965 = vdwg.mxu0
    %3966 = vmatprep.subr.mxu0 0.0
    %3967 = vmatpush1.msra.mxu0 %v3880
    %3968 = vmatprep.subr.mxu0 0.0
    %3969 = vmatpush1.msra.mxu0 %v3881
    %3970 = vmatprep.subr.mxu0 0.0
    %3971 = vmatpush1.msra.mxu0 %v3882
    %3972 = vmatprep.subr.mxu0 0.0
    %3973 = vmatpush1.msra.mxu0 %v3883
    %3974 = vmatprep.subr.mxu0 0.0
    %3975 = vmatpush1.msra.mxu0 %v3884
    %3976 = vmatprep.subr.mxu0 0.0
    %3977 = vmatpush1.msra.mxu0 %v3885
    %3978 = vmatprep.subr.mxu0 0.0
    %3979 = vmatpush1.msra.mxu0 %v3886
    %3980 = vmatprep.subr.mxu0 0.0
    %3981 = vmatpush1.msra.mxu0 %v3887
    %3982 = vmatprep.subr.mxu0 0.0
    %3983 = vmatpush1.msra.mxu0 %v3888
    %3984 = vmatprep.subr.mxu0 0.0
    %3985 = vmatpush1.msra.mxu0 %v3889
    %3986 = vmatprep.subr.mxu0 0.0
    %3987 = vmatpush1.msra.mxu0 %v3890
    %3988 = vmatprep.subr.mxu0 0.0
    %3989 = vmatpush1.msra.mxu0 %v3891
    %3990 = vmatprep.subr.mxu0 0.0
    %3991 = vmatpush1.msra.mxu0 %v3892
    %3992 = vmatprep.subr.mxu0 0.0
    %3993 = vmatpush1.msra.mxu0 %v3893
    %3994 = vmatprep.subr.mxu0 0.0
    %3995 = vmatpush1.msra.mxu0 %v3894
    %3996 = vmatprep.subr.mxu0 0.0
    %3997 = vmatpush1.msra.mxu0 %v3895
    %3998 = vmatprep.subr.mxu0 0.0
    %3999 = vmatpush1.msra.mxu0 0.0
    %4000 = vmatprep.subr.mxu0 0.0
    %4001 = vmatpush1.msra.mxu0 0.0
    %4002 = vmatprep.subr.mxu0 0.0
    %4003 = vmatpush1.msra.mxu0 0.0
    %4004 = vmatprep.subr.mxu0 0.0
    %4005 = vmatpush1.msra.mxu0 0.0
    %4006 = vmatprep.subr.mxu0 0.0
    %4007 = vmatpush1.msra.mxu0 0.0
    %4008 = vmatprep.subr.mxu0 0.0
    %4009 = vmatpush1.msra.mxu0 0.0
    %4010 = vmatprep.subr.mxu0 0.0
    %4011 = vmatpush1.msra.mxu0 0.0
    %4012 = vmatprep.subr.mxu0 0.0
    %4013 = vmatpush1.msra.mxu0 0.0
    %4014 = vmatprep.subr.mxu0 0.0
    %4015 = vmatpush1.msra.mxu0 0.0
    %4016 = vmatprep.subr.mxu0 0.0
    %4017 = vmatpush1.msra.mxu0 0.0
    %4018 = vmatprep.subr.mxu0 0.0
    %4019 = vmatpush1.msra.mxu0 0.0
    %4020 = vmatprep.subr.mxu0 0.0
    %4021 = vmatpush1.msra.mxu0 0.0
    %4022 = vmatprep.subr.mxu0 0.0
    %4023 = vmatpush1.msra.mxu0 0.0
    %4024 = vmatprep.subr.mxu0 0.0
    %4025 = vmatpush1.msra.mxu0 0.0
    %4026 = vmatprep.subr.mxu0 0.0
    %4027 = vmatpush1.msra.mxu0 0.0
    %4028 = vmatprep.subr.mxu0 0.0
    %4029 = vmatpush1.msra.mxu0 0.0
    %4030 = vmatprep.mubr.f32.mxu0 0.0
    %4031 = vmatmul.mubr.f32.gmra.mrb[0].mxu0 %v3679
    %v4032 = vpop.f32.mrb[0].mxu0
    %v4033 = vadd.f32 0.0, %v4032
    %v4034 = vpop.f32.mrb[0].mxu0
    %4035 = vdwg.mxu0
    %v4036 = vmul.f32 %v3963, 0.001953125
    %v4037 = vmul.f32 %v4033, 0.001953125
    %v4038 = vmul.f32 %v4036, %v4036
    %v4039 = vsub.f32 %v4037, %v4038
    %v4040 = vmax.f32 %v4039, 0.0
    %v4041 = vld [vmem:[%s8] sm:$0x1]
    %v4042 = vadd.f32 %v4040, 1e-05
    %v4043 = vrsqrt.pop %v4042
    %v4044 = vmul.f32 %v4041, %v4043
    %v4045 = vld [vmem:[%s9] sm:$0x1]
    %v4046 = vmul.f32 %v4036, %v4044
    %v4047 = vsub.f32 %v4045, %v4046
    %vm4048 = vcmp.lt.s32.totalorder %v408, 0
    %v4049 = vsub.s32 0, %v408
    %v4050 = vsel %vm4048, %v4049, %v408
    %v4051 = vshrl.u32 %v4050, 3
    %v4052 = vand.u32 %v4050, 7
    %v4053 = vsub.s32 0, %v4052
    %v4054 = vsel %vm4048, %v4053, %v4052
    %vm4055 = vcmp.ne.s32.totalorder %v4054, 0
    %vm4056 = vcmp.lt.s32.totalorder %v4054, 0
    %vm4057 = vmand %vm4056, %vm4055
    %v4058 = vadd.s32 %v4054, 8
    %v4059 = vsel %vm4057, %v4058, %v4054
    %vm4060 = vcmp.eq.s32.totalorder %v4059, %v343
    %v4061 = vsel %vm4060, 1, 0
    %v4062 = vcvt.s32.f32 %v4061
    %vm4063 = vcmask 64512
    %v4065 = vsel %vm4063, %v4044, 0
    %4067 = vmatprep.subr.mxu0 0.0
    %4068 = vmatpush1.msra.mxu0 %v4062
    %4069 = vmatprep.subr.mxu0 0.0
    %4070 = vmatpush1.msra.mxu0 0.0
    %4071 = vmatprep.subr.mxu0 0.0
    %4072 = vmatpush1.msra.mxu0 0.0
    %4073 = vmatprep.subr.mxu0 0.0
    %4074 = vmatpush1.msra.mxu0 0.0
    %4075 = vmatprep.subr.mxu0 0.0
    %4076 = vmatpush1.msra.mxu0 0.0
    %4077 = vmatprep.subr.mxu0 0.0
    %4078 = vmatpush1.msra.mxu0 0.0
    %4079 = vmatprep.subr.mxu0 0.0
    %4080 = vmatpush1.msra.mxu0 0.0
    %4081 = vmatprep.subr.mxu0 0.0
    %4082 = vmatpush1.msra.mxu0 0.0
    %4083 = vmatprep.subr.mxu0 0.0
    %4084 = vmatpush1.msra.mxu0 0.0
    %4085 = vmatprep.subr.mxu0 0.0
    %4086 = vmatpush1.msra.mxu0 0.0
    %4087 = vmatprep.subr.mxu0 0.0
    %4088 = vmatpush1.msra.mxu0 0.0
    %4089 = vmatprep.subr.mxu0 0.0
    %4090 = vmatpush1.msra.mxu0 0.0
    %4091 = vmatprep.subr.mxu0 0.0
    %4092 = vmatpush1.msra.mxu0 0.0
    %4093 = vmatprep.subr.mxu0 0.0
    %4094 = vmatpush1.msra.mxu0 0.0
    %4095 = vmatprep.subr.mxu0 0.0
    %4096 = vmatpush1.msra.mxu0 0.0
    %4097 = vmatprep.subr.mxu0 0.0
    %4098 = vmatpush1.msra.mxu0 0.0
    %4099 = vmatprep.subr.mxu0 0.0
    %4100 = vmatpush1.msra.mxu0 0.0
    %4101 = vmatprep.subr.mxu0 0.0
    %4102 = vmatpush1.msra.mxu0 0.0
    %4103 = vmatprep.subr.mxu0 0.0
    %4104 = vmatpush1.msra.mxu0 0.0
    %4105 = vmatprep.subr.mxu0 0.0
    %4106 = vmatpush1.msra.mxu0 0.0
    %4107 = vmatprep.subr.mxu0 0.0
    %4108 = vmatpush1.msra.mxu0 0.0
    %4109 = vmatprep.subr.mxu0 0.0
    %4110 = vmatpush1.msra.mxu0 0.0
    %4111 = vmatprep.subr.mxu0 0.0
    %4112 = vmatpush1.msra.mxu0 0.0
    %4113 = vmatprep.subr.mxu0 0.0
    %4114 = vmatpush1.msra.mxu0 0.0
    %4115 = vmatprep.subr.mxu0 0.0
    %4116 = vmatpush1.msra.mxu0 0.0
    %4117 = vmatprep.subr.mxu0 0.0
    %4118 = vmatpush1.msra.mxu0 0.0
    %4119 = vmatprep.subr.mxu0 0.0
    %4120 = vmatpush1.msra.mxu0 0.0
    %4121 = vmatprep.subr.mxu0 0.0
    %4122 = vmatpush1.msra.mxu0 0.0
    %4123 = vmatprep.subr.mxu0 0.0
    %4124 = vmatpush1.msra.mxu0 0.0
    %4125 = vmatprep.subr.mxu0 0.0
    %4126 = vmatpush1.msra.mxu0 0.0
    %4127 = vmatprep.subr.mxu0 0.0
    %4128 = vmatpush1.msra.mxu0 0.0
    %4129 = vmatprep.subr.mxu0 0.0
    %4130 = vmatpush1.msra.mxu0 0.0
    %4131 = vmatprep.mubr.f32.mxu0 0.0
    %4132 = vmatmul.mubr.f32.gmra.mrb[0].mxu0 %v4065
    %v4133 = vpop.f32.mrb[0].mxu0
    %v4134 = vadd.f32 0.0, %v4133
    %v4135 = vpop.f32.mrb[0].mxu0
    %4136 = vdwg.mxu0
    %v4138 = vsel %vm4063, %v4047, 0
    %4140 = vmatprep.subr.mxu0 0.0
    %4141 = vmatpush1.msra.mxu0 %v4062
    %4142 = vmatprep.subr.mxu0 0.0
    %4143 = vmatpush1.msra.mxu0 0.0
    %4144 = vmatprep.subr.mxu0 0.0
    %4145 = vmatpush1.msra.mxu0 0.0
    %4146 = vmatprep.subr.mxu0 0.0
    %4147 = vmatpush1.msra.mxu0 0.0
    %4148 = vmatprep.subr.mxu0 0.0
    %4149 = vmatpush1.msra.mxu0 0.0
    %4150 = vmatprep.subr.mxu0 0.0
    %4151 = vmatpush1.msra.mxu0 0.0
    %4152 = vmatprep.subr.mxu0 0.0
    %4153 = vmatpush1.msra.mxu0 0.0
    %4154 = vmatprep.subr.mxu0 0.0
    %4155 = vmatpush1.msra.mxu0 0.0
    %4156 = vmatprep.subr.mxu0 0.0
    %4157 = vmatpush1.msra.mxu0 0.0
    %4158 = vmatprep.subr.mxu0 0.0
    %4159 = vmatpush1.msra.mxu0 0.0
    %4160 = vmatprep.subr.mxu0 0.0
    %4161 = vmatpush1.msra.mxu0 0.0
    %4162 = vmatprep.subr.mxu0 0.0
    %4163 = vmatpush1.msra.mxu0 0.0
    %4164 = vmatprep.subr.mxu0 0.0
    %4165 = vmatpush1.msra.mxu0 0.0
    %4166 = vmatprep.subr.mxu0 0.0
    %4167 = vmatpush1.msra.mxu0 0.0
    %4168 = vmatprep.subr.mxu0 0.0
    %4169 = vmatpush1.msra.mxu0 0.0
    %4170 = vmatprep.subr.mxu0 0.0
    %4171 = vmatpush1.msra.mxu0 0.0
    %4172 = vmatprep.subr.mxu0 0.0
    %4173 = vmatpush1.msra.mxu0 0.0
    %4174 = vmatprep.subr.mxu0 0.0
    %4175 = vmatpush1.msra.mxu0 0.0
    %4176 = vmatprep.subr.mxu0 0.0
    %4177 = vmatpush1.msra.mxu0 0.0
    %4178 = vmatprep.subr.mxu0 0.0
    %4179 = vmatpush1.msra.mxu0 0.0
    %4180 = vmatprep.subr.mxu0 0.0
    %4181 = vmatpush1.msra.mxu0 0.0
    %4182 = vmatprep.subr.mxu0 0.0
    %4183 = vmatpush1.msra.mxu0 0.0
    %4184 = vmatprep.subr.mxu0 0.0
    %4185 = vmatpush1.msra.mxu0 0.0
    %4186 = vmatprep.subr.mxu0 0.0
    %4187 = vmatpush1.msra.mxu0 0.0
    %4188 = vmatprep.subr.mxu0 0.0
    %4189 = vmatpush1.msra.mxu0 0.0
    %4190 = vmatprep.subr.mxu0 0.0
    %4191 = vmatpush1.msra.mxu0 0.0
    %4192 = vmatprep.subr.mxu0 0.0
    %4193 = vmatpush1.msra.mxu0 0.0
    %4194 = vmatprep.subr.mxu0 0.0
    %4195 = vmatpush1.msra.mxu0 0.0
    %4196 = vmatprep.subr.mxu0 0.0
    %4197 = vmatpush1.msra.mxu0 0.0
    %4198 = vmatprep.subr.mxu0 0.0
    %4199 = vmatpush1.msra.mxu0 0.0
    %4200 = vmatprep.subr.mxu0 0.0
    %4201 = vmatpush1.msra.mxu0 0.0
    %4202 = vmatprep.subr.mxu0 0.0
    %4203 = vmatpush1.msra.mxu0 0.0
    %4204 = vmatprep.mubr.f32.mxu0 0.0
    %4205 = vmatmul.mubr.f32.gmra.mrb[0].mxu0 %v4138
    %v4206 = vpop.f32.mrb[0].mxu0
    %v4207 = vadd.f32 0.0, %v4206
    %v4208 = vpop.f32.mrb[0].mxu0
    %4209 = vdwg.mxu0
    %v4210 = vlaneseq
    %v4211 = vshrl.u32 %v4210, 7
    %v4212 = vsub.s32 0, %v4211
    %v4213 = vrot.slane %v4134, %v4212
    %v4214 = vmul.f32 %v3462, %v4213
    %v4215 = vmul.f32 %v3465, %v4213
    %v4216 = vlaneseq
    %v4217 = vshrl.u32 %v4216, 7
    %v4218 = vsub.s32 0, %v4217
    %v4219 = vrot.slane %v4207, %v4218
    %v4220 = vadd.f32 %v4214, %v4219
    %v4221 = vadd.f32 %v4215, %v4219
    %v4222 = vmax.f32 %v4220, 0.0
    %v4223 = vmax.f32 %v4221, 0.0
    %v4224 = vmul.f32 %v3640, %v4213
    %v4225 = vmul.f32 %v3643, %v4213
    %v4226 = vadd.f32 %v4224, %v4219
    %v4227 = vadd.f32 %v4225, %v4219
    %v4228 = vmax.f32 %v4226, 0.0
    %v4229 = vmax.f32 %v4227, 0.0
    %4230 = vst [vmem:[#allocation4 + $0x1] sm:$0x1] %v4222
    %4231 = vst [vmem:[#allocation4 + $0x2] sm:$0x1] %v4228
    %4232 = vst [vmem:[#allocation4 + $0x2] sm:$0x2] %v4222
    %4233 = vst [vmem:[#allocation4 + $0x3] sm:$0x2] %v4228
    %4234 = vst [vmem:[#allocation4 + $0x3] sm:$0x4] %v4222
    %4235 = vst [vmem:[#allocation4 + $0x4] sm:$0x4] %v4228
    %4236 = vst [vmem:[#allocation4 + $0x4] sm:$0x8] %v4222
    %4237 = vst [vmem:[#allocation4 + $0x5] sm:$0x8] %v4228
    %4238 = vst [vmem:[#allocation4 + $0x5] sm:$0x10] %v4222
    %4239 = vst [vmem:[#allocation4 + $0x6] sm:$0x10] %v4228
    %4240 = vst [vmem:[#allocation4 + $0x6] sm:$0x20] %v4222
    %4241 = vst [vmem:[#allocation4 + $0x7] sm:$0x20] %v4228
    %4242 = vst [vmem:[#allocation4 + $0x7] sm:$0x40] %v4222
    %4243 = vst [vmem:[#allocation4 + $0x8] sm:$0x40] %v4228
    %4244 = vst [vmem:[#allocation4 + $0x8] sm:$0x80] %v4222
    %4245 = vst [vmem:[#allocation4 + $0x9] sm:$0x80] %v4228
    %4246 = vst [vmem:[#allocation4 + $0x11] sm:$0x1] %v4223
    %4247 = vst [vmem:[#allocation4 + $0x12] sm:$0x1] %v4229
    %4248 = vst [vmem:[#allocation4 + $0x12] sm:$0x2] %v4223
    %4249 = vst [vmem:[#allocation4 + $0x13] sm:$0x2] %v4229
    %4250 = vst [vmem:[#allocation4 + $0x13] sm:$0x4] %v4223
    %4251 = vst [vmem:[#allocation4 + $0x14] sm:$0x4] %v4229
    %4252 = vst [vmem:[#allocation4 + $0x14] sm:$0x8] %v4223
    %4253 = vst [vmem:[#allocation4 + $0x15] sm:$0x8] %v4229
    %4254 = vst [vmem:[#allocation4 + $0x15] sm:$0x10] %v4223
    %4255 = vst [vmem:[#allocation4 + $0x16] sm:$0x10] %v4229
    %4256 = vst [vmem:[#allocation4 + $0x16] sm:$0x20] %v4223
    %4257 = vst [vmem:[#allocation4 + $0x17] sm:$0x20] %v4229
    %4258 = vst [vmem:[#allocation4 + $0x17] sm:$0x40] %v4223
    %4259 = vst [vmem:[#allocation4 + $0x18] sm:$0x40] %v4229
    %4260 = vst [vmem:[#allocation4 + $0x18] sm:$0x80] %v4223
    %4261 = vst [vmem:[#allocation4 + $0x19] sm:$0x80] %v4229
    %v4262 = vld [vmem:[#allocation4] sm:$0xff]
    %v4263 = vld [vmem:[#allocation4 + $0x8] sm:$0xff]
    %v4264 = vld [vmem:[#allocation4 + $0x10] sm:$0xff]
    %v4265 = vld [vmem:[#allocation4 + $0x18] sm:$0xff]
    %vm4266 = vcmp.ge.s32.totalorder %v2774, 1
    %vm4267 = vcmp.ge.s32.totalorder %v2775, 1
    %vm4268 = vcmp.ge.s32.totalorder %v2776, 1
    %vm4269 = vcmp.ge.s32.totalorder %v2777, 1
    %v4270 = vsel %vm4266, %v4262, 0.0
    %v4271 = vsel %vm4267, %v4263, 0.0
    %v4272 = vsel %vm4268, %v4264, 0.0
    %v4273 = vsel %vm4269, %v4265, 0.0
    %v4274 = vpack.c.bf16 %v4271, %v4270
    %v4275 = vpack.c.bf16 %v4273, %v4272
    %v4276 = vld [vmem:[#allocation4 + $0x1] sm:$0xff]
    %v4277 = vld [vmem:[#allocation4 + $0x9] sm:$0xff]
    %v4278 = vld [vmem:[#allocation4 + $0x11] sm:$0xff]
    %v4279 = vld [vmem:[#allocation4 + $0x19] sm:$0xff]
    %v4280 = vpack.c.bf16 %v4277, %v4276
    %v4281 = vpack.c.bf16 %v4279, %v4278
    %v4282 = vld [vmem:[#allocation4 + $0x2] sm:$0xff]
    %v4283 = vld [vmem:[#allocation4 + $0xa] sm:$0xff]
    %v4284 = vld [vmem:[#allocation4 + $0x12] sm:$0xff]
    %v4285 = vld [vmem:[#allocation4 + $0x1a] sm:$0xff]
    %vm4286 = vcmp.le.s32.totalorder %v2774, 14
    %vm4287 = vcmp.le.s32.totalorder %v2775, 14
    %vm4288 = vcmp.le.s32.totalorder %v2776, 14
    %vm4289 = vcmp.le.s32.totalorder %v2777, 14
    %v4290 = vsel %vm4286, %v4282, 0.0
    %v4291 = vsel %vm4287, %v4283, 0.0
    %v4292 = vsel %vm4288, %v4284, 0.0
    %v4293 = vsel %vm4289, %v4285, 0.0
    %v4294 = vpack.c.bf16 %v4291, %v4290
    %v4295 = vpack.c.bf16 %v4293, %v4292
    %v4296 = vld [vmem:[#allocation10] sm:$0xf]
    %v4297 = vld [vmem:[#allocation10 + $0x4] sm:$0xf]
    %v4298 = vld [vmem:[#allocation10 + $0x8] sm:$0xf]
    %v4299 = vld [vmem:[#allocation10 + $0xc] sm:$0xf]
    %v4300 = vld [vmem:[#allocation10 + $0x10] sm:$0xf]
    %v4301 = vld [vmem:[#allocation10 + $0x14] sm:$0xf]
    %v4302 = vld [vmem:[#allocation10 + $0x18] sm:$0xf]
    %v4303 = vld [vmem:[#allocation10 + $0x1c] sm:$0xf]
    %v4304 = vld [vmem:[#allocation10 + $0x20] sm:$0xf]
    %v4305 = vld [vmem:[#allocation10 + $0x24] sm:$0xf]
    %v4306 = vld [vmem:[#allocation10 + $0x28] sm:$0xf]
    %v4307 = vld [vmem:[#allocation10 + $0x2c] sm:$0xf]
    %v4308 = vld [vmem:[#allocation10 + $0x30] sm:$0xf]
    %v4309 = vld [vmem:[#allocation10 + $0x34] sm:$0xf]
    %v4310 = vld [vmem:[#allocation10 + $0x38] sm:$0xf]
    %v4311 = vld [vmem:[#allocation10 + $0x3c] sm:$0xf]
    %v4312 = vld [vmem:[#allocation10 + $0x40] sm:$0xf]
    %v4313 = vld [vmem:[#allocation10 + $0x44] sm:$0xf]
    %v4314 = vld [vmem:[#allocation10 + $0x48] sm:$0xf]
    %v4315 = vld [vmem:[#allocation10 + $0x4c] sm:$0xf]
    %v4316 = vld [vmem:[#allocation10 + $0x50] sm:$0xf]
    %v4317 = vld [vmem:[#allocation10 + $0x54] sm:$0xf]
    %v4318 = vld [vmem:[#allocation10 + $0x58] sm:$0xf]
    %v4319 = vld [vmem:[#allocation10 + $0x5c] sm:$0xf]
    %v4320 = vld [vmem:[#allocation10 + $0x60] sm:$0xf]
    %v4321 = vld [vmem:[#allocation10 + $0x64] sm:$0xf]
    %v4322 = vld [vmem:[#allocation10 + $0x68] sm:$0xf]
    %v4323 = vld [vmem:[#allocation10 + $0x6c] sm:$0xf]
    %v4324 = vld [vmem:[#allocation10 + $0x70] sm:$0xf]
    %v4325 = vld [vmem:[#allocation10 + $0x74] sm:$0xf]
    %v4326 = vld [vmem:[#allocation10 + $0x78] sm:$0xf]
    %v4327 = vld [vmem:[#allocation10 + $0x7c] sm:$0xf]
    %v4328 = vld [vmem:[#allocation10 + $0x80] sm:$0xf]
    %v4329 = vld [vmem:[#allocation10 + $0x84] sm:$0xf]
    %v4330 = vld [vmem:[#allocation10 + $0x88] sm:$0xf]
    %v4331 = vld [vmem:[#allocation10 + $0x8c] sm:$0xf]
    %v4332 = vld [vmem:[#allocation10 + $0x90] sm:$0xf]
    %v4333 = vld [vmem:[#allocation10 + $0x94] sm:$0xf]
    %v4334 = vld [vmem:[#allocation10 + $0x98] sm:$0xf]
    %v4335 = vld [vmem:[#allocation10 + $0x9c] sm:$0xf]
    %v4336 = vld [vmem:[#allocation10 + $0xa0] sm:$0xf]
    %v4337 = vld [vmem:[#allocation10 + $0xa4] sm:$0xf]
    %v4338 = vld [vmem:[#allocation10 + $0xa8] sm:$0xf]
    %v4339 = vld [vmem:[#allocation10 + $0xac] sm:$0xf]
    %v4340 = vld [vmem:[#allocation10 + $0xb0] sm:$0xf]
    %v4341 = vld [vmem:[#allocation10 + $0xb4] sm:$0xf]
    %v4342 = vld [vmem:[#allocation10 + $0xb8] sm:$0xf]
    %v4343 = vld [vmem:[#allocation10 + $0xbc] sm:$0xf]
    %v4344 = vld [vmem:[#allocation10 + $0xc0] sm:$0xf]
    %v4345 = vld [vmem:[#allocation10 + $0xc4] sm:$0xf]
    %v4346 = vld [vmem:[#allocation10 + $0xc8] sm:$0xf]
    %v4347 = vld [vmem:[#allocation10 + $0xcc] sm:$0xf]
    %v4348 = vld [vmem:[#allocation10 + $0xd0] sm:$0xf]
    %v4349 = vld [vmem:[#allocation10 + $0xd4] sm:$0xf]
    %v4350 = vld [vmem:[#allocation10 + $0xd8] sm:$0xf]
    %v4351 = vld [vmem:[#allocation10 + $0xdc] sm:$0xf]
    %v4352 = vld [vmem:[#allocation10 + $0xe0] sm:$0xf]
    %v4353 = vld [vmem:[#allocation10 + $0xe4] sm:$0xf]
    %v4354 = vld [vmem:[#allocation10 + $0xe8] sm:$0xf]
    %v4355 = vld [vmem:[#allocation10 + $0xec] sm:$0xf]
    %v4356 = vld [vmem:[#allocation10 + $0xf0] sm:$0xf]
    %v4357 = vld [vmem:[#allocation10 + $0xf4] sm:$0xf]
    %v4358 = vld [vmem:[#allocation10 + $0xf8] sm:$0xf]
    %v4359 = vld [vmem:[#allocation10 + $0xfc] sm:$0xf]
    %v4376 = vunpack.c.l.b16 %v4312
    %v4377 = vunpack.c.l.b16 %v4313
    %v4378 = vunpack.c.l.b16 %v4314
    %v4379 = vunpack.c.l.b16 %v4315
    %v4380 = vunpack.c.l.b16 %v4316
    %v4381 = vunpack.c.l.b16 %v4317
    %v4382 = vunpack.c.l.b16 %v4318
    %v4383 = vunpack.c.l.b16 %v4319
    %v4384 = vunpack.c.l.b16 %v4320
    %v4385 = vunpack.c.l.b16 %v4321
    %v4386 = vunpack.c.l.b16 %v4322
    %v4387 = vunpack.c.l.b16 %v4323
    %v4388 = vunpack.c.l.b16 %v4324
    %v4389 = vunpack.c.l.b16 %v4325
    %v4390 = vunpack.c.l.b16 %v4326
    %v4391 = vunpack.c.l.b16 %v4327
    %v4392 = vpack.c.b16 %v4377, %v4376
    %v4393 = vpack.c.b16 %v4379, %v4378
    %v4394 = vpack.c.b16 %v4381, %v4380
    %v4395 = vpack.c.b16 %v4383, %v4382
    %v4396 = vpack.c.b16 %v4385, %v4384
    %v4397 = vpack.c.b16 %v4387, %v4386
    %v4398 = vpack.c.b16 %v4389, %v4388
    %v4399 = vpack.c.b16 %v4391, %v4390
    %4408 = vmatprep.subr.bf16.mxu0 0
    %4409 = vmatpush1.bf16.msra.mxu0 %v4392
    %4410 = vmatprep.subr.bf16.mxu0 0
    %4411 = vmatpush1.bf16.msra.mxu0 %v4393
    %4412 = vmatprep.subr.bf16.mxu0 0
    %4413 = vmatpush1.bf16.msra.mxu0 %v4394
    %4414 = vmatprep.subr.bf16.mxu0 0
    %4415 = vmatpush1.bf16.msra.mxu0 %v4395
    %4416 = vmatprep.subr.bf16.mxu0 0
    %4417 = vmatpush1.bf16.msra.mxu0 %v4396
    %4418 = vmatprep.subr.bf16.mxu0 0
    %4419 = vmatpush1.bf16.msra.mxu0 %v4397
    %4420 = vmatprep.subr.bf16.mxu0 0
    %4421 = vmatpush1.bf16.msra.mxu0 %v4398
    %4422 = vmatprep.subr.bf16.mxu0 0
    %4423 = vmatpush1.bf16.msra.mxu0 %v4399
    %4424 = vmatprep.subr.bf16.mxu0 0
    %4425 = vmatpush1.bf16.msra.mxu0 0
    %4426 = vmatprep.subr.bf16.mxu0 0
    %4427 = vmatpush1.bf16.msra.mxu0 0
    %4428 = vmatprep.subr.bf16.mxu0 0
    %4429 = vmatpush1.bf16.msra.mxu0 0
    %4430 = vmatprep.subr.bf16.mxu0 0
    %4431 = vmatpush1.bf16.msra.mxu0 0
    %4432 = vmatprep.subr.bf16.mxu0 0
    %4433 = vmatpush1.bf16.msra.mxu0 0
    %4434 = vmatprep.subr.bf16.mxu0 0
    %4435 = vmatpush1.bf16.msra.mxu0 0
    %4436 = vmatprep.subr.bf16.mxu0 0
    %4437 = vmatpush1.bf16.msra.mxu0 0
    %4438 = vmatprep.subr.bf16.mxu0 0
    %4439 = vmatpush1.bf16.msra.mxu0 0
    %4440 = vmatprep.mubr.bf16.mxu0 0
    %4441 = vmatmul.mubr.bf16.gmra.mrb[0].mxu0 %v4280
    %v4442 = vpop.f32.mrb[0].mxu0
    %v4443 = vadd.f32 0.0, %v4442
    %v4444 = vpop.f32.mrb[0].mxu0
    %v4445 = vpop.f32.mrb[0].mxu0
    %v4446 = vadd.f32 0.0, %v4445
    %v4447 = vpop.f32.mrb[0].mxu0
    %4448 = vmatprep.mubr.bf16.mxu0 0
    %4449 = vmatmul.mubr.bf16.gmra.mrb[0].mxu0 %v4281
    %v4450 = vpop.f32.mrb[0].mxu0
    %v4451 = vadd.f32 0.0, %v4450
    %v4452 = vpop.f32.mrb[0].mxu0
    %v4453 = vpop.f32.mrb[0].mxu0
    %v4454 = vadd.f32 0.0, %v4453
    %v4455 = vpop.f32.mrb[0].mxu0
    %4456 = vdwg.mxu0
    %v4473 = vunpack.c.l.b16 %v4296
    %v4474 = vunpack.c.l.b16 %v4297
    %v4475 = vunpack.c.l.b16 %v4298
    %v4476 = vunpack.c.l.b16 %v4299
    %v4477 = vunpack.c.l.b16 %v4300
    %v4478 = vunpack.c.l.b16 %v4301
    %v4479 = vunpack.c.l.b16 %v4302
    %v4480 = vunpack.c.l.b16 %v4303
    %v4481 = vunpack.c.l.b16 %v4304
    %v4482 = vunpack.c.l.b16 %v4305
    %v4483 = vunpack.c.l.b16 %v4306
    %v4484 = vunpack.c.l.b16 %v4307
    %v4485 = vunpack.c.l.b16 %v4308
    %v4486 = vunpack.c.l.b16 %v4309
    %v4487 = vunpack.c.l.b16 %v4310
    %v4488 = vunpack.c.l.b16 %v4311
    %v4489 = vpack.c.b16 %v4474, %v4473
    %v4490 = vpack.c.b16 %v4476, %v4475
    %v4491 = vpack.c.b16 %v4478, %v4477
    %v4492 = vpack.c.b16 %v4480, %v4479
    %v4493 = vpack.c.b16 %v4482, %v4481
    %v4494 = vpack.c.b16 %v4484, %v4483
    %v4495 = vpack.c.b16 %v4486, %v4485
    %v4496 = vpack.c.b16 %v4488, %v4487
    %4505 = vmatprep.subr.bf16.mxu0 0
    %4506 = vmatpush1.bf16.msra.mxu0 %v4489
    %4507 = vmatprep.subr.bf16.mxu0 0
    %4508 = vmatpush1.bf16.msra.mxu0 %v4490
    %4509 = vmatprep.subr.bf16.mxu0 0
    %4510 = vmatpush1.bf16.msra.mxu0 %v4491
    %4511 = vmatprep.subr.bf16.mxu0 0
    %4512 = vmatpush1.bf16.msra.mxu0 %v4492
    %4513 = vmatprep.subr.bf16.mxu0 0
    %4514 = vmatpush1.bf16.msra.mxu0 %v4493
    %4515 = vmatprep.subr.bf16.mxu0 0
    %4516 = vmatpush1.bf16.msra.mxu0 %v4494
    %4517 = vmatprep.subr.bf16.mxu0 0
    %4518 = vmatpush1.bf16.msra.mxu0 %v4495
    %4519 = vmatprep.subr.bf16.mxu0 0
    %4520 = vmatpush1.bf16.msra.mxu0 %v4496
    %4521 = vmatprep.subr.bf16.mxu0 0
    %4522 = vmatpush1.bf16.msra.mxu0 0
    %4523 = vmatprep.subr.bf16.mxu0 0
    %4524 = vmatpush1.bf16.msra.mxu0 0
    %4525 = vmatprep.subr.bf16.mxu0 0
    %4526 = vmatpush1.bf16.msra.mxu0 0
    %4527 = vmatprep.subr.bf16.mxu0 0
    %4528 = vmatpush1.bf16.msra.mxu0 0
    %4529 = vmatprep.subr.bf16.mxu0 0
    %4530 = vmatpush1.bf16.msra.mxu0 0
    %4531 = vmatprep.subr.bf16.mxu0 0
    %4532 = vmatpush1.bf16.msra.mxu0 0
    %4533 = vmatprep.subr.bf16.mxu0 0
    %4534 = vmatpush1.bf16.msra.mxu0 0
    %4535 = vmatprep.subr.bf16.mxu0 0
    %4536 = vmatpush1.bf16.msra.mxu0 0
    %4537 = vmatprep.mubr.bf16.mxu0 0
    %4538 = vmatmul.mubr.bf16.gmra.mrb[0].mxu0 %v4274
    %v4539 = vpop.f32.mrb[0].mxu0
    %v4540 = vadd.f32 %v4443, %v4539
    %v4541 = vpop.f32.mrb[0].mxu0
    %v4542 = vpop.f32.mrb[0].mxu0
    %v4543 = vadd.f32 %v4446, %v4542
    %v4544 = vpop.f32.mrb[0].mxu0
    %4545 = vmatprep.mubr.bf16.mxu0 0
    %4546 = vmatmul.mubr.bf16.gmra.mrb[0].mxu0 %v4275
    %v4547 = vpop.f32.mrb[0].mxu0
    %v4548 = vadd.f32 %v4451, %v4547
    %v4549 = vpop.f32.mrb[0].mxu0
    %v4550 = vpop.f32.mrb[0].mxu0
    %v4551 = vadd.f32 %v4454, %v4550
    %v4552 = vpop.f32.mrb[0].mxu0
    %4553 = vdwg.mxu0
    %v4570 = vunpack.c.l.b16 %v4344
    %v4571 = vunpack.c.l.b16 %v4345
    %v4572 = vunpack.c.l.b16 %v4346
    %v4573 = vunpack.c.l.b16 %v4347
    %v4574 = vunpack.c.l.b16 %v4348
    %v4575 = vunpack.c.l.b16 %v4349
    %v4576 = vunpack.c.l.b16 %v4350
    %v4577 = vunpack.c.l.b16 %v4351
    %v4578 = vunpack.c.l.b16 %v4352
    %v4579 = vunpack.c.l.b16 %v4353
    %v4580 = vunpack.c.l.b16 %v4354
    %v4581 = vunpack.c.l.b16 %v4355
    %v4582 = vunpack.c.l.b16 %v4356
    %v4583 = vunpack.c.l.b16 %v4357
    %v4584 = vunpack.c.l.b16 %v4358
    %v4585 = vunpack.c.l.b16 %v4359
    %v4586 = vpack.c.b16 %v4571, %v4570
    %v4587 = vpack.c.b16 %v4573, %v4572
    %v4588 = vpack.c.b16 %v4575, %v4574
    %v4589 = vpack.c.b16 %v4577, %v4576
    %v4590 = vpack.c.b16 %v4579, %v4578
    %v4591 = vpack.c.b16 %v4581, %v4580
    %v4592 = vpack.c.b16 %v4583, %v4582
    %v4593 = vpack.c.b16 %v4585, %v4584
    %4602 = vmatprep.subr.bf16.mxu0 0
    %4603 = vmatpush1.bf16.msra.mxu0 %v4586
    %4604 = vmatprep.subr.bf16.mxu0 0
    %4605 = vmatpush1.bf16.msra.mxu0 %v4587
    %4606 = vmatprep.subr.bf16.mxu0 0
    %4607 = vmatpush1.bf16.msra.mxu0 %v4588
    %4608 = vmatprep.subr.bf16.mxu0 0
    %4609 = vmatpush1.bf16.msra.mxu0 %v4589
    %4610 = vmatprep.subr.bf16.mxu0 0
    %4611 = vmatpush1.bf16.msra.mxu0 %v4590
    %4612 = vmatprep.subr.bf16.mxu0 0
    %4613 = vmatpush1.bf16.msra.mxu0 %v4591
    %4614 = vmatprep.subr.bf16.mxu0 0
    %4615 = vmatpush1.bf16.msra.mxu0 %v4592
    %4616 = vmatprep.subr.bf16.mxu0 0
    %4617 = vmatpush1.bf16.msra.mxu0 %v4593
    %4618 = vmatprep.subr.bf16.mxu0 0
    %4619 = vmatpush1.bf16.msra.mxu0 0
    %4620 = vmatprep.subr.bf16.mxu0 0
    %4621 = vmatpush1.bf16.msra.mxu0 0
    %4622 = vmatprep.subr.bf16.mxu0 0
    %4623 = vmatpush1.bf16.msra.mxu0 0
    %4624 = vmatprep.subr.bf16.mxu0 0
    %4625 = vmatpush1.bf16.msra.mxu0 0
    %4626 = vmatprep.subr.bf16.mxu0 0
    %4627 = vmatpush1.bf16.msra.mxu0 0
    %4628 = vmatprep.subr.bf16.mxu0 0
    %4629 = vmatpush1.bf16.msra.mxu0 0
    %4630 = vmatprep.subr.bf16.mxu0 0
    %4631 = vmatpush1.bf16.msra.mxu0 0
    %4632 = vmatprep.subr.bf16.mxu0 0
    %4633 = vmatpush1.bf16.msra.mxu0 0
    %4634 = vmatprep.mubr.bf16.mxu0 0
    %4635 = vmatmul.mubr.bf16.gmra.mrb[0].mxu0 %v4294
    %v4636 = vpop.f32.mrb[0].mxu0
    %v4637 = vadd.f32 0.0, %v4636
    %v4638 = vpop.f32.mrb[0].mxu0
    %v4639 = vpop.f32.mrb[0].mxu0
    %v4640 = vadd.f32 0.0, %v4639
    %v4641 = vpop.f32.mrb[0].mxu0
    %4642 = vmatprep.mubr.bf16.mxu0 0
    %4643 = vmatmul.mubr.bf16.gmra.mrb[0].mxu0 %v4295
    %v4644 = vpop.f32.mrb[0].mxu0
    %v4645 = vadd.f32 0.0, %v4644
    %v4646 = vpop.f32.mrb[0].mxu0
    %v4647 = vpop.f32.mrb[0].mxu0
    %v4648 = vadd.f32 0.0, %v4647
    %v4649 = vpop.f32.mrb[0].mxu0
    %4650 = vdwg.mxu0
    %v4667 = vunpack.c.l.b16 %v4328
    %v4668 = vunpack.c.l.b16 %v4329
    %v4669 = vunpack.c.l.b16 %v4330
    %v4670 = vunpack.c.l.b16 %v4331
    %v4671 = vunpack.c.l.b16 %v4332
    %v4672 = vunpack.c.l.b16 %v4333
    %v4673 = vunpack.c.l.b16 %v4334
    %v4674 = vunpack.c.l.b16 %v4335
    %v4675 = vunpack.c.l.b16 %v4336
    %v4676 = vunpack.c.l.b16 %v4337
    %v4677 = vunpack.c.l.b16 %v4338
    %v4678 = vunpack.c.l.b16 %v4339
    %v4679 = vunpack.c.l.b16 %v4340
    %v4680 = vunpack.c.l.b16 %v4341
    %v4681 = vunpack.c.l.b16 %v4342
    %v4682 = vunpack.c.l.b16 %v4343
    %v4683 = vpack.c.b16 %v4668, %v4667
    %v4684 = vpack.c.b16 %v4670, %v4669
    %v4685 = vpack.c.b16 %v4672, %v4671
    %v4686 = vpack.c.b16 %v4674, %v4673
    %v4687 = vpack.c.b16 %v4676, %v4675
    %v4688 = vpack.c.b16 %v4678, %v4677
    %v4689 = vpack.c.b16 %v4680, %v4679
    %v4690 = vpack.c.b16 %v4682, %v4681
    %4699 = vmatprep.subr.bf16.mxu0 0
    %4700 = vmatpush1.bf16.msra.mxu0 %v4683
    %4701 = vmatprep.subr.bf16.mxu0 0
    %4702 = vmatpush1.bf16.msra.mxu0 %v4684
    %4703 = vmatprep.subr.bf16.mxu0 0
    %4704 = vmatpush1.bf16.msra.mxu0 %v4685
    %4705 = vmatprep.subr.bf16.mxu0 0
    %4706 = vmatpush1.bf16.msra.mxu0 %v4686
    %4707 = vmatprep.subr.bf16.mxu0 0
    %4708 = vmatpush1.bf16.msra.mxu0 %v4687
    %4709 = vmatprep.subr.bf16.mxu0 0
    %4710 = vmatpush1.bf16.msra.mxu0 %v4688
    %4711 = vmatprep.subr.bf16.mxu0 0
    %4712 = vmatpush1.bf16.msra.mxu0 %v4689
    %4713 = vmatprep.subr.bf16.mxu0 0
    %4714 = vmatpush1.bf16.msra.mxu0 %v4690
    %4715 = vmatprep.subr.bf16.mxu0 0
    %4716 = vmatpush1.bf16.msra.mxu0 0
    %4717 = vmatprep.subr.bf16.mxu0 0
    %4718 = vmatpush1.bf16.msra.mxu0 0
    %4719 = vmatprep.subr.bf16.mxu0 0
    %4720 = vmatpush1.bf16.msra.mxu0 0
    %4721 = vmatprep.subr.bf16.mxu0 0
    %4722 = vmatpush1.bf16.msra.mxu0 0
    %4723 = vmatprep.subr.bf16.mxu0 0
    %4724 = vmatpush1.bf16.msra.mxu0 0
    %4725 = vmatprep.subr.bf16.mxu0 0
    %4726 = vmatpush1.bf16.msra.mxu0 0
    %4727 = vmatprep.subr.bf16.mxu0 0
    %4728 = vmatpush1.bf16.msra.mxu0 0
    %4729 = vmatprep.subr.bf16.mxu0 0
    %4730 = vmatpush1.bf16.msra.mxu0 0
    %4731 = vmatprep.mubr.bf16.mxu0 0
    %4732 = vmatmul.mubr.bf16.gmra.mrb[0].mxu0 %v4280
    %v4733 = vpop.f32.mrb[0].mxu0
    %v4734 = vadd.f32 %v4637, %v4733
    %v4735 = vpop.f32.mrb[0].mxu0
    %v4736 = vpop.f32.mrb[0].mxu0
    %v4737 = vadd.f32 %v4640, %v4736
    %v4738 = vpop.f32.mrb[0].mxu0
    %4739 = vmatprep.mubr.bf16.mxu0 0
    %4740 = vmatmul.mubr.bf16.gmra.mrb[0].mxu0 %v4281
    %v4741 = vpop.f32.mrb[0].mxu0
    %v4742 = vadd.f32 %v4645, %v4741
    %v4743 = vpop.f32.mrb[0].mxu0
    %v4744 = vpop.f32.mrb[0].mxu0
    %v4745 = vadd.f32 %v4648, %v4744
    %v4746 = vpop.f32.mrb[0].mxu0
    %4747 = vdwg.mxu0
    %v4748 = vld [vmem:[%s11] sm:$0x1]
    %v4750 = vlaneseq
    %v4751 = vshrl.u32 %v4750, 7
    %v4752 = vsub.s32 0, %v4751
    %v4753 = vrot.slane %v4748, %v4752
    %v4755 = vadd.f32 %v4540, %v4753
    %v4756 = vadd.f32 %v4543, %v4753
    %v4757 = vadd.f32 %v4548, %v4753
    %v4758 = vadd.f32 %v4551, %v4753
    %v4759 = vtanh.pop %v4755
    %v4760 = vtanh.pop %v4756
    %v4761 = vtanh.pop %v4757
    %v4762 = vtanh.pop %v4758
    %v4763 = vadd.f32 %v4734, %v4753
    %v4764 = vadd.f32 %v4737, %v4753
    %v4765 = vadd.f32 %v4742, %v4753
    %v4766 = vadd.f32 %v4745, %v4753
    %v4767 = vtanh.pop %v4763
    %v4768 = vtanh.pop %v4764
    %v4769 = vtanh.pop %v4765
    %v4770 = vtanh.pop %v4766
    %4771 = vst [vmem:[%s12] sm:$0x1] %v4759
    %4772 = vst [vmem:[%s12 + $0x1] sm:$0x1] %v4767
    %4773 = vst [vmem:[%s12 + $0x1] sm:$0x2] %v4759
    %4774 = vst [vmem:[%s12 + $0x2] sm:$0x2] %v4767
    %4775 = vst [vmem:[%s12 + $0x2] sm:$0x4] %v4759
    %4776 = vst [vmem:[%s12 + $0x3] sm:$0x4] %v4767
    %4777 = vst [vmem:[%s12 + $0x3] sm:$0x8] %v4759
    %4778 = vst [vmem:[%s12 + $0x4] sm:$0x8] %v4767
    %4779 = vst [vmem:[%s12 + $0x4] sm:$0x10] %v4759
    %4780 = vst [vmem:[%s12 + $0x5] sm:$0x10] %v4767
    %4781 = vst [vmem:[%s12 + $0x5] sm:$0x20] %v4759
    %4782 = vst [vmem:[%s12 + $0x6] sm:$0x20] %v4767
    %4783 = vst [vmem:[%s12 + $0x6] sm:$0x40] %v4759
    %4784 = vst [vmem:[%s12 + $0x7] sm:$0x40] %v4767
    %4785 = vst [vmem:[%s12 + $0x7] sm:$0x80] %v4759
    %4786 = vst [vmem:[%s12 + $0x8] sm:$0x80] %v4767
    %4787 = vst [vmem:[%s12 + $0x10] sm:$0x1] %v4760
    %4788 = vst [vmem:[%s12 + $0x11] sm:$0x1] %v4768
    %4789 = vst [vmem:[%s12 + $0x11] sm:$0x2] %v4760
    %4790 = vst [vmem:[%s12 + $0x12] sm:$0x2] %v4768
    %4791 = vst [vmem:[%s12 + $0x12] sm:$0x4] %v4760
    %4792 = vst [vmem:[%s12 + $0x13] sm:$0x4] %v4768
    %4793 = vst [vmem:[%s12 + $0x13] sm:$0x8] %v4760
    %4794 = vst [vmem:[%s12 + $0x14] sm:$0x8] %v4768
    %4795 = vst [vmem:[%s12 + $0x14] sm:$0x10] %v4760
    %4796 = vst [vmem:[%s12 + $0x15] sm:$0x10] %v4768
    %4797 = vst [vmem:[%s12 + $0x15] sm:$0x20] %v4760
    %4798 = vst [vmem:[%s12 + $0x16] sm:$0x20] %v4768
    %4799 = vst [vmem:[%s12 + $0x16] sm:$0x40] %v4760
    %4800 = vst [vmem:[%s12 + $0x17] sm:$0x40] %v4768
    %4801 = vst [vmem:[%s12 + $0x17] sm:$0x80] %v4760
    %4802 = vst [vmem:[%s12 + $0x18] sm:$0x80] %v4768
    %4803 = vst [vmem:[%s12 + $0x20] sm:$0x1] %v4761
    %4804 = vst [vmem:[%s12 + $0x21] sm:$0x1] %v4769
    %4805 = vst [vmem:[%s12 + $0x21] sm:$0x2] %v4761
    %4806 = vst [vmem:[%s12 + $0x22] sm:$0x2] %v4769
    %4807 = vst [vmem:[%s12 + $0x22] sm:$0x4] %v4761
    %4808 = vst [vmem:[%s12 + $0x23] sm:$0x4] %v4769
    %4809 = vst [vmem:[%s12 + $0x23] sm:$0x8] %v4761
    %4810 = vst [vmem:[%s12 + $0x24] sm:$0x8] %v4769
    %4811 = vst [vmem:[%s12 + $0x24] sm:$0x10] %v4761
    %4812 = vst [vmem:[%s12 + $0x25] sm:$0x10] %v4769
    %4813 = vst [vmem:[%s12 + $0x25] sm:$0x20] %v4761
    %4814 = vst [vmem:[%s12 + $0x26] sm:$0x20] %v4769
    %4815 = vst [vmem:[%s12 + $0x26] sm:$0x40] %v4761
    %4816 = vst [vmem:[%s12 + $0x27] sm:$0x40] %v4769
    %4817 = vst [vmem:[%s12 + $0x27] sm:$0x80] %v4761
    %4818 = vst [vmem:[%s12 + $0x28] sm:$0x80] %v4769
    %4819 = vst [vmem:[%s12 + $0x30] sm:$0x1] %v4762
    %4820 = vst [vmem:[%s12 + $0x31] sm:$0x1] %v4770
    %4821 = vst [vmem:[%s12 + $0x31] sm:$0x2] %v4762
    %4822 = vst [vmem:[%s12 + $0x32] sm:$0x2] %v4770
    %4823 = vst [vmem:[%s12 + $0x32] sm:$0x4] %v4762
    %4824 = vst [vmem:[%s12 + $0x33] sm:$0x4] %v4770
    %4825 = vst [vmem:[%s12 + $0x33] sm:$0x8] %v4762
    %4826 = vst [vmem:[%s12 + $0x34] sm:$0x8] %v4770
    %4827 = vst [vmem:[%s12 + $0x34] sm:$0x10] %v4762
    %4828 = vst [vmem:[%s12 + $0x35] sm:$0x10] %v4770
    %4829 = vst [vmem:[%s12 + $0x35] sm:$0x20] %v4762
    %4830 = vst [vmem:[%s12 + $0x36] sm:$0x20] %v4770
    %4831 = vst [vmem:[%s12 + $0x36] sm:$0x40] %v4762
    %4832 = vst [vmem:[%s12 + $0x37] sm:$0x40] %v4770
    %4833 = vst [vmem:[%s12 + $0x37] sm:$0x80] %v4762
    %4834 = vst [vmem:[%s12 + $0x38] sm:$0x80] %v4770
    // Predicated region
    $region66: #{generator_forward.1} parent=1 // pred_check
      _
    $region67: #{generator_forward.1} parent=1 // pred_check_branch
      %4836 = sbr.rel (0) target = $region69
    $region68: #{generator_forward.1} parent=1 // pred_region
      _
    $region69: #{generator_forward.1} parent=1 // pred_fallthru
      _
    // Predicated region
    $region70: #{generator_forward.1} parent=1 // pred_check
      _
    $region71: #{generator_forward.1} parent=1 // pred_check_branch
      %4838 = sbr.rel (0) target = $region73
    $region72: #{generator_forward.1} parent=1 // pred_region
      _
    $region73: #{generator_forward.1} parent=1 // pred_fallthru
      _
    %4839 = vsyncpa [#allocation6], 1
    %4840 = vsyncpa [#allocation8], 1
    %4841 = vsyncpa [#allocation11], 1

</llo_original>
